<compile_context>
chip_gen: v7x
topology: tpu7x:2x2x1
jax: 0.10.0
libtpu: 0.0.40
codegen_flags: <defaults>
</compile_context>

<pallas_src>
import jax
import jax.numpy as jnp
from jax import lax
from jax.experimental import pallas as pl
from jax.experimental.pallas import tpu as pltpu


# --------------------------------------------------------------------------
# Fused Pallas kernel (one image per grid step)
# --------------------------------------------------------------------------
def _lenet_kernel(x_ref,              # (1, 32, 32, 3)  NHWC image
                  w1_ref, b1_ref,     # (75, 128), (1, 128)   conv1 (kh,kw,ci)->co
                  w2_ref, b2_ref,     # (150, 128), (1, 128)  conv2 (kh,kw,ci)->co
                  w3_ref, b3_ref,     # (5, 5, 16, 128), (1, 128)  fc1 per (h,w)
                  w4_ref, b4_ref,     # (128, 128), (1, 128)  fc2
                  w5_ref, b5_ref,     # (128, 128), (1, 128)  fc3
                  o_ref,              # (1, 1, 128)
                  lhs1_ref,           # scratch (28, 75)   conv1 im2col rows
                  t1_ref,             # scratch (28, 128)  pool1 temp
                  a1_ref,             # scratch (14, 14, 128) pooled conv1 (H,W,C)
                  lhs2_ref,           # scratch (10, 150)  conv2 im2col rows
                  t2_ref,             # scratch (10, 128)  pool2 temp
                  a2_ref):            # scratch (5, 5, 128) pooled conv2 (H,W,C)

    # ---------------- conv1 (3->6, k=5, 32->28) + ReLU + 2x2 max-pool --------
    def conv1_row(i):
        # Assemble im2col rows for conv1 output row i: (28 output cols, 75=kh*kw*ci)
        for di in range(5):
            for dj in range(5):
                c0 = (di * 5 + dj) * 3
                lhs1_ref[:, c0:c0 + 3] = x_ref[0, i + di, dj:dj + 28, :]
        y = jnp.dot(lhs1_ref[...], w1_ref[...],
                    preferred_element_type=jnp.float32) + b1_ref[...]
        return jnp.maximum(y, 0.0)                          # (28, 128)

    def pool1_body(io, carry):
        ya = conv1_row(2 * io)
        yb = conv1_row(2 * io + 1)
        t1_ref[...] = jnp.maximum(ya, yb)                   # max over the H pair
        a1_ref[io] = jnp.maximum(t1_ref[pl.ds(0, 14, 2), :],
                                 t1_ref[pl.ds(1, 14, 2), :])  # max over the W pair
        return carry

    lax.fori_loop(0, 14, pool1_body, 0)

    # ---------------- conv2 (6->16, k=5, 14->10) + ReLU + 2x2 max-pool -------
    def conv2_row(i):
        for di in range(5):
            for dj in range(5):
                c0 = (di * 5 + dj) * 6
                lhs2_ref[:, c0:c0 + 6] = a1_ref[i + di, dj:dj + 10, 0:6]
        y = jnp.dot(lhs2_ref[...], w2_ref[...],
                    preferred_element_type=jnp.float32) + b2_ref[...]
        return jnp.maximum(y, 0.0)                          # (10, 128)

    def pool2_body(io, carry):
        ya = conv2_row(2 * io)
        yb = conv2_row(2 * io + 1)
        t2_ref[...] = jnp.maximum(ya, yb)
        a2_ref[io] = jnp.maximum(t2_ref[pl.ds(0, 5, 2), :],
                                 t2_ref[pl.ds(1, 5, 2), :])
        return carry

    lax.fori_loop(0, 5, pool2_body, 0)

    # ---------------- fc1 (400->120) + ReLU -----------------------------------
    # PyTorch flattens NCHW, i.e. feature index = c*25 + h*5 + w.  That ordering
    # is folded into the pre-arranged fc1 weight blocks w3_ref[h, w] (16, 128),
    # so fc1 is a sum of 25 tiny (1,16)@(16,128) matmuls over (h, w).
    acc = b3_ref[...]                                       # (1, 128)
    for h in range(5):
        for w in range(5):
            acc = acc + jnp.dot(a2_ref[h, w:w + 1, 0:16], w3_ref[h, w],
                                preferred_element_type=jnp.float32)
    h1 = jnp.maximum(acc, 0.0)                              # (1, 128)

    # ---------------- fc2 (120->84) + ReLU, fc3 (84->100) ---------------------
    h2 = jnp.maximum(jnp.dot(h1, w4_ref[...],
                             preferred_element_type=jnp.float32) + b4_ref[...],
                     0.0)
    logits = jnp.dot(h2, w5_ref[...],
                     preferred_element_type=jnp.float32) + b5_ref[...]
    o_ref[0] = logits                                       # lane-dense (1,128) store


# --------------------------------------------------------------------------
# Wrapper: one-time weight re-layout + the fused pallas_call
# --------------------------------------------------------------------------
def _pad_to(x, shape):
    return jnp.pad(x, [(0, t - s) for s, t in zip(x.shape, shape)])


def preprocess_params(p):
    """Re-layout PyTorch-style params ONCE into matmul-ready, lane-padded form."""
    w1 = jnp.transpose(p["conv1_w"], (2, 3, 1, 0)).reshape(75, 6)     # (kh,kw,ci)->co
    w2 = jnp.transpose(p["conv2_w"], (2, 3, 1, 0)).reshape(150, 16)
    w3 = jnp.transpose(p["fc1_w"].reshape(120, 16, 5, 5), (2, 3, 1, 0))  # (h,w,c,co)
    return {
        "w1": _pad_to(w1.astype(jnp.float32), (75, 128)),
        "b1": _pad_to(p["conv1_b"].reshape(1, 6).astype(jnp.float32), (1, 128)),
        "w2": _pad_to(w2.astype(jnp.float32), (150, 128)),
        "b2": _pad_to(p["conv2_b"].reshape(1, 16).astype(jnp.float32), (1, 128)),
        "w3": _pad_to(w3.astype(jnp.float32), (5, 5, 16, 128)),
        "b3": _pad_to(p["fc1_b"].reshape(1, 120).astype(jnp.float32), (1, 128)),
        "w4": _pad_to(p["fc2_w"].T.astype(jnp.float32), (128, 128)),
        "b4": _pad_to(p["fc2_b"].reshape(1, 84).astype(jnp.float32), (1, 128)),
        "w5": _pad_to(p["fc3_w"].T.astype(jnp.float32), (128, 128)),
        "b5": _pad_to(p["fc3_b"].reshape(1, 100).astype(jnp.float32), (1, 128)),
    }


def lenet_cifar100_forward(prep, x_nchw):
    """x_nchw: (N, 3, 32, 32) float32 -> logits (N, 100)."""
    n = x_nchw.shape[0]
    x_nhwc = jnp.transpose(x_nchw.astype(jnp.float32), (0, 2, 3, 1))  # (N,32,32,3)

    const2 = lambda i: (0, 0)
    out = pl.pallas_call(
        _lenet_kernel,
        out_shape=jax.ShapeDtypeStruct((n, 1, 128), jnp.float32),
        grid=(n,),
        in_specs=[
            pl.BlockSpec((1, 32, 32, 3), lambda i: (i, 0, 0, 0)),
            pl.BlockSpec((75, 128), const2),
            pl.BlockSpec((1, 128), const2),
            pl.BlockSpec((150, 128), const2),
            pl.BlockSpec((1, 128), const2),
            pl.BlockSpec((5, 5, 16, 128), lambda i: (0, 0, 0, 0)),
            pl.BlockSpec((1, 128), const2),
            pl.BlockSpec((128, 128), const2),
            pl.BlockSpec((1, 128), const2),
            pl.BlockSpec((128, 128), const2),
            pl.BlockSpec((1, 128), const2),
        ],
        out_specs=pl.BlockSpec((1, 1, 128), lambda i: (i, 0, 0)),
        scratch_shapes=[
            pltpu.VMEM((28, 75), jnp.float32),
            pltpu.VMEM((28, 128), jnp.float32),
            pltpu.VMEM((14, 14, 128), jnp.float32),
            pltpu.VMEM((10, 150), jnp.float32),
            pltpu.VMEM((10, 128), jnp.float32),
            pltpu.VMEM((5, 5, 128), jnp.float32),
        ],
        compiler_params=pltpu.CompilerParams(
            dimension_semantics=("parallel",),
            vmem_limit_bytes=32 * 1024 * 1024,
        ),
    )(x_nhwc, prep["w1"], prep["b1"], prep["w2"], prep["b2"],
      prep["w3"], prep["b3"], prep["w4"], prep["b4"], prep["w5"], prep["b5"])

    return out.reshape(n, 128)[:, :100]


# --------------------------------------------------------------------------
# Pure-JAX reference for correctness check
# --------------------------------------------------------------------------
def reference_forward(params, x_nchw):
    def conv(x, w, b):
        y = lax.conv_general_dilated(
            x, w, window_strides=(1, 1), padding="VALID",
            dimension_numbers=("NCHW", "OIHW", "NCHW"))
        return jax.nn.relu(y + b[None, :, None, None])

    def pool(x):  # NCHW 2x2 max-pool
        n, c, h, w = x.shape
        return jnp.max(x.reshape(n, c, h // 2, 2, w // 2, 2), axis=(3, 5))

    x = pool(conv(x_nchw, params["conv1_w"], params["conv1_b"]))
    x = pool(conv(x, params["conv2_w"], params["conv2_b"]))
    x = x.reshape(x.shape[0], 16 * 5 * 5)
    x = jax.nn.relu(x @ params["fc1_w"].T + params["fc1_b"])
    x = jax.nn.relu(x @ params["fc2_w"].T + params["fc2_b"])
    return x @ params["fc3_w"].T + params["fc3_b"]


# --------------------------------------------------------------------------
def init_params(key, num_classes=100):
    ks = jax.random.split(key, 10)

    def u(k, shape, fan_in):
        bound = 1.0 / jnp.sqrt(fan_in)
        return jax.random.uniform(k, shape, jnp.float32, -bound, bound)

    return {
        "conv1_w": u(ks[0], (6, 3, 5, 5), 3 * 5 * 5),
        "conv1_b": u(ks[1], (6,), 3 * 5 * 5),
        "conv2_w": u(ks[2], (16, 6, 5, 5), 6 * 5 * 5),
        "conv2_b": u(ks[3], (16,), 6 * 5 * 5),
        "fc1_w":   u(ks[4], (120, 400), 400),
        "fc1_b":   u(ks[5], (120,), 400),
        "fc2_w":   u(ks[6], (84, 120), 120),
        "fc2_b":   u(ks[7], (84,), 120),
        "fc3_w":   u(ks[8], (num_classes, 84), 84),
        "fc3_b":   u(ks[9], (num_classes,), 84),
    }


if __name__ == "__main__":
    key = jax.random.PRNGKey(0)
    pkey, xkey = jax.random.split(key)
    params = init_params(pkey)
    prep = preprocess_params(params)          # one-time weight re-layout/padding

    # CIFAR-sized input (32x32 spatial is required by the 16*5*5 fc1); batch=2.
    x = jax.random.normal(xkey, (2, 3, 32, 32), jnp.float32)

    fwd = jax.jit(lenet_cifar100_forward)
    logits = jax.block_until_ready(fwd(prep, x))
    ref = jax.block_until_ready(reference_forward(params, x))

    assert logits.shape == (2, 100), logits.shape
    max_err = float(jnp.max(jnp.abs(logits - ref)))
    assert jnp.allclose(logits, ref, atol=1e-3, rtol=1e-3), max_err
    print("KERNEL_OK")
</pallas_src>

<mosaic_0001>
module attributes {stable_mosaic.version = 11 : i64} {
  func.func @_lenet_kernel(%arg0: i32, %arg1: memref<1x32x32x3xf32, #tpu.memory_space<vmem>>, %arg2: memref<75x128xf32, #tpu.memory_space<vmem>>, %arg3: memref<1x128xf32, #tpu.memory_space<vmem>>, %arg4: memref<150x128xf32, #tpu.memory_space<vmem>>, %arg5: memref<1x128xf32, #tpu.memory_space<vmem>>, %arg6: memref<5x5x16x128xf32, #tpu.memory_space<vmem>>, %arg7: memref<1x128xf32, #tpu.memory_space<vmem>>, %arg8: memref<128x128xf32, #tpu.memory_space<vmem>>, %arg9: memref<1x128xf32, #tpu.memory_space<vmem>>, %arg10: memref<128x128xf32, #tpu.memory_space<vmem>>, %arg11: memref<1x128xf32, #tpu.memory_space<vmem>>, %arg12: memref<1x1x128xf32, #tpu.memory_space<vmem>>, %arg13: memref<28x75xf32, #tpu.memory_space<vmem>>, %arg14: memref<28x128xf32, #tpu.memory_space<vmem>>, %arg15: memref<14x14x128xf32, #tpu.memory_space<vmem>>, %arg16: memref<10x150xf32, #tpu.memory_space<vmem>>, %arg17: memref<10x128xf32, #tpu.memory_space<vmem>>, %arg18: memref<5x5x128xf32, #tpu.memory_space<vmem>>) attributes {dimension_semantics = [#tpu.dimension_semantics<parallel>], iteration_bounds = array<i64: 2>, scalar_prefetch = 0 : i64, scratch_operands = 6 : i64, tpu.core_type = #tpu.core_type<tc>, window_params = [{transform_indices = @transform_0, window_bounds = array<i64: 1, 32, 32, 3>}, {pipeline_mode = #tpu.pipeline_mode<synchronous>, transform_indices = @transform_1, window_bounds = array<i64: 75, 128>}, {pipeline_mode = #tpu.pipeline_mode<synchronous>, transform_indices = @transform_2, window_bounds = array<i64: 1, 128>}, {pipeline_mode = #tpu.pipeline_mode<synchronous>, transform_indices = @transform_3, window_bounds = array<i64: 150, 128>}, {pipeline_mode = #tpu.pipeline_mode<synchronous>, transform_indices = @transform_4, window_bounds = array<i64: 1, 128>}, {pipeline_mode = #tpu.pipeline_mode<synchronous>, transform_indices = @transform_5, window_bounds = array<i64: 5, 5, 16, 128>}, {pipeline_mode = #tpu.pipeline_mode<synchronous>, transform_indices = @transform_6, window_bounds = array<i64: 1, 128>}, {pipeline_mode = #tpu.pipeline_mode<synchronous>, transform_indices = @transform_7, window_bounds = array<i64: 128, 128>}, {pipeline_mode = #tpu.pipeline_mode<synchronous>, transform_indices = @transform_8, window_bounds = array<i64: 1, 128>}, {pipeline_mode = #tpu.pipeline_mode<synchronous>, transform_indices = @transform_9, window_bounds = array<i64: 128, 128>}, {pipeline_mode = #tpu.pipeline_mode<synchronous>, transform_indices = @transform_10, window_bounds = array<i64: 1, 128>}, {transform_indices = @transform_11, window_bounds = array<i64: 1, 1, 128>}]} {
    %c0_i32 = arith.constant 0 : i32
    %c14_i32 = arith.constant 14 : i32
    %0 = arith.addi %c0_i32, %c14_i32 : i32
    %c1_i32 = arith.constant 1 : i32
    scf.for %arg19 = %c0_i32 to %0 step %c1_i32  : i32 {
      %c2_i32 = arith.constant 2 : i32
      %168 = arith.muli %c2_i32, %arg19 : i32
      %c0_i32_215 = arith.constant 0 : i32
      %169 = arith.addi %168, %c0_i32_215 : i32
      %c0_216 = arith.constant 0 : index
      %170 = arith.index_cast %169 : i32 to index
      %c0_217 = arith.constant 0 : index
      %c0_218 = arith.constant 0 : index
      %171 = vector.load %arg1[%c0_216, %170, %c0_217, %c0_218] : memref<1x32x32x3xf32, #tpu.memory_space<vmem>>, vector<1x1x28x3xf32>
      %172 = vector.shape_cast %171 : vector<1x1x28x3xf32> to vector<28x3xf32>
      %c0_219 = arith.constant 0 : index
      %c0_220 = arith.constant 0 : index
      %173 = vector.load %arg13[%c0_219, %c0_220] : memref<28x75xf32, #tpu.memory_space<vmem>>, vector<28x3xf32>
      tpu.vector_store %arg13[%c0_219, %c0_220], %172 {strides = array<i32>} : memref<28x75xf32, #tpu.memory_space<vmem>>, vector<28x3xf32>,
      %c0_i32_221 = arith.constant 0 : i32
      %174 = arith.addi %168, %c0_i32_221 : i32
      %c0_222 = arith.constant 0 : index
      %175 = arith.index_cast %174 : i32 to index
      %c1_223 = arith.constant 1 : index
      %c0_224 = arith.constant 0 : index
      %176 = vector.load %arg1[%c0_222, %175, %c1_223, %c0_224] : memref<1x32x32x3xf32, #tpu.memory_space<vmem>>, vector<1x1x28x3xf32>
      %177 = vector.shape_cast %176 : vector<1x1x28x3xf32> to vector<28x3xf32>
      %c0_225 = arith.constant 0 : index
      %c3_226 = arith.constant 3 : index
      %178 = vector.load %arg13[%c0_225, %c3_226] : memref<28x75xf32, #tpu.memory_space<vmem>>, vector<28x3xf32>
      tpu.vector_store %arg13[%c0_225, %c3_226], %177 {strides = array<i32>} : memref<28x75xf32, #tpu.memory_space<vmem>>, vector<28x3xf32>,
      %c0_i32_227 = arith.constant 0 : i32
      %179 = arith.addi %168, %c0_i32_227 : i32
      %c0_228 = arith.constant 0 : index
      %180 = arith.index_cast %179 : i32 to index
      %c2_229 = arith.constant 2 : index
      %c0_230 = arith.constant 0 : index
      %181 = vector.load %arg1[%c0_228, %180, %c2_229, %c0_230] : memref<1x32x32x3xf32, #tpu.memory_space<vmem>>, vector<1x1x28x3xf32>
      %182 = vector.shape_cast %181 : vector<1x1x28x3xf32> to vector<28x3xf32>
      %c0_231 = arith.constant 0 : index
      %c6 = arith.constant 6 : index
      %183 = vector.load %arg13[%c0_231, %c6] : memref<28x75xf32, #tpu.memory_space<vmem>>, vector<28x3xf32>
      tpu.vector_store %arg13[%c0_231, %c6], %182 {strides = array<i32>} : memref<28x75xf32, #tpu.memory_space<vmem>>, vector<28x3xf32>,
      %c0_i32_232 = arith.constant 0 : i32
      %184 = arith.addi %168, %c0_i32_232 : i32
      %c0_233 = arith.constant 0 : index
      %185 = arith.index_cast %184 : i32 to index
      %c3_234 = arith.constant 3 : index
      %c0_235 = arith.constant 0 : index
      %186 = vector.load %arg1[%c0_233, %185, %c3_234, %c0_235] : memref<1x32x32x3xf32, #tpu.memory_space<vmem>>, vector<1x1x28x3xf32>
      %187 = vector.shape_cast %186 : vector<1x1x28x3xf32> to vector<28x3xf32>
      %c0_236 = arith.constant 0 : index
      %c9 = arith.constant 9 : index
      %188 = vector.load %arg13[%c0_236, %c9] : memref<28x75xf32, #tpu.memory_space<vmem>>, vector<28x3xf32>
      tpu.vector_store %arg13[%c0_236, %c9], %187 {strides = array<i32>} : memref<28x75xf32, #tpu.memory_space<vmem>>, vector<28x3xf32>,
      %c0_i32_237 = arith.constant 0 : i32
      %189 = arith.addi %168, %c0_i32_237 : i32
      %c0_238 = arith.constant 0 : index
      %190 = arith.index_cast %189 : i32 to index
      %c4_239 = arith.constant 4 : index
      %c0_240 = arith.constant 0 : index
      %191 = vector.load %arg1[%c0_238, %190, %c4_239, %c0_240] : memref<1x32x32x3xf32, #tpu.memory_space<vmem>>, vector<1x1x28x3xf32>
      %192 = vector.shape_cast %191 : vector<1x1x28x3xf32> to vector<28x3xf32>
      %c0_241 = arith.constant 0 : index
      %c12 = arith.constant 12 : index
      %193 = vector.load %arg13[%c0_241, %c12] : memref<28x75xf32, #tpu.memory_space<vmem>>, vector<28x3xf32>
      tpu.vector_store %arg13[%c0_241, %c12], %192 {strides = array<i32>} : memref<28x75xf32, #tpu.memory_space<vmem>>, vector<28x3xf32>,
      %c1_i32_242 = arith.constant 1 : i32
      %194 = arith.addi %168, %c1_i32_242 : i32
      %c0_243 = arith.constant 0 : index
      %195 = arith.index_cast %194 : i32 to index
      %c0_244 = arith.constant 0 : index
      %c0_245 = arith.constant 0 : index
      %196 = vector.load %arg1[%c0_243, %195, %c0_244, %c0_245] : memref<1x32x32x3xf32, #tpu.memory_space<vmem>>, vector<1x1x28x3xf32>
      %197 = vector.shape_cast %196 : vector<1x1x28x3xf32> to vector<28x3xf32>
      %c0_246 = arith.constant 0 : index
      %c15 = arith.constant 15 : index
      %198 = vector.load %arg13[%c0_246, %c15] : memref<28x75xf32, #tpu.memory_space<vmem>>, vector<28x3xf32>
      tpu.vector_store %arg13[%c0_246, %c15], %197 {strides = array<i32>} : memref<28x75xf32, #tpu.memory_space<vmem>>, vector<28x3xf32>,
      %c1_i32_247 = arith.constant 1 : i32
      %199 = arith.addi %168, %c1_i32_247 : i32
      %c0_248 = arith.constant 0 : index
      %200 = arith.index_cast %199 : i32 to index
      %c1_249 = arith.constant 1 : index
      %c0_250 = arith.constant 0 : index
      %201 = vector.load %arg1[%c0_248, %200, %c1_249, %c0_250] : memref<1x32x32x3xf32, #tpu.memory_space<vmem>>, vector<1x1x28x3xf32>
      %202 = vector.shape_cast %201 : vector<1x1x28x3xf32> to vector<28x3xf32>
      %c0_251 = arith.constant 0 : index
      %c18 = arith.constant 18 : index
      %203 = vector.load %arg13[%c0_251, %c18] : memref<28x75xf32, #tpu.memory_space<vmem>>, vector<28x3xf32>
      tpu.vector_store %arg13[%c0_251, %c18], %202 {strides = array<i32>} : memref<28x75xf32, #tpu.memory_space<vmem>>, vector<28x3xf32>,
      %c1_i32_252 = arith.constant 1 : i32
      %204 = arith.addi %168, %c1_i32_252 : i32
      %c0_253 = arith.constant 0 : index
      %205 = arith.index_cast %204 : i32 to index
      %c2_254 = arith.constant 2 : index
      %c0_255 = arith.constant 0 : index
      %206 = vector.load %arg1[%c0_253, %205, %c2_254, %c0_255] : memref<1x32x32x3xf32, #tpu.memory_space<vmem>>, vector<1x1x28x3xf32>
      %207 = vector.shape_cast %206 : vector<1x1x28x3xf32> to vector<28x3xf32>
      %c0_256 = arith.constant 0 : index
      %c21 = arith.constant 21 : index
      %208 = vector.load %arg13[%c0_256, %c21] : memref<28x75xf32, #tpu.memory_space<vmem>>, vector<28x3xf32>
      tpu.vector_store %arg13[%c0_256, %c21], %207 {strides = array<i32>} : memref<28x75xf32, #tpu.memory_space<vmem>>, vector<28x3xf32>,
      %c1_i32_257 = arith.constant 1 : i32
      %209 = arith.addi %168, %c1_i32_257 : i32
      %c0_258 = arith.constant 0 : index
      %210 = arith.index_cast %209 : i32 to index
      %c3_259 = arith.constant 3 : index
      %c0_260 = arith.constant 0 : index
      %211 = vector.load %arg1[%c0_258, %210, %c3_259, %c0_260] : memref<1x32x32x3xf32, #tpu.memory_space<vmem>>, vector<1x1x28x3xf32>
      %212 = vector.shape_cast %211 : vector<1x1x28x3xf32> to vector<28x3xf32>
      %c0_261 = arith.constant 0 : index
      %c24 = arith.constant 24 : index
      %213 = vector.load %arg13[%c0_261, %c24] : memref<28x75xf32, #tpu.memory_space<vmem>>, vector<28x3xf32>
      tpu.vector_store %arg13[%c0_261, %c24], %212 {strides = array<i32>} : memref<28x75xf32, #tpu.memory_space<vmem>>, vector<28x3xf32>,
      %c1_i32_262 = arith.constant 1 : i32
      %214 = arith.addi %168, %c1_i32_262 : i32
      %c0_263 = arith.constant 0 : index
      %215 = arith.index_cast %214 : i32 to index
      %c4_264 = arith.constant 4 : index
      %c0_265 = arith.constant 0 : index
      %216 = vector.load %arg1[%c0_263, %215, %c4_264, %c0_265] : memref<1x32x32x3xf32, #tpu.memory_space<vmem>>, vector<1x1x28x3xf32>
      %217 = vector.shape_cast %216 : vector<1x1x28x3xf32> to vector<28x3xf32>
      %c0_266 = arith.constant 0 : index
      %c27 = arith.constant 27 : index
      %218 = vector.load %arg13[%c0_266, %c27] : memref<28x75xf32, #tpu.memory_space<vmem>>, vector<28x3xf32>
      tpu.vector_store %arg13[%c0_266, %c27], %217 {strides = array<i32>} : memref<28x75xf32, #tpu.memory_space<vmem>>, vector<28x3xf32>,
      %c2_i32_267 = arith.constant 2 : i32
      %219 = arith.addi %168, %c2_i32_267 : i32
      %c0_268 = arith.constant 0 : index
      %220 = arith.index_cast %219 : i32 to index
      %c0_269 = arith.constant 0 : index
      %c0_270 = arith.constant 0 : index
      %221 = vector.load %arg1[%c0_268, %220, %c0_269, %c0_270] : memref<1x32x32x3xf32, #tpu.memory_space<vmem>>, vector<1x1x28x3xf32>
      %222 = vector.shape_cast %221 : vector<1x1x28x3xf32> to vector<28x3xf32>
      %c0_271 = arith.constant 0 : index
      %c30 = arith.constant 30 : index
      %223 = vector.load %arg13[%c0_271, %c30] : memref<28x75xf32, #tpu.memory_space<vmem>>, vector<28x3xf32>
      tpu.vector_store %arg13[%c0_271, %c30], %222 {strides = array<i32>} : memref<28x75xf32, #tpu.memory_space<vmem>>, vector<28x3xf32>,
      %c2_i32_272 = arith.constant 2 : i32
      %224 = arith.addi %168, %c2_i32_272 : i32
      %c0_273 = arith.constant 0 : index
      %225 = arith.index_cast %224 : i32 to index
      %c1_274 = arith.constant 1 : index
      %c0_275 = arith.constant 0 : index
      %226 = vector.load %arg1[%c0_273, %225, %c1_274, %c0_275] : memref<1x32x32x3xf32, #tpu.memory_space<vmem>>, vector<1x1x28x3xf32>
      %227 = vector.shape_cast %226 : vector<1x1x28x3xf32> to vector<28x3xf32>
      %c0_276 = arith.constant 0 : index
      %c33 = arith.constant 33 : index
      %228 = vector.load %arg13[%c0_276, %c33] : memref<28x75xf32, #tpu.memory_space<vmem>>, vector<28x3xf32>
      tpu.vector_store %arg13[%c0_276, %c33], %227 {strides = array<i32>} : memref<28x75xf32, #tpu.memory_space<vmem>>, vector<28x3xf32>,
      %c2_i32_277 = arith.constant 2 : i32
      %229 = arith.addi %168, %c2_i32_277 : i32
      %c0_278 = arith.constant 0 : index
      %230 = arith.index_cast %229 : i32 to index
      %c2_279 = arith.constant 2 : index
      %c0_280 = arith.constant 0 : index
      %231 = vector.load %arg1[%c0_278, %230, %c2_279, %c0_280] : memref<1x32x32x3xf32, #tpu.memory_space<vmem>>, vector<1x1x28x3xf32>
      %232 = vector.shape_cast %231 : vector<1x1x28x3xf32> to vector<28x3xf32>
      %c0_281 = arith.constant 0 : index
      %c36 = arith.constant 36 : index
      %233 = vector.load %arg13[%c0_281, %c36] : memref<28x75xf32, #tpu.memory_space<vmem>>, vector<28x3xf32>
      tpu.vector_store %arg13[%c0_281, %c36], %232 {strides = array<i32>} : memref<28x75xf32, #tpu.memory_space<vmem>>, vector<28x3xf32>,
      %c2_i32_282 = arith.constant 2 : i32
      %234 = arith.addi %168, %c2_i32_282 : i32
      %c0_283 = arith.constant 0 : index
      %235 = arith.index_cast %234 : i32 to index
      %c3_284 = arith.constant 3 : index
      %c0_285 = arith.constant 0 : index
      %236 = vector.load %arg1[%c0_283, %235, %c3_284, %c0_285] : memref<1x32x32x3xf32, #tpu.memory_space<vmem>>, vector<1x1x28x3xf32>
      %237 = vector.shape_cast %236 : vector<1x1x28x3xf32> to vector<28x3xf32>
      %c0_286 = arith.constant 0 : index
      %c39 = arith.constant 39 : index
      %238 = vector.load %arg13[%c0_286, %c39] : memref<28x75xf32, #tpu.memory_space<vmem>>, vector<28x3xf32>
      tpu.vector_store %arg13[%c0_286, %c39], %237 {strides = array<i32>} : memref<28x75xf32, #tpu.memory_space<vmem>>, vector<28x3xf32>,
      %c2_i32_287 = arith.constant 2 : i32
      %239 = arith.addi %168, %c2_i32_287 : i32
      %c0_288 = arith.constant 0 : index
      %240 = arith.index_cast %239 : i32 to index
      %c4_289 = arith.constant 4 : index
      %c0_290 = arith.constant 0 : index
      %241 = vector.load %arg1[%c0_288, %240, %c4_289, %c0_290] : memref<1x32x32x3xf32, #tpu.memory_space<vmem>>, vector<1x1x28x3xf32>
      %242 = vector.shape_cast %241 : vector<1x1x28x3xf32> to vector<28x3xf32>
      %c0_291 = arith.constant 0 : index
      %c42 = arith.constant 42 : index
      %243 = vector.load %arg13[%c0_291, %c42] : memref<28x75xf32, #tpu.memory_space<vmem>>, vector<28x3xf32>
      tpu.vector_store %arg13[%c0_291, %c42], %242 {strides = array<i32>} : memref<28x75xf32, #tpu.memory_space<vmem>>, vector<28x3xf32>,
      %c3_i32 = arith.constant 3 : i32
      %244 = arith.addi %168, %c3_i32 : i32
      %c0_292 = arith.constant 0 : index
      %245 = arith.index_cast %244 : i32 to index
      %c0_293 = arith.constant 0 : index
      %c0_294 = arith.constant 0 : index
      %246 = vector.load %arg1[%c0_292, %245, %c0_293, %c0_294] : memref<1x32x32x3xf32, #tpu.memory_space<vmem>>, vector<1x1x28x3xf32>
      %247 = vector.shape_cast %246 : vector<1x1x28x3xf32> to vector<28x3xf32>
      %c0_295 = arith.constant 0 : index
      %c45 = arith.constant 45 : index
      %248 = vector.load %arg13[%c0_295, %c45] : memref<28x75xf32, #tpu.memory_space<vmem>>, vector<28x3xf32>
      tpu.vector_store %arg13[%c0_295, %c45], %247 {strides = array<i32>} : memref<28x75xf32, #tpu.memory_space<vmem>>, vector<28x3xf32>,
      %c3_i32_296 = arith.constant 3 : i32
      %249 = arith.addi %168, %c3_i32_296 : i32
      %c0_297 = arith.constant 0 : index
      %250 = arith.index_cast %249 : i32 to index
      %c1_298 = arith.constant 1 : index
      %c0_299 = arith.constant 0 : index
      %251 = vector.load %arg1[%c0_297, %250, %c1_298, %c0_299] : memref<1x32x32x3xf32, #tpu.memory_space<vmem>>, vector<1x1x28x3xf32>
      %252 = vector.shape_cast %251 : vector<1x1x28x3xf32> to vector<28x3xf32>
      %c0_300 = arith.constant 0 : index
      %c48 = arith.constant 48 : index
      %253 = vector.load %arg13[%c0_300, %c48] : memref<28x75xf32, #tpu.memory_space<vmem>>, vector<28x3xf32>
      tpu.vector_store %arg13[%c0_300, %c48], %252 {strides = array<i32>} : memref<28x75xf32, #tpu.memory_space<vmem>>, vector<28x3xf32>,
      %c3_i32_301 = arith.constant 3 : i32
      %254 = arith.addi %168, %c3_i32_301 : i32
      %c0_302 = arith.constant 0 : index
      %255 = arith.index_cast %254 : i32 to index
      %c2_303 = arith.constant 2 : index
      %c0_304 = arith.constant 0 : index
      %256 = vector.load %arg1[%c0_302, %255, %c2_303, %c0_304] : memref<1x32x32x3xf32, #tpu.memory_space<vmem>>, vector<1x1x28x3xf32>
      %257 = vector.shape_cast %256 : vector<1x1x28x3xf32> to vector<28x3xf32>
      %c0_305 = arith.constant 0 : index
      %c51 = arith.constant 51 : index
      %258 = vector.load %arg13[%c0_305, %c51] : memref<28x75xf32, #tpu.memory_space<vmem>>, vector<28x3xf32>
      tpu.vector_store %arg13[%c0_305, %c51], %257 {strides = array<i32>} : memref<28x75xf32, #tpu.memory_space<vmem>>, vector<28x3xf32>,
      %c3_i32_306 = arith.constant 3 : i32
      %259 = arith.addi %168, %c3_i32_306 : i32
      %c0_307 = arith.constant 0 : index
      %260 = arith.index_cast %259 : i32 to index
      %c3_308 = arith.constant 3 : index
      %c0_309 = arith.constant 0 : index
      %261 = vector.load %arg1[%c0_307, %260, %c3_308, %c0_309] : memref<1x32x32x3xf32, #tpu.memory_space<vmem>>, vector<1x1x28x3xf32>
      %262 = vector.shape_cast %261 : vector<1x1x28x3xf32> to vector<28x3xf32>
      %c0_310 = arith.constant 0 : index
      %c54 = arith.constant 54 : index
      %263 = vector.load %arg13[%c0_310, %c54] : memref<28x75xf32, #tpu.memory_space<vmem>>, vector<28x3xf32>
      tpu.vector_store %arg13[%c0_310, %c54], %262 {strides = array<i32>} : memref<28x75xf32, #tpu.memory_space<vmem>>, vector<28x3xf32>,
      %c3_i32_311 = arith.constant 3 : i32
      %264 = arith.addi %168, %c3_i32_311 : i32
      %c0_312 = arith.constant 0 : index
      %265 = arith.index_cast %264 : i32 to index
      %c4_313 = arith.constant 4 : index
      %c0_314 = arith.constant 0 : index
      %266 = vector.load %arg1[%c0_312, %265, %c4_313, %c0_314] : memref<1x32x32x3xf32, #tpu.memory_space<vmem>>, vector<1x1x28x3xf32>
      %267 = vector.shape_cast %266 : vector<1x1x28x3xf32> to vector<28x3xf32>
      %c0_315 = arith.constant 0 : index
      %c57 = arith.constant 57 : index
      %268 = vector.load %arg13[%c0_315, %c57] : memref<28x75xf32, #tpu.memory_space<vmem>>, vector<28x3xf32>
      tpu.vector_store %arg13[%c0_315, %c57], %267 {strides = array<i32>} : memref<28x75xf32, #tpu.memory_space<vmem>>, vector<28x3xf32>,
      %c4_i32 = arith.constant 4 : i32
      %269 = arith.addi %168, %c4_i32 : i32
      %c0_316 = arith.constant 0 : index
      %270 = arith.index_cast %269 : i32 to index
      %c0_317 = arith.constant 0 : index
      %c0_318 = arith.constant 0 : index
      %271 = vector.load %arg1[%c0_316, %270, %c0_317, %c0_318] : memref<1x32x32x3xf32, #tpu.memory_space<vmem>>, vector<1x1x28x3xf32>
      %272 = vector.shape_cast %271 : vector<1x1x28x3xf32> to vector<28x3xf32>
      %c0_319 = arith.constant 0 : index
      %c60 = arith.constant 60 : index
      %273 = vector.load %arg13[%c0_319, %c60] : memref<28x75xf32, #tpu.memory_space<vmem>>, vector<28x3xf32>
      tpu.vector_store %arg13[%c0_319, %c60], %272 {strides = array<i32>} : memref<28x75xf32, #tpu.memory_space<vmem>>, vector<28x3xf32>,
      %c4_i32_320 = arith.constant 4 : i32
      %274 = arith.addi %168, %c4_i32_320 : i32
      %c0_321 = arith.constant 0 : index
      %275 = arith.index_cast %274 : i32 to index
      %c1_322 = arith.constant 1 : index
      %c0_323 = arith.constant 0 : index
      %276 = vector.load %arg1[%c0_321, %275, %c1_322, %c0_323] : memref<1x32x32x3xf32, #tpu.memory_space<vmem>>, vector<1x1x28x3xf32>
      %277 = vector.shape_cast %276 : vector<1x1x28x3xf32> to vector<28x3xf32>
      %c0_324 = arith.constant 0 : index
      %c63 = arith.constant 63 : index
      %278 = vector.load %arg13[%c0_324, %c63] : memref<28x75xf32, #tpu.memory_space<vmem>>, vector<28x3xf32>
      tpu.vector_store %arg13[%c0_324, %c63], %277 {strides = array<i32>} : memref<28x75xf32, #tpu.memory_space<vmem>>, vector<28x3xf32>,
      %c4_i32_325 = arith.constant 4 : i32
      %279 = arith.addi %168, %c4_i32_325 : i32
      %c0_326 = arith.constant 0 : index
      %280 = arith.index_cast %279 : i32 to index
      %c2_327 = arith.constant 2 : index
      %c0_328 = arith.constant 0 : index
      %281 = vector.load %arg1[%c0_326, %280, %c2_327, %c0_328] : memref<1x32x32x3xf32, #tpu.memory_space<vmem>>, vector<1x1x28x3xf32>
      %282 = vector.shape_cast %281 : vector<1x1x28x3xf32> to vector<28x3xf32>
      %c0_329 = arith.constant 0 : index
      %c66 = arith.constant 66 : index
      %283 = vector.load %arg13[%c0_329, %c66] : memref<28x75xf32, #tpu.memory_space<vmem>>, vector<28x3xf32>
      tpu.vector_store %arg13[%c0_329, %c66], %282 {strides = array<i32>} : memref<28x75xf32, #tpu.memory_space<vmem>>, vector<28x3xf32>,
      %c4_i32_330 = arith.constant 4 : i32
      %284 = arith.addi %168, %c4_i32_330 : i32
      %c0_331 = arith.constant 0 : index
      %285 = arith.index_cast %284 : i32 to index
      %c3_332 = arith.constant 3 : index
      %c0_333 = arith.constant 0 : index
      %286 = vector.load %arg1[%c0_331, %285, %c3_332, %c0_333] : memref<1x32x32x3xf32, #tpu.memory_space<vmem>>, vector<1x1x28x3xf32>
      %287 = vector.shape_cast %286 : vector<1x1x28x3xf32> to vector<28x3xf32>
      %c0_334 = arith.constant 0 : index
      %c69 = arith.constant 69 : index
      %288 = vector.load %arg13[%c0_334, %c69] : memref<28x75xf32, #tpu.memory_space<vmem>>, vector<28x3xf32>
      tpu.vector_store %arg13[%c0_334, %c69], %287 {strides = array<i32>} : memref<28x75xf32, #tpu.memory_space<vmem>>, vector<28x3xf32>,
      %c4_i32_335 = arith.constant 4 : i32
      %289 = arith.addi %168, %c4_i32_335 : i32
      %c0_336 = arith.constant 0 : index
      %290 = arith.index_cast %289 : i32 to index
      %c4_337 = arith.constant 4 : index
      %c0_338 = arith.constant 0 : index
      %291 = vector.load %arg1[%c0_336, %290, %c4_337, %c0_338] : memref<1x32x32x3xf32, #tpu.memory_space<vmem>>, vector<1x1x28x3xf32>
      %292 = vector.shape_cast %291 : vector<1x1x28x3xf32> to vector<28x3xf32>
      %c0_339 = arith.constant 0 : index
      %c72 = arith.constant 72 : index
      %293 = vector.load %arg13[%c0_339, %c72] : memref<28x75xf32, #tpu.memory_space<vmem>>, vector<28x3xf32>
      tpu.vector_store %arg13[%c0_339, %c72], %292 {strides = array<i32>} : memref<28x75xf32, #tpu.memory_space<vmem>>, vector<28x3xf32>,
      %c0_340 = arith.constant 0 : index
      %c0_341 = arith.constant 0 : index
      %294 = vector.load %arg13[%c0_340, %c0_341] : memref<28x75xf32, #tpu.memory_space<vmem>>, vector<28x75xf32>
      %c0_342 = arith.constant 0 : index
      %c0_343 = arith.constant 0 : index
      %295 = vector.load %arg2[%c0_342, %c0_343] : memref<75x128xf32, #tpu.memory_space<vmem>>, vector<75x128xf32>
      %cst_344 = arith.constant dense<0.000000e+00> : vector<28x128xf32>
      %296 = tpu.matmul %294, %295, %cst_344 {dimension_numbers = #tpu.dot_dimension_numbers<[1], [0], [0], [1], [0, 0, 1, 1], [], []>} : vector<28x75xf32>, vector<75x128xf32>, vector<28x128xf32> -> vector<28x128xf32>
      %c0_345 = arith.constant 0 : index
      %c0_346 = arith.constant 0 : index
      %297 = vector.load %arg3[%c0_345, %c0_346] : memref<1x128xf32, #tpu.memory_space<vmem>>, vector<1x128xf32>
      %298 = vector.broadcast %297 : vector<1x128xf32> to vector<28x128xf32>
      %299 = arith.addf %296, %298 : vector<28x128xf32>
      %cst_347 = arith.constant 0.000000e+00 : f32
      %300 = vector.broadcast %cst_347 : f32 to vector<28x128xf32>
      %301 = arith.maximumf %299, %300 : vector<28x128xf32>
      %c2_i32_348 = arith.constant 2 : i32
      %302 = arith.muli %c2_i32_348, %arg19 : i32
      %c1_i32_349 = arith.constant 1 : i32
      %303 = arith.addi %302, %c1_i32_349 : i32
      %c0_i32_350 = arith.constant 0 : i32
      %304 = arith.addi %303, %c0_i32_350 : i32
      %c0_351 = arith.constant 0 : index
      %305 = arith.index_cast %304 : i32 to index
      %c0_352 = arith.constant 0 : index
      %c0_353 = arith.constant 0 : index
      %306 = vector.load %arg1[%c0_351, %305, %c0_352, %c0_353] : memref<1x32x32x3xf32, #tpu.memory_space<vmem>>, vector<1x1x28x3xf32>
      %307 = vector.shape_cast %306 : vector<1x1x28x3xf32> to vector<28x3xf32>
      %c0_354 = arith.constant 0 : index
      %c0_355 = arith.constant 0 : index
      %308 = vector.load %arg13[%c0_354, %c0_355] : memref<28x75xf32, #tpu.memory_space<vmem>>, vector<28x3xf32>
      tpu.vector_store %arg13[%c0_354, %c0_355], %307 {strides = array<i32>} : memref<28x75xf32, #tpu.memory_space<vmem>>, vector<28x3xf32>,
      %c0_i32_356 = arith.constant 0 : i32
      %309 = arith.addi %303, %c0_i32_356 : i32
      %c0_357 = arith.constant 0 : index
      %310 = arith.index_cast %309 : i32 to index
      %c1_358 = arith.constant 1 : index
      %c0_359 = arith.constant 0 : index
      %311 = vector.load %arg1[%c0_357, %310, %c1_358, %c0_359] : memref<1x32x32x3xf32, #tpu.memory_space<vmem>>, vector<1x1x28x3xf32>
      %312 = vector.shape_cast %311 : vector<1x1x28x3xf32> to vector<28x3xf32>
      %c0_360 = arith.constant 0 : index
      %c3_361 = arith.constant 3 : index
      %313 = vector.load %arg13[%c0_360, %c3_361] : memref<28x75xf32, #tpu.memory_space<vmem>>, vector<28x3xf32>
      tpu.vector_store %arg13[%c0_360, %c3_361], %312 {strides = array<i32>} : memref<28x75xf32, #tpu.memory_space<vmem>>, vector<28x3xf32>,
      %c0_i32_362 = arith.constant 0 : i32
      %314 = arith.addi %303, %c0_i32_362 : i32
      %c0_363 = arith.constant 0 : index
      %315 = arith.index_cast %314 : i32 to index
      %c2_364 = arith.constant 2 : index
      %c0_365 = arith.constant 0 : index
      %316 = vector.load %arg1[%c0_363, %315, %c2_364, %c0_365] : memref<1x32x32x3xf32, #tpu.memory_space<vmem>>, vector<1x1x28x3xf32>
      %317 = vector.shape_cast %316 : vector<1x1x28x3xf32> to vector<28x3xf32>
      %c0_366 = arith.constant 0 : index
      %c6_367 = arith.constant 6 : index
      %318 = vector.load %arg13[%c0_366, %c6_367] : memref<28x75xf32, #tpu.memory_space<vmem>>, vector<28x3xf32>
      tpu.vector_store %arg13[%c0_366, %c6_367], %317 {strides = array<i32>} : memref<28x75xf32, #tpu.memory_space<vmem>>, vector<28x3xf32>,
      %c0_i32_368 = arith.constant 0 : i32
      %319 = arith.addi %303, %c0_i32_368 : i32
      %c0_369 = arith.constant 0 : index
      %320 = arith.index_cast %319 : i32 to index
      %c3_370 = arith.constant 3 : index
      %c0_371 = arith.constant 0 : index
      %321 = vector.load %arg1[%c0_369, %320, %c3_370, %c0_371] : memref<1x32x32x3xf32, #tpu.memory_space<vmem>>, vector<1x1x28x3xf32>
      %322 = vector.shape_cast %321 : vector<1x1x28x3xf32> to vector<28x3xf32>
      %c0_372 = arith.constant 0 : index
      %c9_373 = arith.constant 9 : index
      %323 = vector.load %arg13[%c0_372, %c9_373] : memref<28x75xf32, #tpu.memory_space<vmem>>, vector<28x3xf32>
      tpu.vector_store %arg13[%c0_372, %c9_373], %322 {strides = array<i32>} : memref<28x75xf32, #tpu.memory_space<vmem>>, vector<28x3xf32>,
      %c0_i32_374 = arith.constant 0 : i32
      %324 = arith.addi %303, %c0_i32_374 : i32
      %c0_375 = arith.constant 0 : index
      %325 = arith.index_cast %324 : i32 to index
      %c4_376 = arith.constant 4 : index
      %c0_377 = arith.constant 0 : index
      %326 = vector.load %arg1[%c0_375, %325, %c4_376, %c0_377] : memref<1x32x32x3xf32, #tpu.memory_space<vmem>>, vector<1x1x28x3xf32>
      %327 = vector.shape_cast %326 : vector<1x1x28x3xf32> to vector<28x3xf32>
      %c0_378 = arith.constant 0 : index
      %c12_379 = arith.constant 12 : index
      %328 = vector.load %arg13[%c0_378, %c12_379] : memref<28x75xf32, #tpu.memory_space<vmem>>, vector<28x3xf32>
      tpu.vector_store %arg13[%c0_378, %c12_379], %327 {strides = array<i32>} : memref<28x75xf32, #tpu.memory_space<vmem>>, vector<28x3xf32>,
      %c1_i32_380 = arith.constant 1 : i32
      %329 = arith.addi %303, %c1_i32_380 : i32
      %c0_381 = arith.constant 0 : index
      %330 = arith.index_cast %329 : i32 to index
      %c0_382 = arith.constant 0 : index
      %c0_383 = arith.constant 0 : index
      %331 = vector.load %arg1[%c0_381, %330, %c0_382, %c0_383] : memref<1x32x32x3xf32, #tpu.memory_space<vmem>>, vector<1x1x28x3xf32>
      %332 = vector.shape_cast %331 : vector<1x1x28x3xf32> to vector<28x3xf32>
      %c0_384 = arith.constant 0 : index
      %c15_385 = arith.constant 15 : index
      %333 = vector.load %arg13[%c0_384, %c15_385] : memref<28x75xf32, #tpu.memory_space<vmem>>, vector<28x3xf32>
      tpu.vector_store %arg13[%c0_384, %c15_385], %332 {strides = array<i32>} : memref<28x75xf32, #tpu.memory_space<vmem>>, vector<28x3xf32>,
      %c1_i32_386 = arith.constant 1 : i32
      %334 = arith.addi %303, %c1_i32_386 : i32
      %c0_387 = arith.constant 0 : index
      %335 = arith.index_cast %334 : i32 to index
      %c1_388 = arith.constant 1 : index
      %c0_389 = arith.constant 0 : index
      %336 = vector.load %arg1[%c0_387, %335, %c1_388, %c0_389] : memref<1x32x32x3xf32, #tpu.memory_space<vmem>>, vector<1x1x28x3xf32>
      %337 = vector.shape_cast %336 : vector<1x1x28x3xf32> to vector<28x3xf32>
      %c0_390 = arith.constant 0 : index
      %c18_391 = arith.constant 18 : index
      %338 = vector.load %arg13[%c0_390, %c18_391] : memref<28x75xf32, #tpu.memory_space<vmem>>, vector<28x3xf32>
      tpu.vector_store %arg13[%c0_390, %c18_391], %337 {strides = array<i32>} : memref<28x75xf32, #tpu.memory_space<vmem>>, vector<28x3xf32>,
      %c1_i32_392 = arith.constant 1 : i32
      %339 = arith.addi %303, %c1_i32_392 : i32
      %c0_393 = arith.constant 0 : index
      %340 = arith.index_cast %339 : i32 to index
      %c2_394 = arith.constant 2 : index
      %c0_395 = arith.constant 0 : index
      %341 = vector.load %arg1[%c0_393, %340, %c2_394, %c0_395] : memref<1x32x32x3xf32, #tpu.memory_space<vmem>>, vector<1x1x28x3xf32>
      %342 = vector.shape_cast %341 : vector<1x1x28x3xf32> to vector<28x3xf32>
      %c0_396 = arith.constant 0 : index
      %c21_397 = arith.constant 21 : index
      %343 = vector.load %arg13[%c0_396, %c21_397] : memref<28x75xf32, #tpu.memory_space<vmem>>, vector<28x3xf32>
      tpu.vector_store %arg13[%c0_396, %c21_397], %342 {strides = array<i32>} : memref<28x75xf32, #tpu.memory_space<vmem>>, vector<28x3xf32>,
      %c1_i32_398 = arith.constant 1 : i32
      %344 = arith.addi %303, %c1_i32_398 : i32
      %c0_399 = arith.constant 0 : index
      %345 = arith.index_cast %344 : i32 to index
      %c3_400 = arith.constant 3 : index
      %c0_401 = arith.constant 0 : index
      %346 = vector.load %arg1[%c0_399, %345, %c3_400, %c0_401] : memref<1x32x32x3xf32, #tpu.memory_space<vmem>>, vector<1x1x28x3xf32>
      %347 = vector.shape_cast %346 : vector<1x1x28x3xf32> to vector<28x3xf32>
      %c0_402 = arith.constant 0 : index
      %c24_403 = arith.constant 24 : index
      %348 = vector.load %arg13[%c0_402, %c24_403] : memref<28x75xf32, #tpu.memory_space<vmem>>, vector<28x3xf32>
      tpu.vector_store %arg13[%c0_402, %c24_403], %347 {strides = array<i32>} : memref<28x75xf32, #tpu.memory_space<vmem>>, vector<28x3xf32>,
      %c1_i32_404 = arith.constant 1 : i32
      %349 = arith.addi %303, %c1_i32_404 : i32
      %c0_405 = arith.constant 0 : index
      %350 = arith.index_cast %349 : i32 to index
      %c4_406 = arith.constant 4 : index
      %c0_407 = arith.constant 0 : index
      %351 = vector.load %arg1[%c0_405, %350, %c4_406, %c0_407] : memref<1x32x32x3xf32, #tpu.memory_space<vmem>>, vector<1x1x28x3xf32>
      %352 = vector.shape_cast %351 : vector<1x1x28x3xf32> to vector<28x3xf32>
      %c0_408 = arith.constant 0 : index
      %c27_409 = arith.constant 27 : index
      %353 = vector.load %arg13[%c0_408, %c27_409] : memref<28x75xf32, #tpu.memory_space<vmem>>, vector<28x3xf32>
      tpu.vector_store %arg13[%c0_408, %c27_409], %352 {strides = array<i32>} : memref<28x75xf32, #tpu.memory_space<vmem>>, vector<28x3xf32>,
      %c2_i32_410 = arith.constant 2 : i32
      %354 = arith.addi %303, %c2_i32_410 : i32
      %c0_411 = arith.constant 0 : index
      %355 = arith.index_cast %354 : i32 to index
      %c0_412 = arith.constant 0 : index
      %c0_413 = arith.constant 0 : index
      %356 = vector.load %arg1[%c0_411, %355, %c0_412, %c0_413] : memref<1x32x32x3xf32, #tpu.memory_space<vmem>>, vector<1x1x28x3xf32>
      %357 = vector.shape_cast %356 : vector<1x1x28x3xf32> to vector<28x3xf32>
      %c0_414 = arith.constant 0 : index
      %c30_415 = arith.constant 30 : index
      %358 = vector.load %arg13[%c0_414, %c30_415] : memref<28x75xf32, #tpu.memory_space<vmem>>, vector<28x3xf32>
      tpu.vector_store %arg13[%c0_414, %c30_415], %357 {strides = array<i32>} : memref<28x75xf32, #tpu.memory_space<vmem>>, vector<28x3xf32>,
      %c2_i32_416 = arith.constant 2 : i32
      %359 = arith.addi %303, %c2_i32_416 : i32
      %c0_417 = arith.constant 0 : index
      %360 = arith.index_cast %359 : i32 to index
      %c1_418 = arith.constant 1 : index
      %c0_419 = arith.constant 0 : index
      %361 = vector.load %arg1[%c0_417, %360, %c1_418, %c0_419] : memref<1x32x32x3xf32, #tpu.memory_space<vmem>>, vector<1x1x28x3xf32>
      %362 = vector.shape_cast %361 : vector<1x1x28x3xf32> to vector<28x3xf32>
      %c0_420 = arith.constant 0 : index
      %c33_421 = arith.constant 33 : index
      %363 = vector.load %arg13[%c0_420, %c33_421] : memref<28x75xf32, #tpu.memory_space<vmem>>, vector<28x3xf32>
      tpu.vector_store %arg13[%c0_420, %c33_421], %362 {strides = array<i32>} : memref<28x75xf32, #tpu.memory_space<vmem>>, vector<28x3xf32>,
      %c2_i32_422 = arith.constant 2 : i32
      %364 = arith.addi %303, %c2_i32_422 : i32
      %c0_423 = arith.constant 0 : index
      %365 = arith.index_cast %364 : i32 to index
      %c2_424 = arith.constant 2 : index
      %c0_425 = arith.constant 0 : index
      %366 = vector.load %arg1[%c0_423, %365, %c2_424, %c0_425] : memref<1x32x32x3xf32, #tpu.memory_space<vmem>>, vector<1x1x28x3xf32>
      %367 = vector.shape_cast %366 : vector<1x1x28x3xf32> to vector<28x3xf32>
      %c0_426 = arith.constant 0 : index
      %c36_427 = arith.constant 36 : index
      %368 = vector.load %arg13[%c0_426, %c36_427] : memref<28x75xf32, #tpu.memory_space<vmem>>, vector<28x3xf32>
      tpu.vector_store %arg13[%c0_426, %c36_427], %367 {strides = array<i32>} : memref<28x75xf32, #tpu.memory_space<vmem>>, vector<28x3xf32>,
      %c2_i32_428 = arith.constant 2 : i32
      %369 = arith.addi %303, %c2_i32_428 : i32
      %c0_429 = arith.constant 0 : index
      %370 = arith.index_cast %369 : i32 to index
      %c3_430 = arith.constant 3 : index
      %c0_431 = arith.constant 0 : index
      %371 = vector.load %arg1[%c0_429, %370, %c3_430, %c0_431] : memref<1x32x32x3xf32, #tpu.memory_space<vmem>>, vector<1x1x28x3xf32>
      %372 = vector.shape_cast %371 : vector<1x1x28x3xf32> to vector<28x3xf32>
      %c0_432 = arith.constant 0 : index
      %c39_433 = arith.constant 39 : index
      %373 = vector.load %arg13[%c0_432, %c39_433] : memref<28x75xf32, #tpu.memory_space<vmem>>, vector<28x3xf32>
      tpu.vector_store %arg13[%c0_432, %c39_433], %372 {strides = array<i32>} : memref<28x75xf32, #tpu.memory_space<vmem>>, vector<28x3xf32>,
      %c2_i32_434 = arith.constant 2 : i32
      %374 = arith.addi %303, %c2_i32_434 : i32
      %c0_435 = arith.constant 0 : index
      %375 = arith.index_cast %374 : i32 to index
      %c4_436 = arith.constant 4 : index
      %c0_437 = arith.constant 0 : index
      %376 = vector.load %arg1[%c0_435, %375, %c4_436, %c0_437] : memref<1x32x32x3xf32, #tpu.memory_space<vmem>>, vector<1x1x28x3xf32>
      %377 = vector.shape_cast %376 : vector<1x1x28x3xf32> to vector<28x3xf32>
      %c0_438 = arith.constant 0 : index
      %c42_439 = arith.constant 42 : index
      %378 = vector.load %arg13[%c0_438, %c42_439] : memref<28x75xf32, #tpu.memory_space<vmem>>, vector<28x3xf32>
      tpu.vector_store %arg13[%c0_438, %c42_439], %377 {strides = array<i32>} : memref<28x75xf32, #tpu.memory_space<vmem>>, vector<28x3xf32>,
      %c3_i32_440 = arith.constant 3 : i32
      %379 = arith.addi %303, %c3_i32_440 : i32
      %c0_441 = arith.constant 0 : index
      %380 = arith.index_cast %379 : i32 to index
      %c0_442 = arith.constant 0 : index
      %c0_443 = arith.constant 0 : index
      %381 = vector.load %arg1[%c0_441, %380, %c0_442, %c0_443] : memref<1x32x32x3xf32, #tpu.memory_space<vmem>>, vector<1x1x28x3xf32>
      %382 = vector.shape_cast %381 : vector<1x1x28x3xf32> to vector<28x3xf32>
      %c0_444 = arith.constant 0 : index
      %c45_445 = arith.constant 45 : index
      %383 = vector.load %arg13[%c0_444, %c45_445] : memref<28x75xf32, #tpu.memory_space<vmem>>, vector<28x3xf32>
      tpu.vector_store %arg13[%c0_444, %c45_445], %382 {strides = array<i32>} : memref<28x75xf32, #tpu.memory_space<vmem>>, vector<28x3xf32>,
      %c3_i32_446 = arith.constant 3 : i32
      %384 = arith.addi %303, %c3_i32_446 : i32
      %c0_447 = arith.constant 0 : index
      %385 = arith.index_cast %384 : i32 to index
      %c1_448 = arith.constant 1 : index
      %c0_449 = arith.constant 0 : index
      %386 = vector.load %arg1[%c0_447, %385, %c1_448, %c0_449] : memref<1x32x32x3xf32, #tpu.memory_space<vmem>>, vector<1x1x28x3xf32>
      %387 = vector.shape_cast %386 : vector<1x1x28x3xf32> to vector<28x3xf32>
      %c0_450 = arith.constant 0 : index
      %c48_451 = arith.constant 48 : index
      %388 = vector.load %arg13[%c0_450, %c48_451] : memref<28x75xf32, #tpu.memory_space<vmem>>, vector<28x3xf32>
      tpu.vector_store %arg13[%c0_450, %c48_451], %387 {strides = array<i32>} : memref<28x75xf32, #tpu.memory_space<vmem>>, vector<28x3xf32>,
      %c3_i32_452 = arith.constant 3 : i32
      %389 = arith.addi %303, %c3_i32_452 : i32
      %c0_453 = arith.constant 0 : index
      %390 = arith.index_cast %389 : i32 to index
      %c2_454 = arith.constant 2 : index
      %c0_455 = arith.constant 0 : index
      %391 = vector.load %arg1[%c0_453, %390, %c2_454, %c0_455] : memref<1x32x32x3xf32, #tpu.memory_space<vmem>>, vector<1x1x28x3xf32>
      %392 = vector.shape_cast %391 : vector<1x1x28x3xf32> to vector<28x3xf32>
      %c0_456 = arith.constant 0 : index
      %c51_457 = arith.constant 51 : index
      %393 = vector.load %arg13[%c0_456, %c51_457] : memref<28x75xf32, #tpu.memory_space<vmem>>, vector<28x3xf32>
      tpu.vector_store %arg13[%c0_456, %c51_457], %392 {strides = array<i32>} : memref<28x75xf32, #tpu.memory_space<vmem>>, vector<28x3xf32>,
      %c3_i32_458 = arith.constant 3 : i32
      %394 = arith.addi %303, %c3_i32_458 : i32
      %c0_459 = arith.constant 0 : index
      %395 = arith.index_cast %394 : i32 to index
      %c3_460 = arith.constant 3 : index
      %c0_461 = arith.constant 0 : index
      %396 = vector.load %arg1[%c0_459, %395, %c3_460, %c0_461] : memref<1x32x32x3xf32, #tpu.memory_space<vmem>>, vector<1x1x28x3xf32>
      %397 = vector.shape_cast %396 : vector<1x1x28x3xf32> to vector<28x3xf32>
      %c0_462 = arith.constant 0 : index
      %c54_463 = arith.constant 54 : index
      %398 = vector.load %arg13[%c0_462, %c54_463] : memref<28x75xf32, #tpu.memory_space<vmem>>, vector<28x3xf32>
      tpu.vector_store %arg13[%c0_462, %c54_463], %397 {strides = array<i32>} : memref<28x75xf32, #tpu.memory_space<vmem>>, vector<28x3xf32>,
      %c3_i32_464 = arith.constant 3 : i32
      %399 = arith.addi %303, %c3_i32_464 : i32
      %c0_465 = arith.constant 0 : index
      %400 = arith.index_cast %399 : i32 to index
      %c4_466 = arith.constant 4 : index
      %c0_467 = arith.constant 0 : index
      %401 = vector.load %arg1[%c0_465, %400, %c4_466, %c0_467] : memref<1x32x32x3xf32, #tpu.memory_space<vmem>>, vector<1x1x28x3xf32>
      %402 = vector.shape_cast %401 : vector<1x1x28x3xf32> to vector<28x3xf32>
      %c0_468 = arith.constant 0 : index
      %c57_469 = arith.constant 57 : index
      %403 = vector.load %arg13[%c0_468, %c57_469] : memref<28x75xf32, #tpu.memory_space<vmem>>, vector<28x3xf32>
      tpu.vector_store %arg13[%c0_468, %c57_469], %402 {strides = array<i32>} : memref<28x75xf32, #tpu.memory_space<vmem>>, vector<28x3xf32>,
      %c4_i32_470 = arith.constant 4 : i32
      %404 = arith.addi %303, %c4_i32_470 : i32
      %c0_471 = arith.constant 0 : index
      %405 = arith.index_cast %404 : i32 to index
      %c0_472 = arith.constant 0 : index
      %c0_473 = arith.constant 0 : index
      %406 = vector.load %arg1[%c0_471, %405, %c0_472, %c0_473] : memref<1x32x32x3xf32, #tpu.memory_space<vmem>>, vector<1x1x28x3xf32>
      %407 = vector.shape_cast %406 : vector<1x1x28x3xf32> to vector<28x3xf32>
      %c0_474 = arith.constant 0 : index
      %c60_475 = arith.constant 60 : index
      %408 = vector.load %arg13[%c0_474, %c60_475] : memref<28x75xf32, #tpu.memory_space<vmem>>, vector<28x3xf32>
      tpu.vector_store %arg13[%c0_474, %c60_475], %407 {strides = array<i32>} : memref<28x75xf32, #tpu.memory_space<vmem>>, vector<28x3xf32>,
      %c4_i32_476 = arith.constant 4 : i32
      %409 = arith.addi %303, %c4_i32_476 : i32
      %c0_477 = arith.constant 0 : index
      %410 = arith.index_cast %409 : i32 to index
      %c1_478 = arith.constant 1 : index
      %c0_479 = arith.constant 0 : index
      %411 = vector.load %arg1[%c0_477, %410, %c1_478, %c0_479] : memref<1x32x32x3xf32, #tpu.memory_space<vmem>>, vector<1x1x28x3xf32>
      %412 = vector.shape_cast %411 : vector<1x1x28x3xf32> to vector<28x3xf32>
      %c0_480 = arith.constant 0 : index
      %c63_481 = arith.constant 63 : index
      %413 = vector.load %arg13[%c0_480, %c63_481] : memref<28x75xf32, #tpu.memory_space<vmem>>, vector<28x3xf32>
      tpu.vector_store %arg13[%c0_480, %c63_481], %412 {strides = array<i32>} : memref<28x75xf32, #tpu.memory_space<vmem>>, vector<28x3xf32>,
      %c4_i32_482 = arith.constant 4 : i32
      %414 = arith.addi %303, %c4_i32_482 : i32
      %c0_483 = arith.constant 0 : index
      %415 = arith.index_cast %414 : i32 to index
      %c2_484 = arith.constant 2 : index
      %c0_485 = arith.constant 0 : index
      %416 = vector.load %arg1[%c0_483, %415, %c2_484, %c0_485] : memref<1x32x32x3xf32, #tpu.memory_space<vmem>>, vector<1x1x28x3xf32>
      %417 = vector.shape_cast %416 : vector<1x1x28x3xf32> to vector<28x3xf32>
      %c0_486 = arith.constant 0 : index
      %c66_487 = arith.constant 66 : index
      %418 = vector.load %arg13[%c0_486, %c66_487] : memref<28x75xf32, #tpu.memory_space<vmem>>, vector<28x3xf32>
      tpu.vector_store %arg13[%c0_486, %c66_487], %417 {strides = array<i32>} : memref<28x75xf32, #tpu.memory_space<vmem>>, vector<28x3xf32>,
      %c4_i32_488 = arith.constant 4 : i32
      %419 = arith.addi %303, %c4_i32_488 : i32
      %c0_489 = arith.constant 0 : index
      %420 = arith.index_cast %419 : i32 to index
      %c3_490 = arith.constant 3 : index
      %c0_491 = arith.constant 0 : index
      %421 = vector.load %arg1[%c0_489, %420, %c3_490, %c0_491] : memref<1x32x32x3xf32, #tpu.memory_space<vmem>>, vector<1x1x28x3xf32>
      %422 = vector.shape_cast %421 : vector<1x1x28x3xf32> to vector<28x3xf32>
      %c0_492 = arith.constant 0 : index
      %c69_493 = arith.constant 69 : index
      %423 = vector.load %arg13[%c0_492, %c69_493] : memref<28x75xf32, #tpu.memory_space<vmem>>, vector<28x3xf32>
      tpu.vector_store %arg13[%c0_492, %c69_493], %422 {strides = array<i32>} : memref<28x75xf32, #tpu.memory_space<vmem>>, vector<28x3xf32>,
      %c4_i32_494 = arith.constant 4 : i32
      %424 = arith.addi %303, %c4_i32_494 : i32
      %c0_495 = arith.constant 0 : index
      %425 = arith.index_cast %424 : i32 to index
      %c4_496 = arith.constant 4 : index
      %c0_497 = arith.constant 0 : index
      %426 = vector.load %arg1[%c0_495, %425, %c4_496, %c0_497] : memref<1x32x32x3xf32, #tpu.memory_space<vmem>>, vector<1x1x28x3xf32>
      %427 = vector.shape_cast %426 : vector<1x1x28x3xf32> to vector<28x3xf32>
      %c0_498 = arith.constant 0 : index
      %c72_499 = arith.constant 72 : index
      %428 = vector.load %arg13[%c0_498, %c72_499] : memref<28x75xf32, #tpu.memory_space<vmem>>, vector<28x3xf32>
      tpu.vector_store %arg13[%c0_498, %c72_499], %427 {strides = array<i32>} : memref<28x75xf32, #tpu.memory_space<vmem>>, vector<28x3xf32>,
      %c0_500 = arith.constant 0 : index
      %c0_501 = arith.constant 0 : index
      %429 = vector.load %arg13[%c0_500, %c0_501] : memref<28x75xf32, #tpu.memory_space<vmem>>, vector<28x75xf32>
      %c0_502 = arith.constant 0 : index
      %c0_503 = arith.constant 0 : index
      %430 = vector.load %arg2[%c0_502, %c0_503] : memref<75x128xf32, #tpu.memory_space<vmem>>, vector<75x128xf32>
      %cst_504 = arith.constant dense<0.000000e+00> : vector<28x128xf32>
      %431 = tpu.matmul %429, %430, %cst_504 {dimension_numbers = #tpu.dot_dimension_numbers<[1], [0], [0], [1], [0, 0, 1, 1], [], []>} : vector<28x75xf32>, vector<75x128xf32>, vector<28x128xf32> -> vector<28x128xf32>
      %c0_505 = arith.constant 0 : index
      %c0_506 = arith.constant 0 : index
      %432 = vector.load %arg3[%c0_505, %c0_506] : memref<1x128xf32, #tpu.memory_space<vmem>>, vector<1x128xf32>
      %433 = vector.broadcast %432 : vector<1x128xf32> to vector<28x128xf32>
      %434 = arith.addf %431, %433 : vector<28x128xf32>
      %cst_507 = arith.constant 0.000000e+00 : f32
      %435 = vector.broadcast %cst_507 : f32 to vector<28x128xf32>
      %436 = arith.maximumf %434, %435 : vector<28x128xf32>
      %437 = arith.maximumf %301, %436 : vector<28x128xf32>
      %c0_508 = arith.constant 0 : index
      %c0_509 = arith.constant 0 : index
      %438 = vector.load %arg14[%c0_508, %c0_509] : memref<28x128xf32, #tpu.memory_space<vmem>>, vector<28x128xf32>
      tpu.vector_store %arg14[%c0_508, %c0_509], %437 {strides = array<i32>} : memref<28x128xf32, #tpu.memory_space<vmem>>, vector<28x128xf32>,
      %c0_510 = arith.constant 0 : index
      %c0_511 = arith.constant 0 : index
      %439 = tpu.strided_load %arg14[%c0_510, %c0_511] {strides = array<i32: 2, 1>} : memref<28x128xf32, #tpu.memory_space<vmem>>, vector<14x128xf32>
      %c1_512 = arith.constant 1 : index
      %c0_513 = arith.constant 0 : index
      %440 = tpu.strided_load %arg14[%c1_512, %c0_513] {strides = array<i32: 2, 1>} : memref<28x128xf32, #tpu.memory_space<vmem>>, vector<14x128xf32>
      %441 = arith.maximumf %439, %440 : vector<14x128xf32>
      %442 = arith.index_cast %arg19 : i32 to index
      %c0_514 = arith.constant 0 : index
      %c0_515 = arith.constant 0 : index
      %443 = vector.load %arg15[%442, %c0_514, %c0_515] : memref<14x14x128xf32, #tpu.memory_space<vmem>>, vector<1x14x128xf32>
      %444 = vector.shape_cast %443 : vector<1x14x128xf32> to vector<14x128xf32>
      %445 = vector.shape_cast %441 : vector<14x128xf32> to vector<1x14x128xf32>
      tpu.vector_store %arg15[%442, %c0_514, %c0_515], %445 {strides = array<i32>} : memref<14x14x128xf32, #tpu.memory_space<vmem>>, vector<1x14x128xf32>,
    }
    %c14_i32_0 = arith.constant 14 : i32
    %c0_i32_1 = arith.constant 0 : i32
    %c5_i32 = arith.constant 5 : i32
    %1 = arith.addi %c0_i32_1, %c5_i32 : i32
    %c1_i32_2 = arith.constant 1 : i32
    scf.for %arg19 = %c0_i32_1 to %1 step %c1_i32_2  : i32 {
      %c2_i32 = arith.constant 2 : i32
      %168 = arith.muli %c2_i32, %arg19 : i32
      %c0_i32_215 = arith.constant 0 : i32
      %169 = arith.addi %168, %c0_i32_215 : i32
      %170 = arith.index_cast %169 : i32 to index
      %c0_216 = arith.constant 0 : index
      %c0_217 = arith.constant 0 : index
      %171 = vector.load %arg15[%170, %c0_216, %c0_217] : memref<14x14x128xf32, #tpu.memory_space<vmem>>, vector<1x10x6xf32>
      %172 = vector.shape_cast %171 : vector<1x10x6xf32> to vector<10x6xf32>
      %c0_218 = arith.constant 0 : index
      %c0_219 = arith.constant 0 : index
      %173 = vector.load %arg16[%c0_218, %c0_219] : memref<10x150xf32, #tpu.memory_space<vmem>>, vector<10x6xf32>
      tpu.vector_store %arg16[%c0_218, %c0_219], %172 {strides = array<i32>} : memref<10x150xf32, #tpu.memory_space<vmem>>, vector<10x6xf32>,
      %c0_i32_220 = arith.constant 0 : i32
      %174 = arith.addi %168, %c0_i32_220 : i32
      %175 = arith.index_cast %174 : i32 to index
      %c1_221 = arith.constant 1 : index
      %c0_222 = arith.constant 0 : index
      %176 = vector.load %arg15[%175, %c1_221, %c0_222] : memref<14x14x128xf32, #tpu.memory_space<vmem>>, vector<1x10x6xf32>
      %177 = vector.shape_cast %176 : vector<1x10x6xf32> to vector<10x6xf32>
      %c0_223 = arith.constant 0 : index
      %c6 = arith.constant 6 : index
      %178 = vector.load %arg16[%c0_223, %c6] : memref<10x150xf32, #tpu.memory_space<vmem>>, vector<10x6xf32>
      tpu.vector_store %arg16[%c0_223, %c6], %177 {strides = array<i32>} : memref<10x150xf32, #tpu.memory_space<vmem>>, vector<10x6xf32>,
      %c0_i32_224 = arith.constant 0 : i32
      %179 = arith.addi %168, %c0_i32_224 : i32
      %180 = arith.index_cast %179 : i32 to index
      %c2_225 = arith.constant 2 : index
      %c0_226 = arith.constant 0 : index
      %181 = vector.load %arg15[%180, %c2_225, %c0_226] : memref<14x14x128xf32, #tpu.memory_space<vmem>>, vector<1x10x6xf32>
      %182 = vector.shape_cast %181 : vector<1x10x6xf32> to vector<10x6xf32>
      %c0_227 = arith.constant 0 : index
      %c12 = arith.constant 12 : index
      %183 = vector.load %arg16[%c0_227, %c12] : memref<10x150xf32, #tpu.memory_space<vmem>>, vector<10x6xf32>
      tpu.vector_store %arg16[%c0_227, %c12], %182 {strides = array<i32>} : memref<10x150xf32, #tpu.memory_space<vmem>>, vector<10x6xf32>,
      %c0_i32_228 = arith.constant 0 : i32
      %184 = arith.addi %168, %c0_i32_228 : i32
      %185 = arith.index_cast %184 : i32 to index
      %c3_229 = arith.constant 3 : index
      %c0_230 = arith.constant 0 : index
      %186 = vector.load %arg15[%185, %c3_229, %c0_230] : memref<14x14x128xf32, #tpu.memory_space<vmem>>, vector<1x10x6xf32>
      %187 = vector.shape_cast %186 : vector<1x10x6xf32> to vector<10x6xf32>
      %c0_231 = arith.constant 0 : index
      %c18 = arith.constant 18 : index
      %188 = vector.load %arg16[%c0_231, %c18] : memref<10x150xf32, #tpu.memory_space<vmem>>, vector<10x6xf32>
      tpu.vector_store %arg16[%c0_231, %c18], %187 {strides = array<i32>} : memref<10x150xf32, #tpu.memory_space<vmem>>, vector<10x6xf32>,
      %c0_i32_232 = arith.constant 0 : i32
      %189 = arith.addi %168, %c0_i32_232 : i32
      %190 = arith.index_cast %189 : i32 to index
      %c4_233 = arith.constant 4 : index
      %c0_234 = arith.constant 0 : index
      %191 = vector.load %arg15[%190, %c4_233, %c0_234] : memref<14x14x128xf32, #tpu.memory_space<vmem>>, vector<1x10x6xf32>
      %192 = vector.shape_cast %191 : vector<1x10x6xf32> to vector<10x6xf32>
      %c0_235 = arith.constant 0 : index
      %c24 = arith.constant 24 : index
      %193 = vector.load %arg16[%c0_235, %c24] : memref<10x150xf32, #tpu.memory_space<vmem>>, vector<10x6xf32>
      tpu.vector_store %arg16[%c0_235, %c24], %192 {strides = array<i32>} : memref<10x150xf32, #tpu.memory_space<vmem>>, vector<10x6xf32>,
      %c1_i32_236 = arith.constant 1 : i32
      %194 = arith.addi %168, %c1_i32_236 : i32
      %195 = arith.index_cast %194 : i32 to index
      %c0_237 = arith.constant 0 : index
      %c0_238 = arith.constant 0 : index
      %196 = vector.load %arg15[%195, %c0_237, %c0_238] : memref<14x14x128xf32, #tpu.memory_space<vmem>>, vector<1x10x6xf32>
      %197 = vector.shape_cast %196 : vector<1x10x6xf32> to vector<10x6xf32>
      %c0_239 = arith.constant 0 : index
      %c30 = arith.constant 30 : index
      %198 = vector.load %arg16[%c0_239, %c30] : memref<10x150xf32, #tpu.memory_space<vmem>>, vector<10x6xf32>
      tpu.vector_store %arg16[%c0_239, %c30], %197 {strides = array<i32>} : memref<10x150xf32, #tpu.memory_space<vmem>>, vector<10x6xf32>,
      %c1_i32_240 = arith.constant 1 : i32
      %199 = arith.addi %168, %c1_i32_240 : i32
      %200 = arith.index_cast %199 : i32 to index
      %c1_241 = arith.constant 1 : index
      %c0_242 = arith.constant 0 : index
      %201 = vector.load %arg15[%200, %c1_241, %c0_242] : memref<14x14x128xf32, #tpu.memory_space<vmem>>, vector<1x10x6xf32>
      %202 = vector.shape_cast %201 : vector<1x10x6xf32> to vector<10x6xf32>
      %c0_243 = arith.constant 0 : index
      %c36 = arith.constant 36 : index
      %203 = vector.load %arg16[%c0_243, %c36] : memref<10x150xf32, #tpu.memory_space<vmem>>, vector<10x6xf32>
      tpu.vector_store %arg16[%c0_243, %c36], %202 {strides = array<i32>} : memref<10x150xf32, #tpu.memory_space<vmem>>, vector<10x6xf32>,
      %c1_i32_244 = arith.constant 1 : i32
      %204 = arith.addi %168, %c1_i32_244 : i32
      %205 = arith.index_cast %204 : i32 to index
      %c2_245 = arith.constant 2 : index
      %c0_246 = arith.constant 0 : index
      %206 = vector.load %arg15[%205, %c2_245, %c0_246] : memref<14x14x128xf32, #tpu.memory_space<vmem>>, vector<1x10x6xf32>
      %207 = vector.shape_cast %206 : vector<1x10x6xf32> to vector<10x6xf32>
      %c0_247 = arith.constant 0 : index
      %c42 = arith.constant 42 : index
      %208 = vector.load %arg16[%c0_247, %c42] : memref<10x150xf32, #tpu.memory_space<vmem>>, vector<10x6xf32>
      tpu.vector_store %arg16[%c0_247, %c42], %207 {strides = array<i32>} : memref<10x150xf32, #tpu.memory_space<vmem>>, vector<10x6xf32>,
      %c1_i32_248 = arith.constant 1 : i32
      %209 = arith.addi %168, %c1_i32_248 : i32
      %210 = arith.index_cast %209 : i32 to index
      %c3_249 = arith.constant 3 : index
      %c0_250 = arith.constant 0 : index
      %211 = vector.load %arg15[%210, %c3_249, %c0_250] : memref<14x14x128xf32, #tpu.memory_space<vmem>>, vector<1x10x6xf32>
      %212 = vector.shape_cast %211 : vector<1x10x6xf32> to vector<10x6xf32>
      %c0_251 = arith.constant 0 : index
      %c48 = arith.constant 48 : index
      %213 = vector.load %arg16[%c0_251, %c48] : memref<10x150xf32, #tpu.memory_space<vmem>>, vector<10x6xf32>
      tpu.vector_store %arg16[%c0_251, %c48], %212 {strides = array<i32>} : memref<10x150xf32, #tpu.memory_space<vmem>>, vector<10x6xf32>,
      %c1_i32_252 = arith.constant 1 : i32
      %214 = arith.addi %168, %c1_i32_252 : i32
      %215 = arith.index_cast %214 : i32 to index
      %c4_253 = arith.constant 4 : index
      %c0_254 = arith.constant 0 : index
      %216 = vector.load %arg15[%215, %c4_253, %c0_254] : memref<14x14x128xf32, #tpu.memory_space<vmem>>, vector<1x10x6xf32>
      %217 = vector.shape_cast %216 : vector<1x10x6xf32> to vector<10x6xf32>
      %c0_255 = arith.constant 0 : index
      %c54 = arith.constant 54 : index
      %218 = vector.load %arg16[%c0_255, %c54] : memref<10x150xf32, #tpu.memory_space<vmem>>, vector<10x6xf32>
      tpu.vector_store %arg16[%c0_255, %c54], %217 {strides = array<i32>} : memref<10x150xf32, #tpu.memory_space<vmem>>, vector<10x6xf32>,
      %c2_i32_256 = arith.constant 2 : i32
      %219 = arith.addi %168, %c2_i32_256 : i32
      %220 = arith.index_cast %219 : i32 to index
      %c0_257 = arith.constant 0 : index
      %c0_258 = arith.constant 0 : index
      %221 = vector.load %arg15[%220, %c0_257, %c0_258] : memref<14x14x128xf32, #tpu.memory_space<vmem>>, vector<1x10x6xf32>
      %222 = vector.shape_cast %221 : vector<1x10x6xf32> to vector<10x6xf32>
      %c0_259 = arith.constant 0 : index
      %c60 = arith.constant 60 : index
      %223 = vector.load %arg16[%c0_259, %c60] : memref<10x150xf32, #tpu.memory_space<vmem>>, vector<10x6xf32>
      tpu.vector_store %arg16[%c0_259, %c60], %222 {strides = array<i32>} : memref<10x150xf32, #tpu.memory_space<vmem>>, vector<10x6xf32>,
      %c2_i32_260 = arith.constant 2 : i32
      %224 = arith.addi %168, %c2_i32_260 : i32
      %225 = arith.index_cast %224 : i32 to index
      %c1_261 = arith.constant 1 : index
      %c0_262 = arith.constant 0 : index
      %226 = vector.load %arg15[%225, %c1_261, %c0_262] : memref<14x14x128xf32, #tpu.memory_space<vmem>>, vector<1x10x6xf32>
      %227 = vector.shape_cast %226 : vector<1x10x6xf32> to vector<10x6xf32>
      %c0_263 = arith.constant 0 : index
      %c66 = arith.constant 66 : index
      %228 = vector.load %arg16[%c0_263, %c66] : memref<10x150xf32, #tpu.memory_space<vmem>>, vector<10x6xf32>
      tpu.vector_store %arg16[%c0_263, %c66], %227 {strides = array<i32>} : memref<10x150xf32, #tpu.memory_space<vmem>>, vector<10x6xf32>,
      %c2_i32_264 = arith.constant 2 : i32
      %229 = arith.addi %168, %c2_i32_264 : i32
      %230 = arith.index_cast %229 : i32 to index
      %c2_265 = arith.constant 2 : index
      %c0_266 = arith.constant 0 : index
      %231 = vector.load %arg15[%230, %c2_265, %c0_266] : memref<14x14x128xf32, #tpu.memory_space<vmem>>, vector<1x10x6xf32>
      %232 = vector.shape_cast %231 : vector<1x10x6xf32> to vector<10x6xf32>
      %c0_267 = arith.constant 0 : index
      %c72 = arith.constant 72 : index
      %233 = vector.load %arg16[%c0_267, %c72] : memref<10x150xf32, #tpu.memory_space<vmem>>, vector<10x6xf32>
      tpu.vector_store %arg16[%c0_267, %c72], %232 {strides = array<i32>} : memref<10x150xf32, #tpu.memory_space<vmem>>, vector<10x6xf32>,
      %c2_i32_268 = arith.constant 2 : i32
      %234 = arith.addi %168, %c2_i32_268 : i32
      %235 = arith.index_cast %234 : i32 to index
      %c3_269 = arith.constant 3 : index
      %c0_270 = arith.constant 0 : index
      %236 = vector.load %arg15[%235, %c3_269, %c0_270] : memref<14x14x128xf32, #tpu.memory_space<vmem>>, vector<1x10x6xf32>
      %237 = vector.shape_cast %236 : vector<1x10x6xf32> to vector<10x6xf32>
      %c0_271 = arith.constant 0 : index
      %c78 = arith.constant 78 : index
      %238 = vector.load %arg16[%c0_271, %c78] : memref<10x150xf32, #tpu.memory_space<vmem>>, vector<10x6xf32>
      tpu.vector_store %arg16[%c0_271, %c78], %237 {strides = array<i32>} : memref<10x150xf32, #tpu.memory_space<vmem>>, vector<10x6xf32>,
      %c2_i32_272 = arith.constant 2 : i32
      %239 = arith.addi %168, %c2_i32_272 : i32
      %240 = arith.index_cast %239 : i32 to index
      %c4_273 = arith.constant 4 : index
      %c0_274 = arith.constant 0 : index
      %241 = vector.load %arg15[%240, %c4_273, %c0_274] : memref<14x14x128xf32, #tpu.memory_space<vmem>>, vector<1x10x6xf32>
      %242 = vector.shape_cast %241 : vector<1x10x6xf32> to vector<10x6xf32>
      %c0_275 = arith.constant 0 : index
      %c84 = arith.constant 84 : index
      %243 = vector.load %arg16[%c0_275, %c84] : memref<10x150xf32, #tpu.memory_space<vmem>>, vector<10x6xf32>
      tpu.vector_store %arg16[%c0_275, %c84], %242 {strides = array<i32>} : memref<10x150xf32, #tpu.memory_space<vmem>>, vector<10x6xf32>,
      %c3_i32 = arith.constant 3 : i32
      %244 = arith.addi %168, %c3_i32 : i32
      %245 = arith.index_cast %244 : i32 to index
      %c0_276 = arith.constant 0 : index
      %c0_277 = arith.constant 0 : index
      %246 = vector.load %arg15[%245, %c0_276, %c0_277] : memref<14x14x128xf32, #tpu.memory_space<vmem>>, vector<1x10x6xf32>
      %247 = vector.shape_cast %246 : vector<1x10x6xf32> to vector<10x6xf32>
      %c0_278 = arith.constant 0 : index
      %c90 = arith.constant 90 : index
      %248 = vector.load %arg16[%c0_278, %c90] : memref<10x150xf32, #tpu.memory_space<vmem>>, vector<10x6xf32>
      tpu.vector_store %arg16[%c0_278, %c90], %247 {strides = array<i32>} : memref<10x150xf32, #tpu.memory_space<vmem>>, vector<10x6xf32>,
      %c3_i32_279 = arith.constant 3 : i32
      %249 = arith.addi %168, %c3_i32_279 : i32
      %250 = arith.index_cast %249 : i32 to index
      %c1_280 = arith.constant 1 : index
      %c0_281 = arith.constant 0 : index
      %251 = vector.load %arg15[%250, %c1_280, %c0_281] : memref<14x14x128xf32, #tpu.memory_space<vmem>>, vector<1x10x6xf32>
      %252 = vector.shape_cast %251 : vector<1x10x6xf32> to vector<10x6xf32>
      %c0_282 = arith.constant 0 : index
      %c96 = arith.constant 96 : index
      %253 = vector.load %arg16[%c0_282, %c96] : memref<10x150xf32, #tpu.memory_space<vmem>>, vector<10x6xf32>
      tpu.vector_store %arg16[%c0_282, %c96], %252 {strides = array<i32>} : memref<10x150xf32, #tpu.memory_space<vmem>>, vector<10x6xf32>,
      %c3_i32_283 = arith.constant 3 : i32
      %254 = arith.addi %168, %c3_i32_283 : i32
      %255 = arith.index_cast %254 : i32 to index
      %c2_284 = arith.constant 2 : index
      %c0_285 = arith.constant 0 : index
      %256 = vector.load %arg15[%255, %c2_284, %c0_285] : memref<14x14x128xf32, #tpu.memory_space<vmem>>, vector<1x10x6xf32>
      %257 = vector.shape_cast %256 : vector<1x10x6xf32> to vector<10x6xf32>
      %c0_286 = arith.constant 0 : index
      %c102 = arith.constant 102 : index
      %258 = vector.load %arg16[%c0_286, %c102] : memref<10x150xf32, #tpu.memory_space<vmem>>, vector<10x6xf32>
      tpu.vector_store %arg16[%c0_286, %c102], %257 {strides = array<i32>} : memref<10x150xf32, #tpu.memory_space<vmem>>, vector<10x6xf32>,
      %c3_i32_287 = arith.constant 3 : i32
      %259 = arith.addi %168, %c3_i32_287 : i32
      %260 = arith.index_cast %259 : i32 to index
      %c3_288 = arith.constant 3 : index
      %c0_289 = arith.constant 0 : index
      %261 = vector.load %arg15[%260, %c3_288, %c0_289] : memref<14x14x128xf32, #tpu.memory_space<vmem>>, vector<1x10x6xf32>
      %262 = vector.shape_cast %261 : vector<1x10x6xf32> to vector<10x6xf32>
      %c0_290 = arith.constant 0 : index
      %c108 = arith.constant 108 : index
      %263 = vector.load %arg16[%c0_290, %c108] : memref<10x150xf32, #tpu.memory_space<vmem>>, vector<10x6xf32>
      tpu.vector_store %arg16[%c0_290, %c108], %262 {strides = array<i32>} : memref<10x150xf32, #tpu.memory_space<vmem>>, vector<10x6xf32>,
      %c3_i32_291 = arith.constant 3 : i32
      %264 = arith.addi %168, %c3_i32_291 : i32
      %265 = arith.index_cast %264 : i32 to index
      %c4_292 = arith.constant 4 : index
      %c0_293 = arith.constant 0 : index
      %266 = vector.load %arg15[%265, %c4_292, %c0_293] : memref<14x14x128xf32, #tpu.memory_space<vmem>>, vector<1x10x6xf32>
      %267 = vector.shape_cast %266 : vector<1x10x6xf32> to vector<10x6xf32>
      %c0_294 = arith.constant 0 : index
      %c114 = arith.constant 114 : index
      %268 = vector.load %arg16[%c0_294, %c114] : memref<10x150xf32, #tpu.memory_space<vmem>>, vector<10x6xf32>
      tpu.vector_store %arg16[%c0_294, %c114], %267 {strides = array<i32>} : memref<10x150xf32, #tpu.memory_space<vmem>>, vector<10x6xf32>,
      %c4_i32 = arith.constant 4 : i32
      %269 = arith.addi %168, %c4_i32 : i32
      %270 = arith.index_cast %269 : i32 to index
      %c0_295 = arith.constant 0 : index
      %c0_296 = arith.constant 0 : index
      %271 = vector.load %arg15[%270, %c0_295, %c0_296] : memref<14x14x128xf32, #tpu.memory_space<vmem>>, vector<1x10x6xf32>
      %272 = vector.shape_cast %271 : vector<1x10x6xf32> to vector<10x6xf32>
      %c0_297 = arith.constant 0 : index
      %c120 = arith.constant 120 : index
      %273 = vector.load %arg16[%c0_297, %c120] : memref<10x150xf32, #tpu.memory_space<vmem>>, vector<10x6xf32>
      tpu.vector_store %arg16[%c0_297, %c120], %272 {strides = array<i32>} : memref<10x150xf32, #tpu.memory_space<vmem>>, vector<10x6xf32>,
      %c4_i32_298 = arith.constant 4 : i32
      %274 = arith.addi %168, %c4_i32_298 : i32
      %275 = arith.index_cast %274 : i32 to index
      %c1_299 = arith.constant 1 : index
      %c0_300 = arith.constant 0 : index
      %276 = vector.load %arg15[%275, %c1_299, %c0_300] : memref<14x14x128xf32, #tpu.memory_space<vmem>>, vector<1x10x6xf32>
      %277 = vector.shape_cast %276 : vector<1x10x6xf32> to vector<10x6xf32>
      %c0_301 = arith.constant 0 : index
      %c126 = arith.constant 126 : index
      %278 = vector.load %arg16[%c0_301, %c126] : memref<10x150xf32, #tpu.memory_space<vmem>>, vector<10x6xf32>
      tpu.vector_store %arg16[%c0_301, %c126], %277 {strides = array<i32>} : memref<10x150xf32, #tpu.memory_space<vmem>>, vector<10x6xf32>,
      %c4_i32_302 = arith.constant 4 : i32
      %279 = arith.addi %168, %c4_i32_302 : i32
      %280 = arith.index_cast %279 : i32 to index
      %c2_303 = arith.constant 2 : index
      %c0_304 = arith.constant 0 : index
      %281 = vector.load %arg15[%280, %c2_303, %c0_304] : memref<14x14x128xf32, #tpu.memory_space<vmem>>, vector<1x10x6xf32>
      %282 = vector.shape_cast %281 : vector<1x10x6xf32> to vector<10x6xf32>
      %c0_305 = arith.constant 0 : index
      %c132 = arith.constant 132 : index
      %283 = vector.load %arg16[%c0_305, %c132] : memref<10x150xf32, #tpu.memory_space<vmem>>, vector<10x6xf32>
      tpu.vector_store %arg16[%c0_305, %c132], %282 {strides = array<i32>} : memref<10x150xf32, #tpu.memory_space<vmem>>, vector<10x6xf32>,
      %c4_i32_306 = arith.constant 4 : i32
      %284 = arith.addi %168, %c4_i32_306 : i32
      %285 = arith.index_cast %284 : i32 to index
      %c3_307 = arith.constant 3 : index
      %c0_308 = arith.constant 0 : index
      %286 = vector.load %arg15[%285, %c3_307, %c0_308] : memref<14x14x128xf32, #tpu.memory_space<vmem>>, vector<1x10x6xf32>
      %287 = vector.shape_cast %286 : vector<1x10x6xf32> to vector<10x6xf32>
      %c0_309 = arith.constant 0 : index
      %c138 = arith.constant 138 : index
      %288 = vector.load %arg16[%c0_309, %c138] : memref<10x150xf32, #tpu.memory_space<vmem>>, vector<10x6xf32>
      tpu.vector_store %arg16[%c0_309, %c138], %287 {strides = array<i32>} : memref<10x150xf32, #tpu.memory_space<vmem>>, vector<10x6xf32>,
      %c4_i32_310 = arith.constant 4 : i32
      %289 = arith.addi %168, %c4_i32_310 : i32
      %290 = arith.index_cast %289 : i32 to index
      %c4_311 = arith.constant 4 : index
      %c0_312 = arith.constant 0 : index
      %291 = vector.load %arg15[%290, %c4_311, %c0_312] : memref<14x14x128xf32, #tpu.memory_space<vmem>>, vector<1x10x6xf32>
      %292 = vector.shape_cast %291 : vector<1x10x6xf32> to vector<10x6xf32>
      %c0_313 = arith.constant 0 : index
      %c144 = arith.constant 144 : index
      %293 = vector.load %arg16[%c0_313, %c144] : memref<10x150xf32, #tpu.memory_space<vmem>>, vector<10x6xf32>
      tpu.vector_store %arg16[%c0_313, %c144], %292 {strides = array<i32>} : memref<10x150xf32, #tpu.memory_space<vmem>>, vector<10x6xf32>,
      %c0_314 = arith.constant 0 : index
      %c0_315 = arith.constant 0 : index
      %294 = vector.load %arg16[%c0_314, %c0_315] : memref<10x150xf32, #tpu.memory_space<vmem>>, vector<10x150xf32>
      %c0_316 = arith.constant 0 : index
      %c0_317 = arith.constant 0 : index
      %295 = vector.load %arg4[%c0_316, %c0_317] : memref<150x128xf32, #tpu.memory_space<vmem>>, vector<150x128xf32>
      %cst_318 = arith.constant dense<0.000000e+00> : vector<10x128xf32>
      %296 = tpu.matmul %294, %295, %cst_318 {dimension_numbers = #tpu.dot_dimension_numbers<[1], [0], [0], [1], [0, 0, 1, 1], [], []>} : vector<10x150xf32>, vector<150x128xf32>, vector<10x128xf32> -> vector<10x128xf32>
      %c0_319 = arith.constant 0 : index
      %c0_320 = arith.constant 0 : index
      %297 = vector.load %arg5[%c0_319, %c0_320] : memref<1x128xf32, #tpu.memory_space<vmem>>, vector<1x128xf32>
      %298 = vector.broadcast %297 : vector<1x128xf32> to vector<10x128xf32>
      %299 = arith.addf %296, %298 : vector<10x128xf32>
      %cst_321 = arith.constant 0.000000e+00 : f32
      %300 = vector.broadcast %cst_321 : f32 to vector<10x128xf32>
      %301 = arith.maximumf %299, %300 : vector<10x128xf32>
      %c2_i32_322 = arith.constant 2 : i32
      %302 = arith.muli %c2_i32_322, %arg19 : i32
      %c1_i32_323 = arith.constant 1 : i32
      %303 = arith.addi %302, %c1_i32_323 : i32
      %c0_i32_324 = arith.constant 0 : i32
      %304 = arith.addi %303, %c0_i32_324 : i32
      %305 = arith.index_cast %304 : i32 to index
      %c0_325 = arith.constant 0 : index
      %c0_326 = arith.constant 0 : index
      %306 = vector.load %arg15[%305, %c0_325, %c0_326] : memref<14x14x128xf32, #tpu.memory_space<vmem>>, vector<1x10x6xf32>
      %307 = vector.shape_cast %306 : vector<1x10x6xf32> to vector<10x6xf32>
      %c0_327 = arith.constant 0 : index
      %c0_328 = arith.constant 0 : index
      %308 = vector.load %arg16[%c0_327, %c0_328] : memref<10x150xf32, #tpu.memory_space<vmem>>, vector<10x6xf32>
      tpu.vector_store %arg16[%c0_327, %c0_328], %307 {strides = array<i32>} : memref<10x150xf32, #tpu.memory_space<vmem>>, vector<10x6xf32>,
      %c0_i32_329 = arith.constant 0 : i32
      %309 = arith.addi %303, %c0_i32_329 : i32
      %310 = arith.index_cast %309 : i32 to index
      %c1_330 = arith.constant 1 : index
      %c0_331 = arith.constant 0 : index
      %311 = vector.load %arg15[%310, %c1_330, %c0_331] : memref<14x14x128xf32, #tpu.memory_space<vmem>>, vector<1x10x6xf32>
      %312 = vector.shape_cast %311 : vector<1x10x6xf32> to vector<10x6xf32>
      %c0_332 = arith.constant 0 : index
      %c6_333 = arith.constant 6 : index
      %313 = vector.load %arg16[%c0_332, %c6_333] : memref<10x150xf32, #tpu.memory_space<vmem>>, vector<10x6xf32>
      tpu.vector_store %arg16[%c0_332, %c6_333], %312 {strides = array<i32>} : memref<10x150xf32, #tpu.memory_space<vmem>>, vector<10x6xf32>,
      %c0_i32_334 = arith.constant 0 : i32
      %314 = arith.addi %303, %c0_i32_334 : i32
      %315 = arith.index_cast %314 : i32 to index
      %c2_335 = arith.constant 2 : index
      %c0_336 = arith.constant 0 : index
      %316 = vector.load %arg15[%315, %c2_335, %c0_336] : memref<14x14x128xf32, #tpu.memory_space<vmem>>, vector<1x10x6xf32>
      %317 = vector.shape_cast %316 : vector<1x10x6xf32> to vector<10x6xf32>
      %c0_337 = arith.constant 0 : index
      %c12_338 = arith.constant 12 : index
      %318 = vector.load %arg16[%c0_337, %c12_338] : memref<10x150xf32, #tpu.memory_space<vmem>>, vector<10x6xf32>
      tpu.vector_store %arg16[%c0_337, %c12_338], %317 {strides = array<i32>} : memref<10x150xf32, #tpu.memory_space<vmem>>, vector<10x6xf32>,
      %c0_i32_339 = arith.constant 0 : i32
      %319 = arith.addi %303, %c0_i32_339 : i32
      %320 = arith.index_cast %319 : i32 to index
      %c3_340 = arith.constant 3 : index
      %c0_341 = arith.constant 0 : index
      %321 = vector.load %arg15[%320, %c3_340, %c0_341] : memref<14x14x128xf32, #tpu.memory_space<vmem>>, vector<1x10x6xf32>
      %322 = vector.shape_cast %321 : vector<1x10x6xf32> to vector<10x6xf32>
      %c0_342 = arith.constant 0 : index
      %c18_343 = arith.constant 18 : index
      %323 = vector.load %arg16[%c0_342, %c18_343] : memref<10x150xf32, #tpu.memory_space<vmem>>, vector<10x6xf32>
      tpu.vector_store %arg16[%c0_342, %c18_343], %322 {strides = array<i32>} : memref<10x150xf32, #tpu.memory_space<vmem>>, vector<10x6xf32>,
      %c0_i32_344 = arith.constant 0 : i32
      %324 = arith.addi %303, %c0_i32_344 : i32
      %325 = arith.index_cast %324 : i32 to index
      %c4_345 = arith.constant 4 : index
      %c0_346 = arith.constant 0 : index
      %326 = vector.load %arg15[%325, %c4_345, %c0_346] : memref<14x14x128xf32, #tpu.memory_space<vmem>>, vector<1x10x6xf32>
      %327 = vector.shape_cast %326 : vector<1x10x6xf32> to vector<10x6xf32>
      %c0_347 = arith.constant 0 : index
      %c24_348 = arith.constant 24 : index
      %328 = vector.load %arg16[%c0_347, %c24_348] : memref<10x150xf32, #tpu.memory_space<vmem>>, vector<10x6xf32>
      tpu.vector_store %arg16[%c0_347, %c24_348], %327 {strides = array<i32>} : memref<10x150xf32, #tpu.memory_space<vmem>>, vector<10x6xf32>,
      %c1_i32_349 = arith.constant 1 : i32
      %329 = arith.addi %303, %c1_i32_349 : i32
      %330 = arith.index_cast %329 : i32 to index
      %c0_350 = arith.constant 0 : index
      %c0_351 = arith.constant 0 : index
      %331 = vector.load %arg15[%330, %c0_350, %c0_351] : memref<14x14x128xf32, #tpu.memory_space<vmem>>, vector<1x10x6xf32>
      %332 = vector.shape_cast %331 : vector<1x10x6xf32> to vector<10x6xf32>
      %c0_352 = arith.constant 0 : index
      %c30_353 = arith.constant 30 : index
      %333 = vector.load %arg16[%c0_352, %c30_353] : memref<10x150xf32, #tpu.memory_space<vmem>>, vector<10x6xf32>
      tpu.vector_store %arg16[%c0_352, %c30_353], %332 {strides = array<i32>} : memref<10x150xf32, #tpu.memory_space<vmem>>, vector<10x6xf32>,
      %c1_i32_354 = arith.constant 1 : i32
      %334 = arith.addi %303, %c1_i32_354 : i32
      %335 = arith.index_cast %334 : i32 to index
      %c1_355 = arith.constant 1 : index
      %c0_356 = arith.constant 0 : index
      %336 = vector.load %arg15[%335, %c1_355, %c0_356] : memref<14x14x128xf32, #tpu.memory_space<vmem>>, vector<1x10x6xf32>
      %337 = vector.shape_cast %336 : vector<1x10x6xf32> to vector<10x6xf32>
      %c0_357 = arith.constant 0 : index
      %c36_358 = arith.constant 36 : index
      %338 = vector.load %arg16[%c0_357, %c36_358] : memref<10x150xf32, #tpu.memory_space<vmem>>, vector<10x6xf32>
      tpu.vector_store %arg16[%c0_357, %c36_358], %337 {strides = array<i32>} : memref<10x150xf32, #tpu.memory_space<vmem>>, vector<10x6xf32>,
      %c1_i32_359 = arith.constant 1 : i32
      %339 = arith.addi %303, %c1_i32_359 : i32
      %340 = arith.index_cast %339 : i32 to index
      %c2_360 = arith.constant 2 : index
      %c0_361 = arith.constant 0 : index
      %341 = vector.load %arg15[%340, %c2_360, %c0_361] : memref<14x14x128xf32, #tpu.memory_space<vmem>>, vector<1x10x6xf32>
      %342 = vector.shape_cast %341 : vector<1x10x6xf32> to vector<10x6xf32>
      %c0_362 = arith.constant 0 : index
      %c42_363 = arith.constant 42 : index
      %343 = vector.load %arg16[%c0_362, %c42_363] : memref<10x150xf32, #tpu.memory_space<vmem>>, vector<10x6xf32>
      tpu.vector_store %arg16[%c0_362, %c42_363], %342 {strides = array<i32>} : memref<10x150xf32, #tpu.memory_space<vmem>>, vector<10x6xf32>,
      %c1_i32_364 = arith.constant 1 : i32
      %344 = arith.addi %303, %c1_i32_364 : i32
      %345 = arith.index_cast %344 : i32 to index
      %c3_365 = arith.constant 3 : index
      %c0_366 = arith.constant 0 : index
      %346 = vector.load %arg15[%345, %c3_365, %c0_366] : memref<14x14x128xf32, #tpu.memory_space<vmem>>, vector<1x10x6xf32>
      %347 = vector.shape_cast %346 : vector<1x10x6xf32> to vector<10x6xf32>
      %c0_367 = arith.constant 0 : index
      %c48_368 = arith.constant 48 : index
      %348 = vector.load %arg16[%c0_367, %c48_368] : memref<10x150xf32, #tpu.memory_space<vmem>>, vector<10x6xf32>
      tpu.vector_store %arg16[%c0_367, %c48_368], %347 {strides = array<i32>} : memref<10x150xf32, #tpu.memory_space<vmem>>, vector<10x6xf32>,
      %c1_i32_369 = arith.constant 1 : i32
      %349 = arith.addi %303, %c1_i32_369 : i32
      %350 = arith.index_cast %349 : i32 to index
      %c4_370 = arith.constant 4 : index
      %c0_371 = arith.constant 0 : index
      %351 = vector.load %arg15[%350, %c4_370, %c0_371] : memref<14x14x128xf32, #tpu.memory_space<vmem>>, vector<1x10x6xf32>
      %352 = vector.shape_cast %351 : vector<1x10x6xf32> to vector<10x6xf32>
      %c0_372 = arith.constant 0 : index
      %c54_373 = arith.constant 54 : index
      %353 = vector.load %arg16[%c0_372, %c54_373] : memref<10x150xf32, #tpu.memory_space<vmem>>, vector<10x6xf32>
      tpu.vector_store %arg16[%c0_372, %c54_373], %352 {strides = array<i32>} : memref<10x150xf32, #tpu.memory_space<vmem>>, vector<10x6xf32>,
      %c2_i32_374 = arith.constant 2 : i32
      %354 = arith.addi %303, %c2_i32_374 : i32
      %355 = arith.index_cast %354 : i32 to index
      %c0_375 = arith.constant 0 : index
      %c0_376 = arith.constant 0 : index
      %356 = vector.load %arg15[%355, %c0_375, %c0_376] : memref<14x14x128xf32, #tpu.memory_space<vmem>>, vector<1x10x6xf32>
      %357 = vector.shape_cast %356 : vector<1x10x6xf32> to vector<10x6xf32>
      %c0_377 = arith.constant 0 : index
      %c60_378 = arith.constant 60 : index
      %358 = vector.load %arg16[%c0_377, %c60_378] : memref<10x150xf32, #tpu.memory_space<vmem>>, vector<10x6xf32>
      tpu.vector_store %arg16[%c0_377, %c60_378], %357 {strides = array<i32>} : memref<10x150xf32, #tpu.memory_space<vmem>>, vector<10x6xf32>,
      %c2_i32_379 = arith.constant 2 : i32
      %359 = arith.addi %303, %c2_i32_379 : i32
      %360 = arith.index_cast %359 : i32 to index
      %c1_380 = arith.constant 1 : index
      %c0_381 = arith.constant 0 : index
      %361 = vector.load %arg15[%360, %c1_380, %c0_381] : memref<14x14x128xf32, #tpu.memory_space<vmem>>, vector<1x10x6xf32>
      %362 = vector.shape_cast %361 : vector<1x10x6xf32> to vector<10x6xf32>
      %c0_382 = arith.constant 0 : index
      %c66_383 = arith.constant 66 : index
      %363 = vector.load %arg16[%c0_382, %c66_383] : memref<10x150xf32, #tpu.memory_space<vmem>>, vector<10x6xf32>
      tpu.vector_store %arg16[%c0_382, %c66_383], %362 {strides = array<i32>} : memref<10x150xf32, #tpu.memory_space<vmem>>, vector<10x6xf32>,
      %c2_i32_384 = arith.constant 2 : i32
      %364 = arith.addi %303, %c2_i32_384 : i32
      %365 = arith.index_cast %364 : i32 to index
      %c2_385 = arith.constant 2 : index
      %c0_386 = arith.constant 0 : index
      %366 = vector.load %arg15[%365, %c2_385, %c0_386] : memref<14x14x128xf32, #tpu.memory_space<vmem>>, vector<1x10x6xf32>
      %367 = vector.shape_cast %366 : vector<1x10x6xf32> to vector<10x6xf32>
      %c0_387 = arith.constant 0 : index
      %c72_388 = arith.constant 72 : index
      %368 = vector.load %arg16[%c0_387, %c72_388] : memref<10x150xf32, #tpu.memory_space<vmem>>, vector<10x6xf32>
      tpu.vector_store %arg16[%c0_387, %c72_388], %367 {strides = array<i32>} : memref<10x150xf32, #tpu.memory_space<vmem>>, vector<10x6xf32>,
      %c2_i32_389 = arith.constant 2 : i32
      %369 = arith.addi %303, %c2_i32_389 : i32
      %370 = arith.index_cast %369 : i32 to index
      %c3_390 = arith.constant 3 : index
      %c0_391 = arith.constant 0 : index
      %371 = vector.load %arg15[%370, %c3_390, %c0_391] : memref<14x14x128xf32, #tpu.memory_space<vmem>>, vector<1x10x6xf32>
      %372 = vector.shape_cast %371 : vector<1x10x6xf32> to vector<10x6xf32>
      %c0_392 = arith.constant 0 : index
      %c78_393 = arith.constant 78 : index
      %373 = vector.load %arg16[%c0_392, %c78_393] : memref<10x150xf32, #tpu.memory_space<vmem>>, vector<10x6xf32>
      tpu.vector_store %arg16[%c0_392, %c78_393], %372 {strides = array<i32>} : memref<10x150xf32, #tpu.memory_space<vmem>>, vector<10x6xf32>,
      %c2_i32_394 = arith.constant 2 : i32
      %374 = arith.addi %303, %c2_i32_394 : i32
      %375 = arith.index_cast %374 : i32 to index
      %c4_395 = arith.constant 4 : index
      %c0_396 = arith.constant 0 : index
      %376 = vector.load %arg15[%375, %c4_395, %c0_396] : memref<14x14x128xf32, #tpu.memory_space<vmem>>, vector<1x10x6xf32>
      %377 = vector.shape_cast %376 : vector<1x10x6xf32> to vector<10x6xf32>
      %c0_397 = arith.constant 0 : index
      %c84_398 = arith.constant 84 : index
      %378 = vector.load %arg16[%c0_397, %c84_398] : memref<10x150xf32, #tpu.memory_space<vmem>>, vector<10x6xf32>
      tpu.vector_store %arg16[%c0_397, %c84_398], %377 {strides = array<i32>} : memref<10x150xf32, #tpu.memory_space<vmem>>, vector<10x6xf32>,
      %c3_i32_399 = arith.constant 3 : i32
      %379 = arith.addi %303, %c3_i32_399 : i32
      %380 = arith.index_cast %379 : i32 to index
      %c0_400 = arith.constant 0 : index
      %c0_401 = arith.constant 0 : index
      %381 = vector.load %arg15[%380, %c0_400, %c0_401] : memref<14x14x128xf32, #tpu.memory_space<vmem>>, vector<1x10x6xf32>
      %382 = vector.shape_cast %381 : vector<1x10x6xf32> to vector<10x6xf32>
      %c0_402 = arith.constant 0 : index
      %c90_403 = arith.constant 90 : index
      %383 = vector.load %arg16[%c0_402, %c90_403] : memref<10x150xf32, #tpu.memory_space<vmem>>, vector<10x6xf32>
      tpu.vector_store %arg16[%c0_402, %c90_403], %382 {strides = array<i32>} : memref<10x150xf32, #tpu.memory_space<vmem>>, vector<10x6xf32>,
      %c3_i32_404 = arith.constant 3 : i32
      %384 = arith.addi %303, %c3_i32_404 : i32
      %385 = arith.index_cast %384 : i32 to index
      %c1_405 = arith.constant 1 : index
      %c0_406 = arith.constant 0 : index
      %386 = vector.load %arg15[%385, %c1_405, %c0_406] : memref<14x14x128xf32, #tpu.memory_space<vmem>>, vector<1x10x6xf32>
      %387 = vector.shape_cast %386 : vector<1x10x6xf32> to vector<10x6xf32>
      %c0_407 = arith.constant 0 : index
      %c96_408 = arith.constant 96 : index
      %388 = vector.load %arg16[%c0_407, %c96_408] : memref<10x150xf32, #tpu.memory_space<vmem>>, vector<10x6xf32>
      tpu.vector_store %arg16[%c0_407, %c96_408], %387 {strides = array<i32>} : memref<10x150xf32, #tpu.memory_space<vmem>>, vector<10x6xf32>,
      %c3_i32_409 = arith.constant 3 : i32
      %389 = arith.addi %303, %c3_i32_409 : i32
      %390 = arith.index_cast %389 : i32 to index
      %c2_410 = arith.constant 2 : index
      %c0_411 = arith.constant 0 : index
      %391 = vector.load %arg15[%390, %c2_410, %c0_411] : memref<14x14x128xf32, #tpu.memory_space<vmem>>, vector<1x10x6xf32>
      %392 = vector.shape_cast %391 : vector<1x10x6xf32> to vector<10x6xf32>
      %c0_412 = arith.constant 0 : index
      %c102_413 = arith.constant 102 : index
      %393 = vector.load %arg16[%c0_412, %c102_413] : memref<10x150xf32, #tpu.memory_space<vmem>>, vector<10x6xf32>
      tpu.vector_store %arg16[%c0_412, %c102_413], %392 {strides = array<i32>} : memref<10x150xf32, #tpu.memory_space<vmem>>, vector<10x6xf32>,
      %c3_i32_414 = arith.constant 3 : i32
      %394 = arith.addi %303, %c3_i32_414 : i32
      %395 = arith.index_cast %394 : i32 to index
      %c3_415 = arith.constant 3 : index
      %c0_416 = arith.constant 0 : index
      %396 = vector.load %arg15[%395, %c3_415, %c0_416] : memref<14x14x128xf32, #tpu.memory_space<vmem>>, vector<1x10x6xf32>
      %397 = vector.shape_cast %396 : vector<1x10x6xf32> to vector<10x6xf32>
      %c0_417 = arith.constant 0 : index
      %c108_418 = arith.constant 108 : index
      %398 = vector.load %arg16[%c0_417, %c108_418] : memref<10x150xf32, #tpu.memory_space<vmem>>, vector<10x6xf32>
      tpu.vector_store %arg16[%c0_417, %c108_418], %397 {strides = array<i32>} : memref<10x150xf32, #tpu.memory_space<vmem>>, vector<10x6xf32>,
      %c3_i32_419 = arith.constant 3 : i32
      %399 = arith.addi %303, %c3_i32_419 : i32
      %400 = arith.index_cast %399 : i32 to index
      %c4_420 = arith.constant 4 : index
      %c0_421 = arith.constant 0 : index
      %401 = vector.load %arg15[%400, %c4_420, %c0_421] : memref<14x14x128xf32, #tpu.memory_space<vmem>>, vector<1x10x6xf32>
      %402 = vector.shape_cast %401 : vector<1x10x6xf32> to vector<10x6xf32>
      %c0_422 = arith.constant 0 : index
      %c114_423 = arith.constant 114 : index
      %403 = vector.load %arg16[%c0_422, %c114_423] : memref<10x150xf32, #tpu.memory_space<vmem>>, vector<10x6xf32>
      tpu.vector_store %arg16[%c0_422, %c114_423], %402 {strides = array<i32>} : memref<10x150xf32, #tpu.memory_space<vmem>>, vector<10x6xf32>,
      %c4_i32_424 = arith.constant 4 : i32
      %404 = arith.addi %303, %c4_i32_424 : i32
      %405 = arith.index_cast %404 : i32 to index
      %c0_425 = arith.constant 0 : index
      %c0_426 = arith.constant 0 : index
      %406 = vector.load %arg15[%405, %c0_425, %c0_426] : memref<14x14x128xf32, #tpu.memory_space<vmem>>, vector<1x10x6xf32>
      %407 = vector.shape_cast %406 : vector<1x10x6xf32> to vector<10x6xf32>
      %c0_427 = arith.constant 0 : index
      %c120_428 = arith.constant 120 : index
      %408 = vector.load %arg16[%c0_427, %c120_428] : memref<10x150xf32, #tpu.memory_space<vmem>>, vector<10x6xf32>
      tpu.vector_store %arg16[%c0_427, %c120_428], %407 {strides = array<i32>} : memref<10x150xf32, #tpu.memory_space<vmem>>, vector<10x6xf32>,
      %c4_i32_429 = arith.constant 4 : i32
      %409 = arith.addi %303, %c4_i32_429 : i32
      %410 = arith.index_cast %409 : i32 to index
      %c1_430 = arith.constant 1 : index
      %c0_431 = arith.constant 0 : index
      %411 = vector.load %arg15[%410, %c1_430, %c0_431] : memref<14x14x128xf32, #tpu.memory_space<vmem>>, vector<1x10x6xf32>
      %412 = vector.shape_cast %411 : vector<1x10x6xf32> to vector<10x6xf32>
      %c0_432 = arith.constant 0 : index
      %c126_433 = arith.constant 126 : index
      %413 = vector.load %arg16[%c0_432, %c126_433] : memref<10x150xf32, #tpu.memory_space<vmem>>, vector<10x6xf32>
      tpu.vector_store %arg16[%c0_432, %c126_433], %412 {strides = array<i32>} : memref<10x150xf32, #tpu.memory_space<vmem>>, vector<10x6xf32>,
      %c4_i32_434 = arith.constant 4 : i32
      %414 = arith.addi %303, %c4_i32_434 : i32
      %415 = arith.index_cast %414 : i32 to index
      %c2_435 = arith.constant 2 : index
      %c0_436 = arith.constant 0 : index
      %416 = vector.load %arg15[%415, %c2_435, %c0_436] : memref<14x14x128xf32, #tpu.memory_space<vmem>>, vector<1x10x6xf32>
      %417 = vector.shape_cast %416 : vector<1x10x6xf32> to vector<10x6xf32>
      %c0_437 = arith.constant 0 : index
      %c132_438 = arith.constant 132 : index
      %418 = vector.load %arg16[%c0_437, %c132_438] : memref<10x150xf32, #tpu.memory_space<vmem>>, vector<10x6xf32>
      tpu.vector_store %arg16[%c0_437, %c132_438], %417 {strides = array<i32>} : memref<10x150xf32, #tpu.memory_space<vmem>>, vector<10x6xf32>,
      %c4_i32_439 = arith.constant 4 : i32
      %419 = arith.addi %303, %c4_i32_439 : i32
      %420 = arith.index_cast %419 : i32 to index
      %c3_440 = arith.constant 3 : index
      %c0_441 = arith.constant 0 : index
      %421 = vector.load %arg15[%420, %c3_440, %c0_441] : memref<14x14x128xf32, #tpu.memory_space<vmem>>, vector<1x10x6xf32>
      %422 = vector.shape_cast %421 : vector<1x10x6xf32> to vector<10x6xf32>
      %c0_442 = arith.constant 0 : index
      %c138_443 = arith.constant 138 : index
      %423 = vector.load %arg16[%c0_442, %c138_443] : memref<10x150xf32, #tpu.memory_space<vmem>>, vector<10x6xf32>
      tpu.vector_store %arg16[%c0_442, %c138_443], %422 {strides = array<i32>} : memref<10x150xf32, #tpu.memory_space<vmem>>, vector<10x6xf32>,
      %c4_i32_444 = arith.constant 4 : i32
      %424 = arith.addi %303, %c4_i32_444 : i32
      %425 = arith.index_cast %424 : i32 to index
      %c4_445 = arith.constant 4 : index
      %c0_446 = arith.constant 0 : index
      %426 = vector.load %arg15[%425, %c4_445, %c0_446] : memref<14x14x128xf32, #tpu.memory_space<vmem>>, vector<1x10x6xf32>
      %427 = vector.shape_cast %426 : vector<1x10x6xf32> to vector<10x6xf32>
      %c0_447 = arith.constant 0 : index
      %c144_448 = arith.constant 144 : index
      %428 = vector.load %arg16[%c0_447, %c144_448] : memref<10x150xf32, #tpu.memory_space<vmem>>, vector<10x6xf32>
      tpu.vector_store %arg16[%c0_447, %c144_448], %427 {strides = array<i32>} : memref<10x150xf32, #tpu.memory_space<vmem>>, vector<10x6xf32>,
      %c0_449 = arith.constant 0 : index
      %c0_450 = arith.constant 0 : index
      %429 = vector.load %arg16[%c0_449, %c0_450] : memref<10x150xf32, #tpu.memory_space<vmem>>, vector<10x150xf32>
      %c0_451 = arith.constant 0 : index
      %c0_452 = arith.constant 0 : index
      %430 = vector.load %arg4[%c0_451, %c0_452] : memref<150x128xf32, #tpu.memory_space<vmem>>, vector<150x128xf32>
      %cst_453 = arith.constant dense<0.000000e+00> : vector<10x128xf32>
      %431 = tpu.matmul %429, %430, %cst_453 {dimension_numbers = #tpu.dot_dimension_numbers<[1], [0], [0], [1], [0, 0, 1, 1], [], []>} : vector<10x150xf32>, vector<150x128xf32>, vector<10x128xf32> -> vector<10x128xf32>
      %c0_454 = arith.constant 0 : index
      %c0_455 = arith.constant 0 : index
      %432 = vector.load %arg5[%c0_454, %c0_455] : memref<1x128xf32, #tpu.memory_space<vmem>>, vector<1x128xf32>
      %433 = vector.broadcast %432 : vector<1x128xf32> to vector<10x128xf32>
      %434 = arith.addf %431, %433 : vector<10x128xf32>
      %cst_456 = arith.constant 0.000000e+00 : f32
      %435 = vector.broadcast %cst_456 : f32 to vector<10x128xf32>
      %436 = arith.maximumf %434, %435 : vector<10x128xf32>
      %437 = arith.maximumf %301, %436 : vector<10x128xf32>
      %c0_457 = arith.constant 0 : index
      %c0_458 = arith.constant 0 : index
      %438 = vector.load %arg17[%c0_457, %c0_458] : memref<10x128xf32, #tpu.memory_space<vmem>>, vector<10x128xf32>
      tpu.vector_store %arg17[%c0_457, %c0_458], %437 {strides = array<i32>} : memref<10x128xf32, #tpu.memory_space<vmem>>, vector<10x128xf32>,
      %c0_459 = arith.constant 0 : index
      %c0_460 = arith.constant 0 : index
      %439 = tpu.strided_load %arg17[%c0_459, %c0_460] {strides = array<i32: 2, 1>} : memref<10x128xf32, #tpu.memory_space<vmem>>, vector<5x128xf32>
      %c1_461 = arith.constant 1 : index
      %c0_462 = arith.constant 0 : index
      %440 = tpu.strided_load %arg17[%c1_461, %c0_462] {strides = array<i32: 2, 1>} : memref<10x128xf32, #tpu.memory_space<vmem>>, vector<5x128xf32>
      %441 = arith.maximumf %439, %440 : vector<5x128xf32>
      %442 = arith.index_cast %arg19 : i32 to index
      %c0_463 = arith.constant 0 : index
      %c0_464 = arith.constant 0 : index
      %443 = vector.load %arg18[%442, %c0_463, %c0_464] : memref<5x5x128xf32, #tpu.memory_space<vmem>>, vector<1x5x128xf32>
      %444 = vector.shape_cast %443 : vector<1x5x128xf32> to vector<5x128xf32>
      %445 = vector.shape_cast %441 : vector<5x128xf32> to vector<1x5x128xf32>
      tpu.vector_store %arg18[%442, %c0_463, %c0_464], %445 {strides = array<i32>} : memref<5x5x128xf32, #tpu.memory_space<vmem>>, vector<1x5x128xf32>,
    }
    %c5_i32_3 = arith.constant 5 : i32
    %c0 = arith.constant 0 : index
    %c0_4 = arith.constant 0 : index
    %2 = vector.load %arg7[%c0, %c0_4] : memref<1x128xf32, #tpu.memory_space<vmem>>, vector<1x128xf32>
    %c0_5 = arith.constant 0 : index
    %c0_6 = arith.constant 0 : index
    %c0_7 = arith.constant 0 : index
    %3 = vector.load %arg18[%c0_5, %c0_6, %c0_7] : memref<5x5x128xf32, #tpu.memory_space<vmem>>, vector<1x1x16xf32>
    %4 = vector.shape_cast %3 : vector<1x1x16xf32> to vector<1x16xf32>
    %c0_8 = arith.constant 0 : index
    %c0_9 = arith.constant 0 : index
    %c0_10 = arith.constant 0 : index
    %c0_11 = arith.constant 0 : index
    %5 = vector.load %arg6[%c0_8, %c0_9, %c0_10, %c0_11] : memref<5x5x16x128xf32, #tpu.memory_space<vmem>>, vector<1x1x16x128xf32>
    %6 = vector.shape_cast %5 : vector<1x1x16x128xf32> to vector<16x128xf32>
    %cst = arith.constant dense<0.000000e+00> : vector<1x128xf32>
    %7 = tpu.matmul %4, %6, %cst {dimension_numbers = #tpu.dot_dimension_numbers<[1], [0], [0], [1], [0, 0, 1, 1], [], []>} : vector<1x16xf32>, vector<16x128xf32>, vector<1x128xf32> -> vector<1x128xf32>
    %8 = arith.addf %2, %7 : vector<1x128xf32>
    %c0_12 = arith.constant 0 : index
    %c1 = arith.constant 1 : index
    %c0_13 = arith.constant 0 : index
    %9 = vector.load %arg18[%c0_12, %c1, %c0_13] : memref<5x5x128xf32, #tpu.memory_space<vmem>>, vector<1x1x16xf32>
    %10 = vector.shape_cast %9 : vector<1x1x16xf32> to vector<1x16xf32>
    %c0_14 = arith.constant 0 : index
    %c1_15 = arith.constant 1 : index
    %c0_16 = arith.constant 0 : index
    %c0_17 = arith.constant 0 : index
    %11 = vector.load %arg6[%c0_14, %c1_15, %c0_16, %c0_17] : memref<5x5x16x128xf32, #tpu.memory_space<vmem>>, vector<1x1x16x128xf32>
    %12 = vector.shape_cast %11 : vector<1x1x16x128xf32> to vector<16x128xf32>
    %cst_18 = arith.constant dense<0.000000e+00> : vector<1x128xf32>
    %13 = tpu.matmul %10, %12, %cst_18 {dimension_numbers = #tpu.dot_dimension_numbers<[1], [0], [0], [1], [0, 0, 1, 1], [], []>} : vector<1x16xf32>, vector<16x128xf32>, vector<1x128xf32> -> vector<1x128xf32>
    %14 = arith.addf %8, %13 : vector<1x128xf32>
    %c0_19 = arith.constant 0 : index
    %c2 = arith.constant 2 : index
    %c0_20 = arith.constant 0 : index
    %15 = vector.load %arg18[%c0_19, %c2, %c0_20] : memref<5x5x128xf32, #tpu.memory_space<vmem>>, vector<1x1x16xf32>
    %16 = vector.shape_cast %15 : vector<1x1x16xf32> to vector<1x16xf32>
    %c0_21 = arith.constant 0 : index
    %c2_22 = arith.constant 2 : index
    %c0_23 = arith.constant 0 : index
    %c0_24 = arith.constant 0 : index
    %17 = vector.load %arg6[%c0_21, %c2_22, %c0_23, %c0_24] : memref<5x5x16x128xf32, #tpu.memory_space<vmem>>, vector<1x1x16x128xf32>
    %18 = vector.shape_cast %17 : vector<1x1x16x128xf32> to vector<16x128xf32>
    %cst_25 = arith.constant dense<0.000000e+00> : vector<1x128xf32>
    %19 = tpu.matmul %16, %18, %cst_25 {dimension_numbers = #tpu.dot_dimension_numbers<[1], [0], [0], [1], [0, 0, 1, 1], [], []>} : vector<1x16xf32>, vector<16x128xf32>, vector<1x128xf32> -> vector<1x128xf32>
    %20 = arith.addf %14, %19 : vector<1x128xf32>
    %c0_26 = arith.constant 0 : index
    %c3 = arith.constant 3 : index
    %c0_27 = arith.constant 0 : index
    %21 = vector.load %arg18[%c0_26, %c3, %c0_27] : memref<5x5x128xf32, #tpu.memory_space<vmem>>, vector<1x1x16xf32>
    %22 = vector.shape_cast %21 : vector<1x1x16xf32> to vector<1x16xf32>
    %c0_28 = arith.constant 0 : index
    %c3_29 = arith.constant 3 : index
    %c0_30 = arith.constant 0 : index
    %c0_31 = arith.constant 0 : index
    %23 = vector.load %arg6[%c0_28, %c3_29, %c0_30, %c0_31] : memref<5x5x16x128xf32, #tpu.memory_space<vmem>>, vector<1x1x16x128xf32>
    %24 = vector.shape_cast %23 : vector<1x1x16x128xf32> to vector<16x128xf32>
    %cst_32 = arith.constant dense<0.000000e+00> : vector<1x128xf32>
    %25 = tpu.matmul %22, %24, %cst_32 {dimension_numbers = #tpu.dot_dimension_numbers<[1], [0], [0], [1], [0, 0, 1, 1], [], []>} : vector<1x16xf32>, vector<16x128xf32>, vector<1x128xf32> -> vector<1x128xf32>
    %26 = arith.addf %20, %25 : vector<1x128xf32>
    %c0_33 = arith.constant 0 : index
    %c4 = arith.constant 4 : index
    %c0_34 = arith.constant 0 : index
    %27 = vector.load %arg18[%c0_33, %c4, %c0_34] : memref<5x5x128xf32, #tpu.memory_space<vmem>>, vector<1x1x16xf32>
    %28 = vector.shape_cast %27 : vector<1x1x16xf32> to vector<1x16xf32>
    %c0_35 = arith.constant 0 : index
    %c4_36 = arith.constant 4 : index
    %c0_37 = arith.constant 0 : index
    %c0_38 = arith.constant 0 : index
    %29 = vector.load %arg6[%c0_35, %c4_36, %c0_37, %c0_38] : memref<5x5x16x128xf32, #tpu.memory_space<vmem>>, vector<1x1x16x128xf32>
    %30 = vector.shape_cast %29 : vector<1x1x16x128xf32> to vector<16x128xf32>
    %cst_39 = arith.constant dense<0.000000e+00> : vector<1x128xf32>
    %31 = tpu.matmul %28, %30, %cst_39 {dimension_numbers = #tpu.dot_dimension_numbers<[1], [0], [0], [1], [0, 0, 1, 1], [], []>} : vector<1x16xf32>, vector<16x128xf32>, vector<1x128xf32> -> vector<1x128xf32>
    %32 = arith.addf %26, %31 : vector<1x128xf32>
    %c1_40 = arith.constant 1 : index
    %c0_41 = arith.constant 0 : index
    %c0_42 = arith.constant 0 : index
    %33 = vector.load %arg18[%c1_40, %c0_41, %c0_42] : memref<5x5x128xf32, #tpu.memory_space<vmem>>, vector<1x1x16xf32>
    %34 = vector.shape_cast %33 : vector<1x1x16xf32> to vector<1x16xf32>
    %c1_43 = arith.constant 1 : index
    %c0_44 = arith.constant 0 : index
    %c0_45 = arith.constant 0 : index
    %c0_46 = arith.constant 0 : index
    %35 = vector.load %arg6[%c1_43, %c0_44, %c0_45, %c0_46] : memref<5x5x16x128xf32, #tpu.memory_space<vmem>>, vector<1x1x16x128xf32>
    %36 = vector.shape_cast %35 : vector<1x1x16x128xf32> to vector<16x128xf32>
    %cst_47 = arith.constant dense<0.000000e+00> : vector<1x128xf32>
    %37 = tpu.matmul %34, %36, %cst_47 {dimension_numbers = #tpu.dot_dimension_numbers<[1], [0], [0], [1], [0, 0, 1, 1], [], []>} : vector<1x16xf32>, vector<16x128xf32>, vector<1x128xf32> -> vector<1x128xf32>
    %38 = arith.addf %32, %37 : vector<1x128xf32>
    %c1_48 = arith.constant 1 : index
    %c1_49 = arith.constant 1 : index
    %c0_50 = arith.constant 0 : index
    %39 = vector.load %arg18[%c1_48, %c1_49, %c0_50] : memref<5x5x128xf32, #tpu.memory_space<vmem>>, vector<1x1x16xf32>
    %40 = vector.shape_cast %39 : vector<1x1x16xf32> to vector<1x16xf32>
    %c1_51 = arith.constant 1 : index
    %c1_52 = arith.constant 1 : index
    %c0_53 = arith.constant 0 : index
    %c0_54 = arith.constant 0 : index
    %41 = vector.load %arg6[%c1_51, %c1_52, %c0_53, %c0_54] : memref<5x5x16x128xf32, #tpu.memory_space<vmem>>, vector<1x1x16x128xf32>
    %42 = vector.shape_cast %41 : vector<1x1x16x128xf32> to vector<16x128xf32>
    %cst_55 = arith.constant dense<0.000000e+00> : vector<1x128xf32>
    %43 = tpu.matmul %40, %42, %cst_55 {dimension_numbers = #tpu.dot_dimension_numbers<[1], [0], [0], [1], [0, 0, 1, 1], [], []>} : vector<1x16xf32>, vector<16x128xf32>, vector<1x128xf32> -> vector<1x128xf32>
    %44 = arith.addf %38, %43 : vector<1x128xf32>
    %c1_56 = arith.constant 1 : index
    %c2_57 = arith.constant 2 : index
    %c0_58 = arith.constant 0 : index
    %45 = vector.load %arg18[%c1_56, %c2_57, %c0_58] : memref<5x5x128xf32, #tpu.memory_space<vmem>>, vector<1x1x16xf32>
    %46 = vector.shape_cast %45 : vector<1x1x16xf32> to vector<1x16xf32>
    %c1_59 = arith.constant 1 : index
    %c2_60 = arith.constant 2 : index
    %c0_61 = arith.constant 0 : index
    %c0_62 = arith.constant 0 : index
    %47 = vector.load %arg6[%c1_59, %c2_60, %c0_61, %c0_62] : memref<5x5x16x128xf32, #tpu.memory_space<vmem>>, vector<1x1x16x128xf32>
    %48 = vector.shape_cast %47 : vector<1x1x16x128xf32> to vector<16x128xf32>
    %cst_63 = arith.constant dense<0.000000e+00> : vector<1x128xf32>
    %49 = tpu.matmul %46, %48, %cst_63 {dimension_numbers = #tpu.dot_dimension_numbers<[1], [0], [0], [1], [0, 0, 1, 1], [], []>} : vector<1x16xf32>, vector<16x128xf32>, vector<1x128xf32> -> vector<1x128xf32>
    %50 = arith.addf %44, %49 : vector<1x128xf32>
    %c1_64 = arith.constant 1 : index
    %c3_65 = arith.constant 3 : index
    %c0_66 = arith.constant 0 : index
    %51 = vector.load %arg18[%c1_64, %c3_65, %c0_66] : memref<5x5x128xf32, #tpu.memory_space<vmem>>, vector<1x1x16xf32>
    %52 = vector.shape_cast %51 : vector<1x1x16xf32> to vector<1x16xf32>
    %c1_67 = arith.constant 1 : index
    %c3_68 = arith.constant 3 : index
    %c0_69 = arith.constant 0 : index
    %c0_70 = arith.constant 0 : index
    %53 = vector.load %arg6[%c1_67, %c3_68, %c0_69, %c0_70] : memref<5x5x16x128xf32, #tpu.memory_space<vmem>>, vector<1x1x16x128xf32>
    %54 = vector.shape_cast %53 : vector<1x1x16x128xf32> to vector<16x128xf32>
    %cst_71 = arith.constant dense<0.000000e+00> : vector<1x128xf32>
    %55 = tpu.matmul %52, %54, %cst_71 {dimension_numbers = #tpu.dot_dimension_numbers<[1], [0], [0], [1], [0, 0, 1, 1], [], []>} : vector<1x16xf32>, vector<16x128xf32>, vector<1x128xf32> -> vector<1x128xf32>
    %56 = arith.addf %50, %55 : vector<1x128xf32>
    %c1_72 = arith.constant 1 : index
    %c4_73 = arith.constant 4 : index
    %c0_74 = arith.constant 0 : index
    %57 = vector.load %arg18[%c1_72, %c4_73, %c0_74] : memref<5x5x128xf32, #tpu.memory_space<vmem>>, vector<1x1x16xf32>
    %58 = vector.shape_cast %57 : vector<1x1x16xf32> to vector<1x16xf32>
    %c1_75 = arith.constant 1 : index
    %c4_76 = arith.constant 4 : index
    %c0_77 = arith.constant 0 : index
    %c0_78 = arith.constant 0 : index
    %59 = vector.load %arg6[%c1_75, %c4_76, %c0_77, %c0_78] : memref<5x5x16x128xf32, #tpu.memory_space<vmem>>, vector<1x1x16x128xf32>
    %60 = vector.shape_cast %59 : vector<1x1x16x128xf32> to vector<16x128xf32>
    %cst_79 = arith.constant dense<0.000000e+00> : vector<1x128xf32>
    %61 = tpu.matmul %58, %60, %cst_79 {dimension_numbers = #tpu.dot_dimension_numbers<[1], [0], [0], [1], [0, 0, 1, 1], [], []>} : vector<1x16xf32>, vector<16x128xf32>, vector<1x128xf32> -> vector<1x128xf32>
    %62 = arith.addf %56, %61 : vector<1x128xf32>
    %c2_80 = arith.constant 2 : index
    %c0_81 = arith.constant 0 : index
    %c0_82 = arith.constant 0 : index
    %63 = vector.load %arg18[%c2_80, %c0_81, %c0_82] : memref<5x5x128xf32, #tpu.memory_space<vmem>>, vector<1x1x16xf32>
    %64 = vector.shape_cast %63 : vector<1x1x16xf32> to vector<1x16xf32>
    %c2_83 = arith.constant 2 : index
    %c0_84 = arith.constant 0 : index
    %c0_85 = arith.constant 0 : index
    %c0_86 = arith.constant 0 : index
    %65 = vector.load %arg6[%c2_83, %c0_84, %c0_85, %c0_86] : memref<5x5x16x128xf32, #tpu.memory_space<vmem>>, vector<1x1x16x128xf32>
    %66 = vector.shape_cast %65 : vector<1x1x16x128xf32> to vector<16x128xf32>
    %cst_87 = arith.constant dense<0.000000e+00> : vector<1x128xf32>
    %67 = tpu.matmul %64, %66, %cst_87 {dimension_numbers = #tpu.dot_dimension_numbers<[1], [0], [0], [1], [0, 0, 1, 1], [], []>} : vector<1x16xf32>, vector<16x128xf32>, vector<1x128xf32> -> vector<1x128xf32>
    %68 = arith.addf %62, %67 : vector<1x128xf32>
    %c2_88 = arith.constant 2 : index
    %c1_89 = arith.constant 1 : index
    %c0_90 = arith.constant 0 : index
    %69 = vector.load %arg18[%c2_88, %c1_89, %c0_90] : memref<5x5x128xf32, #tpu.memory_space<vmem>>, vector<1x1x16xf32>
    %70 = vector.shape_cast %69 : vector<1x1x16xf32> to vector<1x16xf32>
    %c2_91 = arith.constant 2 : index
    %c1_92 = arith.constant 1 : index
    %c0_93 = arith.constant 0 : index
    %c0_94 = arith.constant 0 : index
    %71 = vector.load %arg6[%c2_91, %c1_92, %c0_93, %c0_94] : memref<5x5x16x128xf32, #tpu.memory_space<vmem>>, vector<1x1x16x128xf32>
    %72 = vector.shape_cast %71 : vector<1x1x16x128xf32> to vector<16x128xf32>
    %cst_95 = arith.constant dense<0.000000e+00> : vector<1x128xf32>
    %73 = tpu.matmul %70, %72, %cst_95 {dimension_numbers = #tpu.dot_dimension_numbers<[1], [0], [0], [1], [0, 0, 1, 1], [], []>} : vector<1x16xf32>, vector<16x128xf32>, vector<1x128xf32> -> vector<1x128xf32>
    %74 = arith.addf %68, %73 : vector<1x128xf32>
    %c2_96 = arith.constant 2 : index
    %c2_97 = arith.constant 2 : index
    %c0_98 = arith.constant 0 : index
    %75 = vector.load %arg18[%c2_96, %c2_97, %c0_98] : memref<5x5x128xf32, #tpu.memory_space<vmem>>, vector<1x1x16xf32>
    %76 = vector.shape_cast %75 : vector<1x1x16xf32> to vector<1x16xf32>
    %c2_99 = arith.constant 2 : index
    %c2_100 = arith.constant 2 : index
    %c0_101 = arith.constant 0 : index
    %c0_102 = arith.constant 0 : index
    %77 = vector.load %arg6[%c2_99, %c2_100, %c0_101, %c0_102] : memref<5x5x16x128xf32, #tpu.memory_space<vmem>>, vector<1x1x16x128xf32>
    %78 = vector.shape_cast %77 : vector<1x1x16x128xf32> to vector<16x128xf32>
    %cst_103 = arith.constant dense<0.000000e+00> : vector<1x128xf32>
    %79 = tpu.matmul %76, %78, %cst_103 {dimension_numbers = #tpu.dot_dimension_numbers<[1], [0], [0], [1], [0, 0, 1, 1], [], []>} : vector<1x16xf32>, vector<16x128xf32>, vector<1x128xf32> -> vector<1x128xf32>
    %80 = arith.addf %74, %79 : vector<1x128xf32>
    %c2_104 = arith.constant 2 : index
    %c3_105 = arith.constant 3 : index
    %c0_106 = arith.constant 0 : index
    %81 = vector.load %arg18[%c2_104, %c3_105, %c0_106] : memref<5x5x128xf32, #tpu.memory_space<vmem>>, vector<1x1x16xf32>
    %82 = vector.shape_cast %81 : vector<1x1x16xf32> to vector<1x16xf32>
    %c2_107 = arith.constant 2 : index
    %c3_108 = arith.constant 3 : index
    %c0_109 = arith.constant 0 : index
    %c0_110 = arith.constant 0 : index
    %83 = vector.load %arg6[%c2_107, %c3_108, %c0_109, %c0_110] : memref<5x5x16x128xf32, #tpu.memory_space<vmem>>, vector<1x1x16x128xf32>
    %84 = vector.shape_cast %83 : vector<1x1x16x128xf32> to vector<16x128xf32>
    %cst_111 = arith.constant dense<0.000000e+00> : vector<1x128xf32>
    %85 = tpu.matmul %82, %84, %cst_111 {dimension_numbers = #tpu.dot_dimension_numbers<[1], [0], [0], [1], [0, 0, 1, 1], [], []>} : vector<1x16xf32>, vector<16x128xf32>, vector<1x128xf32> -> vector<1x128xf32>
    %86 = arith.addf %80, %85 : vector<1x128xf32>
    %c2_112 = arith.constant 2 : index
    %c4_113 = arith.constant 4 : index
    %c0_114 = arith.constant 0 : index
    %87 = vector.load %arg18[%c2_112, %c4_113, %c0_114] : memref<5x5x128xf32, #tpu.memory_space<vmem>>, vector<1x1x16xf32>
    %88 = vector.shape_cast %87 : vector<1x1x16xf32> to vector<1x16xf32>
    %c2_115 = arith.constant 2 : index
    %c4_116 = arith.constant 4 : index
    %c0_117 = arith.constant 0 : index
    %c0_118 = arith.constant 0 : index
    %89 = vector.load %arg6[%c2_115, %c4_116, %c0_117, %c0_118] : memref<5x5x16x128xf32, #tpu.memory_space<vmem>>, vector<1x1x16x128xf32>
    %90 = vector.shape_cast %89 : vector<1x1x16x128xf32> to vector<16x128xf32>
    %cst_119 = arith.constant dense<0.000000e+00> : vector<1x128xf32>
    %91 = tpu.matmul %88, %90, %cst_119 {dimension_numbers = #tpu.dot_dimension_numbers<[1], [0], [0], [1], [0, 0, 1, 1], [], []>} : vector<1x16xf32>, vector<16x128xf32>, vector<1x128xf32> -> vector<1x128xf32>
    %92 = arith.addf %86, %91 : vector<1x128xf32>
    %c3_120 = arith.constant 3 : index
    %c0_121 = arith.constant 0 : index
    %c0_122 = arith.constant 0 : index
    %93 = vector.load %arg18[%c3_120, %c0_121, %c0_122] : memref<5x5x128xf32, #tpu.memory_space<vmem>>, vector<1x1x16xf32>
    %94 = vector.shape_cast %93 : vector<1x1x16xf32> to vector<1x16xf32>
    %c3_123 = arith.constant 3 : index
    %c0_124 = arith.constant 0 : index
    %c0_125 = arith.constant 0 : index
    %c0_126 = arith.constant 0 : index
    %95 = vector.load %arg6[%c3_123, %c0_124, %c0_125, %c0_126] : memref<5x5x16x128xf32, #tpu.memory_space<vmem>>, vector<1x1x16x128xf32>
    %96 = vector.shape_cast %95 : vector<1x1x16x128xf32> to vector<16x128xf32>
    %cst_127 = arith.constant dense<0.000000e+00> : vector<1x128xf32>
    %97 = tpu.matmul %94, %96, %cst_127 {dimension_numbers = #tpu.dot_dimension_numbers<[1], [0], [0], [1], [0, 0, 1, 1], [], []>} : vector<1x16xf32>, vector<16x128xf32>, vector<1x128xf32> -> vector<1x128xf32>
    %98 = arith.addf %92, %97 : vector<1x128xf32>
    %c3_128 = arith.constant 3 : index
    %c1_129 = arith.constant 1 : index
    %c0_130 = arith.constant 0 : index
    %99 = vector.load %arg18[%c3_128, %c1_129, %c0_130] : memref<5x5x128xf32, #tpu.memory_space<vmem>>, vector<1x1x16xf32>
    %100 = vector.shape_cast %99 : vector<1x1x16xf32> to vector<1x16xf32>
    %c3_131 = arith.constant 3 : index
    %c1_132 = arith.constant 1 : index
    %c0_133 = arith.constant 0 : index
    %c0_134 = arith.constant 0 : index
    %101 = vector.load %arg6[%c3_131, %c1_132, %c0_133, %c0_134] : memref<5x5x16x128xf32, #tpu.memory_space<vmem>>, vector<1x1x16x128xf32>
    %102 = vector.shape_cast %101 : vector<1x1x16x128xf32> to vector<16x128xf32>
    %cst_135 = arith.constant dense<0.000000e+00> : vector<1x128xf32>
    %103 = tpu.matmul %100, %102, %cst_135 {dimension_numbers = #tpu.dot_dimension_numbers<[1], [0], [0], [1], [0, 0, 1, 1], [], []>} : vector<1x16xf32>, vector<16x128xf32>, vector<1x128xf32> -> vector<1x128xf32>
    %104 = arith.addf %98, %103 : vector<1x128xf32>
    %c3_136 = arith.constant 3 : index
    %c2_137 = arith.constant 2 : index
    %c0_138 = arith.constant 0 : index
    %105 = vector.load %arg18[%c3_136, %c2_137, %c0_138] : memref<5x5x128xf32, #tpu.memory_space<vmem>>, vector<1x1x16xf32>
    %106 = vector.shape_cast %105 : vector<1x1x16xf32> to vector<1x16xf32>
    %c3_139 = arith.constant 3 : index
    %c2_140 = arith.constant 2 : index
    %c0_141 = arith.constant 0 : index
    %c0_142 = arith.constant 0 : index
    %107 = vector.load %arg6[%c3_139, %c2_140, %c0_141, %c0_142] : memref<5x5x16x128xf32, #tpu.memory_space<vmem>>, vector<1x1x16x128xf32>
    %108 = vector.shape_cast %107 : vector<1x1x16x128xf32> to vector<16x128xf32>
    %cst_143 = arith.constant dense<0.000000e+00> : vector<1x128xf32>
    %109 = tpu.matmul %106, %108, %cst_143 {dimension_numbers = #tpu.dot_dimension_numbers<[1], [0], [0], [1], [0, 0, 1, 1], [], []>} : vector<1x16xf32>, vector<16x128xf32>, vector<1x128xf32> -> vector<1x128xf32>
    %110 = arith.addf %104, %109 : vector<1x128xf32>
    %c3_144 = arith.constant 3 : index
    %c3_145 = arith.constant 3 : index
    %c0_146 = arith.constant 0 : index
    %111 = vector.load %arg18[%c3_144, %c3_145, %c0_146] : memref<5x5x128xf32, #tpu.memory_space<vmem>>, vector<1x1x16xf32>
    %112 = vector.shape_cast %111 : vector<1x1x16xf32> to vector<1x16xf32>
    %c3_147 = arith.constant 3 : index
    %c3_148 = arith.constant 3 : index
    %c0_149 = arith.constant 0 : index
    %c0_150 = arith.constant 0 : index
    %113 = vector.load %arg6[%c3_147, %c3_148, %c0_149, %c0_150] : memref<5x5x16x128xf32, #tpu.memory_space<vmem>>, vector<1x1x16x128xf32>
    %114 = vector.shape_cast %113 : vector<1x1x16x128xf32> to vector<16x128xf32>
    %cst_151 = arith.constant dense<0.000000e+00> : vector<1x128xf32>
    %115 = tpu.matmul %112, %114, %cst_151 {dimension_numbers = #tpu.dot_dimension_numbers<[1], [0], [0], [1], [0, 0, 1, 1], [], []>} : vector<1x16xf32>, vector<16x128xf32>, vector<1x128xf32> -> vector<1x128xf32>
    %116 = arith.addf %110, %115 : vector<1x128xf32>
    %c3_152 = arith.constant 3 : index
    %c4_153 = arith.constant 4 : index
    %c0_154 = arith.constant 0 : index
    %117 = vector.load %arg18[%c3_152, %c4_153, %c0_154] : memref<5x5x128xf32, #tpu.memory_space<vmem>>, vector<1x1x16xf32>
    %118 = vector.shape_cast %117 : vector<1x1x16xf32> to vector<1x16xf32>
    %c3_155 = arith.constant 3 : index
    %c4_156 = arith.constant 4 : index
    %c0_157 = arith.constant 0 : index
    %c0_158 = arith.constant 0 : index
    %119 = vector.load %arg6[%c3_155, %c4_156, %c0_157, %c0_158] : memref<5x5x16x128xf32, #tpu.memory_space<vmem>>, vector<1x1x16x128xf32>
    %120 = vector.shape_cast %119 : vector<1x1x16x128xf32> to vector<16x128xf32>
    %cst_159 = arith.constant dense<0.000000e+00> : vector<1x128xf32>
    %121 = tpu.matmul %118, %120, %cst_159 {dimension_numbers = #tpu.dot_dimension_numbers<[1], [0], [0], [1], [0, 0, 1, 1], [], []>} : vector<1x16xf32>, vector<16x128xf32>, vector<1x128xf32> -> vector<1x128xf32>
    %122 = arith.addf %116, %121 : vector<1x128xf32>
    %c4_160 = arith.constant 4 : index
    %c0_161 = arith.constant 0 : index
    %c0_162 = arith.constant 0 : index
    %123 = vector.load %arg18[%c4_160, %c0_161, %c0_162] : memref<5x5x128xf32, #tpu.memory_space<vmem>>, vector<1x1x16xf32>
    %124 = vector.shape_cast %123 : vector<1x1x16xf32> to vector<1x16xf32>
    %c4_163 = arith.constant 4 : index
    %c0_164 = arith.constant 0 : index
    %c0_165 = arith.constant 0 : index
    %c0_166 = arith.constant 0 : index
    %125 = vector.load %arg6[%c4_163, %c0_164, %c0_165, %c0_166] : memref<5x5x16x128xf32, #tpu.memory_space<vmem>>, vector<1x1x16x128xf32>
    %126 = vector.shape_cast %125 : vector<1x1x16x128xf32> to vector<16x128xf32>
    %cst_167 = arith.constant dense<0.000000e+00> : vector<1x128xf32>
    %127 = tpu.matmul %124, %126, %cst_167 {dimension_numbers = #tpu.dot_dimension_numbers<[1], [0], [0], [1], [0, 0, 1, 1], [], []>} : vector<1x16xf32>, vector<16x128xf32>, vector<1x128xf32> -> vector<1x128xf32>
    %128 = arith.addf %122, %127 : vector<1x128xf32>
    %c4_168 = arith.constant 4 : index
    %c1_169 = arith.constant 1 : index
    %c0_170 = arith.constant 0 : index
    %129 = vector.load %arg18[%c4_168, %c1_169, %c0_170] : memref<5x5x128xf32, #tpu.memory_space<vmem>>, vector<1x1x16xf32>
    %130 = vector.shape_cast %129 : vector<1x1x16xf32> to vector<1x16xf32>
    %c4_171 = arith.constant 4 : index
    %c1_172 = arith.constant 1 : index
    %c0_173 = arith.constant 0 : index
    %c0_174 = arith.constant 0 : index
    %131 = vector.load %arg6[%c4_171, %c1_172, %c0_173, %c0_174] : memref<5x5x16x128xf32, #tpu.memory_space<vmem>>, vector<1x1x16x128xf32>
    %132 = vector.shape_cast %131 : vector<1x1x16x128xf32> to vector<16x128xf32>
    %cst_175 = arith.constant dense<0.000000e+00> : vector<1x128xf32>
    %133 = tpu.matmul %130, %132, %cst_175 {dimension_numbers = #tpu.dot_dimension_numbers<[1], [0], [0], [1], [0, 0, 1, 1], [], []>} : vector<1x16xf32>, vector<16x128xf32>, vector<1x128xf32> -> vector<1x128xf32>
    %134 = arith.addf %128, %133 : vector<1x128xf32>
    %c4_176 = arith.constant 4 : index
    %c2_177 = arith.constant 2 : index
    %c0_178 = arith.constant 0 : index
    %135 = vector.load %arg18[%c4_176, %c2_177, %c0_178] : memref<5x5x128xf32, #tpu.memory_space<vmem>>, vector<1x1x16xf32>
    %136 = vector.shape_cast %135 : vector<1x1x16xf32> to vector<1x16xf32>
    %c4_179 = arith.constant 4 : index
    %c2_180 = arith.constant 2 : index
    %c0_181 = arith.constant 0 : index
    %c0_182 = arith.constant 0 : index
    %137 = vector.load %arg6[%c4_179, %c2_180, %c0_181, %c0_182] : memref<5x5x16x128xf32, #tpu.memory_space<vmem>>, vector<1x1x16x128xf32>
    %138 = vector.shape_cast %137 : vector<1x1x16x128xf32> to vector<16x128xf32>
    %cst_183 = arith.constant dense<0.000000e+00> : vector<1x128xf32>
    %139 = tpu.matmul %136, %138, %cst_183 {dimension_numbers = #tpu.dot_dimension_numbers<[1], [0], [0], [1], [0, 0, 1, 1], [], []>} : vector<1x16xf32>, vector<16x128xf32>, vector<1x128xf32> -> vector<1x128xf32>
    %140 = arith.addf %134, %139 : vector<1x128xf32>
    %c4_184 = arith.constant 4 : index
    %c3_185 = arith.constant 3 : index
    %c0_186 = arith.constant 0 : index
    %141 = vector.load %arg18[%c4_184, %c3_185, %c0_186] : memref<5x5x128xf32, #tpu.memory_space<vmem>>, vector<1x1x16xf32>
    %142 = vector.shape_cast %141 : vector<1x1x16xf32> to vector<1x16xf32>
    %c4_187 = arith.constant 4 : index
    %c3_188 = arith.constant 3 : index
    %c0_189 = arith.constant 0 : index
    %c0_190 = arith.constant 0 : index
    %143 = vector.load %arg6[%c4_187, %c3_188, %c0_189, %c0_190] : memref<5x5x16x128xf32, #tpu.memory_space<vmem>>, vector<1x1x16x128xf32>
    %144 = vector.shape_cast %143 : vector<1x1x16x128xf32> to vector<16x128xf32>
    %cst_191 = arith.constant dense<0.000000e+00> : vector<1x128xf32>
    %145 = tpu.matmul %142, %144, %cst_191 {dimension_numbers = #tpu.dot_dimension_numbers<[1], [0], [0], [1], [0, 0, 1, 1], [], []>} : vector<1x16xf32>, vector<16x128xf32>, vector<1x128xf32> -> vector<1x128xf32>
    %146 = arith.addf %140, %145 : vector<1x128xf32>
    %c4_192 = arith.constant 4 : index
    %c4_193 = arith.constant 4 : index
    %c0_194 = arith.constant 0 : index
    %147 = vector.load %arg18[%c4_192, %c4_193, %c0_194] : memref<5x5x128xf32, #tpu.memory_space<vmem>>, vector<1x1x16xf32>
    %148 = vector.shape_cast %147 : vector<1x1x16xf32> to vector<1x16xf32>
    %c4_195 = arith.constant 4 : index
    %c4_196 = arith.constant 4 : index
    %c0_197 = arith.constant 0 : index
    %c0_198 = arith.constant 0 : index
    %149 = vector.load %arg6[%c4_195, %c4_196, %c0_197, %c0_198] : memref<5x5x16x128xf32, #tpu.memory_space<vmem>>, vector<1x1x16x128xf32>
    %150 = vector.shape_cast %149 : vector<1x1x16x128xf32> to vector<16x128xf32>
    %cst_199 = arith.constant dense<0.000000e+00> : vector<1x128xf32>
    %151 = tpu.matmul %148, %150, %cst_199 {dimension_numbers = #tpu.dot_dimension_numbers<[1], [0], [0], [1], [0, 0, 1, 1], [], []>} : vector<1x16xf32>, vector<16x128xf32>, vector<1x128xf32> -> vector<1x128xf32>
    %152 = arith.addf %146, %151 : vector<1x128xf32>
    %cst_200 = arith.constant 0.000000e+00 : f32
    %153 = vector.broadcast %cst_200 : f32 to vector<1x128xf32>
    %154 = arith.maximumf %152, %153 : vector<1x128xf32>
    %c0_201 = arith.constant 0 : index
    %c0_202 = arith.constant 0 : index
    %155 = vector.load %arg8[%c0_201, %c0_202] : memref<128x128xf32, #tpu.memory_space<vmem>>, vector<128x128xf32>
    %cst_203 = arith.constant dense<0.000000e+00> : vector<1x128xf32>
    %156 = tpu.matmul %154, %155, %cst_203 {dimension_numbers = #tpu.dot_dimension_numbers<[1], [0], [0], [1], [0, 0, 1, 1], [], []>} : vector<1x128xf32>, vector<128x128xf32>, vector<1x128xf32> -> vector<1x128xf32>
    %c0_204 = arith.constant 0 : index
    %c0_205 = arith.constant 0 : index
    %157 = vector.load %arg9[%c0_204, %c0_205] : memref<1x128xf32, #tpu.memory_space<vmem>>, vector<1x128xf32>
    %158 = arith.addf %156, %157 : vector<1x128xf32>
    %cst_206 = arith.constant 0.000000e+00 : f32
    %159 = vector.broadcast %cst_206 : f32 to vector<1x128xf32>
    %160 = arith.maximumf %158, %159 : vector<1x128xf32>
    %c0_207 = arith.constant 0 : index
    %c0_208 = arith.constant 0 : index
    %161 = vector.load %arg10[%c0_207, %c0_208] : memref<128x128xf32, #tpu.memory_space<vmem>>, vector<128x128xf32>
    %cst_209 = arith.constant dense<0.000000e+00> : vector<1x128xf32>
    %162 = tpu.matmul %160, %161, %cst_209 {dimension_numbers = #tpu.dot_dimension_numbers<[1], [0], [0], [1], [0, 0, 1, 1], [], []>} : vector<1x128xf32>, vector<128x128xf32>, vector<1x128xf32> -> vector<1x128xf32>
    %c0_210 = arith.constant 0 : index
    %c0_211 = arith.constant 0 : index
    %163 = vector.load %arg11[%c0_210, %c0_211] : memref<1x128xf32, #tpu.memory_space<vmem>>, vector<1x128xf32>
    %164 = arith.addf %162, %163 : vector<1x128xf32>
    %c0_212 = arith.constant 0 : index
    %c0_213 = arith.constant 0 : index
    %c0_214 = arith.constant 0 : index
    %165 = vector.load %arg12[%c0_212, %c0_213, %c0_214] : memref<1x1x128xf32, #tpu.memory_space<vmem>>, vector<1x1x128xf32>
    %166 = vector.shape_cast %165 : vector<1x1x128xf32> to vector<1x128xf32>
    %167 = vector.shape_cast %164 : vector<1x128xf32> to vector<1x1x128xf32>
    tpu.vector_store %arg12[%c0_212, %c0_213, %c0_214], %167 {strides = array<i32>} : memref<1x1x128xf32, #tpu.memory_space<vmem>>, vector<1x1x128xf32>,
    return
  }
  func.func @transform_0(%arg0: i32) -> (i32, i32, i32, i32) {
    %c0_i32 = arith.constant 0 : i32
    %c0_i32_0 = arith.constant 0 : i32
    %c0_i32_1 = arith.constant 0 : i32
    %c0_i32_2 = arith.constant 0 : i32
    return %arg0, %c0_i32, %c0_i32_0, %c0_i32_1 : i32, i32, i32, i32
  }
  func.func @transform_1(%arg0: i32) -> (i32, i32) {
    %c0_i32 = arith.constant 0 : i32
    %c0_i32_0 = arith.constant 0 : i32
    %c0_i32_1 = arith.constant 0 : i32
    return %c0_i32, %c0_i32_0 : i32, i32
  }
  func.func @transform_2(%arg0: i32) -> (i32, i32) {
    %c0_i32 = arith.constant 0 : i32
    %c0_i32_0 = arith.constant 0 : i32
    %c0_i32_1 = arith.constant 0 : i32
    return %c0_i32, %c0_i32_0 : i32, i32
  }
  func.func @transform_3(%arg0: i32) -> (i32, i32) {
    %c0_i32 = arith.constant 0 : i32
    %c0_i32_0 = arith.constant 0 : i32
    %c0_i32_1 = arith.constant 0 : i32
    return %c0_i32, %c0_i32_0 : i32, i32
  }
  func.func @transform_4(%arg0: i32) -> (i32, i32) {
    %c0_i32 = arith.constant 0 : i32
    %c0_i32_0 = arith.constant 0 : i32
    %c0_i32_1 = arith.constant 0 : i32
    return %c0_i32, %c0_i32_0 : i32, i32
  }
  func.func @transform_5(%arg0: i32) -> (i32, i32, i32, i32) {
    %c0_i32 = arith.constant 0 : i32
    %c0_i32_0 = arith.constant 0 : i32
    %c0_i32_1 = arith.constant 0 : i32
    %c0_i32_2 = arith.constant 0 : i32
    %c0_i32_3 = arith.constant 0 : i32
    return %c0_i32, %c0_i32_0, %c0_i32_1, %c0_i32_2 : i32, i32, i32, i32
  }
  func.func @transform_6(%arg0: i32) -> (i32, i32) {
    %c0_i32 = arith.constant 0 : i32
    %c0_i32_0 = arith.constant 0 : i32
    %c0_i32_1 = arith.constant 0 : i32
    return %c0_i32, %c0_i32_0 : i32, i32
  }
  func.func @transform_7(%arg0: i32) -> (i32, i32) {
    %c0_i32 = arith.constant 0 : i32
    %c0_i32_0 = arith.constant 0 : i32
    %c0_i32_1 = arith.constant 0 : i32
    return %c0_i32, %c0_i32_0 : i32, i32
  }
  func.func @transform_8(%arg0: i32) -> (i32, i32) {
    %c0_i32 = arith.constant 0 : i32
    %c0_i32_0 = arith.constant 0 : i32
    %c0_i32_1 = arith.constant 0 : i32
    return %c0_i32, %c0_i32_0 : i32, i32
  }
  func.func @transform_9(%arg0: i32) -> (i32, i32) {
    %c0_i32 = arith.constant 0 : i32
    %c0_i32_0 = arith.constant 0 : i32
    %c0_i32_1 = arith.constant 0 : i32
    return %c0_i32, %c0_i32_0 : i32, i32
  }
  func.func @transform_10(%arg0: i32) -> (i32, i32) {
    %c0_i32 = arith.constant 0 : i32
    %c0_i32_0 = arith.constant 0 : i32
    %c0_i32_1 = arith.constant 0 : i32
    return %c0_i32, %c0_i32_0 : i32, i32
  }
  func.func @transform_11(%arg0: i32) -> (i32, i32, i32) {
    %c0_i32 = arith.constant 0 : i32
    %c0_i32_0 = arith.constant 0 : i32
    %c0_i32_1 = arith.constant 0 : i32
    return %arg0, %c0_i32, %c0_i32_0 : i32, i32, i32
  }
}

</mosaic_0001>

<llo_original>
// kernel: lenet_cifar100_forward.1
$region0: #{lenet_cifar100_forward.1}
  #allocation0 [shape = 'u32[]', space=smem, size = 0x4, offset = 0x4, fixed_abs, tag = 'smem constant byte address 0x4 - core index']
  #allocation1 [shape = 'u32[144,128]{1,0:T(1,128)}', space=vmem, size = 0x12000, scoped, tag = 'internal scratch']
  #allocation2 [shape = 'f32[28,75]{1,0:T(8,128)}', space=vmem, size = 0x4000, scoped, tag = 'scratch operand']
  #allocation3 [shape = 'f32[28,128]{1,0:T(8,128)}', space=vmem, size = 0x4000, scoped, tag = 'scratch operand']
  #allocation4 [shape = 'f32[14,14,128]{2,1,0:T(8,128)}', space=vmem, size = 0x1c000, scoped, tag = 'scratch operand']
  #allocation5 [shape = 'f32[10,150]{1,0:T(8,128)}', space=vmem, size = 0x4000, scoped, tag = 'scratch operand']
  #allocation6 [shape = 'f32[10,128]{1,0:T(8,128)}', space=vmem, size = 0x2000, scoped, tag = 'scratch operand']
  #allocation7 [shape = 'f32[5,5,128]{2,1,0:T(8,128)}', space=vmem, size = 0x5000, scoped, tag = 'scratch operand']
  %s0 = inlined_call_operand.vmem [shape: f32[2,32,32,3], index: 0, kind: input, shape index: {}]
  %s1 = inlined_call_operand.vmem [shape: f32[75,128], index: 1, kind: input, shape index: {}]
  %s2 = inlined_call_operand.vmem [shape: f32[1,128], index: 2, kind: input, shape index: {}]
  %s3 = inlined_call_operand.vmem [shape: f32[150,128], index: 3, kind: input, shape index: {}]
  %s4 = inlined_call_operand.vmem [shape: f32[1,128], index: 4, kind: input, shape index: {}]
  %s5 = inlined_call_operand.vmem [shape: f32[5,5,16,128], index: 5, kind: input, shape index: {}]
  %s6 = inlined_call_operand.vmem [shape: f32[1,128], index: 6, kind: input, shape index: {}]
  %s7 = inlined_call_operand.vmem [shape: f32[128,128], index: 7, kind: input, shape index: {}]
  %s8 = inlined_call_operand.vmem [shape: f32[1,128], index: 8, kind: input, shape index: {}]
  %s9 = inlined_call_operand.vmem [shape: f32[128,128], index: 9, kind: input, shape index: {}]
  %s10 = inlined_call_operand.vmem [shape: f32[1,128], index: 10, kind: input, shape index: {}]
  %s11 = inlined_call_operand.hbm [shape: f32[2,1,128], index: 11, kind: output, shape index: {}]
  %s12 = sld [smem:[#allocation0]]
  $region91: #{lenet_cifar100_forward.1} parent=0
    _
  %s14 = ssub.s32 1, %s12
  %s15 = scalar_select 0, %s14, %s12
  $region1: #{lenet_cifar100_forward.1} parent=0
    #allocation8 [shape = 'u8[1024]{0}', space=vmem, size = 0x400, scoped, tag = 'output window, operand 0']
    #allocation9 [shape = 's32[2]{0}', space=sflag, size = 0x8, scoped, tag = 'scoped memory for lenet_cifar100_forward.1']
    %16 = vsyncpa [#allocation9], 0
    %s17 = scalar_lea.sflag [#allocation9], 1
    %18 = vsyncpa %s17, 0
    loop: start=0, step=1, limit=4
    $region2: #{lenet_cifar100_forward.1} parent=1 // loop_pre_header
      _
    $region3: #{lenet_cifar100_forward.1} parent=1 // loop_header
      %s20 = sphi 0, %s24
      %p21 = scmp.ge.s32.totalorder %s20, 4
      %s30 = sphi 0, %s32
      %s33 = sphi 0, %s30
      %s34 = sphi 0, %s33
      %s50 = sphi 0, %s34
      %s54 = sphi 0, %s54
      %s56 = sphi 0, %s54
      %s57 = sphi 0, %s56
      %s71 = sphi 0, %s57
      %s75 = sphi 0, %s75
      %s77 = sphi 0, %s75
      %s78 = sphi 0, %s77
      %s92 = sphi 0, %s78
      %s96 = sphi 0, %s96
      %s98 = sphi 0, %s96
      %s99 = sphi 0, %s98
      %s113 = sphi 0, %s99
      %s117 = sphi 0, %s117
      %s119 = sphi 0, %s117
      %s120 = sphi 0, %s119
      %s134 = sphi 0, %s120
      %s138 = sphi 0, %s138
      %s140 = sphi 0, %s138
      %s141 = sphi 0, %s140
      %s155 = sphi 0, %s141
      %s159 = sphi 0, %s159
      %s161 = sphi 0, %s159
      %s162 = sphi 0, %s161
      %s176 = sphi 0, %s162
      %s180 = sphi 0, %s180
      %s182 = sphi 0, %s180
      %s183 = sphi 0, %s182
      %s197 = sphi 0, %s183
      %s201 = sphi 0, %s201
      %s203 = sphi 0, %s201
      %s204 = sphi 0, %s203
      %s218 = sphi 0, %s204
      %s222 = sphi 0, %s222
      %s224 = sphi 0, %s222
      %s225 = sphi 0, %s224
      %s239 = sphi 0, %s225
      %s243 = sphi 0, %s243
      %s245 = sphi 0, %s243
      %s246 = sphi 0, %s245
      %s260 = sphi 0, %s246
      %s266 = sphi 0, %s268
      %s269 = sphi 0, %s266
      %s270 = sphi 0, %s269
      %s286 = sphi 0, %s270
    $region4: #{lenet_cifar100_forward.1} parent=1 // loop_header_branch
      %23 = sbr.rel (%p21) target = $region8
    $region5: #{lenet_cifar100_forward.1} parent=1 // loop_body
      %s25 = ssub.s32 %s20, 1
      %s26 = ssub.s32 %s20, 2
      %s27 = sadd.s32 %s20, 1
      %s28 = ssub.s32 %s20, %s27
      %p29 = scmp.eq.s32.totalorder %s28, 0
      %s31 = sadd.s32 %s30, 1
      %s32 = scalar_select %p29, %s30, %s31
      %p35 = pneg %p29
      %p36 = scmp.eq.s32.totalorder %s20, 1
      %p37 = por %p35, %p36
      %p38 = scmp.ne.s32.totalorder %s30, %s33
      %p39 = scmp.eq.s32.totalorder %s20, 0
      %p40 = por %p38, %p39
      %p41 = scmp.ne.s32.totalorder %s30, %s33
      %p42 = scmp.eq.s32.totalorder %s25, 1
      %p43 = por %p41, %p42
      %p44 = scmp.ne.s32.totalorder %s33, %s34
      %p45 = scmp.eq.s32.totalorder %s25, 0
      %p46 = por %p44, %p45
      %p47 = scmp.ne.s32.totalorder %s33, %s34
      %p48 = scmp.eq.s32.totalorder %s26, 1
      %p49 = por %p47, %p48
      %p51 = scmp.ne.s32.totalorder %s34, %s50
      %p52 = scmp.eq.s32.totalorder %s26, 0
      %p53 = por %p51, %p52
      %s55 = sadd.s32 %s54, 1
      %p58 = scmp.eq.s32.totalorder %s20, 1
      %p59 = scmp.ne.s32.totalorder %s54, %s56
      %p60 = scmp.eq.s32.totalorder %s20, 0
      %p61 = por %p59, %p60
      %p62 = scmp.ne.s32.totalorder %s54, %s56
      %p63 = scmp.eq.s32.totalorder %s25, 1
      %p64 = por %p62, %p63
      %p65 = scmp.ne.s32.totalorder %s56, %s57
      %p66 = scmp.eq.s32.totalorder %s25, 0
      %p67 = por %p65, %p66
      %p68 = scmp.ne.s32.totalorder %s56, %s57
      %p69 = scmp.eq.s32.totalorder %s26, 1
      %p70 = por %p68, %p69
      %p72 = scmp.ne.s32.totalorder %s57, %s71
      %p73 = scmp.eq.s32.totalorder %s26, 0
      %p74 = por %p72, %p73
      %s76 = sadd.s32 %s75, 1
      %p79 = scmp.eq.s32.totalorder %s20, 1
      %p80 = scmp.ne.s32.totalorder %s75, %s77
      %p81 = scmp.eq.s32.totalorder %s20, 0
      %p82 = por %p80, %p81
      %p83 = scmp.ne.s32.totalorder %s75, %s77
      %p84 = scmp.eq.s32.totalorder %s25, 1
      %p85 = por %p83, %p84
      %p86 = scmp.ne.s32.totalorder %s77, %s78
      %p87 = scmp.eq.s32.totalorder %s25, 0
      %p88 = por %p86, %p87
      %p89 = scmp.ne.s32.totalorder %s77, %s78
      %p90 = scmp.eq.s32.totalorder %s26, 1
      %p91 = por %p89, %p90
      %p93 = scmp.ne.s32.totalorder %s78, %s92
      %p94 = scmp.eq.s32.totalorder %s26, 0
      %p95 = por %p93, %p94
      %s97 = sadd.s32 %s96, 1
      %p100 = scmp.eq.s32.totalorder %s20, 1
      %p101 = scmp.ne.s32.totalorder %s96, %s98
      %p102 = scmp.eq.s32.totalorder %s20, 0
      %p103 = por %p101, %p102
      %p104 = scmp.ne.s32.totalorder %s96, %s98
      %p105 = scmp.eq.s32.totalorder %s25, 1
      %p106 = por %p104, %p105
      %p107 = scmp.ne.s32.totalorder %s98, %s99
      %p108 = scmp.eq.s32.totalorder %s25, 0
      %p109 = por %p107, %p108
      %p110 = scmp.ne.s32.totalorder %s98, %s99
      %p111 = scmp.eq.s32.totalorder %s26, 1
      %p112 = por %p110, %p111
      %p114 = scmp.ne.s32.totalorder %s99, %s113
      %p115 = scmp.eq.s32.totalorder %s26, 0
      %p116 = por %p114, %p115
      %s118 = sadd.s32 %s117, 1
      %p121 = scmp.eq.s32.totalorder %s20, 1
      %p122 = scmp.ne.s32.totalorder %s117, %s119
      %p123 = scmp.eq.s32.totalorder %s20, 0
      %p124 = por %p122, %p123
      %p125 = scmp.ne.s32.totalorder %s117, %s119
      %p126 = scmp.eq.s32.totalorder %s25, 1
      %p127 = por %p125, %p126
      %p128 = scmp.ne.s32.totalorder %s119, %s120
      %p129 = scmp.eq.s32.totalorder %s25, 0
      %p130 = por %p128, %p129
      %p131 = scmp.ne.s32.totalorder %s119, %s120
      %p132 = scmp.eq.s32.totalorder %s26, 1
      %p133 = por %p131, %p132
      %p135 = scmp.ne.s32.totalorder %s120, %s134
      %p136 = scmp.eq.s32.totalorder %s26, 0
      %p137 = por %p135, %p136
      %s139 = sadd.s32 %s138, 1
      %p142 = scmp.eq.s32.totalorder %s20, 1
      %p143 = scmp.ne.s32.totalorder %s138, %s140
      %p144 = scmp.eq.s32.totalorder %s20, 0
      %p145 = por %p143, %p144
      %p146 = scmp.ne.s32.totalorder %s138, %s140
      %p147 = scmp.eq.s32.totalorder %s25, 1
      %p148 = por %p146, %p147
      %p149 = scmp.ne.s32.totalorder %s140, %s141
      %p150 = scmp.eq.s32.totalorder %s25, 0
      %p151 = por %p149, %p150
      %p152 = scmp.ne.s32.totalorder %s140, %s141
      %p153 = scmp.eq.s32.totalorder %s26, 1
      %p154 = por %p152, %p153
      %p156 = scmp.ne.s32.totalorder %s141, %s155
      %p157 = scmp.eq.s32.totalorder %s26, 0
      %p158 = por %p156, %p157
      %s160 = sadd.s32 %s159, 1
      %p163 = scmp.eq.s32.totalorder %s20, 1
      %p164 = scmp.ne.s32.totalorder %s159, %s161
      %p165 = scmp.eq.s32.totalorder %s20, 0
      %p166 = por %p164, %p165
      %p167 = scmp.ne.s32.totalorder %s159, %s161
      %p168 = scmp.eq.s32.totalorder %s25, 1
      %p169 = por %p167, %p168
      %p170 = scmp.ne.s32.totalorder %s161, %s162
      %p171 = scmp.eq.s32.totalorder %s25, 0
      %p172 = por %p170, %p171
      %p173 = scmp.ne.s32.totalorder %s161, %s162
      %p174 = scmp.eq.s32.totalorder %s26, 1
      %p175 = por %p173, %p174
      %p177 = scmp.ne.s32.totalorder %s162, %s176
      %p178 = scmp.eq.s32.totalorder %s26, 0
      %p179 = por %p177, %p178
      %s181 = sadd.s32 %s180, 1
      %p184 = scmp.eq.s32.totalorder %s20, 1
      %p185 = scmp.ne.s32.totalorder %s180, %s182
      %p186 = scmp.eq.s32.totalorder %s20, 0
      %p187 = por %p185, %p186
      %p188 = scmp.ne.s32.totalorder %s180, %s182
      %p189 = scmp.eq.s32.totalorder %s25, 1
      %p190 = por %p188, %p189
      %p191 = scmp.ne.s32.totalorder %s182, %s183
      %p192 = scmp.eq.s32.totalorder %s25, 0
      %p193 = por %p191, %p192
      %p194 = scmp.ne.s32.totalorder %s182, %s183
      %p195 = scmp.eq.s32.totalorder %s26, 1
      %p196 = por %p194, %p195
      %p198 = scmp.ne.s32.totalorder %s183, %s197
      %p199 = scmp.eq.s32.totalorder %s26, 0
      %p200 = por %p198, %p199
      %s202 = sadd.s32 %s201, 1
      %p205 = scmp.eq.s32.totalorder %s20, 1
      %p206 = scmp.ne.s32.totalorder %s201, %s203
      %p207 = scmp.eq.s32.totalorder %s20, 0
      %p208 = por %p206, %p207
      %p209 = scmp.ne.s32.totalorder %s201, %s203
      %p210 = scmp.eq.s32.totalorder %s25, 1
      %p211 = por %p209, %p210
      %p212 = scmp.ne.s32.totalorder %s203, %s204
      %p213 = scmp.eq.s32.totalorder %s25, 0
      %p214 = por %p212, %p213
      %p215 = scmp.ne.s32.totalorder %s203, %s204
      %p216 = scmp.eq.s32.totalorder %s26, 1
      %p217 = por %p215, %p216
      %p219 = scmp.ne.s32.totalorder %s204, %s218
      %p220 = scmp.eq.s32.totalorder %s26, 0
      %p221 = por %p219, %p220
      %s223 = sadd.s32 %s222, 1
      %p226 = scmp.eq.s32.totalorder %s20, 1
      %p227 = scmp.ne.s32.totalorder %s222, %s224
      %p228 = scmp.eq.s32.totalorder %s20, 0
      %p229 = por %p227, %p228
      %p230 = scmp.ne.s32.totalorder %s222, %s224
      %p231 = scmp.eq.s32.totalorder %s25, 1
      %p232 = por %p230, %p231
      %p233 = scmp.ne.s32.totalorder %s224, %s225
      %p234 = scmp.eq.s32.totalorder %s25, 0
      %p235 = por %p233, %p234
      %p236 = scmp.ne.s32.totalorder %s224, %s225
      %p237 = scmp.eq.s32.totalorder %s26, 1
      %p238 = por %p236, %p237
      %p240 = scmp.ne.s32.totalorder %s225, %s239
      %p241 = scmp.eq.s32.totalorder %s26, 0
      %p242 = por %p240, %p241
      %s244 = sadd.s32 %s243, 1
      %p247 = scmp.eq.s32.totalorder %s20, 1
      %p248 = scmp.ne.s32.totalorder %s243, %s245
      %p249 = scmp.eq.s32.totalorder %s20, 0
      %p250 = por %p248, %p249
      %p251 = scmp.ne.s32.totalorder %s243, %s245
      %p252 = scmp.eq.s32.totalorder %s25, 1
      %p253 = por %p251, %p252
      %p254 = scmp.ne.s32.totalorder %s245, %s246
      %p255 = scmp.eq.s32.totalorder %s25, 0
      %p256 = por %p254, %p255
      %p257 = scmp.ne.s32.totalorder %s245, %s246
      %p258 = scmp.eq.s32.totalorder %s26, 1
      %p259 = por %p257, %p258
      %p261 = scmp.ne.s32.totalorder %s246, %s260
      %p262 = scmp.eq.s32.totalorder %s26, 0
      %p263 = por %p261, %p262
      %s264 = ssub.s32 %s20, %s27
      %p265 = scmp.eq.s32.totalorder %s264, 0
      %s267 = sadd.s32 %s266, 1
      %s268 = scalar_select %p265, %s266, %s267
      %p271 = pneg %p265
      %p272 = scmp.eq.s32.totalorder %s20, 1
      %p273 = por %p271, %p272
      %p274 = scmp.ne.s32.totalorder %s266, %s269
      %p275 = scmp.eq.s32.totalorder %s20, 0
      %p276 = por %p274, %p275
      %p277 = scmp.ne.s32.totalorder %s266, %s269
      %p278 = scmp.eq.s32.totalorder %s25, 1
      %p279 = por %p277, %p278
      %p280 = scmp.ne.s32.totalorder %s269, %s270
      %p281 = scmp.eq.s32.totalorder %s25, 0
      %p282 = por %p280, %p281
      %p283 = scmp.ne.s32.totalorder %s269, %s270
      %p284 = scmp.eq.s32.totalorder %s26, 1
      %p285 = por %p283, %p284
      %p287 = scmp.ne.s32.totalorder %s270, %s286
      %p288 = scmp.eq.s32.totalorder %s26, 0
      %p289 = por %p287, %p288
      %p290 = scmp.le.s32.totalorder 1, %s20
      %p291 = scmp.lt.s32.totalorder %s20, 3
      %p292 = pnand %p290, %p291
      %p293 = pneg %p292
      // Predicated region
      $region9: #{lenet_cifar100_forward.1} parent=5 // pred_check
        _
      $region10: #{lenet_cifar100_forward.1} parent=5 // pred_check_branch
        %295 = sbr.rel (%p292) target = $region12
      $region11: #{lenet_cifar100_forward.1} parent=5 // pred_region
        %s296 = ssub.s32 %s20, 1
        // Predicated region
        $region13: #{lenet_cifar100_forward.1} parent=11 // pred_check
          %p297 = pneg %p67
        $region14: #{lenet_cifar100_forward.1} parent=11 // pred_check_branch
          %299 = sbr.rel (%p297) target = $region16
        $region15: #{lenet_cifar100_forward.1} parent=11 // pred_region
          _
        $region16: #{lenet_cifar100_forward.1} parent=11 // pred_fallthru
          _
        // Predicated region
        $region17: #{lenet_cifar100_forward.1} parent=11 // pred_check
          %p300 = pneg %p88
        $region18: #{lenet_cifar100_forward.1} parent=11 // pred_check_branch
          %302 = sbr.rel (%p300) target = $region20
        $region19: #{lenet_cifar100_forward.1} parent=11 // pred_region
          _
        $region20: #{lenet_cifar100_forward.1} parent=11 // pred_fallthru
          _
        // Predicated region
        $region21: #{lenet_cifar100_forward.1} parent=11 // pred_check
          %p303 = pneg %p109
        $region22: #{lenet_cifar100_forward.1} parent=11 // pred_check_branch
          %305 = sbr.rel (%p303) target = $region24
        $region23: #{lenet_cifar100_forward.1} parent=11 // pred_region
          _
        $region24: #{lenet_cifar100_forward.1} parent=11 // pred_fallthru
          _
        // Predicated region
        $region25: #{lenet_cifar100_forward.1} parent=11 // pred_check
          %p306 = pneg %p130
        $region26: #{lenet_cifar100_forward.1} parent=11 // pred_check_branch
          %308 = sbr.rel (%p306) target = $region28
        $region27: #{lenet_cifar100_forward.1} parent=11 // pred_region
          _
        $region28: #{lenet_cifar100_forward.1} parent=11 // pred_fallthru
          _
        // Predicated region
        $region29: #{lenet_cifar100_forward.1} parent=11 // pred_check
          %p309 = pneg %p151
        $region30: #{lenet_cifar100_forward.1} parent=11 // pred_check_branch
          %311 = sbr.rel (%p309) target = $region32
        $region31: #{lenet_cifar100_forward.1} parent=11 // pred_region
          _
        $region32: #{lenet_cifar100_forward.1} parent=11 // pred_fallthru
          _
        // Predicated region
        $region33: #{lenet_cifar100_forward.1} parent=11 // pred_check
          %p312 = pneg %p172
        $region34: #{lenet_cifar100_forward.1} parent=11 // pred_check_branch
          %314 = sbr.rel (%p312) target = $region36
        $region35: #{lenet_cifar100_forward.1} parent=11 // pred_region
          _
        $region36: #{lenet_cifar100_forward.1} parent=11 // pred_fallthru
          _
        // Predicated region
        $region37: #{lenet_cifar100_forward.1} parent=11 // pred_check
          %p315 = pneg %p193
        $region38: #{lenet_cifar100_forward.1} parent=11 // pred_check_branch
          %317 = sbr.rel (%p315) target = $region40
        $region39: #{lenet_cifar100_forward.1} parent=11 // pred_region
          _
        $region40: #{lenet_cifar100_forward.1} parent=11 // pred_fallthru
          _
        // Predicated region
        $region41: #{lenet_cifar100_forward.1} parent=11 // pred_check
          %p318 = pneg %p214
        $region42: #{lenet_cifar100_forward.1} parent=11 // pred_check_branch
          %320 = sbr.rel (%p318) target = $region44
        $region43: #{lenet_cifar100_forward.1} parent=11 // pred_region
          _
        $region44: #{lenet_cifar100_forward.1} parent=11 // pred_fallthru
          _
        // Predicated region
        $region45: #{lenet_cifar100_forward.1} parent=11 // pred_check
          %p321 = pneg %p235
        $region46: #{lenet_cifar100_forward.1} parent=11 // pred_check_branch
          %323 = sbr.rel (%p321) target = $region48
        $region47: #{lenet_cifar100_forward.1} parent=11 // pred_region
          _
        $region48: #{lenet_cifar100_forward.1} parent=11 // pred_fallthru
          _
        // Predicated region
        $region49: #{lenet_cifar100_forward.1} parent=11 // pred_check
          %p324 = pneg %p256
        $region50: #{lenet_cifar100_forward.1} parent=11 // pred_check_branch
          %326 = sbr.rel (%p324) target = $region52
        $region51: #{lenet_cifar100_forward.1} parent=11 // pred_region
          _
        $region52: #{lenet_cifar100_forward.1} parent=11 // pred_fallthru
          _
      $region12: #{lenet_cifar100_forward.1} parent=5 // pred_fallthru
        _
      %p327 = scmp.lt.s32.totalorder %s20, 2
      // Predicated region
      $region53: #{lenet_cifar100_forward.1} parent=5 // pred_check
        %p328 = pneg %p327
      $region54: #{lenet_cifar100_forward.1} parent=5 // pred_check_branch
        %330 = sbr.rel (%p328) target = $region56
      $region55: #{lenet_cifar100_forward.1} parent=5 // pred_region
        // Predicated region
        $region57: #{lenet_cifar100_forward.1} parent=55 // pred_check
          %p331 = pneg %p40
        $region58: #{lenet_cifar100_forward.1} parent=55 // pred_check_branch
          %333 = sbr.rel (%p331) target = $region60
        $region59: #{lenet_cifar100_forward.1} parent=55 // pred_region
          %p334 = scmp.lt.s32.totalorder %s20, 1
          %s335 = scalar_select %p334, %s20, 1
          %s336 = smul.addr %s335, 128
          %s337 = smul.addr %s336, 8
          %s338 = scalar_lea.vmem %s0, %s337
        $region60: #{lenet_cifar100_forward.1} parent=55 // pred_fallthru
          _
      $region56: #{lenet_cifar100_forward.1} parent=5 // pred_fallthru
        _
      %p339 = scmp.le.s32.totalorder 1, %s20
      %p340 = scmp.lt.s32.totalorder %s20, 3
      %p341 = pnand %p339, %p340
      %p342 = pneg %p341
      // Predicated region
      $region61: #{lenet_cifar100_forward.1} parent=5 // pred_check
        _
      $region62: #{lenet_cifar100_forward.1} parent=5 // pred_check_branch
        %344 = sbr.rel (%p341) target = $region64
      $region63: #{lenet_cifar100_forward.1} parent=5 // pred_region
        %s345 = ssub.s32 %s20, 1
        %p346 = scmp.lt.s32.totalorder %s25, 1
        %s347 = scalar_select %p346, %s25, 1
        %s348 = smul.addr %s347, 128
        %s349 = smul.addr %s348, 8
        %s350 = scalar_lea.vmem %s0, %s349
        %p351 = pneg %p46
        %p352 = pneg %p43
        %p353 = pneg %p67
        %p354 = pneg %p64
        %p355 = pneg %p88
        %p356 = pneg %p85
        %p357 = pneg %p109
        %p358 = pneg %p106
        %p359 = pneg %p130
        %p360 = pneg %p127
        %p361 = pneg %p151
        %p362 = pneg %p148
        %p363 = pneg %p172
        %p364 = pneg %p169
        %p365 = pneg %p193
        %p366 = pneg %p190
        %p367 = pneg %p214
        %p368 = pneg %p211
        %p369 = pneg %p235
        %p370 = pneg %p232
        %p371 = pneg %p256
        %p372 = pneg %p253
        %p373 = pneg %p282
        %p374 = pneg %p279
        %s375 = sand.u32 %s269, 1
        %s376 = scalar_lea.sflag [#allocation9], %s375
        %s377 = sand.u32 %s269, 1
        %s378 = scalar_lea.vmem [#allocation8], %s377
        %p379 = scmp.lt.s32.totalorder %s25, 1
        %s380 = scalar_select %p379, %s25, 1
        %s381 = smul.addr %s380, 128
        %s382 = smul.addr %s381, 8
        %s383 = scalar_lea.vmem %s0, %s382
        loop: start=0, step=1, limit=14
        $region65: #{lenet_cifar100_forward.1} parent=63 // loop_pre_header
          _
        $region66: #{lenet_cifar100_forward.1} parent=63 // loop_header
          %s385 = sphi 0, %s389
          %p386 = scmp.ge.s32.totalorder %s385, 14
        $region67: #{lenet_cifar100_forward.1} parent=63 // loop_header_branch
          %388 = sbr.rel (%p386) target = $region71
        $region68: #{lenet_cifar100_forward.1} parent=63 // loop_body
          %s390 = smul.u32 %s385, 2
          %s391 = smul.u32 %s390, 32
          %s392 = scalar_lea.vmem %s383, %s391
          %v393 = vld [vmem:[%s392] sm:$0xff]
          %v394 = vld [vmem:[%s392 + $0x8] sm:$0xff]
          %v395 = vld [vmem:[%s392 + $0x10] sm:$0xff]
          %v396 = vld [vmem:[%s392 + $0x18] sm:$0xf]
          %vm397 = vcmask 23552
          %398 = vst.msk [vmem:[#allocation2] sm:$0xff] %vm397, %v393
          %399 = vst.msk [vmem:[#allocation2 + $0x8] sm:$0xff] %vm397, %v394
          %400 = vst.msk [vmem:[#allocation2 + $0x10] sm:$0xff] %vm397, %v395
          %vm401 = vcmask 19456
          %402 = vst.msk [vmem:[#allocation2 + $0x18] sm:$0xf] %vm401, %v396
          %v403 = vld [vmem:[%s392 + $0x1] sm:$0xff]
          %v404 = vld [vmem:[%s392 + $0x9] sm:$0xff]
          %v405 = vld [vmem:[%s392 + $0x11] sm:$0xff]
          %v406 = vld [vmem:[%s392 + $0x19] sm:$0xf]
          %411 = vrot.lane.b32.xlu0 %v403, 3
          %v412 = vpop.permute.xlu0 %411
          %413 = vrot.lane.b32.xlu0 %v404, 3
          %v414 = vpop.permute.xlu0 %413
          %415 = vrot.lane.b32.xlu0 %v405, 3
          %v416 = vpop.permute.xlu0 %415
          %417 = vrot.lane.b32.xlu0 %v406, 3
          %v418 = vpop.permute.xlu0 %417
          %vm423 = vcmask 48152
          %424 = vst.msk [vmem:[#allocation2] sm:$0xff] %vm423, %v412
          %425 = vst.msk [vmem:[#allocation2 + $0x8] sm:$0xff] %vm423, %v414
          %426 = vst.msk [vmem:[#allocation2 + $0x10] sm:$0xff] %vm423, %v416
          %vm427 = vcmask 44056
          %428 = vst.msk [vmem:[#allocation2 + $0x18] sm:$0xf] %vm427, %v418
          %v429 = vld [vmem:[%s392 + $0x2] sm:$0xff]
          %v430 = vld [vmem:[%s392 + $0xa] sm:$0xff]
          %v431 = vld [vmem:[%s392 + $0x12] sm:$0xff]
          %v432 = vld [vmem:[%s392 + $0x1a] sm:$0xf]
          %437 = vrot.lane.b32.xlu0 %v429, 6
          %v438 = vpop.permute.xlu0 %437
          %439 = vrot.lane.b32.xlu0 %v430, 6
          %v440 = vpop.permute.xlu0 %439
          %441 = vrot.lane.b32.xlu0 %v431, 6
          %v442 = vpop.permute.xlu0 %441
          %443 = vrot.lane.b32.xlu0 %v432, 6
          %v444 = vpop.permute.xlu0 %443
          %vm449 = vcmask 72752
          %450 = vst.msk [vmem:[#allocation2] sm:$0xff] %vm449, %v438
          %451 = vst.msk [vmem:[#allocation2 + $0x8] sm:$0xff] %vm449, %v440
          %452 = vst.msk [vmem:[#allocation2 + $0x10] sm:$0xff] %vm449, %v442
          %vm453 = vcmask 68656
          %454 = vst.msk [vmem:[#allocation2 + $0x18] sm:$0xf] %vm453, %v444
          %v455 = vld [vmem:[%s392 + $0x3] sm:$0xff]
          %v456 = vld [vmem:[%s392 + $0xb] sm:$0xff]
          %v457 = vld [vmem:[%s392 + $0x13] sm:$0xff]
          %v458 = vld [vmem:[%s392 + $0x1b] sm:$0xf]
          %463 = vrot.lane.b32.xlu0 %v455, 9
          %v464 = vpop.permute.xlu0 %463
          %465 = vrot.lane.b32.xlu0 %v456, 9
          %v466 = vpop.permute.xlu0 %465
          %467 = vrot.lane.b32.xlu0 %v457, 9
          %v468 = vpop.permute.xlu0 %467
          %469 = vrot.lane.b32.xlu0 %v458, 9
          %v470 = vpop.permute.xlu0 %469
          %vm475 = vcmask 97352
          %476 = vst.msk [vmem:[#allocation2] sm:$0xff] %vm475, %v464
          %477 = vst.msk [vmem:[#allocation2 + $0x8] sm:$0xff] %vm475, %v466
          %478 = vst.msk [vmem:[#allocation2 + $0x10] sm:$0xff] %vm475, %v468
          %vm479 = vcmask 93256
          %480 = vst.msk [vmem:[#allocation2 + $0x18] sm:$0xf] %vm479, %v470
          %v481 = vld [vmem:[%s392 + $0x4] sm:$0xff]
          %v482 = vld [vmem:[%s392 + $0xc] sm:$0xff]
          %v483 = vld [vmem:[%s392 + $0x14] sm:$0xff]
          %v484 = vld [vmem:[%s392 + $0x1c] sm:$0xf]
          %489 = vrot.lane.b32.xlu0 %v481, 12
          %v490 = vpop.permute.xlu0 %489
          %491 = vrot.lane.b32.xlu0 %v482, 12
          %v492 = vpop.permute.xlu0 %491
          %493 = vrot.lane.b32.xlu0 %v483, 12
          %v494 = vpop.permute.xlu0 %493
          %495 = vrot.lane.b32.xlu0 %v484, 12
          %v496 = vpop.permute.xlu0 %495
          %vm501 = vcmask 121952
          %502 = vst.msk [vmem:[#allocation2] sm:$0xff] %vm501, %v490
          %503 = vst.msk [vmem:[#allocation2 + $0x8] sm:$0xff] %vm501, %v492
          %504 = vst.msk [vmem:[#allocation2 + $0x10] sm:$0xff] %vm501, %v494
          %vm505 = vcmask 117856
          %506 = vst.msk [vmem:[#allocation2 + $0x18] sm:$0xf] %vm505, %v496
          %s507 = sadd.s32 %s390, 1
          %s508 = smul.u32 %s507, 32
          %s509 = scalar_lea.vmem %s383, %s508
          %v510 = vld [vmem:[%s509] sm:$0xff]
          %v511 = vld [vmem:[%s509 + $0x8] sm:$0xff]
          %v512 = vld [vmem:[%s509 + $0x10] sm:$0xff]
          %v513 = vld [vmem:[%s509 + $0x18] sm:$0xf]
          %518 = vrot.lane.b32.xlu0 %v510, 15
          %v519 = vpop.permute.xlu0 %518
          %520 = vrot.lane.b32.xlu0 %v511, 15
          %v521 = vpop.permute.xlu0 %520
          %522 = vrot.lane.b32.xlu0 %v512, 15
          %v523 = vpop.permute.xlu0 %522
          %524 = vrot.lane.b32.xlu0 %v513, 15
          %v525 = vpop.permute.xlu0 %524
          %vm530 = vcmask 146552
          %531 = vst.msk [vmem:[#allocation2] sm:$0xff] %vm530, %v519
          %532 = vst.msk [vmem:[#allocation2 + $0x8] sm:$0xff] %vm530, %v521
          %533 = vst.msk [vmem:[#allocation2 + $0x10] sm:$0xff] %vm530, %v523
          %vm534 = vcmask 142456
          %535 = vst.msk [vmem:[#allocation2 + $0x18] sm:$0xf] %vm534, %v525
          %v536 = vld [vmem:[%s509 + $0x1] sm:$0xff]
          %v537 = vld [vmem:[%s509 + $0x9] sm:$0xff]
          %v538 = vld [vmem:[%s509 + $0x11] sm:$0xff]
          %v539 = vld [vmem:[%s509 + $0x19] sm:$0xf]
          %544 = vrot.lane.b32.xlu0 %v536, 18
          %v545 = vpop.permute.xlu0 %544
          %546 = vrot.lane.b32.xlu0 %v537, 18
          %v547 = vpop.permute.xlu0 %546
          %548 = vrot.lane.b32.xlu0 %v538, 18
          %v549 = vpop.permute.xlu0 %548
          %550 = vrot.lane.b32.xlu0 %v539, 18
          %v551 = vpop.permute.xlu0 %550
          %vm556 = vcmask 171152
          %557 = vst.msk [vmem:[#allocation2] sm:$0xff] %vm556, %v545
          %558 = vst.msk [vmem:[#allocation2 + $0x8] sm:$0xff] %vm556, %v547
          %559 = vst.msk [vmem:[#allocation2 + $0x10] sm:$0xff] %vm556, %v549
          %vm560 = vcmask 167056
          %561 = vst.msk [vmem:[#allocation2 + $0x18] sm:$0xf] %vm560, %v551
          %v562 = vld [vmem:[%s509 + $0x2] sm:$0xff]
          %v563 = vld [vmem:[%s509 + $0xa] sm:$0xff]
          %v564 = vld [vmem:[%s509 + $0x12] sm:$0xff]
          %v565 = vld [vmem:[%s509 + $0x1a] sm:$0xf]
          %570 = vrot.lane.b32.xlu0 %v562, 21
          %v571 = vpop.permute.xlu0 %570
          %572 = vrot.lane.b32.xlu0 %v563, 21
          %v573 = vpop.permute.xlu0 %572
          %574 = vrot.lane.b32.xlu0 %v564, 21
          %v575 = vpop.permute.xlu0 %574
          %576 = vrot.lane.b32.xlu0 %v565, 21
          %v577 = vpop.permute.xlu0 %576
          %vm582 = vcmask 195752
          %583 = vst.msk [vmem:[#allocation2] sm:$0xff] %vm582, %v571
          %584 = vst.msk [vmem:[#allocation2 + $0x8] sm:$0xff] %vm582, %v573
          %585 = vst.msk [vmem:[#allocation2 + $0x10] sm:$0xff] %vm582, %v575
          %vm586 = vcmask 191656
          %587 = vst.msk [vmem:[#allocation2 + $0x18] sm:$0xf] %vm586, %v577
          %v588 = vld [vmem:[%s509 + $0x3] sm:$0xff]
          %v589 = vld [vmem:[%s509 + $0xb] sm:$0xff]
          %v590 = vld [vmem:[%s509 + $0x13] sm:$0xff]
          %v591 = vld [vmem:[%s509 + $0x1b] sm:$0xf]
          %596 = vrot.lane.b32.xlu0 %v588, 24
          %v597 = vpop.permute.xlu0 %596
          %598 = vrot.lane.b32.xlu0 %v589, 24
          %v599 = vpop.permute.xlu0 %598
          %600 = vrot.lane.b32.xlu0 %v590, 24
          %v601 = vpop.permute.xlu0 %600
          %602 = vrot.lane.b32.xlu0 %v591, 24
          %v603 = vpop.permute.xlu0 %602
          %vm608 = vcmask 220352
          %609 = vst.msk [vmem:[#allocation2] sm:$0xff] %vm608, %v597
          %610 = vst.msk [vmem:[#allocation2 + $0x8] sm:$0xff] %vm608, %v599
          %611 = vst.msk [vmem:[#allocation2 + $0x10] sm:$0xff] %vm608, %v601
          %vm612 = vcmask 216256
          %613 = vst.msk [vmem:[#allocation2 + $0x18] sm:$0xf] %vm612, %v603
          %v614 = vld [vmem:[%s509 + $0x4] sm:$0xff]
          %v615 = vld [vmem:[%s509 + $0xc] sm:$0xff]
          %v616 = vld [vmem:[%s509 + $0x14] sm:$0xff]
          %v617 = vld [vmem:[%s509 + $0x1c] sm:$0xf]
          %622 = vrot.lane.b32.xlu0 %v614, 27
          %v623 = vpop.permute.xlu0 %622
          %624 = vrot.lane.b32.xlu0 %v615, 27
          %v625 = vpop.permute.xlu0 %624
          %626 = vrot.lane.b32.xlu0 %v616, 27
          %v627 = vpop.permute.xlu0 %626
          %628 = vrot.lane.b32.xlu0 %v617, 27
          %v629 = vpop.permute.xlu0 %628
          %vm634 = vcmask 244952
          %635 = vst.msk [vmem:[#allocation2] sm:$0xff] %vm634, %v623
          %636 = vst.msk [vmem:[#allocation2 + $0x8] sm:$0xff] %vm634, %v625
          %637 = vst.msk [vmem:[#allocation2 + $0x10] sm:$0xff] %vm634, %v627
          %vm638 = vcmask 240856
          %639 = vst.msk [vmem:[#allocation2 + $0x18] sm:$0xf] %vm638, %v629
          %s640 = sadd.s32 %s390, 2
          %s641 = smul.u32 %s640, 32
          %s642 = scalar_lea.vmem %s383, %s641
          %v643 = vld [vmem:[%s642] sm:$0xff]
          %v644 = vld [vmem:[%s642 + $0x8] sm:$0xff]
          %v645 = vld [vmem:[%s642 + $0x10] sm:$0xff]
          %v646 = vld [vmem:[%s642 + $0x18] sm:$0xf]
          %651 = vrot.lane.b32.xlu0 %v643, 30
          %v652 = vpop.permute.xlu0 %651
          %653 = vrot.lane.b32.xlu0 %v644, 30
          %v654 = vpop.permute.xlu0 %653
          %655 = vrot.lane.b32.xlu0 %v645, 30
          %v656 = vpop.permute.xlu0 %655
          %657 = vrot.lane.b32.xlu0 %v646, 30
          %v658 = vpop.permute.xlu0 %657
          %vm663 = vcmask 269552
          %664 = vst.msk [vmem:[#allocation2] sm:$0xff] %vm663, %v652
          %665 = vst.msk [vmem:[#allocation2 + $0x8] sm:$0xff] %vm663, %v654
          %666 = vst.msk [vmem:[#allocation2 + $0x10] sm:$0xff] %vm663, %v656
          %vm667 = vcmask 265456
          %668 = vst.msk [vmem:[#allocation2 + $0x18] sm:$0xf] %vm667, %v658
          %v669 = vld [vmem:[%s642 + $0x1] sm:$0xff]
          %v670 = vld [vmem:[%s642 + $0x9] sm:$0xff]
          %v671 = vld [vmem:[%s642 + $0x11] sm:$0xff]
          %v672 = vld [vmem:[%s642 + $0x19] sm:$0xf]
          %677 = vrot.lane.b32.xlu0 %v669, 33
          %v678 = vpop.permute.xlu0 %677
          %679 = vrot.lane.b32.xlu0 %v670, 33
          %v680 = vpop.permute.xlu0 %679
          %681 = vrot.lane.b32.xlu0 %v671, 33
          %v682 = vpop.permute.xlu0 %681
          %683 = vrot.lane.b32.xlu0 %v672, 33
          %v684 = vpop.permute.xlu0 %683
          %vm689 = vcmask 294152
          %690 = vst.msk [vmem:[#allocation2] sm:$0xff] %vm689, %v678
          %691 = vst.msk [vmem:[#allocation2 + $0x8] sm:$0xff] %vm689, %v680
          %692 = vst.msk [vmem:[#allocation2 + $0x10] sm:$0xff] %vm689, %v682
          %vm693 = vcmask 290056
          %694 = vst.msk [vmem:[#allocation2 + $0x18] sm:$0xf] %vm693, %v684
          %v695 = vld [vmem:[%s642 + $0x2] sm:$0xff]
          %v696 = vld [vmem:[%s642 + $0xa] sm:$0xff]
          %v697 = vld [vmem:[%s642 + $0x12] sm:$0xff]
          %v698 = vld [vmem:[%s642 + $0x1a] sm:$0xf]
          %703 = vrot.lane.b32.xlu0 %v695, 36
          %v704 = vpop.permute.xlu0 %703
          %705 = vrot.lane.b32.xlu0 %v696, 36
          %v706 = vpop.permute.xlu0 %705
          %707 = vrot.lane.b32.xlu0 %v697, 36
          %v708 = vpop.permute.xlu0 %707
          %709 = vrot.lane.b32.xlu0 %v698, 36
          %v710 = vpop.permute.xlu0 %709
          %vm715 = vcmask 318752
          %716 = vst.msk [vmem:[#allocation2] sm:$0xff] %vm715, %v704
          %717 = vst.msk [vmem:[#allocation2 + $0x8] sm:$0xff] %vm715, %v706
          %718 = vst.msk [vmem:[#allocation2 + $0x10] sm:$0xff] %vm715, %v708
          %vm719 = vcmask 314656
          %720 = vst.msk [vmem:[#allocation2 + $0x18] sm:$0xf] %vm719, %v710
          %v721 = vld [vmem:[%s642 + $0x3] sm:$0xff]
          %v722 = vld [vmem:[%s642 + $0xb] sm:$0xff]
          %v723 = vld [vmem:[%s642 + $0x13] sm:$0xff]
          %v724 = vld [vmem:[%s642 + $0x1b] sm:$0xf]
          %729 = vrot.lane.b32.xlu0 %v721, 39
          %v730 = vpop.permute.xlu0 %729
          %731 = vrot.lane.b32.xlu0 %v722, 39
          %v732 = vpop.permute.xlu0 %731
          %733 = vrot.lane.b32.xlu0 %v723, 39
          %v734 = vpop.permute.xlu0 %733
          %735 = vrot.lane.b32.xlu0 %v724, 39
          %v736 = vpop.permute.xlu0 %735
          %vm741 = vcmask 343352
          %742 = vst.msk [vmem:[#allocation2] sm:$0xff] %vm741, %v730
          %743 = vst.msk [vmem:[#allocation2 + $0x8] sm:$0xff] %vm741, %v732
          %744 = vst.msk [vmem:[#allocation2 + $0x10] sm:$0xff] %vm741, %v734
          %vm745 = vcmask 339256
          %746 = vst.msk [vmem:[#allocation2 + $0x18] sm:$0xf] %vm745, %v736
          %v747 = vld [vmem:[%s642 + $0x4] sm:$0xff]
          %v748 = vld [vmem:[%s642 + $0xc] sm:$0xff]
          %v749 = vld [vmem:[%s642 + $0x14] sm:$0xff]
          %v750 = vld [vmem:[%s642 + $0x1c] sm:$0xf]
          %755 = vrot.lane.b32.xlu0 %v747, 42
          %v756 = vpop.permute.xlu0 %755
          %757 = vrot.lane.b32.xlu0 %v748, 42
          %v758 = vpop.permute.xlu0 %757
          %759 = vrot.lane.b32.xlu0 %v749, 42
          %v760 = vpop.permute.xlu0 %759
          %761 = vrot.lane.b32.xlu0 %v750, 42
          %v762 = vpop.permute.xlu0 %761
          %vm767 = vcmask 367952
          %768 = vst.msk [vmem:[#allocation2] sm:$0xff] %vm767, %v756
          %769 = vst.msk [vmem:[#allocation2 + $0x8] sm:$0xff] %vm767, %v758
          %770 = vst.msk [vmem:[#allocation2 + $0x10] sm:$0xff] %vm767, %v760
          %vm771 = vcmask 363856
          %772 = vst.msk [vmem:[#allocation2 + $0x18] sm:$0xf] %vm771, %v762
          %s773 = sadd.s32 %s390, 3
          %s774 = smul.u32 %s773, 32
          %s775 = scalar_lea.vmem %s383, %s774
          %v776 = vld [vmem:[%s775] sm:$0xff]
          %v777 = vld [vmem:[%s775 + $0x8] sm:$0xff]
          %v778 = vld [vmem:[%s775 + $0x10] sm:$0xff]
          %v779 = vld [vmem:[%s775 + $0x18] sm:$0xf]
          %784 = vrot.lane.b32.xlu0 %v776, 45
          %v785 = vpop.permute.xlu0 %784
          %786 = vrot.lane.b32.xlu0 %v777, 45
          %v787 = vpop.permute.xlu0 %786
          %788 = vrot.lane.b32.xlu0 %v778, 45
          %v789 = vpop.permute.xlu0 %788
          %790 = vrot.lane.b32.xlu0 %v779, 45
          %v791 = vpop.permute.xlu0 %790
          %vm796 = vcmask 392552
          %797 = vst.msk [vmem:[#allocation2] sm:$0xff] %vm796, %v785
          %798 = vst.msk [vmem:[#allocation2 + $0x8] sm:$0xff] %vm796, %v787
          %799 = vst.msk [vmem:[#allocation2 + $0x10] sm:$0xff] %vm796, %v789
          %vm800 = vcmask 388456
          %801 = vst.msk [vmem:[#allocation2 + $0x18] sm:$0xf] %vm800, %v791
          %v802 = vld [vmem:[%s775 + $0x1] sm:$0xff]
          %v803 = vld [vmem:[%s775 + $0x9] sm:$0xff]
          %v804 = vld [vmem:[%s775 + $0x11] sm:$0xff]
          %v805 = vld [vmem:[%s775 + $0x19] sm:$0xf]
          %810 = vrot.lane.b32.xlu0 %v802, 48
          %v811 = vpop.permute.xlu0 %810
          %812 = vrot.lane.b32.xlu0 %v803, 48
          %v813 = vpop.permute.xlu0 %812
          %814 = vrot.lane.b32.xlu0 %v804, 48
          %v815 = vpop.permute.xlu0 %814
          %816 = vrot.lane.b32.xlu0 %v805, 48
          %v817 = vpop.permute.xlu0 %816
          %vm822 = vcmask 417152
          %823 = vst.msk [vmem:[#allocation2] sm:$0xff] %vm822, %v811
          %824 = vst.msk [vmem:[#allocation2 + $0x8] sm:$0xff] %vm822, %v813
          %825 = vst.msk [vmem:[#allocation2 + $0x10] sm:$0xff] %vm822, %v815
          %vm826 = vcmask 413056
          %827 = vst.msk [vmem:[#allocation2 + $0x18] sm:$0xf] %vm826, %v817
          %v828 = vld [vmem:[%s775 + $0x2] sm:$0xff]
          %v829 = vld [vmem:[%s775 + $0xa] sm:$0xff]
          %v830 = vld [vmem:[%s775 + $0x12] sm:$0xff]
          %v831 = vld [vmem:[%s775 + $0x1a] sm:$0xf]
          %836 = vrot.lane.b32.xlu0 %v828, 51
          %v837 = vpop.permute.xlu0 %836
          %838 = vrot.lane.b32.xlu0 %v829, 51
          %v839 = vpop.permute.xlu0 %838
          %840 = vrot.lane.b32.xlu0 %v830, 51
          %v841 = vpop.permute.xlu0 %840
          %842 = vrot.lane.b32.xlu0 %v831, 51
          %v843 = vpop.permute.xlu0 %842
          %vm848 = vcmask 441752
          %849 = vst.msk [vmem:[#allocation2] sm:$0xff] %vm848, %v837
          %850 = vst.msk [vmem:[#allocation2 + $0x8] sm:$0xff] %vm848, %v839
          %851 = vst.msk [vmem:[#allocation2 + $0x10] sm:$0xff] %vm848, %v841
          %vm852 = vcmask 437656
          %853 = vst.msk [vmem:[#allocation2 + $0x18] sm:$0xf] %vm852, %v843
          %v854 = vld [vmem:[%s775 + $0x3] sm:$0xff]
          %v855 = vld [vmem:[%s775 + $0xb] sm:$0xff]
          %v856 = vld [vmem:[%s775 + $0x13] sm:$0xff]
          %v857 = vld [vmem:[%s775 + $0x1b] sm:$0xf]
          %862 = vrot.lane.b32.xlu0 %v854, 54
          %v863 = vpop.permute.xlu0 %862
          %864 = vrot.lane.b32.xlu0 %v855, 54
          %v865 = vpop.permute.xlu0 %864
          %866 = vrot.lane.b32.xlu0 %v856, 54
          %v867 = vpop.permute.xlu0 %866
          %868 = vrot.lane.b32.xlu0 %v857, 54
          %v869 = vpop.permute.xlu0 %868
          %vm874 = vcmask 466352
          %875 = vst.msk [vmem:[#allocation2] sm:$0xff] %vm874, %v863
          %876 = vst.msk [vmem:[#allocation2 + $0x8] sm:$0xff] %vm874, %v865
          %877 = vst.msk [vmem:[#allocation2 + $0x10] sm:$0xff] %vm874, %v867
          %vm878 = vcmask 462256
          %879 = vst.msk [vmem:[#allocation2 + $0x18] sm:$0xf] %vm878, %v869
          %v880 = vld [vmem:[%s775 + $0x4] sm:$0xff]
          %v881 = vld [vmem:[%s775 + $0xc] sm:$0xff]
          %v882 = vld [vmem:[%s775 + $0x14] sm:$0xff]
          %v883 = vld [vmem:[%s775 + $0x1c] sm:$0xf]
          %888 = vrot.lane.b32.xlu0 %v880, 57
          %v889 = vpop.permute.xlu0 %888
          %890 = vrot.lane.b32.xlu0 %v881, 57
          %v891 = vpop.permute.xlu0 %890
          %892 = vrot.lane.b32.xlu0 %v882, 57
          %v893 = vpop.permute.xlu0 %892
          %894 = vrot.lane.b32.xlu0 %v883, 57
          %v895 = vpop.permute.xlu0 %894
          %vm900 = vcmask 490952
          %901 = vst.msk [vmem:[#allocation2] sm:$0xff] %vm900, %v889
          %902 = vst.msk [vmem:[#allocation2 + $0x8] sm:$0xff] %vm900, %v891
          %903 = vst.msk [vmem:[#allocation2 + $0x10] sm:$0xff] %vm900, %v893
          %vm904 = vcmask 486856
          %905 = vst.msk [vmem:[#allocation2 + $0x18] sm:$0xf] %vm904, %v895
          %s906 = sadd.s32 %s390, 4
          %s907 = smul.u32 %s906, 32
          %s908 = scalar_lea.vmem %s383, %s907
          %v909 = vld [vmem:[%s908] sm:$0xff]
          %v910 = vld [vmem:[%s908 + $0x8] sm:$0xff]
          %v911 = vld [vmem:[%s908 + $0x10] sm:$0xff]
          %v912 = vld [vmem:[%s908 + $0x18] sm:$0xf]
          %917 = vrot.lane.b32.xlu0 %v909, 60
          %v918 = vpop.permute.xlu0 %917
          %919 = vrot.lane.b32.xlu0 %v910, 60
          %v920 = vpop.permute.xlu0 %919
          %921 = vrot.lane.b32.xlu0 %v911, 60
          %v922 = vpop.permute.xlu0 %921
          %923 = vrot.lane.b32.xlu0 %v912, 60
          %v924 = vpop.permute.xlu0 %923
          %vm929 = vcmask 515552
          %930 = vst.msk [vmem:[#allocation2] sm:$0xff] %vm929, %v918
          %931 = vst.msk [vmem:[#allocation2 + $0x8] sm:$0xff] %vm929, %v920
          %932 = vst.msk [vmem:[#allocation2 + $0x10] sm:$0xff] %vm929, %v922
          %vm933 = vcmask 511456
          %934 = vst.msk [vmem:[#allocation2 + $0x18] sm:$0xf] %vm933, %v924
          %v935 = vld [vmem:[%s908 + $0x1] sm:$0xff]
          %v936 = vld [vmem:[%s908 + $0x9] sm:$0xff]
          %v937 = vld [vmem:[%s908 + $0x11] sm:$0xff]
          %v938 = vld [vmem:[%s908 + $0x19] sm:$0xf]
          %943 = vrot.lane.b32.xlu0 %v935, 63
          %v944 = vpop.permute.xlu0 %943
          %945 = vrot.lane.b32.xlu0 %v936, 63
          %v946 = vpop.permute.xlu0 %945
          %947 = vrot.lane.b32.xlu0 %v937, 63
          %v948 = vpop.permute.xlu0 %947
          %949 = vrot.lane.b32.xlu0 %v938, 63
          %v950 = vpop.permute.xlu0 %949
          %vm955 = vcmask 540152
          %956 = vst.msk [vmem:[#allocation2] sm:$0xff] %vm955, %v944
          %957 = vst.msk [vmem:[#allocation2 + $0x8] sm:$0xff] %vm955, %v946
          %958 = vst.msk [vmem:[#allocation2 + $0x10] sm:$0xff] %vm955, %v948
          %vm959 = vcmask 536056
          %960 = vst.msk [vmem:[#allocation2 + $0x18] sm:$0xf] %vm959, %v950
          %v961 = vld [vmem:[%s908 + $0x2] sm:$0xff]
          %v962 = vld [vmem:[%s908 + $0xa] sm:$0xff]
          %v963 = vld [vmem:[%s908 + $0x12] sm:$0xff]
          %v964 = vld [vmem:[%s908 + $0x1a] sm:$0xf]
          %969 = vrot.lane.b32.xlu0 %v961, 66
          %v970 = vpop.permute.xlu0 %969
          %971 = vrot.lane.b32.xlu0 %v962, 66
          %v972 = vpop.permute.xlu0 %971
          %973 = vrot.lane.b32.xlu0 %v963, 66
          %v974 = vpop.permute.xlu0 %973
          %975 = vrot.lane.b32.xlu0 %v964, 66
          %v976 = vpop.permute.xlu0 %975
          %vm981 = vcmask 564752
          %982 = vst.msk [vmem:[#allocation2] sm:$0xff] %vm981, %v970
          %983 = vst.msk [vmem:[#allocation2 + $0x8] sm:$0xff] %vm981, %v972
          %984 = vst.msk [vmem:[#allocation2 + $0x10] sm:$0xff] %vm981, %v974
          %vm985 = vcmask 560656
          %986 = vst.msk [vmem:[#allocation2 + $0x18] sm:$0xf] %vm985, %v976
          %v987 = vld [vmem:[%s908 + $0x3] sm:$0xff]
          %v988 = vld [vmem:[%s908 + $0xb] sm:$0xff]
          %v989 = vld [vmem:[%s908 + $0x13] sm:$0xff]
          %v990 = vld [vmem:[%s908 + $0x1b] sm:$0xf]
          %995 = vrot.lane.b32.xlu0 %v987, 69
          %v996 = vpop.permute.xlu0 %995
          %997 = vrot.lane.b32.xlu0 %v988, 69
          %v998 = vpop.permute.xlu0 %997
          %999 = vrot.lane.b32.xlu0 %v989, 69
          %v1000 = vpop.permute.xlu0 %999
          %1001 = vrot.lane.b32.xlu0 %v990, 69
          %v1002 = vpop.permute.xlu0 %1001
          %vm1007 = vcmask 589352
          %1008 = vst.msk [vmem:[#allocation2] sm:$0xff] %vm1007, %v996
          %1009 = vst.msk [vmem:[#allocation2 + $0x8] sm:$0xff] %vm1007, %v998
          %1010 = vst.msk [vmem:[#allocation2 + $0x10] sm:$0xff] %vm1007, %v1000
          %vm1011 = vcmask 585256
          %1012 = vst.msk [vmem:[#allocation2 + $0x18] sm:$0xf] %vm1011, %v1002
          %v1013 = vld [vmem:[%s908 + $0x4] sm:$0xff]
          %v1014 = vld [vmem:[%s908 + $0xc] sm:$0xff]
          %v1015 = vld [vmem:[%s908 + $0x14] sm:$0xff]
          %v1016 = vld [vmem:[%s908 + $0x1c] sm:$0xf]
          %1021 = vrot.lane.b32.xlu0 %v1013, 72
          %v1022 = vpop.permute.xlu0 %1021
          %1023 = vrot.lane.b32.xlu0 %v1014, 72
          %v1024 = vpop.permute.xlu0 %1023
          %1025 = vrot.lane.b32.xlu0 %v1015, 72
          %v1026 = vpop.permute.xlu0 %1025
          %1027 = vrot.lane.b32.xlu0 %v1016, 72
          %v1028 = vpop.permute.xlu0 %1027
          %vm1033 = vcmask 613952
          %1034 = vst.msk [vmem:[#allocation2] sm:$0xff] %vm1033, %v1022
          %1035 = vst.msk [vmem:[#allocation2 + $0x8] sm:$0xff] %vm1033, %v1024
          %1036 = vst.msk [vmem:[#allocation2 + $0x10] sm:$0xff] %vm1033, %v1026
          %vm1037 = vcmask 609856
          %1038 = vst.msk [vmem:[#allocation2 + $0x18] sm:$0xf] %vm1037, %v1028
          %v1039 = vld [vmem:[#allocation2] sm:$0xff]
          %v1040 = vld [vmem:[#allocation2 + $0x8] sm:$0xff]
          %v1041 = vld [vmem:[#allocation2 + $0x10] sm:$0xff]
          %v1042 = vld [vmem:[#allocation2 + $0x18] sm:$0xf]
          %v1043 = vld [vmem:[%s1] sm:$0xff]
          %v1044 = vld [vmem:[%s1 + $0x8] sm:$0xff]
          %v1045 = vld [vmem:[%s1 + $0x10] sm:$0xff]
          %v1046 = vld [vmem:[%s1 + $0x18] sm:$0xff]
          %v1047 = vld [vmem:[%s1 + $0x20] sm:$0xff]
          %v1048 = vld [vmem:[%s1 + $0x28] sm:$0xff]
          %v1049 = vld [vmem:[%s1 + $0x30] sm:$0xff]
          %v1050 = vld [vmem:[%s1 + $0x38] sm:$0xff]
          %v1051 = vld [vmem:[%s1 + $0x40] sm:$0xff]
          %v1052 = vld [vmem:[%s1 + $0x48] sm:$0x7]
          %v1053 = vld [vmem:[%s2] sm:$0x1]
          %v1055 = vlaneseq
          %v1056 = vshrl.u32 %v1055, 7
          %v1057 = vsub.s32 0, %v1056
          %v1058 = vrot.slane %v1053, %v1057
          %vm1060 = vcmask 613376
          %v1062 = vsel %vm1060, %v1039, 0
          %v1065 = vsel %vm1060, %v1040, 0
          %v1068 = vsel %vm1060, %v1041, 0
          %v1071 = vsel %vm1060, %v1042, 0
          %vm1073 = vcmask 1042432
          %v1075 = vsel %vm1073, %v1052, 0
          %1077 = vmatprep.subr.mxu0 0.0
          %1078 = vmatpush1.msra.mxu0 %v1043
          %1079 = vmatprep.subr.mxu0 0.0
          %1080 = vmatpush1.msra.mxu0 %v1044
          %1081 = vmatprep.subr.mxu0 0.0
          %1082 = vmatpush1.msra.mxu0 %v1045
          %1083 = vmatprep.subr.mxu0 0.0
          %1084 = vmatpush1.msra.mxu0 %v1046
          %1085 = vmatprep.subr.mxu0 0.0
          %1086 = vmatpush1.msra.mxu0 %v1047
          %1087 = vmatprep.subr.mxu0 0.0
          %1088 = vmatpush1.msra.mxu0 %v1048
          %1089 = vmatprep.subr.mxu0 0.0
          %1090 = vmatpush1.msra.mxu0 %v1049
          %1091 = vmatprep.subr.mxu0 0.0
          %1092 = vmatpush1.msra.mxu0 %v1050
          %1093 = vmatprep.subr.mxu0 0.0
          %1094 = vmatpush1.msra.mxu0 %v1051
          %1095 = vmatprep.subr.mxu0 0.0
          %1096 = vmatpush1.msra.mxu0 %v1075
          %1097 = vmatprep.subr.mxu0 0.0
          %1098 = vmatpush1.msra.mxu0 0.0
          %1099 = vmatprep.subr.mxu0 0.0
          %1100 = vmatpush1.msra.mxu0 0.0
          %1101 = vmatprep.subr.mxu0 0.0
          %1102 = vmatpush1.msra.mxu0 0.0
          %1103 = vmatprep.subr.mxu0 0.0
          %1104 = vmatpush1.msra.mxu0 0.0
          %1105 = vmatprep.subr.mxu0 0.0
          %1106 = vmatpush1.msra.mxu0 0.0
          %1107 = vmatprep.subr.mxu0 0.0
          %1108 = vmatpush1.msra.mxu0 0.0
          %1109 = vmatprep.subr.mxu0 0.0
          %1110 = vmatpush1.msra.mxu0 0.0
          %1111 = vmatprep.subr.mxu0 0.0
          %1112 = vmatpush1.msra.mxu0 0.0
          %1113 = vmatprep.subr.mxu0 0.0
          %1114 = vmatpush1.msra.mxu0 0.0
          %1115 = vmatprep.subr.mxu0 0.0
          %1116 = vmatpush1.msra.mxu0 0.0
          %1117 = vmatprep.subr.mxu0 0.0
          %1118 = vmatpush1.msra.mxu0 0.0
          %1119 = vmatprep.subr.mxu0 0.0
          %1120 = vmatpush1.msra.mxu0 0.0
          %1121 = vmatprep.subr.mxu0 0.0
          %1122 = vmatpush1.msra.mxu0 0.0
          %1123 = vmatprep.subr.mxu0 0.0
          %1124 = vmatpush1.msra.mxu0 0.0
          %1125 = vmatprep.subr.mxu0 0.0
          %1126 = vmatpush1.msra.mxu0 0.0
          %1127 = vmatprep.subr.mxu0 0.0
          %1128 = vmatpush1.msra.mxu0 0.0
          %1129 = vmatprep.subr.mxu0 0.0
          %1130 = vmatpush1.msra.mxu0 0.0
          %1131 = vmatprep.subr.mxu0 0.0
          %1132 = vmatpush1.msra.mxu0 0.0
          %1133 = vmatprep.subr.mxu0 0.0
          %1134 = vmatpush1.msra.mxu0 0.0
          %1135 = vmatprep.subr.mxu0 0.0
          %1136 = vmatpush1.msra.mxu0 0.0
          %1137 = vmatprep.subr.mxu0 0.0
          %1138 = vmatpush1.msra.mxu0 0.0
          %1139 = vmatprep.subr.mxu0 0.0
          %1140 = vmatpush1.msra.mxu0 0.0
          %1141 = vmatprep.mubr.f32.mxu0 0.0
          %1142 = vmatmul.mubr.f32.gmra.mrb[0].mxu0 %v1062
          %v1143 = vpop.f32.mrb[0].mxu0
          %v1144 = vadd.f32 %v1058, %v1143
          %v1145 = vpop.f32.mrb[0].mxu0
          %1146 = vmatprep.mubr.f32.mxu0 0.0
          %1147 = vmatmul.mubr.f32.gmra.mrb[0].mxu0 %v1065
          %v1148 = vpop.f32.mrb[0].mxu0
          %v1149 = vadd.f32 %v1058, %v1148
          %v1150 = vpop.f32.mrb[0].mxu0
          %1151 = vmatprep.mubr.f32.mxu0 0.0
          %1152 = vmatmul.mubr.f32.gmra.mrb[0].mxu0 %v1068
          %v1153 = vpop.f32.mrb[0].mxu0
          %v1154 = vadd.f32 %v1058, %v1153
          %v1155 = vpop.f32.mrb[0].mxu0
          %1156 = vmatprep.mubr.f32.mxu0 0.0
          %1157 = vmatmul.mubr.f32.gmra.mrb[0].mxu0 %v1071
          %v1158 = vpop.f32.mrb[0].mxu0
          %v1159 = vadd.f32 %v1058, %v1158
          %v1160 = vpop.f32.mrb[0].mxu0
          %1161 = vdwg.mxu0
          %v1162 = vmax.f32 %v1144, 0.0
          %v1163 = vmax.f32 %v1149, 0.0
          %v1164 = vmax.f32 %v1154, 0.0
          %v1165 = vmax.f32 %v1159, 0.0
          %v1166 = vld [vmem:[%s509] sm:$0xff]
          %v1167 = vld [vmem:[%s509 + $0x8] sm:$0xff]
          %v1168 = vld [vmem:[%s509 + $0x10] sm:$0xff]
          %v1169 = vld [vmem:[%s509 + $0x18] sm:$0xf]
          %1170 = vst.msk [vmem:[#allocation2] sm:$0xff] %vm397, %v1166
          %1171 = vst.msk [vmem:[#allocation2 + $0x8] sm:$0xff] %vm397, %v1167
          %1172 = vst.msk [vmem:[#allocation2 + $0x10] sm:$0xff] %vm397, %v1168
          %1173 = vst.msk [vmem:[#allocation2 + $0x18] sm:$0xf] %vm401, %v1169
          %v1174 = vld [vmem:[%s509 + $0x1] sm:$0xff]
          %v1175 = vld [vmem:[%s509 + $0x9] sm:$0xff]
          %v1176 = vld [vmem:[%s509 + $0x11] sm:$0xff]
          %v1177 = vld [vmem:[%s509 + $0x19] sm:$0xf]
          %1182 = vrot.lane.b32.xlu0 %v1174, 3
          %v1183 = vpop.permute.xlu0 %1182
          %1184 = vrot.lane.b32.xlu0 %v1175, 3
          %v1185 = vpop.permute.xlu0 %1184
          %1186 = vrot.lane.b32.xlu0 %v1176, 3
          %v1187 = vpop.permute.xlu0 %1186
          %1188 = vrot.lane.b32.xlu0 %v1177, 3
          %v1189 = vpop.permute.xlu0 %1188
          %1194 = vst.msk [vmem:[#allocation2] sm:$0xff] %vm423, %v1183
          %1195 = vst.msk [vmem:[#allocation2 + $0x8] sm:$0xff] %vm423, %v1185
          %1196 = vst.msk [vmem:[#allocation2 + $0x10] sm:$0xff] %vm423, %v1187
          %1197 = vst.msk [vmem:[#allocation2 + $0x18] sm:$0xf] %vm427, %v1189
          %v1198 = vld [vmem:[%s509 + $0x2] sm:$0xff]
          %v1199 = vld [vmem:[%s509 + $0xa] sm:$0xff]
          %v1200 = vld [vmem:[%s509 + $0x12] sm:$0xff]
          %v1201 = vld [vmem:[%s509 + $0x1a] sm:$0xf]
          %1206 = vrot.lane.b32.xlu0 %v1198, 6
          %v1207 = vpop.permute.xlu0 %1206
          %1208 = vrot.lane.b32.xlu0 %v1199, 6
          %v1209 = vpop.permute.xlu0 %1208
          %1210 = vrot.lane.b32.xlu0 %v1200, 6
          %v1211 = vpop.permute.xlu0 %1210
          %1212 = vrot.lane.b32.xlu0 %v1201, 6
          %v1213 = vpop.permute.xlu0 %1212
          %1218 = vst.msk [vmem:[#allocation2] sm:$0xff] %vm449, %v1207
          %1219 = vst.msk [vmem:[#allocation2 + $0x8] sm:$0xff] %vm449, %v1209
          %1220 = vst.msk [vmem:[#allocation2 + $0x10] sm:$0xff] %vm449, %v1211
          %1221 = vst.msk [vmem:[#allocation2 + $0x18] sm:$0xf] %vm453, %v1213
          %v1222 = vld [vmem:[%s509 + $0x3] sm:$0xff]
          %v1223 = vld [vmem:[%s509 + $0xb] sm:$0xff]
          %v1224 = vld [vmem:[%s509 + $0x13] sm:$0xff]
          %v1225 = vld [vmem:[%s509 + $0x1b] sm:$0xf]
          %1230 = vrot.lane.b32.xlu0 %v1222, 9
          %v1231 = vpop.permute.xlu0 %1230
          %1232 = vrot.lane.b32.xlu0 %v1223, 9
          %v1233 = vpop.permute.xlu0 %1232
          %1234 = vrot.lane.b32.xlu0 %v1224, 9
          %v1235 = vpop.permute.xlu0 %1234
          %1236 = vrot.lane.b32.xlu0 %v1225, 9
          %v1237 = vpop.permute.xlu0 %1236
          %1242 = vst.msk [vmem:[#allocation2] sm:$0xff] %vm475, %v1231
          %1243 = vst.msk [vmem:[#allocation2 + $0x8] sm:$0xff] %vm475, %v1233
          %1244 = vst.msk [vmem:[#allocation2 + $0x10] sm:$0xff] %vm475, %v1235
          %1245 = vst.msk [vmem:[#allocation2 + $0x18] sm:$0xf] %vm479, %v1237
          %v1246 = vld [vmem:[%s509 + $0x4] sm:$0xff]
          %v1247 = vld [vmem:[%s509 + $0xc] sm:$0xff]
          %v1248 = vld [vmem:[%s509 + $0x14] sm:$0xff]
          %v1249 = vld [vmem:[%s509 + $0x1c] sm:$0xf]
          %1254 = vrot.lane.b32.xlu0 %v1246, 12
          %v1255 = vpop.permute.xlu0 %1254
          %1256 = vrot.lane.b32.xlu0 %v1247, 12
          %v1257 = vpop.permute.xlu0 %1256
          %1258 = vrot.lane.b32.xlu0 %v1248, 12
          %v1259 = vpop.permute.xlu0 %1258
          %1260 = vrot.lane.b32.xlu0 %v1249, 12
          %v1261 = vpop.permute.xlu0 %1260
          %1266 = vst.msk [vmem:[#allocation2] sm:$0xff] %vm501, %v1255
          %1267 = vst.msk [vmem:[#allocation2 + $0x8] sm:$0xff] %vm501, %v1257
          %1268 = vst.msk [vmem:[#allocation2 + $0x10] sm:$0xff] %vm501, %v1259
          %1269 = vst.msk [vmem:[#allocation2 + $0x18] sm:$0xf] %vm505, %v1261
          %v1270 = vld [vmem:[%s642] sm:$0xff]
          %v1271 = vld [vmem:[%s642 + $0x8] sm:$0xff]
          %v1272 = vld [vmem:[%s642 + $0x10] sm:$0xff]
          %v1273 = vld [vmem:[%s642 + $0x18] sm:$0xf]
          %1278 = vrot.lane.b32.xlu0 %v1270, 15
          %v1279 = vpop.permute.xlu0 %1278
          %1280 = vrot.lane.b32.xlu0 %v1271, 15
          %v1281 = vpop.permute.xlu0 %1280
          %1282 = vrot.lane.b32.xlu0 %v1272, 15
          %v1283 = vpop.permute.xlu0 %1282
          %1284 = vrot.lane.b32.xlu0 %v1273, 15
          %v1285 = vpop.permute.xlu0 %1284
          %1290 = vst.msk [vmem:[#allocation2] sm:$0xff] %vm530, %v1279
          %1291 = vst.msk [vmem:[#allocation2 + $0x8] sm:$0xff] %vm530, %v1281
          %1292 = vst.msk [vmem:[#allocation2 + $0x10] sm:$0xff] %vm530, %v1283
          %1293 = vst.msk [vmem:[#allocation2 + $0x18] sm:$0xf] %vm534, %v1285
          %v1294 = vld [vmem:[%s642 + $0x1] sm:$0xff]
          %v1295 = vld [vmem:[%s642 + $0x9] sm:$0xff]
          %v1296 = vld [vmem:[%s642 + $0x11] sm:$0xff]
          %v1297 = vld [vmem:[%s642 + $0x19] sm:$0xf]
          %1302 = vrot.lane.b32.xlu0 %v1294, 18
          %v1303 = vpop.permute.xlu0 %1302
          %1304 = vrot.lane.b32.xlu0 %v1295, 18
          %v1305 = vpop.permute.xlu0 %1304
          %1306 = vrot.lane.b32.xlu0 %v1296, 18
          %v1307 = vpop.permute.xlu0 %1306
          %1308 = vrot.lane.b32.xlu0 %v1297, 18
          %v1309 = vpop.permute.xlu0 %1308
          %1314 = vst.msk [vmem:[#allocation2] sm:$0xff] %vm556, %v1303
          %1315 = vst.msk [vmem:[#allocation2 + $0x8] sm:$0xff] %vm556, %v1305
          %1316 = vst.msk [vmem:[#allocation2 + $0x10] sm:$0xff] %vm556, %v1307
          %1317 = vst.msk [vmem:[#allocation2 + $0x18] sm:$0xf] %vm560, %v1309
          %v1318 = vld [vmem:[%s642 + $0x2] sm:$0xff]
          %v1319 = vld [vmem:[%s642 + $0xa] sm:$0xff]
          %v1320 = vld [vmem:[%s642 + $0x12] sm:$0xff]
          %v1321 = vld [vmem:[%s642 + $0x1a] sm:$0xf]
          %1326 = vrot.lane.b32.xlu0 %v1318, 21
          %v1327 = vpop.permute.xlu0 %1326
          %1328 = vrot.lane.b32.xlu0 %v1319, 21
          %v1329 = vpop.permute.xlu0 %1328
          %1330 = vrot.lane.b32.xlu0 %v1320, 21
          %v1331 = vpop.permute.xlu0 %1330
          %1332 = vrot.lane.b32.xlu0 %v1321, 21
          %v1333 = vpop.permute.xlu0 %1332
          %1338 = vst.msk [vmem:[#allocation2] sm:$0xff] %vm582, %v1327
          %1339 = vst.msk [vmem:[#allocation2 + $0x8] sm:$0xff] %vm582, %v1329
          %1340 = vst.msk [vmem:[#allocation2 + $0x10] sm:$0xff] %vm582, %v1331
          %1341 = vst.msk [vmem:[#allocation2 + $0x18] sm:$0xf] %vm586, %v1333
          %v1342 = vld [vmem:[%s642 + $0x3] sm:$0xff]
          %v1343 = vld [vmem:[%s642 + $0xb] sm:$0xff]
          %v1344 = vld [vmem:[%s642 + $0x13] sm:$0xff]
          %v1345 = vld [vmem:[%s642 + $0x1b] sm:$0xf]
          %1350 = vrot.lane.b32.xlu0 %v1342, 24
          %v1351 = vpop.permute.xlu0 %1350
          %1352 = vrot.lane.b32.xlu0 %v1343, 24
          %v1353 = vpop.permute.xlu0 %1352
          %1354 = vrot.lane.b32.xlu0 %v1344, 24
          %v1355 = vpop.permute.xlu0 %1354
          %1356 = vrot.lane.b32.xlu0 %v1345, 24
          %v1357 = vpop.permute.xlu0 %1356
          %1362 = vst.msk [vmem:[#allocation2] sm:$0xff] %vm608, %v1351
          %1363 = vst.msk [vmem:[#allocation2 + $0x8] sm:$0xff] %vm608, %v1353
          %1364 = vst.msk [vmem:[#allocation2 + $0x10] sm:$0xff] %vm608, %v1355
          %1365 = vst.msk [vmem:[#allocation2 + $0x18] sm:$0xf] %vm612, %v1357
          %v1366 = vld [vmem:[%s642 + $0x4] sm:$0xff]
          %v1367 = vld [vmem:[%s642 + $0xc] sm:$0xff]
          %v1368 = vld [vmem:[%s642 + $0x14] sm:$0xff]
          %v1369 = vld [vmem:[%s642 + $0x1c] sm:$0xf]
          %1374 = vrot.lane.b32.xlu0 %v1366, 27
          %v1375 = vpop.permute.xlu0 %1374
          %1376 = vrot.lane.b32.xlu0 %v1367, 27
          %v1377 = vpop.permute.xlu0 %1376
          %1378 = vrot.lane.b32.xlu0 %v1368, 27
          %v1379 = vpop.permute.xlu0 %1378
          %1380 = vrot.lane.b32.xlu0 %v1369, 27
          %v1381 = vpop.permute.xlu0 %1380
          %1386 = vst.msk [vmem:[#allocation2] sm:$0xff] %vm634, %v1375
          %1387 = vst.msk [vmem:[#allocation2 + $0x8] sm:$0xff] %vm634, %v1377
          %1388 = vst.msk [vmem:[#allocation2 + $0x10] sm:$0xff] %vm634, %v1379
          %1389 = vst.msk [vmem:[#allocation2 + $0x18] sm:$0xf] %vm638, %v1381
          %v1390 = vld [vmem:[%s775] sm:$0xff]
          %v1391 = vld [vmem:[%s775 + $0x8] sm:$0xff]
          %v1392 = vld [vmem:[%s775 + $0x10] sm:$0xff]
          %v1393 = vld [vmem:[%s775 + $0x18] sm:$0xf]
          %1398 = vrot.lane.b32.xlu0 %v1390, 30
          %v1399 = vpop.permute.xlu0 %1398
          %1400 = vrot.lane.b32.xlu0 %v1391, 30
          %v1401 = vpop.permute.xlu0 %1400
          %1402 = vrot.lane.b32.xlu0 %v1392, 30
          %v1403 = vpop.permute.xlu0 %1402
          %1404 = vrot.lane.b32.xlu0 %v1393, 30
          %v1405 = vpop.permute.xlu0 %1404
          %1410 = vst.msk [vmem:[#allocation2] sm:$0xff] %vm663, %v1399
          %1411 = vst.msk [vmem:[#allocation2 + $0x8] sm:$0xff] %vm663, %v1401
          %1412 = vst.msk [vmem:[#allocation2 + $0x10] sm:$0xff] %vm663, %v1403
          %1413 = vst.msk [vmem:[#allocation2 + $0x18] sm:$0xf] %vm667, %v1405
          %v1414 = vld [vmem:[%s775 + $0x1] sm:$0xff]
          %v1415 = vld [vmem:[%s775 + $0x9] sm:$0xff]
          %v1416 = vld [vmem:[%s775 + $0x11] sm:$0xff]
          %v1417 = vld [vmem:[%s775 + $0x19] sm:$0xf]
          %1422 = vrot.lane.b32.xlu0 %v1414, 33
          %v1423 = vpop.permute.xlu0 %1422
          %1424 = vrot.lane.b32.xlu0 %v1415, 33
          %v1425 = vpop.permute.xlu0 %1424
          %1426 = vrot.lane.b32.xlu0 %v1416, 33
          %v1427 = vpop.permute.xlu0 %1426
          %1428 = vrot.lane.b32.xlu0 %v1417, 33
          %v1429 = vpop.permute.xlu0 %1428
          %1434 = vst.msk [vmem:[#allocation2] sm:$0xff] %vm689, %v1423
          %1435 = vst.msk [vmem:[#allocation2 + $0x8] sm:$0xff] %vm689, %v1425
          %1436 = vst.msk [vmem:[#allocation2 + $0x10] sm:$0xff] %vm689, %v1427
          %1437 = vst.msk [vmem:[#allocation2 + $0x18] sm:$0xf] %vm693, %v1429
          %v1438 = vld [vmem:[%s775 + $0x2] sm:$0xff]
          %v1439 = vld [vmem:[%s775 + $0xa] sm:$0xff]
          %v1440 = vld [vmem:[%s775 + $0x12] sm:$0xff]
          %v1441 = vld [vmem:[%s775 + $0x1a] sm:$0xf]
          %1446 = vrot.lane.b32.xlu0 %v1438, 36
          %v1447 = vpop.permute.xlu0 %1446
          %1448 = vrot.lane.b32.xlu0 %v1439, 36
          %v1449 = vpop.permute.xlu0 %1448
          %1450 = vrot.lane.b32.xlu0 %v1440, 36
          %v1451 = vpop.permute.xlu0 %1450
          %1452 = vrot.lane.b32.xlu0 %v1441, 36
          %v1453 = vpop.permute.xlu0 %1452
          %1458 = vst.msk [vmem:[#allocation2] sm:$0xff] %vm715, %v1447
          %1459 = vst.msk [vmem:[#allocation2 + $0x8] sm:$0xff] %vm715, %v1449
          %1460 = vst.msk [vmem:[#allocation2 + $0x10] sm:$0xff] %vm715, %v1451
          %1461 = vst.msk [vmem:[#allocation2 + $0x18] sm:$0xf] %vm719, %v1453
          %v1462 = vld [vmem:[%s775 + $0x3] sm:$0xff]
          %v1463 = vld [vmem:[%s775 + $0xb] sm:$0xff]
          %v1464 = vld [vmem:[%s775 + $0x13] sm:$0xff]
          %v1465 = vld [vmem:[%s775 + $0x1b] sm:$0xf]
          %1470 = vrot.lane.b32.xlu0 %v1462, 39
          %v1471 = vpop.permute.xlu0 %1470
          %1472 = vrot.lane.b32.xlu0 %v1463, 39
          %v1473 = vpop.permute.xlu0 %1472
          %1474 = vrot.lane.b32.xlu0 %v1464, 39
          %v1475 = vpop.permute.xlu0 %1474
          %1476 = vrot.lane.b32.xlu0 %v1465, 39
          %v1477 = vpop.permute.xlu0 %1476
          %1482 = vst.msk [vmem:[#allocation2] sm:$0xff] %vm741, %v1471
          %1483 = vst.msk [vmem:[#allocation2 + $0x8] sm:$0xff] %vm741, %v1473
          %1484 = vst.msk [vmem:[#allocation2 + $0x10] sm:$0xff] %vm741, %v1475
          %1485 = vst.msk [vmem:[#allocation2 + $0x18] sm:$0xf] %vm745, %v1477
          %v1486 = vld [vmem:[%s775 + $0x4] sm:$0xff]
          %v1487 = vld [vmem:[%s775 + $0xc] sm:$0xff]
          %v1488 = vld [vmem:[%s775 + $0x14] sm:$0xff]
          %v1489 = vld [vmem:[%s775 + $0x1c] sm:$0xf]
          %1494 = vrot.lane.b32.xlu0 %v1486, 42
          %v1495 = vpop.permute.xlu0 %1494
          %1496 = vrot.lane.b32.xlu0 %v1487, 42
          %v1497 = vpop.permute.xlu0 %1496
          %1498 = vrot.lane.b32.xlu0 %v1488, 42
          %v1499 = vpop.permute.xlu0 %1498
          %1500 = vrot.lane.b32.xlu0 %v1489, 42
          %v1501 = vpop.permute.xlu0 %1500
          %1506 = vst.msk [vmem:[#allocation2] sm:$0xff] %vm767, %v1495
          %1507 = vst.msk [vmem:[#allocation2 + $0x8] sm:$0xff] %vm767, %v1497
          %1508 = vst.msk [vmem:[#allocation2 + $0x10] sm:$0xff] %vm767, %v1499
          %1509 = vst.msk [vmem:[#allocation2 + $0x18] sm:$0xf] %vm771, %v1501
          %v1510 = vld [vmem:[%s908] sm:$0xff]
          %v1511 = vld [vmem:[%s908 + $0x8] sm:$0xff]
          %v1512 = vld [vmem:[%s908 + $0x10] sm:$0xff]
          %v1513 = vld [vmem:[%s908 + $0x18] sm:$0xf]
          %1518 = vrot.lane.b32.xlu0 %v1510, 45
          %v1519 = vpop.permute.xlu0 %1518
          %1520 = vrot.lane.b32.xlu0 %v1511, 45
          %v1521 = vpop.permute.xlu0 %1520
          %1522 = vrot.lane.b32.xlu0 %v1512, 45
          %v1523 = vpop.permute.xlu0 %1522
          %1524 = vrot.lane.b32.xlu0 %v1513, 45
          %v1525 = vpop.permute.xlu0 %1524
          %1530 = vst.msk [vmem:[#allocation2] sm:$0xff] %vm796, %v1519
          %1531 = vst.msk [vmem:[#allocation2 + $0x8] sm:$0xff] %vm796, %v1521
          %1532 = vst.msk [vmem:[#allocation2 + $0x10] sm:$0xff] %vm796, %v1523
          %1533 = vst.msk [vmem:[#allocation2 + $0x18] sm:$0xf] %vm800, %v1525
          %v1534 = vld [vmem:[%s908 + $0x1] sm:$0xff]
          %v1535 = vld [vmem:[%s908 + $0x9] sm:$0xff]
          %v1536 = vld [vmem:[%s908 + $0x11] sm:$0xff]
          %v1537 = vld [vmem:[%s908 + $0x19] sm:$0xf]
          %1542 = vrot.lane.b32.xlu0 %v1534, 48
          %v1543 = vpop.permute.xlu0 %1542
          %1544 = vrot.lane.b32.xlu0 %v1535, 48
          %v1545 = vpop.permute.xlu0 %1544
          %1546 = vrot.lane.b32.xlu0 %v1536, 48
          %v1547 = vpop.permute.xlu0 %1546
          %1548 = vrot.lane.b32.xlu0 %v1537, 48
          %v1549 = vpop.permute.xlu0 %1548
          %1554 = vst.msk [vmem:[#allocation2] sm:$0xff] %vm822, %v1543
          %1555 = vst.msk [vmem:[#allocation2 + $0x8] sm:$0xff] %vm822, %v1545
          %1556 = vst.msk [vmem:[#allocation2 + $0x10] sm:$0xff] %vm822, %v1547
          %1557 = vst.msk [vmem:[#allocation2 + $0x18] sm:$0xf] %vm826, %v1549
          %v1558 = vld [vmem:[%s908 + $0x2] sm:$0xff]
          %v1559 = vld [vmem:[%s908 + $0xa] sm:$0xff]
          %v1560 = vld [vmem:[%s908 + $0x12] sm:$0xff]
          %v1561 = vld [vmem:[%s908 + $0x1a] sm:$0xf]
          %1566 = vrot.lane.b32.xlu0 %v1558, 51
          %v1567 = vpop.permute.xlu0 %1566
          %1568 = vrot.lane.b32.xlu0 %v1559, 51
          %v1569 = vpop.permute.xlu0 %1568
          %1570 = vrot.lane.b32.xlu0 %v1560, 51
          %v1571 = vpop.permute.xlu0 %1570
          %1572 = vrot.lane.b32.xlu0 %v1561, 51
          %v1573 = vpop.permute.xlu0 %1572
          %1578 = vst.msk [vmem:[#allocation2] sm:$0xff] %vm848, %v1567
          %1579 = vst.msk [vmem:[#allocation2 + $0x8] sm:$0xff] %vm848, %v1569
          %1580 = vst.msk [vmem:[#allocation2 + $0x10] sm:$0xff] %vm848, %v1571
          %1581 = vst.msk [vmem:[#allocation2 + $0x18] sm:$0xf] %vm852, %v1573
          %v1582 = vld [vmem:[%s908 + $0x3] sm:$0xff]
          %v1583 = vld [vmem:[%s908 + $0xb] sm:$0xff]
          %v1584 = vld [vmem:[%s908 + $0x13] sm:$0xff]
          %v1585 = vld [vmem:[%s908 + $0x1b] sm:$0xf]
          %1590 = vrot.lane.b32.xlu0 %v1582, 54
          %v1591 = vpop.permute.xlu0 %1590
          %1592 = vrot.lane.b32.xlu0 %v1583, 54
          %v1593 = vpop.permute.xlu0 %1592
          %1594 = vrot.lane.b32.xlu0 %v1584, 54
          %v1595 = vpop.permute.xlu0 %1594
          %1596 = vrot.lane.b32.xlu0 %v1585, 54
          %v1597 = vpop.permute.xlu0 %1596
          %1602 = vst.msk [vmem:[#allocation2] sm:$0xff] %vm874, %v1591
          %1603 = vst.msk [vmem:[#allocation2 + $0x8] sm:$0xff] %vm874, %v1593
          %1604 = vst.msk [vmem:[#allocation2 + $0x10] sm:$0xff] %vm874, %v1595
          %1605 = vst.msk [vmem:[#allocation2 + $0x18] sm:$0xf] %vm878, %v1597
          %v1606 = vld [vmem:[%s908 + $0x4] sm:$0xff]
          %v1607 = vld [vmem:[%s908 + $0xc] sm:$0xff]
          %v1608 = vld [vmem:[%s908 + $0x14] sm:$0xff]
          %v1609 = vld [vmem:[%s908 + $0x1c] sm:$0xf]
          %1614 = vrot.lane.b32.xlu0 %v1606, 57
          %v1615 = vpop.permute.xlu0 %1614
          %1616 = vrot.lane.b32.xlu0 %v1607, 57
          %v1617 = vpop.permute.xlu0 %1616
          %1618 = vrot.lane.b32.xlu0 %v1608, 57
          %v1619 = vpop.permute.xlu0 %1618
          %1620 = vrot.lane.b32.xlu0 %v1609, 57
          %v1621 = vpop.permute.xlu0 %1620
          %1626 = vst.msk [vmem:[#allocation2] sm:$0xff] %vm900, %v1615
          %1627 = vst.msk [vmem:[#allocation2 + $0x8] sm:$0xff] %vm900, %v1617
          %1628 = vst.msk [vmem:[#allocation2 + $0x10] sm:$0xff] %vm900, %v1619
          %1629 = vst.msk [vmem:[#allocation2 + $0x18] sm:$0xf] %vm904, %v1621
          %s1630 = sadd.s32 %s390, 5
          %s1631 = smul.u32 %s1630, 32
          %s1632 = scalar_lea.vmem %s383, %s1631
          %v1633 = vld [vmem:[%s1632] sm:$0xff]
          %v1634 = vld [vmem:[%s1632 + $0x8] sm:$0xff]
          %v1635 = vld [vmem:[%s1632 + $0x10] sm:$0xff]
          %v1636 = vld [vmem:[%s1632 + $0x18] sm:$0xf]
          %1641 = vrot.lane.b32.xlu0 %v1633, 60
          %v1642 = vpop.permute.xlu0 %1641
          %1643 = vrot.lane.b32.xlu0 %v1634, 60
          %v1644 = vpop.permute.xlu0 %1643
          %1645 = vrot.lane.b32.xlu0 %v1635, 60
          %v1646 = vpop.permute.xlu0 %1645
          %1647 = vrot.lane.b32.xlu0 %v1636, 60
          %v1648 = vpop.permute.xlu0 %1647
          %1653 = vst.msk [vmem:[#allocation2] sm:$0xff] %vm929, %v1642
          %1654 = vst.msk [vmem:[#allocation2 + $0x8] sm:$0xff] %vm929, %v1644
          %1655 = vst.msk [vmem:[#allocation2 + $0x10] sm:$0xff] %vm929, %v1646
          %1656 = vst.msk [vmem:[#allocation2 + $0x18] sm:$0xf] %vm933, %v1648
          %v1657 = vld [vmem:[%s1632 + $0x1] sm:$0xff]
          %v1658 = vld [vmem:[%s1632 + $0x9] sm:$0xff]
          %v1659 = vld [vmem:[%s1632 + $0x11] sm:$0xff]
          %v1660 = vld [vmem:[%s1632 + $0x19] sm:$0xf]
          %1665 = vrot.lane.b32.xlu0 %v1657, 63
          %v1666 = vpop.permute.xlu0 %1665
          %1667 = vrot.lane.b32.xlu0 %v1658, 63
          %v1668 = vpop.permute.xlu0 %1667
          %1669 = vrot.lane.b32.xlu0 %v1659, 63
          %v1670 = vpop.permute.xlu0 %1669
          %1671 = vrot.lane.b32.xlu0 %v1660, 63
          %v1672 = vpop.permute.xlu0 %1671
          %1677 = vst.msk [vmem:[#allocation2] sm:$0xff] %vm955, %v1666
          %1678 = vst.msk [vmem:[#allocation2 + $0x8] sm:$0xff] %vm955, %v1668
          %1679 = vst.msk [vmem:[#allocation2 + $0x10] sm:$0xff] %vm955, %v1670
          %1680 = vst.msk [vmem:[#allocation2 + $0x18] sm:$0xf] %vm959, %v1672
          %v1681 = vld [vmem:[%s1632 + $0x2] sm:$0xff]
          %v1682 = vld [vmem:[%s1632 + $0xa] sm:$0xff]
          %v1683 = vld [vmem:[%s1632 + $0x12] sm:$0xff]
          %v1684 = vld [vmem:[%s1632 + $0x1a] sm:$0xf]
          %1689 = vrot.lane.b32.xlu0 %v1681, 66
          %v1690 = vpop.permute.xlu0 %1689
          %1691 = vrot.lane.b32.xlu0 %v1682, 66
          %v1692 = vpop.permute.xlu0 %1691
          %1693 = vrot.lane.b32.xlu0 %v1683, 66
          %v1694 = vpop.permute.xlu0 %1693
          %1695 = vrot.lane.b32.xlu0 %v1684, 66
          %v1696 = vpop.permute.xlu0 %1695
          %1701 = vst.msk [vmem:[#allocation2] sm:$0xff] %vm981, %v1690
          %1702 = vst.msk [vmem:[#allocation2 + $0x8] sm:$0xff] %vm981, %v1692
          %1703 = vst.msk [vmem:[#allocation2 + $0x10] sm:$0xff] %vm981, %v1694
          %1704 = vst.msk [vmem:[#allocation2 + $0x18] sm:$0xf] %vm985, %v1696
          %v1705 = vld [vmem:[%s1632 + $0x3] sm:$0xff]
          %v1706 = vld [vmem:[%s1632 + $0xb] sm:$0xff]
          %v1707 = vld [vmem:[%s1632 + $0x13] sm:$0xff]
          %v1708 = vld [vmem:[%s1632 + $0x1b] sm:$0xf]
          %1713 = vrot.lane.b32.xlu0 %v1705, 69
          %v1714 = vpop.permute.xlu0 %1713
          %1715 = vrot.lane.b32.xlu0 %v1706, 69
          %v1716 = vpop.permute.xlu0 %1715
          %1717 = vrot.lane.b32.xlu0 %v1707, 69
          %v1718 = vpop.permute.xlu0 %1717
          %1719 = vrot.lane.b32.xlu0 %v1708, 69
          %v1720 = vpop.permute.xlu0 %1719
          %1725 = vst.msk [vmem:[#allocation2] sm:$0xff] %vm1007, %v1714
          %1726 = vst.msk [vmem:[#allocation2 + $0x8] sm:$0xff] %vm1007, %v1716
          %1727 = vst.msk [vmem:[#allocation2 + $0x10] sm:$0xff] %vm1007, %v1718
          %1728 = vst.msk [vmem:[#allocation2 + $0x18] sm:$0xf] %vm1011, %v1720
          %v1729 = vld [vmem:[%s1632 + $0x4] sm:$0xff]
          %v1730 = vld [vmem:[%s1632 + $0xc] sm:$0xff]
          %v1731 = vld [vmem:[%s1632 + $0x14] sm:$0xff]
          %v1732 = vld [vmem:[%s1632 + $0x1c] sm:$0xf]
          %1737 = vrot.lane.b32.xlu0 %v1729, 72
          %v1738 = vpop.permute.xlu0 %1737
          %1739 = vrot.lane.b32.xlu0 %v1730, 72
          %v1740 = vpop.permute.xlu0 %1739
          %1741 = vrot.lane.b32.xlu0 %v1731, 72
          %v1742 = vpop.permute.xlu0 %1741
          %1743 = vrot.lane.b32.xlu0 %v1732, 72
          %v1744 = vpop.permute.xlu0 %1743
          %1749 = vst.msk [vmem:[#allocation2] sm:$0xff] %vm1033, %v1738
          %1750 = vst.msk [vmem:[#allocation2 + $0x8] sm:$0xff] %vm1033, %v1740
          %1751 = vst.msk [vmem:[#allocation2 + $0x10] sm:$0xff] %vm1033, %v1742
          %1752 = vst.msk [vmem:[#allocation2 + $0x18] sm:$0xf] %vm1037, %v1744
          %v1753 = vld [vmem:[#allocation2] sm:$0xff]
          %v1754 = vld [vmem:[#allocation2 + $0x8] sm:$0xff]
          %v1755 = vld [vmem:[#allocation2 + $0x10] sm:$0xff]
          %v1756 = vld [vmem:[#allocation2 + $0x18] sm:$0xf]
          %v1757 = vld [vmem:[%s1] sm:$0xff]
          %v1758 = vld [vmem:[%s1 + $0x8] sm:$0xff]
          %v1759 = vld [vmem:[%s1 + $0x10] sm:$0xff]
          %v1760 = vld [vmem:[%s1 + $0x18] sm:$0xff]
          %v1761 = vld [vmem:[%s1 + $0x20] sm:$0xff]
          %v1762 = vld [vmem:[%s1 + $0x28] sm:$0xff]
          %v1763 = vld [vmem:[%s1 + $0x30] sm:$0xff]
          %v1764 = vld [vmem:[%s1 + $0x38] sm:$0xff]
          %v1765 = vld [vmem:[%s1 + $0x40] sm:$0xff]
          %v1766 = vld [vmem:[%s1 + $0x48] sm:$0x7]
          %v1767 = vld [vmem:[%s2] sm:$0x1]
          %v1769 = vlaneseq
          %v1770 = vshrl.u32 %v1769, 7
          %v1771 = vsub.s32 0, %v1770
          %v1772 = vrot.slane %v1767, %v1771
          %v1775 = vsel %vm1060, %v1753, 0
          %v1778 = vsel %vm1060, %v1754, 0
          %v1781 = vsel %vm1060, %v1755, 0
          %v1784 = vsel %vm1060, %v1756, 0
          %v1787 = vsel %vm1073, %v1766, 0
          %1789 = vmatprep.subr.mxu0 0.0
          %1790 = vmatpush1.msra.mxu0 %v1757
          %1791 = vmatprep.subr.mxu0 0.0
          %1792 = vmatpush1.msra.mxu0 %v1758
          %1793 = vmatprep.subr.mxu0 0.0
          %1794 = vmatpush1.msra.mxu0 %v1759
          %1795 = vmatprep.subr.mxu0 0.0
          %1796 = vmatpush1.msra.mxu0 %v1760
          %1797 = vmatprep.subr.mxu0 0.0
          %1798 = vmatpush1.msra.mxu0 %v1761
          %1799 = vmatprep.subr.mxu0 0.0
          %1800 = vmatpush1.msra.mxu0 %v1762
          %1801 = vmatprep.subr.mxu0 0.0
          %1802 = vmatpush1.msra.mxu0 %v1763
          %1803 = vmatprep.subr.mxu0 0.0
          %1804 = vmatpush1.msra.mxu0 %v1764
          %1805 = vmatprep.subr.mxu0 0.0
          %1806 = vmatpush1.msra.mxu0 %v1765
          %1807 = vmatprep.subr.mxu0 0.0
          %1808 = vmatpush1.msra.mxu0 %v1787
          %1809 = vmatprep.subr.mxu0 0.0
          %1810 = vmatpush1.msra.mxu0 0.0
          %1811 = vmatprep.subr.mxu0 0.0
          %1812 = vmatpush1.msra.mxu0 0.0
          %1813 = vmatprep.subr.mxu0 0.0
          %1814 = vmatpush1.msra.mxu0 0.0
          %1815 = vmatprep.subr.mxu0 0.0
          %1816 = vmatpush1.msra.mxu0 0.0
          %1817 = vmatprep.subr.mxu0 0.0
          %1818 = vmatpush1.msra.mxu0 0.0
          %1819 = vmatprep.subr.mxu0 0.0
          %1820 = vmatpush1.msra.mxu0 0.0
          %1821 = vmatprep.subr.mxu0 0.0
          %1822 = vmatpush1.msra.mxu0 0.0
          %1823 = vmatprep.subr.mxu0 0.0
          %1824 = vmatpush1.msra.mxu0 0.0
          %1825 = vmatprep.subr.mxu0 0.0
          %1826 = vmatpush1.msra.mxu0 0.0
          %1827 = vmatprep.subr.mxu0 0.0
          %1828 = vmatpush1.msra.mxu0 0.0
          %1829 = vmatprep.subr.mxu0 0.0
          %1830 = vmatpush1.msra.mxu0 0.0
          %1831 = vmatprep.subr.mxu0 0.0
          %1832 = vmatpush1.msra.mxu0 0.0
          %1833 = vmatprep.subr.mxu0 0.0
          %1834 = vmatpush1.msra.mxu0 0.0
          %1835 = vmatprep.subr.mxu0 0.0
          %1836 = vmatpush1.msra.mxu0 0.0
          %1837 = vmatprep.subr.mxu0 0.0
          %1838 = vmatpush1.msra.mxu0 0.0
          %1839 = vmatprep.subr.mxu0 0.0
          %1840 = vmatpush1.msra.mxu0 0.0
          %1841 = vmatprep.subr.mxu0 0.0
          %1842 = vmatpush1.msra.mxu0 0.0
          %1843 = vmatprep.subr.mxu0 0.0
          %1844 = vmatpush1.msra.mxu0 0.0
          %1845 = vmatprep.subr.mxu0 0.0
          %1846 = vmatpush1.msra.mxu0 0.0
          %1847 = vmatprep.subr.mxu0 0.0
          %1848 = vmatpush1.msra.mxu0 0.0
          %1849 = vmatprep.subr.mxu0 0.0
          %1850 = vmatpush1.msra.mxu0 0.0
          %1851 = vmatprep.subr.mxu0 0.0
          %1852 = vmatpush1.msra.mxu0 0.0
          %1853 = vmatprep.mubr.f32.mxu0 0.0
          %1854 = vmatmul.mubr.f32.gmra.mrb[0].mxu0 %v1775
          %v1855 = vpop.f32.mrb[0].mxu0
          %v1856 = vadd.f32 %v1772, %v1855
          %v1857 = vpop.f32.mrb[0].mxu0
          %1858 = vmatprep.mubr.f32.mxu0 0.0
          %1859 = vmatmul.mubr.f32.gmra.mrb[0].mxu0 %v1778
          %v1860 = vpop.f32.mrb[0].mxu0
          %v1861 = vadd.f32 %v1772, %v1860
          %v1862 = vpop.f32.mrb[0].mxu0
          %1863 = vmatprep.mubr.f32.mxu0 0.0
          %1864 = vmatmul.mubr.f32.gmra.mrb[0].mxu0 %v1781
          %v1865 = vpop.f32.mrb[0].mxu0
          %v1866 = vadd.f32 %v1772, %v1865
          %v1867 = vpop.f32.mrb[0].mxu0
          %1868 = vmatprep.mubr.f32.mxu0 0.0
          %1869 = vmatmul.mubr.f32.gmra.mrb[0].mxu0 %v1784
          %v1870 = vpop.f32.mrb[0].mxu0
          %v1871 = vadd.f32 %v1772, %v1870
          %v1872 = vpop.f32.mrb[0].mxu0
          %1873 = vdwg.mxu0
          %v1874 = vmax.f32 %v1856, 0.0
          %v1875 = vmax.f32 %v1861, 0.0
          %v1876 = vmax.f32 %v1866, 0.0
          %v1877 = vmax.f32 %v1871, 0.0
          %v1878 = vmax.f32 %v1162, %v1874
          %v1879 = vmax.f32 %v1163, %v1875
          %v1880 = vmax.f32 %v1164, %v1876
          %v1881 = vmax.f32 %v1165, %v1877
          %1882 = vst [vmem:[#allocation3] sm:$0xff] %v1878
          %1883 = vst [vmem:[#allocation3 + $0x8] sm:$0xff] %v1879
          %1884 = vst [vmem:[#allocation3 + $0x10] sm:$0xff] %v1880
          %1885 = vst [vmem:[#allocation3 + $0x18] sm:$0xf] %v1881
          %v1886 = vld [vmem:[#allocation3] ss:$2 sm:$0xff]
          %s1887 = scalar_lea.vmem [#allocation3], 16
          %v1888 = vld [vmem:[%s1887] ss:$2 sm:$0x3f]
          %s1889 = scalar_lea.vmem [#allocation3], 1
          %v1890 = vld [vmem:[%s1889] ss:$2 sm:$0xff]
          %s1891 = scalar_lea.vmem [#allocation3], 17
          %v1892 = vld [vmem:[%s1891] ss:$2 sm:$0x3f]
          %v1893 = vmax.f32 %v1886, %v1890
          %v1894 = vmax.f32 %v1888, %v1892
          %s1895 = smul.u32 %s385, 16
          %s1896 = scalar_lea.vmem [#allocation4], %s1895
          %1897 = vst [vmem:[%s1896] sm:$0xff] %v1893
          %1898 = vst [vmem:[%s1896 + $0x8] sm:$0x3f] %v1894
        $region69: #{lenet_cifar100_forward.1} parent=63 // loop_footer
          %s389 = sadd.s32 1, %s385
        $region70: #{lenet_cifar100_forward.1} parent=63 // loop_footer_branch
          %384 = sbr.rel target = $region66
        $region71: #{lenet_cifar100_forward.1} parent=63 // loop_exit
          _
        loop: start=0, step=1, limit=5
        $region72: #{lenet_cifar100_forward.1} parent=63 // loop_pre_header
          _
        $region73: #{lenet_cifar100_forward.1} parent=63 // loop_header
          %s1900 = sphi 0, %s1904
          %p1901 = scmp.ge.s32.totalorder %s1900, 5
        $region74: #{lenet_cifar100_forward.1} parent=63 // loop_header_branch
          %1903 = sbr.rel (%p1901) target = $region78
        $region75: #{lenet_cifar100_forward.1} parent=63 // loop_body
          %s1905 = smul.u32 %s1900, 2
          %s1906 = smul.u32 %s1905, 16
          %s1907 = scalar_lea.vmem [#allocation4], %s1906
          %v1908 = vld [vmem:[%s1907] sm:$0xff]
          %v1909 = vld [vmem:[%s1907 + $0x8] sm:$0x3]
          %vm1910 = vcmask 48128
          %1911 = vst.msk [vmem:[#allocation5] sm:$0xff] %vm1910, %v1908
          %vm1912 = vcmask 41984
          %1913 = vst.msk [vmem:[#allocation5 + $0x10] sm:$0x3] %vm1912, %v1909
          %v1914 = vld [vmem:[%s1907 + $0x1] sm:$0xff]
          %v1915 = vld [vmem:[%s1907 + $0x9] sm:$0x3]
          %1918 = vrot.lane.b32.xlu0 %v1914, 6
          %v1919 = vpop.permute.xlu0 %1918
          %1920 = vrot.lane.b32.xlu0 %v1915, 6
          %v1921 = vpop.permute.xlu0 %1920
          %vm1924 = vcmask 97328
          %1925 = vst.msk [vmem:[#allocation5] sm:$0xff] %vm1924, %v1919
          %vm1926 = vcmask 91184
          %1927 = vst.msk [vmem:[#allocation5 + $0x10] sm:$0x3] %vm1926, %v1921
          %v1928 = vld [vmem:[%s1907 + $0x2] sm:$0xff]
          %v1929 = vld [vmem:[%s1907 + $0xa] sm:$0x3]
          %1932 = vrot.lane.b32.xlu0 %v1928, 12
          %v1933 = vpop.permute.xlu0 %1932
          %1934 = vrot.lane.b32.xlu0 %v1929, 12
          %v1935 = vpop.permute.xlu0 %1934
          %vm1938 = vcmask 146528
          %1939 = vst.msk [vmem:[#allocation5] sm:$0xff] %vm1938, %v1933
          %vm1940 = vcmask 140384
          %1941 = vst.msk [vmem:[#allocation5 + $0x10] sm:$0x3] %vm1940, %v1935
          %v1942 = vld [vmem:[%s1907 + $0x3] sm:$0xff]
          %v1943 = vld [vmem:[%s1907 + $0xb] sm:$0x3]
          %1946 = vrot.lane.b32.xlu0 %v1942, 18
          %v1947 = vpop.permute.xlu0 %1946
          %1948 = vrot.lane.b32.xlu0 %v1943, 18
          %v1949 = vpop.permute.xlu0 %1948
          %vm1952 = vcmask 195728
          %1953 = vst.msk [vmem:[#allocation5] sm:$0xff] %vm1952, %v1947
          %vm1954 = vcmask 189584
          %1955 = vst.msk [vmem:[#allocation5 + $0x10] sm:$0x3] %vm1954, %v1949
          %v1956 = vld [vmem:[%s1907 + $0x4] sm:$0xff]
          %v1957 = vld [vmem:[%s1907 + $0xc] sm:$0x3]
          %1960 = vrot.lane.b32.xlu0 %v1956, 24
          %v1961 = vpop.permute.xlu0 %1960
          %1962 = vrot.lane.b32.xlu0 %v1957, 24
          %v1963 = vpop.permute.xlu0 %1962
          %vm1966 = vcmask 244928
          %1967 = vst.msk [vmem:[#allocation5] sm:$0xff] %vm1966, %v1961
          %vm1968 = vcmask 238784
          %1969 = vst.msk [vmem:[#allocation5 + $0x10] sm:$0x3] %vm1968, %v1963
          %s1970 = sadd.s32 %s1905, 1
          %s1971 = smul.u32 %s1970, 16
          %s1972 = scalar_lea.vmem [#allocation4], %s1971
          %v1973 = vld [vmem:[%s1972] sm:$0xff]
          %v1974 = vld [vmem:[%s1972 + $0x8] sm:$0x3]
          %1977 = vrot.lane.b32.xlu0 %v1973, 30
          %v1978 = vpop.permute.xlu0 %1977
          %1979 = vrot.lane.b32.xlu0 %v1974, 30
          %v1980 = vpop.permute.xlu0 %1979
          %vm1983 = vcmask 294128
          %1984 = vst.msk [vmem:[#allocation5] sm:$0xff] %vm1983, %v1978
          %vm1985 = vcmask 287984
          %1986 = vst.msk [vmem:[#allocation5 + $0x10] sm:$0x3] %vm1985, %v1980
          %v1987 = vld [vmem:[%s1972 + $0x1] sm:$0xff]
          %v1988 = vld [vmem:[%s1972 + $0x9] sm:$0x3]
          %1991 = vrot.lane.b32.xlu0 %v1987, 36
          %v1992 = vpop.permute.xlu0 %1991
          %1993 = vrot.lane.b32.xlu0 %v1988, 36
          %v1994 = vpop.permute.xlu0 %1993
          %vm1997 = vcmask 343328
          %1998 = vst.msk [vmem:[#allocation5] sm:$0xff] %vm1997, %v1992
          %vm1999 = vcmask 337184
          %2000 = vst.msk [vmem:[#allocation5 + $0x10] sm:$0x3] %vm1999, %v1994
          %v2001 = vld [vmem:[%s1972 + $0x2] sm:$0xff]
          %v2002 = vld [vmem:[%s1972 + $0xa] sm:$0x3]
          %2005 = vrot.lane.b32.xlu0 %v2001, 42
          %v2006 = vpop.permute.xlu0 %2005
          %2007 = vrot.lane.b32.xlu0 %v2002, 42
          %v2008 = vpop.permute.xlu0 %2007
          %vm2011 = vcmask 392528
          %2012 = vst.msk [vmem:[#allocation5] sm:$0xff] %vm2011, %v2006
          %vm2013 = vcmask 386384
          %2014 = vst.msk [vmem:[#allocation5 + $0x10] sm:$0x3] %vm2013, %v2008
          %v2015 = vld [vmem:[%s1972 + $0x3] sm:$0xff]
          %v2016 = vld [vmem:[%s1972 + $0xb] sm:$0x3]
          %2019 = vrot.lane.b32.xlu0 %v2015, 48
          %v2020 = vpop.permute.xlu0 %2019
          %2021 = vrot.lane.b32.xlu0 %v2016, 48
          %v2022 = vpop.permute.xlu0 %2021
          %vm2025 = vcmask 441728
          %2026 = vst.msk [vmem:[#allocation5] sm:$0xff] %vm2025, %v2020
          %vm2027 = vcmask 435584
          %2028 = vst.msk [vmem:[#allocation5 + $0x10] sm:$0x3] %vm2027, %v2022
          %v2029 = vld [vmem:[%s1972 + $0x4] sm:$0xff]
          %v2030 = vld [vmem:[%s1972 + $0xc] sm:$0x3]
          %2033 = vrot.lane.b32.xlu0 %v2029, 54
          %v2034 = vpop.permute.xlu0 %2033
          %2035 = vrot.lane.b32.xlu0 %v2030, 54
          %v2036 = vpop.permute.xlu0 %2035
          %vm2039 = vcmask 490928
          %2040 = vst.msk [vmem:[#allocation5] sm:$0xff] %vm2039, %v2034
          %vm2041 = vcmask 484784
          %2042 = vst.msk [vmem:[#allocation5 + $0x10] sm:$0x3] %vm2041, %v2036
          %s2043 = sadd.s32 %s1905, 2
          %s2044 = smul.u32 %s2043, 16
          %s2045 = scalar_lea.vmem [#allocation4], %s2044
          %v2046 = vld [vmem:[%s2045] sm:$0xff]
          %v2047 = vld [vmem:[%s2045 + $0x8] sm:$0x3]
          %2050 = vrot.lane.b32.xlu0 %v2046, 60
          %v2051 = vpop.permute.xlu0 %2050
          %2052 = vrot.lane.b32.xlu0 %v2047, 60
          %v2053 = vpop.permute.xlu0 %2052
          %vm2056 = vcmask 540128
          %2057 = vst.msk [vmem:[#allocation5] sm:$0xff] %vm2056, %v2051
          %vm2058 = vcmask 533984
          %2059 = vst.msk [vmem:[#allocation5 + $0x10] sm:$0x3] %vm2058, %v2053
          %v2060 = vld [vmem:[%s2045 + $0x1] sm:$0xff]
          %v2061 = vld [vmem:[%s2045 + $0x9] sm:$0x3]
          %2064 = vrot.lane.b32.xlu0 %v2060, 66
          %v2065 = vpop.permute.xlu0 %2064
          %2066 = vrot.lane.b32.xlu0 %v2061, 66
          %v2067 = vpop.permute.xlu0 %2066
          %vm2070 = vcmask 589328
          %2071 = vst.msk [vmem:[#allocation5] sm:$0xff] %vm2070, %v2065
          %vm2072 = vcmask 583184
          %2073 = vst.msk [vmem:[#allocation5 + $0x10] sm:$0x3] %vm2072, %v2067
          %v2074 = vld [vmem:[%s2045 + $0x2] sm:$0xff]
          %v2075 = vld [vmem:[%s2045 + $0xa] sm:$0x3]
          %2078 = vrot.lane.b32.xlu0 %v2074, 72
          %v2079 = vpop.permute.xlu0 %2078
          %2080 = vrot.lane.b32.xlu0 %v2075, 72
          %v2081 = vpop.permute.xlu0 %2080
          %vm2084 = vcmask 638528
          %2085 = vst.msk [vmem:[#allocation5] sm:$0xff] %vm2084, %v2079
          %vm2086 = vcmask 632384
          %2087 = vst.msk [vmem:[#allocation5 + $0x10] sm:$0x3] %vm2086, %v2081
          %v2088 = vld [vmem:[%s2045 + $0x3] sm:$0xff]
          %v2089 = vld [vmem:[%s2045 + $0xb] sm:$0x3]
          %2092 = vrot.lane.b32.xlu0 %v2088, 78
          %v2093 = vpop.permute.xlu0 %2092
          %2094 = vrot.lane.b32.xlu0 %v2089, 78
          %v2095 = vpop.permute.xlu0 %2094
          %vm2098 = vcmask 687728
          %2099 = vst.msk [vmem:[#allocation5] sm:$0xff] %vm2098, %v2093
          %vm2100 = vcmask 681584
          %2101 = vst.msk [vmem:[#allocation5 + $0x10] sm:$0x3] %vm2100, %v2095
          %v2102 = vld [vmem:[%s2045 + $0x4] sm:$0xff]
          %v2103 = vld [vmem:[%s2045 + $0xc] sm:$0x3]
          %2106 = vrot.lane.b32.xlu0 %v2102, 84
          %v2107 = vpop.permute.xlu0 %2106
          %2108 = vrot.lane.b32.xlu0 %v2103, 84
          %v2109 = vpop.permute.xlu0 %2108
          %vm2112 = vcmask 736928
          %2113 = vst.msk [vmem:[#allocation5] sm:$0xff] %vm2112, %v2107
          %vm2114 = vcmask 730784
          %2115 = vst.msk [vmem:[#allocation5 + $0x10] sm:$0x3] %vm2114, %v2109
          %s2116 = sadd.s32 %s1905, 3
          %s2117 = smul.u32 %s2116, 16
          %s2118 = scalar_lea.vmem [#allocation4], %s2117
          %v2119 = vld [vmem:[%s2118] sm:$0xff]
          %v2120 = vld [vmem:[%s2118 + $0x8] sm:$0x3]
          %2123 = vrot.lane.b32.xlu0 %v2119, 90
          %v2124 = vpop.permute.xlu0 %2123
          %2125 = vrot.lane.b32.xlu0 %v2120, 90
          %v2126 = vpop.permute.xlu0 %2125
          %vm2129 = vcmask 786128
          %2130 = vst.msk [vmem:[#allocation5] sm:$0xff] %vm2129, %v2124
          %vm2131 = vcmask 779984
          %2132 = vst.msk [vmem:[#allocation5 + $0x10] sm:$0x3] %vm2131, %v2126
          %v2133 = vld [vmem:[%s2118 + $0x1] sm:$0xff]
          %v2134 = vld [vmem:[%s2118 + $0x9] sm:$0x3]
          %2137 = vrot.lane.b32.xlu0 %v2133, 96
          %v2138 = vpop.permute.xlu0 %2137
          %2139 = vrot.lane.b32.xlu0 %v2134, 96
          %v2140 = vpop.permute.xlu0 %2139
          %vm2143 = vcmask 835328
          %2144 = vst.msk [vmem:[#allocation5] sm:$0xff] %vm2143, %v2138
          %vm2145 = vcmask 829184
          %2146 = vst.msk [vmem:[#allocation5 + $0x10] sm:$0x3] %vm2145, %v2140
          %v2147 = vld [vmem:[%s2118 + $0x2] sm:$0xff]
          %v2148 = vld [vmem:[%s2118 + $0xa] sm:$0x3]
          %2151 = vrot.lane.b32.xlu0 %v2147, 102
          %v2152 = vpop.permute.xlu0 %2151
          %2153 = vrot.lane.b32.xlu0 %v2148, 102
          %v2154 = vpop.permute.xlu0 %2153
          %vm2157 = vcmask 884528
          %2158 = vst.msk [vmem:[#allocation5] sm:$0xff] %vm2157, %v2152
          %vm2159 = vcmask 878384
          %2160 = vst.msk [vmem:[#allocation5 + $0x10] sm:$0x3] %vm2159, %v2154
          %v2161 = vld [vmem:[%s2118 + $0x3] sm:$0xff]
          %v2162 = vld [vmem:[%s2118 + $0xb] sm:$0x3]
          %2165 = vrot.lane.b32.xlu0 %v2161, 108
          %v2166 = vpop.permute.xlu0 %2165
          %2167 = vrot.lane.b32.xlu0 %v2162, 108
          %v2168 = vpop.permute.xlu0 %2167
          %vm2171 = vcmask 933728
          %2172 = vst.msk [vmem:[#allocation5] sm:$0xff] %vm2171, %v2166
          %vm2173 = vcmask 927584
          %2174 = vst.msk [vmem:[#allocation5 + $0x10] sm:$0x3] %vm2173, %v2168
          %v2175 = vld [vmem:[%s2118 + $0x4] sm:$0xff]
          %v2176 = vld [vmem:[%s2118 + $0xc] sm:$0x3]
          %2179 = vrot.lane.b32.xlu0 %v2175, 114
          %v2180 = vpop.permute.xlu0 %2179
          %2181 = vrot.lane.b32.xlu0 %v2176, 114
          %v2182 = vpop.permute.xlu0 %2181
          %vm2185 = vcmask 982928
          %2186 = vst.msk [vmem:[#allocation5] sm:$0xff] %vm2185, %v2180
          %vm2187 = vcmask 976784
          %2188 = vst.msk [vmem:[#allocation5 + $0x10] sm:$0x3] %vm2187, %v2182
          %s2189 = sadd.s32 %s1905, 4
          %s2190 = smul.u32 %s2189, 16
          %s2191 = scalar_lea.vmem [#allocation4], %s2190
          %v2192 = vld [vmem:[%s2191] sm:$0xff]
          %v2193 = vld [vmem:[%s2191 + $0x8] sm:$0x3]
          %2196 = vrot.lane.b32.xlu0 %v2192, 120
          %v2197 = vpop.permute.xlu0 %2196
          %2198 = vrot.lane.b32.xlu0 %v2193, 120
          %v2199 = vpop.permute.xlu0 %2198
          %vm2202 = vcmask 1032128
          %2203 = vst.msk [vmem:[#allocation5] sm:$0xff] %vm2202, %v2197
          %vm2204 = vcmask 1025984
          %2205 = vst.msk [vmem:[#allocation5 + $0x10] sm:$0x3] %vm2204, %v2199
          %v2206 = vld [vmem:[%s2191 + $0x1] sm:$0xff]
          %v2207 = vld [vmem:[%s2191 + $0x9] sm:$0x3]
          %2210 = vrot.lane.b32.xlu0 %v2206, 126
          %v2211 = vpop.permute.xlu0 %2210
          %2212 = vrot.lane.b32.xlu0 %v2207, 126
          %v2213 = vpop.permute.xlu0 %2212
          %vm2216 = vcmask 1048560
          %2217 = vst.msk [vmem:[#allocation5] sm:$0xff] %vm2216, %v2211
          %vm2218 = vcmask 31744
          %2219 = vst.msk [vmem:[#allocation5 + $0x8] sm:$0xff] %vm2218, %v2211
          %vm2220 = vcmask 1042416
          %2221 = vst.msk [vmem:[#allocation5 + $0x10] sm:$0x3] %vm2220, %v2213
          %vm2222 = vcmask 25600
          %2223 = vst.msk [vmem:[#allocation5 + $0x18] sm:$0x3] %vm2222, %v2213
          %v2224 = vld [vmem:[%s2191 + $0x2] sm:$0xff]
          %v2225 = vld [vmem:[%s2191 + $0xa] sm:$0x3]
          %2228 = vrot.lane.b32.xlu0 %v2224, 4
          %v2229 = vpop.permute.xlu0 %2228
          %2230 = vrot.lane.b32.xlu0 %v2225, 4
          %v2231 = vpop.permute.xlu0 %2230
          %vm2234 = vcmask 80928
          %2235 = vst.msk [vmem:[#allocation5 + $0x8] sm:$0xff] %vm2234, %v2229
          %vm2236 = vcmask 74784
          %2237 = vst.msk [vmem:[#allocation5 + $0x18] sm:$0x3] %vm2236, %v2231
          %v2238 = vld [vmem:[%s2191 + $0x3] sm:$0xff]
          %v2239 = vld [vmem:[%s2191 + $0xb] sm:$0x3]
          %2242 = vrot.lane.b32.xlu0 %v2238, 10
          %v2243 = vpop.permute.xlu0 %2242
          %2244 = vrot.lane.b32.xlu0 %v2239, 10
          %v2245 = vpop.permute.xlu0 %2244
          %vm2248 = vcmask 130128
          %2249 = vst.msk [vmem:[#allocation5 + $0x8] sm:$0xff] %vm2248, %v2243
          %vm2250 = vcmask 123984
          %2251 = vst.msk [vmem:[#allocation5 + $0x18] sm:$0x3] %vm2250, %v2245
          %v2252 = vld [vmem:[%s2191 + $0x4] sm:$0xff]
          %v2253 = vld [vmem:[%s2191 + $0xc] sm:$0x3]
          %2256 = vrot.lane.b32.xlu0 %v2252, 16
          %v2257 = vpop.permute.xlu0 %2256
          %2258 = vrot.lane.b32.xlu0 %v2253, 16
          %v2259 = vpop.permute.xlu0 %2258
          %vm2262 = vcmask 179328
          %2263 = vst.msk [vmem:[#allocation5 + $0x8] sm:$0xff] %vm2262, %v2257
          %vm2264 = vcmask 173184
          %2265 = vst.msk [vmem:[#allocation5 + $0x18] sm:$0x3] %vm2264, %v2259
          %v2266 = vld [vmem:[#allocation5] sm:$0xff]
          %v2267 = vld [vmem:[#allocation5 + $0x8] sm:$0xff]
          %v2268 = vld [vmem:[#allocation5 + $0x10] sm:$0x3]
          %v2269 = vld [vmem:[#allocation5 + $0x18] sm:$0x3]
          %v2270 = vld [vmem:[%s3] sm:$0xff]
          %v2271 = vld [vmem:[%s3 + $0x8] sm:$0xff]
          %v2272 = vld [vmem:[%s3 + $0x10] sm:$0xff]
          %v2273 = vld [vmem:[%s3 + $0x18] sm:$0xff]
          %v2274 = vld [vmem:[%s3 + $0x20] sm:$0xff]
          %v2275 = vld [vmem:[%s3 + $0x28] sm:$0xff]
          %v2276 = vld [vmem:[%s3 + $0x30] sm:$0xff]
          %v2277 = vld [vmem:[%s3 + $0x38] sm:$0xff]
          %v2278 = vld [vmem:[%s3 + $0x40] sm:$0xff]
          %v2279 = vld [vmem:[%s3 + $0x48] sm:$0xff]
          %v2280 = vld [vmem:[%s3 + $0x50] sm:$0xff]
          %v2281 = vld [vmem:[%s3 + $0x58] sm:$0xff]
          %v2282 = vld [vmem:[%s3 + $0x60] sm:$0xff]
          %v2283 = vld [vmem:[%s3 + $0x68] sm:$0xff]
          %v2284 = vld [vmem:[%s3 + $0x70] sm:$0xff]
          %v2285 = vld [vmem:[%s3 + $0x78] sm:$0xff]
          %v2286 = vld [vmem:[%s3 + $0x80] sm:$0xff]
          %v2287 = vld [vmem:[%s3 + $0x88] sm:$0xff]
          %v2288 = vld [vmem:[%s3 + $0x90] sm:$0x3f]
          %v2289 = vld [vmem:[%s4] sm:$0x1]
          %v2291 = vlaneseq
          %v2292 = vshrl.u32 %v2291, 7
          %v2293 = vsub.s32 0, %v2292
          %v2294 = vrot.slane %v2289, %v2293
          %vm2296 = vcmask 179200
          %v2298 = vsel %vm2296, %v2267, 0
          %v2301 = vsel %vm2296, %v2269, 0
          %vm2303 = vcmask 1045504
          %v2305 = vsel %vm2303, %v2288, 0
          %2307 = vmatprep.subr.mxu0 0.0
          %2308 = vmatpush1.msra.mxu0 %v2270
          %2309 = vmatprep.subr.mxu0 0.0
          %2310 = vmatpush1.msra.mxu0 %v2271
          %2311 = vmatprep.subr.mxu0 0.0
          %2312 = vmatpush1.msra.mxu0 %v2272
          %2313 = vmatprep.subr.mxu0 0.0
          %2314 = vmatpush1.msra.mxu0 %v2273
          %2315 = vmatprep.subr.mxu0 0.0
          %2316 = vmatpush1.msra.mxu0 %v2274
          %2317 = vmatprep.subr.mxu0 0.0
          %2318 = vmatpush1.msra.mxu0 %v2275
          %2319 = vmatprep.subr.mxu0 0.0
          %2320 = vmatpush1.msra.mxu0 %v2276
          %2321 = vmatprep.subr.mxu0 0.0
          %2322 = vmatpush1.msra.mxu0 %v2277
          %2323 = vmatprep.subr.mxu0 0.0
          %2324 = vmatpush1.msra.mxu0 %v2278
          %2325 = vmatprep.subr.mxu0 0.0
          %2326 = vmatpush1.msra.mxu0 %v2279
          %2327 = vmatprep.subr.mxu0 0.0
          %2328 = vmatpush1.msra.mxu0 %v2280
          %2329 = vmatprep.subr.mxu0 0.0
          %2330 = vmatpush1.msra.mxu0 %v2281
          %2331 = vmatprep.subr.mxu0 0.0
          %2332 = vmatpush1.msra.mxu0 %v2282
          %2333 = vmatprep.subr.mxu0 0.0
          %2334 = vmatpush1.msra.mxu0 %v2283
          %2335 = vmatprep.subr.mxu0 0.0
          %2336 = vmatpush1.msra.mxu0 %v2284
          %2337 = vmatprep.subr.mxu0 0.0
          %2338 = vmatpush1.msra.mxu0 %v2285
          %2339 = vmatprep.subr.mxu0 0.0
          %2340 = vmatpush1.msra.mxu0 %v2286
          %2341 = vmatprep.subr.mxu0 0.0
          %2342 = vmatpush1.msra.mxu0 %v2287
          %2343 = vmatprep.subr.mxu0 0.0
          %2344 = vmatpush1.msra.mxu0 %v2305
          %2345 = vmatprep.subr.mxu0 0.0
          %2346 = vmatpush1.msra.mxu0 0.0
          %2347 = vmatprep.subr.mxu0 0.0
          %2348 = vmatpush1.msra.mxu0 0.0
          %2349 = vmatprep.subr.mxu0 0.0
          %2350 = vmatpush1.msra.mxu0 0.0
          %2351 = vmatprep.subr.mxu0 0.0
          %2352 = vmatpush1.msra.mxu0 0.0
          %2353 = vmatprep.subr.mxu0 0.0
          %2354 = vmatpush1.msra.mxu0 0.0
          %2355 = vmatprep.subr.mxu0 0.0
          %2356 = vmatpush1.msra.mxu0 0.0
          %2357 = vmatprep.subr.mxu0 0.0
          %2358 = vmatpush1.msra.mxu0 0.0
          %2359 = vmatprep.subr.mxu0 0.0
          %2360 = vmatpush1.msra.mxu0 0.0
          %2361 = vmatprep.subr.mxu0 0.0
          %2362 = vmatpush1.msra.mxu0 0.0
          %2363 = vmatprep.subr.mxu0 0.0
          %2364 = vmatpush1.msra.mxu0 0.0
          %2365 = vmatprep.subr.mxu0 0.0
          %2366 = vmatpush1.msra.mxu0 0.0
          %2367 = vmatprep.subr.mxu0 0.0
          %2368 = vmatpush1.msra.mxu0 0.0
          %2369 = vmatprep.subr.mxu0 0.0
          %2370 = vmatpush1.msra.mxu0 0.0
          %2371 = vmatprep.mubr.f32.mxu0 %v2298
          %2372 = vmatmul.mubr.f32.gmra.mrb[0].mxu0 %v2266
          %v2373 = vpop.f32.mrb[0].mxu0
          %v2374 = vadd.f32 %v2294, %v2373
          %v2375 = vpop.f32.mrb[0].mxu0
          %2376 = vmatprep.mubr.f32.mxu0 %v2301
          %2377 = vmatmul.mubr.f32.gmra.mrb[0].mxu0 %v2268
          %v2378 = vpop.f32.mrb[0].mxu0
          %v2379 = vadd.f32 %v2294, %v2378
          %v2380 = vpop.f32.mrb[0].mxu0
          %2381 = vdwg.mxu0
          %v2382 = vmax.f32 %v2374, 0.0
          %v2383 = vmax.f32 %v2379, 0.0
          %v2384 = vld [vmem:[%s1972] sm:$0xff]
          %v2385 = vld [vmem:[%s1972 + $0x8] sm:$0x3]
          %2386 = vst.msk [vmem:[#allocation5] sm:$0xff] %vm1910, %v2384
          %2387 = vst.msk [vmem:[#allocation5 + $0x10] sm:$0x3] %vm1912, %v2385
          %v2388 = vld [vmem:[%s1972 + $0x1] sm:$0xff]
          %v2389 = vld [vmem:[%s1972 + $0x9] sm:$0x3]
          %2392 = vrot.lane.b32.xlu0 %v2388, 6
          %v2393 = vpop.permute.xlu0 %2392
          %2394 = vrot.lane.b32.xlu0 %v2389, 6
          %v2395 = vpop.permute.xlu0 %2394
          %2398 = vst.msk [vmem:[#allocation5] sm:$0xff] %vm1924, %v2393
          %2399 = vst.msk [vmem:[#allocation5 + $0x10] sm:$0x3] %vm1926, %v2395
          %v2400 = vld [vmem:[%s1972 + $0x2] sm:$0xff]
          %v2401 = vld [vmem:[%s1972 + $0xa] sm:$0x3]
          %2404 = vrot.lane.b32.xlu0 %v2400, 12
          %v2405 = vpop.permute.xlu0 %2404
          %2406 = vrot.lane.b32.xlu0 %v2401, 12
          %v2407 = vpop.permute.xlu0 %2406
          %2410 = vst.msk [vmem:[#allocation5] sm:$0xff] %vm1938, %v2405
          %2411 = vst.msk [vmem:[#allocation5 + $0x10] sm:$0x3] %vm1940, %v2407
          %v2412 = vld [vmem:[%s1972 + $0x3] sm:$0xff]
          %v2413 = vld [vmem:[%s1972 + $0xb] sm:$0x3]
          %2416 = vrot.lane.b32.xlu0 %v2412, 18
          %v2417 = vpop.permute.xlu0 %2416
          %2418 = vrot.lane.b32.xlu0 %v2413, 18
          %v2419 = vpop.permute.xlu0 %2418
          %2422 = vst.msk [vmem:[#allocation5] sm:$0xff] %vm1952, %v2417
          %2423 = vst.msk [vmem:[#allocation5 + $0x10] sm:$0x3] %vm1954, %v2419
          %v2424 = vld [vmem:[%s1972 + $0x4] sm:$0xff]
          %v2425 = vld [vmem:[%s1972 + $0xc] sm:$0x3]
          %2428 = vrot.lane.b32.xlu0 %v2424, 24
          %v2429 = vpop.permute.xlu0 %2428
          %2430 = vrot.lane.b32.xlu0 %v2425, 24
          %v2431 = vpop.permute.xlu0 %2430
          %2434 = vst.msk [vmem:[#allocation5] sm:$0xff] %vm1966, %v2429
          %2435 = vst.msk [vmem:[#allocation5 + $0x10] sm:$0x3] %vm1968, %v2431
          %v2436 = vld [vmem:[%s2045] sm:$0xff]
          %v2437 = vld [vmem:[%s2045 + $0x8] sm:$0x3]
          %2440 = vrot.lane.b32.xlu0 %v2436, 30
          %v2441 = vpop.permute.xlu0 %2440
          %2442 = vrot.lane.b32.xlu0 %v2437, 30
          %v2443 = vpop.permute.xlu0 %2442
          %2446 = vst.msk [vmem:[#allocation5] sm:$0xff] %vm1983, %v2441
          %2447 = vst.msk [vmem:[#allocation5 + $0x10] sm:$0x3] %vm1985, %v2443
          %v2448 = vld [vmem:[%s2045 + $0x1] sm:$0xff]
          %v2449 = vld [vmem:[%s2045 + $0x9] sm:$0x3]
          %2452 = vrot.lane.b32.xlu0 %v2448, 36
          %v2453 = vpop.permute.xlu0 %2452
          %2454 = vrot.lane.b32.xlu0 %v2449, 36
          %v2455 = vpop.permute.xlu0 %2454
          %2458 = vst.msk [vmem:[#allocation5] sm:$0xff] %vm1997, %v2453
          %2459 = vst.msk [vmem:[#allocation5 + $0x10] sm:$0x3] %vm1999, %v2455
          %v2460 = vld [vmem:[%s2045 + $0x2] sm:$0xff]
          %v2461 = vld [vmem:[%s2045 + $0xa] sm:$0x3]
          %2464 = vrot.lane.b32.xlu0 %v2460, 42
          %v2465 = vpop.permute.xlu0 %2464
          %2466 = vrot.lane.b32.xlu0 %v2461, 42
          %v2467 = vpop.permute.xlu0 %2466
          %2470 = vst.msk [vmem:[#allocation5] sm:$0xff] %vm2011, %v2465
          %2471 = vst.msk [vmem:[#allocation5 + $0x10] sm:$0x3] %vm2013, %v2467
          %v2472 = vld [vmem:[%s2045 + $0x3] sm:$0xff]
          %v2473 = vld [vmem:[%s2045 + $0xb] sm:$0x3]
          %2476 = vrot.lane.b32.xlu0 %v2472, 48
          %v2477 = vpop.permute.xlu0 %2476
          %2478 = vrot.lane.b32.xlu0 %v2473, 48
          %v2479 = vpop.permute.xlu0 %2478
          %2482 = vst.msk [vmem:[#allocation5] sm:$0xff] %vm2025, %v2477
          %2483 = vst.msk [vmem:[#allocation5 + $0x10] sm:$0x3] %vm2027, %v2479
          %v2484 = vld [vmem:[%s2045 + $0x4] sm:$0xff]
          %v2485 = vld [vmem:[%s2045 + $0xc] sm:$0x3]
          %2488 = vrot.lane.b32.xlu0 %v2484, 54
          %v2489 = vpop.permute.xlu0 %2488
          %2490 = vrot.lane.b32.xlu0 %v2485, 54
          %v2491 = vpop.permute.xlu0 %2490
          %2494 = vst.msk [vmem:[#allocation5] sm:$0xff] %vm2039, %v2489
          %2495 = vst.msk [vmem:[#allocation5 + $0x10] sm:$0x3] %vm2041, %v2491
          %v2496 = vld [vmem:[%s2118] sm:$0xff]
          %v2497 = vld [vmem:[%s2118 + $0x8] sm:$0x3]
          %2500 = vrot.lane.b32.xlu0 %v2496, 60
          %v2501 = vpop.permute.xlu0 %2500
          %2502 = vrot.lane.b32.xlu0 %v2497, 60
          %v2503 = vpop.permute.xlu0 %2502
          %2506 = vst.msk [vmem:[#allocation5] sm:$0xff] %vm2056, %v2501
          %2507 = vst.msk [vmem:[#allocation5 + $0x10] sm:$0x3] %vm2058, %v2503
          %v2508 = vld [vmem:[%s2118 + $0x1] sm:$0xff]
          %v2509 = vld [vmem:[%s2118 + $0x9] sm:$0x3]
          %2512 = vrot.lane.b32.xlu0 %v2508, 66
          %v2513 = vpop.permute.xlu0 %2512
          %2514 = vrot.lane.b32.xlu0 %v2509, 66
          %v2515 = vpop.permute.xlu0 %2514
          %2518 = vst.msk [vmem:[#allocation5] sm:$0xff] %vm2070, %v2513
          %2519 = vst.msk [vmem:[#allocation5 + $0x10] sm:$0x3] %vm2072, %v2515
          %v2520 = vld [vmem:[%s2118 + $0x2] sm:$0xff]
          %v2521 = vld [vmem:[%s2118 + $0xa] sm:$0x3]
          %2524 = vrot.lane.b32.xlu0 %v2520, 72
          %v2525 = vpop.permute.xlu0 %2524
          %2526 = vrot.lane.b32.xlu0 %v2521, 72
          %v2527 = vpop.permute.xlu0 %2526
          %2530 = vst.msk [vmem:[#allocation5] sm:$0xff] %vm2084, %v2525
          %2531 = vst.msk [vmem:[#allocation5 + $0x10] sm:$0x3] %vm2086, %v2527
          %v2532 = vld [vmem:[%s2118 + $0x3] sm:$0xff]
          %v2533 = vld [vmem:[%s2118 + $0xb] sm:$0x3]
          %2536 = vrot.lane.b32.xlu0 %v2532, 78
          %v2537 = vpop.permute.xlu0 %2536
          %2538 = vrot.lane.b32.xlu0 %v2533, 78
          %v2539 = vpop.permute.xlu0 %2538
          %2542 = vst.msk [vmem:[#allocation5] sm:$0xff] %vm2098, %v2537
          %2543 = vst.msk [vmem:[#allocation5 + $0x10] sm:$0x3] %vm2100, %v2539
          %v2544 = vld [vmem:[%s2118 + $0x4] sm:$0xff]
          %v2545 = vld [vmem:[%s2118 + $0xc] sm:$0x3]
          %2548 = vrot.lane.b32.xlu0 %v2544, 84
          %v2549 = vpop.permute.xlu0 %2548
          %2550 = vrot.lane.b32.xlu0 %v2545, 84
          %v2551 = vpop.permute.xlu0 %2550
          %2554 = vst.msk [vmem:[#allocation5] sm:$0xff] %vm2112, %v2549
          %2555 = vst.msk [vmem:[#allocation5 + $0x10] sm:$0x3] %vm2114, %v2551
          %v2556 = vld [vmem:[%s2191] sm:$0xff]
          %v2557 = vld [vmem:[%s2191 + $0x8] sm:$0x3]
          %2560 = vrot.lane.b32.xlu0 %v2556, 90
          %v2561 = vpop.permute.xlu0 %2560
          %2562 = vrot.lane.b32.xlu0 %v2557, 90
          %v2563 = vpop.permute.xlu0 %2562
          %2566 = vst.msk [vmem:[#allocation5] sm:$0xff] %vm2129, %v2561
          %2567 = vst.msk [vmem:[#allocation5 + $0x10] sm:$0x3] %vm2131, %v2563
          %v2568 = vld [vmem:[%s2191 + $0x1] sm:$0xff]
          %v2569 = vld [vmem:[%s2191 + $0x9] sm:$0x3]
          %2572 = vrot.lane.b32.xlu0 %v2568, 96
          %v2573 = vpop.permute.xlu0 %2572
          %2574 = vrot.lane.b32.xlu0 %v2569, 96
          %v2575 = vpop.permute.xlu0 %2574
          %2578 = vst.msk [vmem:[#allocation5] sm:$0xff] %vm2143, %v2573
          %2579 = vst.msk [vmem:[#allocation5 + $0x10] sm:$0x3] %vm2145, %v2575
          %v2580 = vld [vmem:[%s2191 + $0x2] sm:$0xff]
          %v2581 = vld [vmem:[%s2191 + $0xa] sm:$0x3]
          %2584 = vrot.lane.b32.xlu0 %v2580, 102
          %v2585 = vpop.permute.xlu0 %2584
          %2586 = vrot.lane.b32.xlu0 %v2581, 102
          %v2587 = vpop.permute.xlu0 %2586
          %2590 = vst.msk [vmem:[#allocation5] sm:$0xff] %vm2157, %v2585
          %2591 = vst.msk [vmem:[#allocation5 + $0x10] sm:$0x3] %vm2159, %v2587
          %v2592 = vld [vmem:[%s2191 + $0x3] sm:$0xff]
          %v2593 = vld [vmem:[%s2191 + $0xb] sm:$0x3]
          %2596 = vrot.lane.b32.xlu0 %v2592, 108
          %v2597 = vpop.permute.xlu0 %2596
          %2598 = vrot.lane.b32.xlu0 %v2593, 108
          %v2599 = vpop.permute.xlu0 %2598
          %2602 = vst.msk [vmem:[#allocation5] sm:$0xff] %vm2171, %v2597
          %2603 = vst.msk [vmem:[#allocation5 + $0x10] sm:$0x3] %vm2173, %v2599
          %v2604 = vld [vmem:[%s2191 + $0x4] sm:$0xff]
          %v2605 = vld [vmem:[%s2191 + $0xc] sm:$0x3]
          %2608 = vrot.lane.b32.xlu0 %v2604, 114
          %v2609 = vpop.permute.xlu0 %2608
          %2610 = vrot.lane.b32.xlu0 %v2605, 114
          %v2611 = vpop.permute.xlu0 %2610
          %2614 = vst.msk [vmem:[#allocation5] sm:$0xff] %vm2185, %v2609
          %2615 = vst.msk [vmem:[#allocation5 + $0x10] sm:$0x3] %vm2187, %v2611
          %s2616 = sadd.s32 %s1905, 5
          %s2617 = smul.u32 %s2616, 16
          %s2618 = scalar_lea.vmem [#allocation4], %s2617
          %v2619 = vld [vmem:[%s2618] sm:$0xff]
          %v2620 = vld [vmem:[%s2618 + $0x8] sm:$0x3]
          %2623 = vrot.lane.b32.xlu0 %v2619, 120
          %v2624 = vpop.permute.xlu0 %2623
          %2625 = vrot.lane.b32.xlu0 %v2620, 120
          %v2626 = vpop.permute.xlu0 %2625
          %2629 = vst.msk [vmem:[#allocation5] sm:$0xff] %vm2202, %v2624
          %2630 = vst.msk [vmem:[#allocation5 + $0x10] sm:$0x3] %vm2204, %v2626
          %v2631 = vld [vmem:[%s2618 + $0x1] sm:$0xff]
          %v2632 = vld [vmem:[%s2618 + $0x9] sm:$0x3]
          %2635 = vrot.lane.b32.xlu0 %v2631, 126
          %v2636 = vpop.permute.xlu0 %2635
          %2637 = vrot.lane.b32.xlu0 %v2632, 126
          %v2638 = vpop.permute.xlu0 %2637
          %2641 = vst.msk [vmem:[#allocation5] sm:$0xff] %vm2216, %v2636
          %2642 = vst.msk [vmem:[#allocation5 + $0x8] sm:$0xff] %vm2218, %v2636
          %2643 = vst.msk [vmem:[#allocation5 + $0x10] sm:$0x3] %vm2220, %v2638
          %2644 = vst.msk [vmem:[#allocation5 + $0x18] sm:$0x3] %vm2222, %v2638
          %v2645 = vld [vmem:[%s2618 + $0x2] sm:$0xff]
          %v2646 = vld [vmem:[%s2618 + $0xa] sm:$0x3]
          %2649 = vrot.lane.b32.xlu0 %v2645, 4
          %v2650 = vpop.permute.xlu0 %2649
          %2651 = vrot.lane.b32.xlu0 %v2646, 4
          %v2652 = vpop.permute.xlu0 %2651
          %2655 = vst.msk [vmem:[#allocation5 + $0x8] sm:$0xff] %vm2234, %v2650
          %2656 = vst.msk [vmem:[#allocation5 + $0x18] sm:$0x3] %vm2236, %v2652
          %v2657 = vld [vmem:[%s2618 + $0x3] sm:$0xff]
          %v2658 = vld [vmem:[%s2618 + $0xb] sm:$0x3]
          %2661 = vrot.lane.b32.xlu0 %v2657, 10
          %v2662 = vpop.permute.xlu0 %2661
          %2663 = vrot.lane.b32.xlu0 %v2658, 10
          %v2664 = vpop.permute.xlu0 %2663
          %2667 = vst.msk [vmem:[#allocation5 + $0x8] sm:$0xff] %vm2248, %v2662
          %2668 = vst.msk [vmem:[#allocation5 + $0x18] sm:$0x3] %vm2250, %v2664
          %v2669 = vld [vmem:[%s2618 + $0x4] sm:$0xff]
          %v2670 = vld [vmem:[%s2618 + $0xc] sm:$0x3]
          %2673 = vrot.lane.b32.xlu0 %v2669, 16
          %v2674 = vpop.permute.xlu0 %2673
          %2675 = vrot.lane.b32.xlu0 %v2670, 16
          %v2676 = vpop.permute.xlu0 %2675
          %2679 = vst.msk [vmem:[#allocation5 + $0x8] sm:$0xff] %vm2262, %v2674
          %2680 = vst.msk [vmem:[#allocation5 + $0x18] sm:$0x3] %vm2264, %v2676
          %v2681 = vld [vmem:[#allocation5] sm:$0xff]
          %v2682 = vld [vmem:[#allocation5 + $0x8] sm:$0xff]
          %v2683 = vld [vmem:[#allocation5 + $0x10] sm:$0x3]
          %v2684 = vld [vmem:[#allocation5 + $0x18] sm:$0x3]
          %v2685 = vld [vmem:[%s3] sm:$0xff]
          %v2686 = vld [vmem:[%s3 + $0x8] sm:$0xff]
          %v2687 = vld [vmem:[%s3 + $0x10] sm:$0xff]
          %v2688 = vld [vmem:[%s3 + $0x18] sm:$0xff]
          %v2689 = vld [vmem:[%s3 + $0x20] sm:$0xff]
          %v2690 = vld [vmem:[%s3 + $0x28] sm:$0xff]
          %v2691 = vld [vmem:[%s3 + $0x30] sm:$0xff]
          %v2692 = vld [vmem:[%s3 + $0x38] sm:$0xff]
          %v2693 = vld [vmem:[%s3 + $0x40] sm:$0xff]
          %v2694 = vld [vmem:[%s3 + $0x48] sm:$0xff]
          %v2695 = vld [vmem:[%s3 + $0x50] sm:$0xff]
          %v2696 = vld [vmem:[%s3 + $0x58] sm:$0xff]
          %v2697 = vld [vmem:[%s3 + $0x60] sm:$0xff]
          %v2698 = vld [vmem:[%s3 + $0x68] sm:$0xff]
          %v2699 = vld [vmem:[%s3 + $0x70] sm:$0xff]
          %v2700 = vld [vmem:[%s3 + $0x78] sm:$0xff]
          %v2701 = vld [vmem:[%s3 + $0x80] sm:$0xff]
          %v2702 = vld [vmem:[%s3 + $0x88] sm:$0xff]
          %v2703 = vld [vmem:[%s3 + $0x90] sm:$0x3f]
          %v2704 = vld [vmem:[%s4] sm:$0x1]
          %v2706 = vlaneseq
          %v2707 = vshrl.u32 %v2706, 7
          %v2708 = vsub.s32 0, %v2707
          %v2709 = vrot.slane %v2704, %v2708
          %v2712 = vsel %vm2296, %v2682, 0
          %v2715 = vsel %vm2296, %v2684, 0
          %v2718 = vsel %vm2303, %v2703, 0
          %2720 = vmatprep.subr.mxu0 0.0
          %2721 = vmatpush1.msra.mxu0 %v2685
          %2722 = vmatprep.subr.mxu0 0.0
          %2723 = vmatpush1.msra.mxu0 %v2686
          %2724 = vmatprep.subr.mxu0 0.0
          %2725 = vmatpush1.msra.mxu0 %v2687
          %2726 = vmatprep.subr.mxu0 0.0
          %2727 = vmatpush1.msra.mxu0 %v2688
          %2728 = vmatprep.subr.mxu0 0.0
          %2729 = vmatpush1.msra.mxu0 %v2689
          %2730 = vmatprep.subr.mxu0 0.0
          %2731 = vmatpush1.msra.mxu0 %v2690
          %2732 = vmatprep.subr.mxu0 0.0
          %2733 = vmatpush1.msra.mxu0 %v2691
          %2734 = vmatprep.subr.mxu0 0.0
          %2735 = vmatpush1.msra.mxu0 %v2692
          %2736 = vmatprep.subr.mxu0 0.0
          %2737 = vmatpush1.msra.mxu0 %v2693
          %2738 = vmatprep.subr.mxu0 0.0
          %2739 = vmatpush1.msra.mxu0 %v2694
          %2740 = vmatprep.subr.mxu0 0.0
          %2741 = vmatpush1.msra.mxu0 %v2695
          %2742 = vmatprep.subr.mxu0 0.0
          %2743 = vmatpush1.msra.mxu0 %v2696
          %2744 = vmatprep.subr.mxu0 0.0
          %2745 = vmatpush1.msra.mxu0 %v2697
          %2746 = vmatprep.subr.mxu0 0.0
          %2747 = vmatpush1.msra.mxu0 %v2698
          %2748 = vmatprep.subr.mxu0 0.0
          %2749 = vmatpush1.msra.mxu0 %v2699
          %2750 = vmatprep.subr.mxu0 0.0
          %2751 = vmatpush1.msra.mxu0 %v2700
          %2752 = vmatprep.subr.mxu0 0.0
          %2753 = vmatpush1.msra.mxu0 %v2701
          %2754 = vmatprep.subr.mxu0 0.0
          %2755 = vmatpush1.msra.mxu0 %v2702
          %2756 = vmatprep.subr.mxu0 0.0
          %2757 = vmatpush1.msra.mxu0 %v2718
          %2758 = vmatprep.subr.mxu0 0.0
          %2759 = vmatpush1.msra.mxu0 0.0
          %2760 = vmatprep.subr.mxu0 0.0
          %2761 = vmatpush1.msra.mxu0 0.0
          %2762 = vmatprep.subr.mxu0 0.0
          %2763 = vmatpush1.msra.mxu0 0.0
          %2764 = vmatprep.subr.mxu0 0.0
          %2765 = vmatpush1.msra.mxu0 0.0
          %2766 = vmatprep.subr.mxu0 0.0
          %2767 = vmatpush1.msra.mxu0 0.0
          %2768 = vmatprep.subr.mxu0 0.0
          %2769 = vmatpush1.msra.mxu0 0.0
          %2770 = vmatprep.subr.mxu0 0.0
          %2771 = vmatpush1.msra.mxu0 0.0
          %2772 = vmatprep.subr.mxu0 0.0
          %2773 = vmatpush1.msra.mxu0 0.0
          %2774 = vmatprep.subr.mxu0 0.0
          %2775 = vmatpush1.msra.mxu0 0.0
          %2776 = vmatprep.subr.mxu0 0.0
          %2777 = vmatpush1.msra.mxu0 0.0
          %2778 = vmatprep.subr.mxu0 0.0
          %2779 = vmatpush1.msra.mxu0 0.0
          %2780 = vmatprep.subr.mxu0 0.0
          %2781 = vmatpush1.msra.mxu0 0.0
          %2782 = vmatprep.subr.mxu0 0.0
          %2783 = vmatpush1.msra.mxu0 0.0
          %2784 = vmatprep.mubr.f32.mxu0 %v2712
          %2785 = vmatmul.mubr.f32.gmra.mrb[0].mxu0 %v2681
          %v2786 = vpop.f32.mrb[0].mxu0
          %v2787 = vadd.f32 %v2709, %v2786
          %v2788 = vpop.f32.mrb[0].mxu0
          %2789 = vmatprep.mubr.f32.mxu0 %v2715
          %2790 = vmatmul.mubr.f32.gmra.mrb[0].mxu0 %v2683
          %v2791 = vpop.f32.mrb[0].mxu0
          %v2792 = vadd.f32 %v2709, %v2791
          %v2793 = vpop.f32.mrb[0].mxu0
          %2794 = vdwg.mxu0
          %v2795 = vmax.f32 %v2787, 0.0
          %v2796 = vmax.f32 %v2792, 0.0
          %v2797 = vmax.f32 %v2382, %v2795
          %v2798 = vmax.f32 %v2383, %v2796
          %2799 = vst [vmem:[#allocation6] sm:$0xff] %v2797
          %2800 = vst [vmem:[#allocation6 + $0x8] sm:$0x3] %v2798
          %v2801 = vld [vmem:[#allocation6] ss:$2 sm:$0x1f]
          %s2802 = scalar_lea.vmem [#allocation6], 1
          %v2803 = vld [vmem:[%s2802] ss:$2 sm:$0x1f]
          %v2804 = vmax.f32 %v2801, %v2803
          %s2805 = smul.u32 %s1900, 8
          %s2806 = scalar_lea.vmem [#allocation7], %s2805
          %2807 = vst [vmem:[%s2806] sm:$0x1f] %v2804
        $region76: #{lenet_cifar100_forward.1} parent=63 // loop_footer
          %s1904 = sadd.s32 1, %s1900
        $region77: #{lenet_cifar100_forward.1} parent=63 // loop_footer_branch
          %1899 = sbr.rel target = $region73
        $region78: #{lenet_cifar100_forward.1} parent=63 // loop_exit
          _
        %v2808 = vld [vmem:[%s6] sm:$0x1]
        %v2809 = vld [vmem:[#allocation7] sm:$0x1]
        %v2810 = vld [vmem:[%s5] sm:$0xff]
        %v2811 = vld [vmem:[%s5 + $0x8] sm:$0xff]
        %vm2812 = vcmask 130048
        %v2814 = vsel %vm2812, %v2809, 0
        %2816 = vmatprep.subr.mxu0 0.0
        %2817 = vmatpush1.msra.mxu0 %v2810
        %2818 = vmatprep.subr.mxu0 0.0
        %2819 = vmatpush1.msra.mxu0 %v2811
        %2820 = vmatprep.subr.mxu0 0.0
        %2821 = vmatpush1.msra.mxu0 0.0
        %2822 = vmatprep.subr.mxu0 0.0
        %2823 = vmatpush1.msra.mxu0 0.0
        %2824 = vmatprep.subr.mxu0 0.0
        %2825 = vmatpush1.msra.mxu0 0.0
        %2826 = vmatprep.subr.mxu0 0.0
        %2827 = vmatpush1.msra.mxu0 0.0
        %2828 = vmatprep.subr.mxu0 0.0
        %2829 = vmatpush1.msra.mxu0 0.0
        %2830 = vmatprep.subr.mxu0 0.0
        %2831 = vmatpush1.msra.mxu0 0.0
        %2832 = vmatprep.subr.mxu0 0.0
        %2833 = vmatpush1.msra.mxu0 0.0
        %2834 = vmatprep.subr.mxu0 0.0
        %2835 = vmatpush1.msra.mxu0 0.0
        %2836 = vmatprep.subr.mxu0 0.0
        %2837 = vmatpush1.msra.mxu0 0.0
        %2838 = vmatprep.subr.mxu0 0.0
        %2839 = vmatpush1.msra.mxu0 0.0
        %2840 = vmatprep.subr.mxu0 0.0
        %2841 = vmatpush1.msra.mxu0 0.0
        %2842 = vmatprep.subr.mxu0 0.0
        %2843 = vmatpush1.msra.mxu0 0.0
        %2844 = vmatprep.subr.mxu0 0.0
        %2845 = vmatpush1.msra.mxu0 0.0
        %2846 = vmatprep.subr.mxu0 0.0
        %2847 = vmatpush1.msra.mxu0 0.0
        %2848 = vmatprep.subr.mxu0 0.0
        %2849 = vmatpush1.msra.mxu0 0.0
        %2850 = vmatprep.subr.mxu0 0.0
        %2851 = vmatpush1.msra.mxu0 0.0
        %2852 = vmatprep.subr.mxu0 0.0
        %2853 = vmatpush1.msra.mxu0 0.0
        %2854 = vmatprep.subr.mxu0 0.0
        %2855 = vmatpush1.msra.mxu0 0.0
        %2856 = vmatprep.subr.mxu0 0.0
        %2857 = vmatpush1.msra.mxu0 0.0
        %2858 = vmatprep.subr.mxu0 0.0
        %2859 = vmatpush1.msra.mxu0 0.0
        %2860 = vmatprep.subr.mxu0 0.0
        %2861 = vmatpush1.msra.mxu0 0.0
        %2862 = vmatprep.subr.mxu0 0.0
        %2863 = vmatpush1.msra.mxu0 0.0
        %2864 = vmatprep.subr.mxu0 0.0
        %2865 = vmatpush1.msra.mxu0 0.0
        %2866 = vmatprep.subr.mxu0 0.0
        %2867 = vmatpush1.msra.mxu0 0.0
        %2868 = vmatprep.subr.mxu0 0.0
        %2869 = vmatpush1.msra.mxu0 0.0
        %2870 = vmatprep.subr.mxu0 0.0
        %2871 = vmatpush1.msra.mxu0 0.0
        %2872 = vmatprep.subr.mxu0 0.0
        %2873 = vmatpush1.msra.mxu0 0.0
        %2874 = vmatprep.subr.mxu0 0.0
        %2875 = vmatpush1.msra.mxu0 0.0
        %2876 = vmatprep.subr.mxu0 0.0
        %2877 = vmatpush1.msra.mxu0 0.0
        %2878 = vmatprep.subr.mxu0 0.0
        %2879 = vmatpush1.msra.mxu0 0.0
        %2880 = vmatprep.mubr.f32.mxu0 0.0
        %2881 = vmatmul.mubr.f32.gmra.mrb[0].mxu0 %v2814
        %v2882 = vpop.f32.mrb[0].mxu0
        %v2883 = vadd.f32 0.0, %v2882
        %v2884 = vpop.f32.mrb[0].mxu0
        %2885 = vdwg.mxu0
        %v2886 = vadd.f32 %v2808, %v2883
        %v2887 = vld [vmem:[#allocation7 + $0x1] sm:$0x1]
        %s2888 = scalar_lea.vmem %s5, 16
        %v2889 = vld [vmem:[%s2888] sm:$0xff]
        %v2890 = vld [vmem:[%s2888 + $0x8] sm:$0xff]
        %v2892 = vsel %vm2812, %v2887, 0
        %2894 = vmatprep.subr.mxu0 0.0
        %2895 = vmatpush1.msra.mxu0 %v2889
        %2896 = vmatprep.subr.mxu0 0.0
        %2897 = vmatpush1.msra.mxu0 %v2890
        %2898 = vmatprep.subr.mxu0 0.0
        %2899 = vmatpush1.msra.mxu0 0.0
        %2900 = vmatprep.subr.mxu0 0.0
        %2901 = vmatpush1.msra.mxu0 0.0
        %2902 = vmatprep.subr.mxu0 0.0
        %2903 = vmatpush1.msra.mxu0 0.0
        %2904 = vmatprep.subr.mxu0 0.0
        %2905 = vmatpush1.msra.mxu0 0.0
        %2906 = vmatprep.subr.mxu0 0.0
        %2907 = vmatpush1.msra.mxu0 0.0
        %2908 = vmatprep.subr.mxu0 0.0
        %2909 = vmatpush1.msra.mxu0 0.0
        %2910 = vmatprep.subr.mxu0 0.0
        %2911 = vmatpush1.msra.mxu0 0.0
        %2912 = vmatprep.subr.mxu0 0.0
        %2913 = vmatpush1.msra.mxu0 0.0
        %2914 = vmatprep.subr.mxu0 0.0
        %2915 = vmatpush1.msra.mxu0 0.0
        %2916 = vmatprep.subr.mxu0 0.0
        %2917 = vmatpush1.msra.mxu0 0.0
        %2918 = vmatprep.subr.mxu0 0.0
        %2919 = vmatpush1.msra.mxu0 0.0
        %2920 = vmatprep.subr.mxu0 0.0
        %2921 = vmatpush1.msra.mxu0 0.0
        %2922 = vmatprep.subr.mxu0 0.0
        %2923 = vmatpush1.msra.mxu0 0.0
        %2924 = vmatprep.subr.mxu0 0.0
        %2925 = vmatpush1.msra.mxu0 0.0
        %2926 = vmatprep.subr.mxu0 0.0
        %2927 = vmatpush1.msra.mxu0 0.0
        %2928 = vmatprep.subr.mxu0 0.0
        %2929 = vmatpush1.msra.mxu0 0.0
        %2930 = vmatprep.subr.mxu0 0.0
        %2931 = vmatpush1.msra.mxu0 0.0
        %2932 = vmatprep.subr.mxu0 0.0
        %2933 = vmatpush1.msra.mxu0 0.0
        %2934 = vmatprep.subr.mxu0 0.0
        %2935 = vmatpush1.msra.mxu0 0.0
        %2936 = vmatprep.subr.mxu0 0.0
        %2937 = vmatpush1.msra.mxu0 0.0
        %2938 = vmatprep.subr.mxu0 0.0
        %2939 = vmatpush1.msra.mxu0 0.0
        %2940 = vmatprep.subr.mxu0 0.0
        %2941 = vmatpush1.msra.mxu0 0.0
        %2942 = vmatprep.subr.mxu0 0.0
        %2943 = vmatpush1.msra.mxu0 0.0
        %2944 = vmatprep.subr.mxu0 0.0
        %2945 = vmatpush1.msra.mxu0 0.0
        %2946 = vmatprep.subr.mxu0 0.0
        %2947 = vmatpush1.msra.mxu0 0.0
        %2948 = vmatprep.subr.mxu0 0.0
        %2949 = vmatpush1.msra.mxu0 0.0
        %2950 = vmatprep.subr.mxu0 0.0
        %2951 = vmatpush1.msra.mxu0 0.0
        %2952 = vmatprep.subr.mxu0 0.0
        %2953 = vmatpush1.msra.mxu0 0.0
        %2954 = vmatprep.subr.mxu0 0.0
        %2955 = vmatpush1.msra.mxu0 0.0
        %2956 = vmatprep.subr.mxu0 0.0
        %2957 = vmatpush1.msra.mxu0 0.0
        %2958 = vmatprep.mubr.f32.mxu0 0.0
        %2959 = vmatmul.mubr.f32.gmra.mrb[0].mxu0 %v2892
        %v2960 = vpop.f32.mrb[0].mxu0
        %v2961 = vadd.f32 0.0, %v2960
        %v2962 = vpop.f32.mrb[0].mxu0
        %2963 = vdwg.mxu0
        %v2964 = vadd.f32 %v2886, %v2961
        %v2965 = vld [vmem:[#allocation7 + $0x2] sm:$0x1]
        %s2966 = scalar_lea.vmem %s5, 32
        %v2967 = vld [vmem:[%s2966] sm:$0xff]
        %v2968 = vld [vmem:[%s2966 + $0x8] sm:$0xff]
        %v2970 = vsel %vm2812, %v2965, 0
        %2972 = vmatprep.subr.mxu0 0.0
        %2973 = vmatpush1.msra.mxu0 %v2967
        %2974 = vmatprep.subr.mxu0 0.0
        %2975 = vmatpush1.msra.mxu0 %v2968
        %2976 = vmatprep.subr.mxu0 0.0
        %2977 = vmatpush1.msra.mxu0 0.0
        %2978 = vmatprep.subr.mxu0 0.0
        %2979 = vmatpush1.msra.mxu0 0.0
        %2980 = vmatprep.subr.mxu0 0.0
        %2981 = vmatpush1.msra.mxu0 0.0
        %2982 = vmatprep.subr.mxu0 0.0
        %2983 = vmatpush1.msra.mxu0 0.0
        %2984 = vmatprep.subr.mxu0 0.0
        %2985 = vmatpush1.msra.mxu0 0.0
        %2986 = vmatprep.subr.mxu0 0.0
        %2987 = vmatpush1.msra.mxu0 0.0
        %2988 = vmatprep.subr.mxu0 0.0
        %2989 = vmatpush1.msra.mxu0 0.0
        %2990 = vmatprep.subr.mxu0 0.0
        %2991 = vmatpush1.msra.mxu0 0.0
        %2992 = vmatprep.subr.mxu0 0.0
        %2993 = vmatpush1.msra.mxu0 0.0
        %2994 = vmatprep.subr.mxu0 0.0
        %2995 = vmatpush1.msra.mxu0 0.0
        %2996 = vmatprep.subr.mxu0 0.0
        %2997 = vmatpush1.msra.mxu0 0.0
        %2998 = vmatprep.subr.mxu0 0.0
        %2999 = vmatpush1.msra.mxu0 0.0
        %3000 = vmatprep.subr.mxu0 0.0
        %3001 = vmatpush1.msra.mxu0 0.0
        %3002 = vmatprep.subr.mxu0 0.0
        %3003 = vmatpush1.msra.mxu0 0.0
        %3004 = vmatprep.subr.mxu0 0.0
        %3005 = vmatpush1.msra.mxu0 0.0
        %3006 = vmatprep.subr.mxu0 0.0
        %3007 = vmatpush1.msra.mxu0 0.0
        %3008 = vmatprep.subr.mxu0 0.0
        %3009 = vmatpush1.msra.mxu0 0.0
        %3010 = vmatprep.subr.mxu0 0.0
        %3011 = vmatpush1.msra.mxu0 0.0
        %3012 = vmatprep.subr.mxu0 0.0
        %3013 = vmatpush1.msra.mxu0 0.0
        %3014 = vmatprep.subr.mxu0 0.0
        %3015 = vmatpush1.msra.mxu0 0.0
        %3016 = vmatprep.subr.mxu0 0.0
        %3017 = vmatpush1.msra.mxu0 0.0
        %3018 = vmatprep.subr.mxu0 0.0
        %3019 = vmatpush1.msra.mxu0 0.0
        %3020 = vmatprep.subr.mxu0 0.0
        %3021 = vmatpush1.msra.mxu0 0.0
        %3022 = vmatprep.subr.mxu0 0.0
        %3023 = vmatpush1.msra.mxu0 0.0
        %3024 = vmatprep.subr.mxu0 0.0
        %3025 = vmatpush1.msra.mxu0 0.0
        %3026 = vmatprep.subr.mxu0 0.0
        %3027 = vmatpush1.msra.mxu0 0.0
        %3028 = vmatprep.subr.mxu0 0.0
        %3029 = vmatpush1.msra.mxu0 0.0
        %3030 = vmatprep.subr.mxu0 0.0
        %3031 = vmatpush1.msra.mxu0 0.0
        %3032 = vmatprep.subr.mxu0 0.0
        %3033 = vmatpush1.msra.mxu0 0.0
        %3034 = vmatprep.subr.mxu0 0.0
        %3035 = vmatpush1.msra.mxu0 0.0
        %3036 = vmatprep.mubr.f32.mxu0 0.0
        %3037 = vmatmul.mubr.f32.gmra.mrb[0].mxu0 %v2970
        %v3038 = vpop.f32.mrb[0].mxu0
        %v3039 = vadd.f32 0.0, %v3038
        %v3040 = vpop.f32.mrb[0].mxu0
        %3041 = vdwg.mxu0
        %v3042 = vadd.f32 %v2964, %v3039
        %v3043 = vld [vmem:[#allocation7 + $0x3] sm:$0x1]
        %s3044 = scalar_lea.vmem %s5, 48
        %v3045 = vld [vmem:[%s3044] sm:$0xff]
        %v3046 = vld [vmem:[%s3044 + $0x8] sm:$0xff]
        %v3048 = vsel %vm2812, %v3043, 0
        %3050 = vmatprep.subr.mxu0 0.0
        %3051 = vmatpush1.msra.mxu0 %v3045
        %3052 = vmatprep.subr.mxu0 0.0
        %3053 = vmatpush1.msra.mxu0 %v3046
        %3054 = vmatprep.subr.mxu0 0.0
        %3055 = vmatpush1.msra.mxu0 0.0
        %3056 = vmatprep.subr.mxu0 0.0
        %3057 = vmatpush1.msra.mxu0 0.0
        %3058 = vmatprep.subr.mxu0 0.0
        %3059 = vmatpush1.msra.mxu0 0.0
        %3060 = vmatprep.subr.mxu0 0.0
        %3061 = vmatpush1.msra.mxu0 0.0
        %3062 = vmatprep.subr.mxu0 0.0
        %3063 = vmatpush1.msra.mxu0 0.0
        %3064 = vmatprep.subr.mxu0 0.0
        %3065 = vmatpush1.msra.mxu0 0.0
        %3066 = vmatprep.subr.mxu0 0.0
        %3067 = vmatpush1.msra.mxu0 0.0
        %3068 = vmatprep.subr.mxu0 0.0
        %3069 = vmatpush1.msra.mxu0 0.0
        %3070 = vmatprep.subr.mxu0 0.0
        %3071 = vmatpush1.msra.mxu0 0.0
        %3072 = vmatprep.subr.mxu0 0.0
        %3073 = vmatpush1.msra.mxu0 0.0
        %3074 = vmatprep.subr.mxu0 0.0
        %3075 = vmatpush1.msra.mxu0 0.0
        %3076 = vmatprep.subr.mxu0 0.0
        %3077 = vmatpush1.msra.mxu0 0.0
        %3078 = vmatprep.subr.mxu0 0.0
        %3079 = vmatpush1.msra.mxu0 0.0
        %3080 = vmatprep.subr.mxu0 0.0
        %3081 = vmatpush1.msra.mxu0 0.0
        %3082 = vmatprep.subr.mxu0 0.0
        %3083 = vmatpush1.msra.mxu0 0.0
        %3084 = vmatprep.subr.mxu0 0.0
        %3085 = vmatpush1.msra.mxu0 0.0
        %3086 = vmatprep.subr.mxu0 0.0
        %3087 = vmatpush1.msra.mxu0 0.0
        %3088 = vmatprep.subr.mxu0 0.0
        %3089 = vmatpush1.msra.mxu0 0.0
        %3090 = vmatprep.subr.mxu0 0.0
        %3091 = vmatpush1.msra.mxu0 0.0
        %3092 = vmatprep.subr.mxu0 0.0
        %3093 = vmatpush1.msra.mxu0 0.0
        %3094 = vmatprep.subr.mxu0 0.0
        %3095 = vmatpush1.msra.mxu0 0.0
        %3096 = vmatprep.subr.mxu0 0.0
        %3097 = vmatpush1.msra.mxu0 0.0
        %3098 = vmatprep.subr.mxu0 0.0
        %3099 = vmatpush1.msra.mxu0 0.0
        %3100 = vmatprep.subr.mxu0 0.0
        %3101 = vmatpush1.msra.mxu0 0.0
        %3102 = vmatprep.subr.mxu0 0.0
        %3103 = vmatpush1.msra.mxu0 0.0
        %3104 = vmatprep.subr.mxu0 0.0
        %3105 = vmatpush1.msra.mxu0 0.0
        %3106 = vmatprep.subr.mxu0 0.0
        %3107 = vmatpush1.msra.mxu0 0.0
        %3108 = vmatprep.subr.mxu0 0.0
        %3109 = vmatpush1.msra.mxu0 0.0
        %3110 = vmatprep.subr.mxu0 0.0
        %3111 = vmatpush1.msra.mxu0 0.0
        %3112 = vmatprep.subr.mxu0 0.0
        %3113 = vmatpush1.msra.mxu0 0.0
        %3114 = vmatprep.mubr.f32.mxu0 0.0
        %3115 = vmatmul.mubr.f32.gmra.mrb[0].mxu0 %v3048
        %v3116 = vpop.f32.mrb[0].mxu0
        %v3117 = vadd.f32 0.0, %v3116
        %v3118 = vpop.f32.mrb[0].mxu0
        %3119 = vdwg.mxu0
        %v3120 = vadd.f32 %v3042, %v3117
        %v3121 = vld [vmem:[#allocation7 + $0x4] sm:$0x1]
        %s3122 = scalar_lea.vmem %s5, 64
        %v3123 = vld [vmem:[%s3122] sm:$0xff]
        %v3124 = vld [vmem:[%s3122 + $0x8] sm:$0xff]
        %v3126 = vsel %vm2812, %v3121, 0
        %3128 = vmatprep.subr.mxu0 0.0
        %3129 = vmatpush1.msra.mxu0 %v3123
        %3130 = vmatprep.subr.mxu0 0.0
        %3131 = vmatpush1.msra.mxu0 %v3124
        %3132 = vmatprep.subr.mxu0 0.0
        %3133 = vmatpush1.msra.mxu0 0.0
        %3134 = vmatprep.subr.mxu0 0.0
        %3135 = vmatpush1.msra.mxu0 0.0
        %3136 = vmatprep.subr.mxu0 0.0
        %3137 = vmatpush1.msra.mxu0 0.0
        %3138 = vmatprep.subr.mxu0 0.0
        %3139 = vmatpush1.msra.mxu0 0.0
        %3140 = vmatprep.subr.mxu0 0.0
        %3141 = vmatpush1.msra.mxu0 0.0
        %3142 = vmatprep.subr.mxu0 0.0
        %3143 = vmatpush1.msra.mxu0 0.0
        %3144 = vmatprep.subr.mxu0 0.0
        %3145 = vmatpush1.msra.mxu0 0.0
        %3146 = vmatprep.subr.mxu0 0.0
        %3147 = vmatpush1.msra.mxu0 0.0
        %3148 = vmatprep.subr.mxu0 0.0
        %3149 = vmatpush1.msra.mxu0 0.0
        %3150 = vmatprep.subr.mxu0 0.0
        %3151 = vmatpush1.msra.mxu0 0.0
        %3152 = vmatprep.subr.mxu0 0.0
        %3153 = vmatpush1.msra.mxu0 0.0
        %3154 = vmatprep.subr.mxu0 0.0
        %3155 = vmatpush1.msra.mxu0 0.0
        %3156 = vmatprep.subr.mxu0 0.0
        %3157 = vmatpush1.msra.mxu0 0.0
        %3158 = vmatprep.subr.mxu0 0.0
        %3159 = vmatpush1.msra.mxu0 0.0
        %3160 = vmatprep.subr.mxu0 0.0
        %3161 = vmatpush1.msra.mxu0 0.0
        %3162 = vmatprep.subr.mxu0 0.0
        %3163 = vmatpush1.msra.mxu0 0.0
        %3164 = vmatprep.subr.mxu0 0.0
        %3165 = vmatpush1.msra.mxu0 0.0
        %3166 = vmatprep.subr.mxu0 0.0
        %3167 = vmatpush1.msra.mxu0 0.0
        %3168 = vmatprep.subr.mxu0 0.0
        %3169 = vmatpush1.msra.mxu0 0.0
        %3170 = vmatprep.subr.mxu0 0.0
        %3171 = vmatpush1.msra.mxu0 0.0
        %3172 = vmatprep.subr.mxu0 0.0
        %3173 = vmatpush1.msra.mxu0 0.0
        %3174 = vmatprep.subr.mxu0 0.0
        %3175 = vmatpush1.msra.mxu0 0.0
        %3176 = vmatprep.subr.mxu0 0.0
        %3177 = vmatpush1.msra.mxu0 0.0
        %3178 = vmatprep.subr.mxu0 0.0
        %3179 = vmatpush1.msra.mxu0 0.0
        %3180 = vmatprep.subr.mxu0 0.0
        %3181 = vmatpush1.msra.mxu0 0.0
        %3182 = vmatprep.subr.mxu0 0.0
        %3183 = vmatpush1.msra.mxu0 0.0
        %3184 = vmatprep.subr.mxu0 0.0
        %3185 = vmatpush1.msra.mxu0 0.0
        %3186 = vmatprep.subr.mxu0 0.0
        %3187 = vmatpush1.msra.mxu0 0.0
        %3188 = vmatprep.subr.mxu0 0.0
        %3189 = vmatpush1.msra.mxu0 0.0
        %3190 = vmatprep.subr.mxu0 0.0
        %3191 = vmatpush1.msra.mxu0 0.0
        %3192 = vmatprep.mubr.f32.mxu0 0.0
        %3193 = vmatmul.mubr.f32.gmra.mrb[0].mxu0 %v3126
        %v3194 = vpop.f32.mrb[0].mxu0
        %v3195 = vadd.f32 0.0, %v3194
        %v3196 = vpop.f32.mrb[0].mxu0
        %3197 = vdwg.mxu0
        %v3198 = vadd.f32 %v3120, %v3195
        %s3199 = scalar_lea.vmem [#allocation7], 8
        %v3200 = vld [vmem:[%s3199] sm:$0x1]
        %s3201 = scalar_lea.vmem %s5, 80
        %v3202 = vld [vmem:[%s3201] sm:$0xff]
        %v3203 = vld [vmem:[%s3201 + $0x8] sm:$0xff]
        %v3205 = vsel %vm2812, %v3200, 0
        %3207 = vmatprep.subr.mxu0 0.0
        %3208 = vmatpush1.msra.mxu0 %v3202
        %3209 = vmatprep.subr.mxu0 0.0
        %3210 = vmatpush1.msra.mxu0 %v3203
        %3211 = vmatprep.subr.mxu0 0.0
        %3212 = vmatpush1.msra.mxu0 0.0
        %3213 = vmatprep.subr.mxu0 0.0
        %3214 = vmatpush1.msra.mxu0 0.0
        %3215 = vmatprep.subr.mxu0 0.0
        %3216 = vmatpush1.msra.mxu0 0.0
        %3217 = vmatprep.subr.mxu0 0.0
        %3218 = vmatpush1.msra.mxu0 0.0
        %3219 = vmatprep.subr.mxu0 0.0
        %3220 = vmatpush1.msra.mxu0 0.0
        %3221 = vmatprep.subr.mxu0 0.0
        %3222 = vmatpush1.msra.mxu0 0.0
        %3223 = vmatprep.subr.mxu0 0.0
        %3224 = vmatpush1.msra.mxu0 0.0
        %3225 = vmatprep.subr.mxu0 0.0
        %3226 = vmatpush1.msra.mxu0 0.0
        %3227 = vmatprep.subr.mxu0 0.0
        %3228 = vmatpush1.msra.mxu0 0.0
        %3229 = vmatprep.subr.mxu0 0.0
        %3230 = vmatpush1.msra.mxu0 0.0
        %3231 = vmatprep.subr.mxu0 0.0
        %3232 = vmatpush1.msra.mxu0 0.0
        %3233 = vmatprep.subr.mxu0 0.0
        %3234 = vmatpush1.msra.mxu0 0.0
        %3235 = vmatprep.subr.mxu0 0.0
        %3236 = vmatpush1.msra.mxu0 0.0
        %3237 = vmatprep.subr.mxu0 0.0
        %3238 = vmatpush1.msra.mxu0 0.0
        %3239 = vmatprep.subr.mxu0 0.0
        %3240 = vmatpush1.msra.mxu0 0.0
        %3241 = vmatprep.subr.mxu0 0.0
        %3242 = vmatpush1.msra.mxu0 0.0
        %3243 = vmatprep.subr.mxu0 0.0
        %3244 = vmatpush1.msra.mxu0 0.0
        %3245 = vmatprep.subr.mxu0 0.0
        %3246 = vmatpush1.msra.mxu0 0.0
        %3247 = vmatprep.subr.mxu0 0.0
        %3248 = vmatpush1.msra.mxu0 0.0
        %3249 = vmatprep.subr.mxu0 0.0
        %3250 = vmatpush1.msra.mxu0 0.0
        %3251 = vmatprep.subr.mxu0 0.0
        %3252 = vmatpush1.msra.mxu0 0.0
        %3253 = vmatprep.subr.mxu0 0.0
        %3254 = vmatpush1.msra.mxu0 0.0
        %3255 = vmatprep.subr.mxu0 0.0
        %3256 = vmatpush1.msra.mxu0 0.0
        %3257 = vmatprep.subr.mxu0 0.0
        %3258 = vmatpush1.msra.mxu0 0.0
        %3259 = vmatprep.subr.mxu0 0.0
        %3260 = vmatpush1.msra.mxu0 0.0
        %3261 = vmatprep.subr.mxu0 0.0
        %3262 = vmatpush1.msra.mxu0 0.0
        %3263 = vmatprep.subr.mxu0 0.0
        %3264 = vmatpush1.msra.mxu0 0.0
        %3265 = vmatprep.subr.mxu0 0.0
        %3266 = vmatpush1.msra.mxu0 0.0
        %3267 = vmatprep.subr.mxu0 0.0
        %3268 = vmatpush1.msra.mxu0 0.0
        %3269 = vmatprep.subr.mxu0 0.0
        %3270 = vmatpush1.msra.mxu0 0.0
        %3271 = vmatprep.mubr.f32.mxu0 0.0
        %3272 = vmatmul.mubr.f32.gmra.mrb[0].mxu0 %v3205
        %v3273 = vpop.f32.mrb[0].mxu0
        %v3274 = vadd.f32 0.0, %v3273
        %v3275 = vpop.f32.mrb[0].mxu0
        %3276 = vdwg.mxu0
        %v3277 = vadd.f32 %v3198, %v3274
        %v3278 = vld [vmem:[%s3199 + $0x1] sm:$0x1]
        %s3279 = scalar_lea.vmem %s5, 96
        %v3280 = vld [vmem:[%s3279] sm:$0xff]
        %v3281 = vld [vmem:[%s3279 + $0x8] sm:$0xff]
        %v3283 = vsel %vm2812, %v3278, 0
        %3285 = vmatprep.subr.mxu0 0.0
        %3286 = vmatpush1.msra.mxu0 %v3280
        %3287 = vmatprep.subr.mxu0 0.0
        %3288 = vmatpush1.msra.mxu0 %v3281
        %3289 = vmatprep.subr.mxu0 0.0
        %3290 = vmatpush1.msra.mxu0 0.0
        %3291 = vmatprep.subr.mxu0 0.0
        %3292 = vmatpush1.msra.mxu0 0.0
        %3293 = vmatprep.subr.mxu0 0.0
        %3294 = vmatpush1.msra.mxu0 0.0
        %3295 = vmatprep.subr.mxu0 0.0
        %3296 = vmatpush1.msra.mxu0 0.0
        %3297 = vmatprep.subr.mxu0 0.0
        %3298 = vmatpush1.msra.mxu0 0.0
        %3299 = vmatprep.subr.mxu0 0.0
        %3300 = vmatpush1.msra.mxu0 0.0
        %3301 = vmatprep.subr.mxu0 0.0
        %3302 = vmatpush1.msra.mxu0 0.0
        %3303 = vmatprep.subr.mxu0 0.0
        %3304 = vmatpush1.msra.mxu0 0.0
        %3305 = vmatprep.subr.mxu0 0.0
        %3306 = vmatpush1.msra.mxu0 0.0
        %3307 = vmatprep.subr.mxu0 0.0
        %3308 = vmatpush1.msra.mxu0 0.0
        %3309 = vmatprep.subr.mxu0 0.0
        %3310 = vmatpush1.msra.mxu0 0.0
        %3311 = vmatprep.subr.mxu0 0.0
        %3312 = vmatpush1.msra.mxu0 0.0
        %3313 = vmatprep.subr.mxu0 0.0
        %3314 = vmatpush1.msra.mxu0 0.0
        %3315 = vmatprep.subr.mxu0 0.0
        %3316 = vmatpush1.msra.mxu0 0.0
        %3317 = vmatprep.subr.mxu0 0.0
        %3318 = vmatpush1.msra.mxu0 0.0
        %3319 = vmatprep.subr.mxu0 0.0
        %3320 = vmatpush1.msra.mxu0 0.0
        %3321 = vmatprep.subr.mxu0 0.0
        %3322 = vmatpush1.msra.mxu0 0.0
        %3323 = vmatprep.subr.mxu0 0.0
        %3324 = vmatpush1.msra.mxu0 0.0
        %3325 = vmatprep.subr.mxu0 0.0
        %3326 = vmatpush1.msra.mxu0 0.0
        %3327 = vmatprep.subr.mxu0 0.0
        %3328 = vmatpush1.msra.mxu0 0.0
        %3329 = vmatprep.subr.mxu0 0.0
        %3330 = vmatpush1.msra.mxu0 0.0
        %3331 = vmatprep.subr.mxu0 0.0
        %3332 = vmatpush1.msra.mxu0 0.0
        %3333 = vmatprep.subr.mxu0 0.0
        %3334 = vmatpush1.msra.mxu0 0.0
        %3335 = vmatprep.subr.mxu0 0.0
        %3336 = vmatpush1.msra.mxu0 0.0
        %3337 = vmatprep.subr.mxu0 0.0
        %3338 = vmatpush1.msra.mxu0 0.0
        %3339 = vmatprep.subr.mxu0 0.0
        %3340 = vmatpush1.msra.mxu0 0.0
        %3341 = vmatprep.subr.mxu0 0.0
        %3342 = vmatpush1.msra.mxu0 0.0
        %3343 = vmatprep.subr.mxu0 0.0
        %3344 = vmatpush1.msra.mxu0 0.0
        %3345 = vmatprep.subr.mxu0 0.0
        %3346 = vmatpush1.msra.mxu0 0.0
        %3347 = vmatprep.subr.mxu0 0.0
        %3348 = vmatpush1.msra.mxu0 0.0
        %3349 = vmatprep.mubr.f32.mxu0 0.0
        %3350 = vmatmul.mubr.f32.gmra.mrb[0].mxu0 %v3283
        %v3351 = vpop.f32.mrb[0].mxu0
        %v3352 = vadd.f32 0.0, %v3351
        %v3353 = vpop.f32.mrb[0].mxu0
        %3354 = vdwg.mxu0
        %v3355 = vadd.f32 %v3277, %v3352
        %v3356 = vld [vmem:[%s3199 + $0x2] sm:$0x1]
        %s3357 = scalar_lea.vmem %s5, 112
        %v3358 = vld [vmem:[%s3357] sm:$0xff]
        %v3359 = vld [vmem:[%s3357 + $0x8] sm:$0xff]
        %v3361 = vsel %vm2812, %v3356, 0
        %3363 = vmatprep.subr.mxu0 0.0
        %3364 = vmatpush1.msra.mxu0 %v3358
        %3365 = vmatprep.subr.mxu0 0.0
        %3366 = vmatpush1.msra.mxu0 %v3359
        %3367 = vmatprep.subr.mxu0 0.0
        %3368 = vmatpush1.msra.mxu0 0.0
        %3369 = vmatprep.subr.mxu0 0.0
        %3370 = vmatpush1.msra.mxu0 0.0
        %3371 = vmatprep.subr.mxu0 0.0
        %3372 = vmatpush1.msra.mxu0 0.0
        %3373 = vmatprep.subr.mxu0 0.0
        %3374 = vmatpush1.msra.mxu0 0.0
        %3375 = vmatprep.subr.mxu0 0.0
        %3376 = vmatpush1.msra.mxu0 0.0
        %3377 = vmatprep.subr.mxu0 0.0
        %3378 = vmatpush1.msra.mxu0 0.0
        %3379 = vmatprep.subr.mxu0 0.0
        %3380 = vmatpush1.msra.mxu0 0.0
        %3381 = vmatprep.subr.mxu0 0.0
        %3382 = vmatpush1.msra.mxu0 0.0
        %3383 = vmatprep.subr.mxu0 0.0
        %3384 = vmatpush1.msra.mxu0 0.0
        %3385 = vmatprep.subr.mxu0 0.0
        %3386 = vmatpush1.msra.mxu0 0.0
        %3387 = vmatprep.subr.mxu0 0.0
        %3388 = vmatpush1.msra.mxu0 0.0
        %3389 = vmatprep.subr.mxu0 0.0
        %3390 = vmatpush1.msra.mxu0 0.0
        %3391 = vmatprep.subr.mxu0 0.0
        %3392 = vmatpush1.msra.mxu0 0.0
        %3393 = vmatprep.subr.mxu0 0.0
        %3394 = vmatpush1.msra.mxu0 0.0
        %3395 = vmatprep.subr.mxu0 0.0
        %3396 = vmatpush1.msra.mxu0 0.0
        %3397 = vmatprep.subr.mxu0 0.0
        %3398 = vmatpush1.msra.mxu0 0.0
        %3399 = vmatprep.subr.mxu0 0.0
        %3400 = vmatpush1.msra.mxu0 0.0
        %3401 = vmatprep.subr.mxu0 0.0
        %3402 = vmatpush1.msra.mxu0 0.0
        %3403 = vmatprep.subr.mxu0 0.0
        %3404 = vmatpush1.msra.mxu0 0.0
        %3405 = vmatprep.subr.mxu0 0.0
        %3406 = vmatpush1.msra.mxu0 0.0
        %3407 = vmatprep.subr.mxu0 0.0
        %3408 = vmatpush1.msra.mxu0 0.0
        %3409 = vmatprep.subr.mxu0 0.0
        %3410 = vmatpush1.msra.mxu0 0.0
        %3411 = vmatprep.subr.mxu0 0.0
        %3412 = vmatpush1.msra.mxu0 0.0
        %3413 = vmatprep.subr.mxu0 0.0
        %3414 = vmatpush1.msra.mxu0 0.0
        %3415 = vmatprep.subr.mxu0 0.0
        %3416 = vmatpush1.msra.mxu0 0.0
        %3417 = vmatprep.subr.mxu0 0.0
        %3418 = vmatpush1.msra.mxu0 0.0
        %3419 = vmatprep.subr.mxu0 0.0
        %3420 = vmatpush1.msra.mxu0 0.0
        %3421 = vmatprep.subr.mxu0 0.0
        %3422 = vmatpush1.msra.mxu0 0.0
        %3423 = vmatprep.subr.mxu0 0.0
        %3424 = vmatpush1.msra.mxu0 0.0
        %3425 = vmatprep.subr.mxu0 0.0
        %3426 = vmatpush1.msra.mxu0 0.0
        %3427 = vmatprep.mubr.f32.mxu0 0.0
        %3428 = vmatmul.mubr.f32.gmra.mrb[0].mxu0 %v3361
        %v3429 = vpop.f32.mrb[0].mxu0
        %v3430 = vadd.f32 0.0, %v3429
        %v3431 = vpop.f32.mrb[0].mxu0
        %3432 = vdwg.mxu0
        %v3433 = vadd.f32 %v3355, %v3430
        %v3434 = vld [vmem:[%s3199 + $0x3] sm:$0x1]
        %s3435 = scalar_lea.vmem %s5, 128
        %v3436 = vld [vmem:[%s3435] sm:$0xff]
        %v3437 = vld [vmem:[%s3435 + $0x8] sm:$0xff]
        %v3439 = vsel %vm2812, %v3434, 0
        %3441 = vmatprep.subr.mxu0 0.0
        %3442 = vmatpush1.msra.mxu0 %v3436
        %3443 = vmatprep.subr.mxu0 0.0
        %3444 = vmatpush1.msra.mxu0 %v3437
        %3445 = vmatprep.subr.mxu0 0.0
        %3446 = vmatpush1.msra.mxu0 0.0
        %3447 = vmatprep.subr.mxu0 0.0
        %3448 = vmatpush1.msra.mxu0 0.0
        %3449 = vmatprep.subr.mxu0 0.0
        %3450 = vmatpush1.msra.mxu0 0.0
        %3451 = vmatprep.subr.mxu0 0.0
        %3452 = vmatpush1.msra.mxu0 0.0
        %3453 = vmatprep.subr.mxu0 0.0
        %3454 = vmatpush1.msra.mxu0 0.0
        %3455 = vmatprep.subr.mxu0 0.0
        %3456 = vmatpush1.msra.mxu0 0.0
        %3457 = vmatprep.subr.mxu0 0.0
        %3458 = vmatpush1.msra.mxu0 0.0
        %3459 = vmatprep.subr.mxu0 0.0
        %3460 = vmatpush1.msra.mxu0 0.0
        %3461 = vmatprep.subr.mxu0 0.0
        %3462 = vmatpush1.msra.mxu0 0.0
        %3463 = vmatprep.subr.mxu0 0.0
        %3464 = vmatpush1.msra.mxu0 0.0
        %3465 = vmatprep.subr.mxu0 0.0
        %3466 = vmatpush1.msra.mxu0 0.0
        %3467 = vmatprep.subr.mxu0 0.0
        %3468 = vmatpush1.msra.mxu0 0.0
        %3469 = vmatprep.subr.mxu0 0.0
        %3470 = vmatpush1.msra.mxu0 0.0
        %3471 = vmatprep.subr.mxu0 0.0
        %3472 = vmatpush1.msra.mxu0 0.0
        %3473 = vmatprep.subr.mxu0 0.0
        %3474 = vmatpush1.msra.mxu0 0.0
        %3475 = vmatprep.subr.mxu0 0.0
        %3476 = vmatpush1.msra.mxu0 0.0
        %3477 = vmatprep.subr.mxu0 0.0
        %3478 = vmatpush1.msra.mxu0 0.0
        %3479 = vmatprep.subr.mxu0 0.0
        %3480 = vmatpush1.msra.mxu0 0.0
        %3481 = vmatprep.subr.mxu0 0.0
        %3482 = vmatpush1.msra.mxu0 0.0
        %3483 = vmatprep.subr.mxu0 0.0
        %3484 = vmatpush1.msra.mxu0 0.0
        %3485 = vmatprep.subr.mxu0 0.0
        %3486 = vmatpush1.msra.mxu0 0.0
        %3487 = vmatprep.subr.mxu0 0.0
        %3488 = vmatpush1.msra.mxu0 0.0
        %3489 = vmatprep.subr.mxu0 0.0
        %3490 = vmatpush1.msra.mxu0 0.0
        %3491 = vmatprep.subr.mxu0 0.0
        %3492 = vmatpush1.msra.mxu0 0.0
        %3493 = vmatprep.subr.mxu0 0.0
        %3494 = vmatpush1.msra.mxu0 0.0
        %3495 = vmatprep.subr.mxu0 0.0
        %3496 = vmatpush1.msra.mxu0 0.0
        %3497 = vmatprep.subr.mxu0 0.0
        %3498 = vmatpush1.msra.mxu0 0.0
        %3499 = vmatprep.subr.mxu0 0.0
        %3500 = vmatpush1.msra.mxu0 0.0
        %3501 = vmatprep.subr.mxu0 0.0
        %3502 = vmatpush1.msra.mxu0 0.0
        %3503 = vmatprep.subr.mxu0 0.0
        %3504 = vmatpush1.msra.mxu0 0.0
        %3505 = vmatprep.mubr.f32.mxu0 0.0
        %3506 = vmatmul.mubr.f32.gmra.mrb[0].mxu0 %v3439
        %v3507 = vpop.f32.mrb[0].mxu0
        %v3508 = vadd.f32 0.0, %v3507
        %v3509 = vpop.f32.mrb[0].mxu0
        %3510 = vdwg.mxu0
        %v3511 = vadd.f32 %v3433, %v3508
        %v3512 = vld [vmem:[%s3199 + $0x4] sm:$0x1]
        %s3513 = scalar_lea.vmem %s5, 144
        %v3514 = vld [vmem:[%s3513] sm:$0xff]
        %v3515 = vld [vmem:[%s3513 + $0x8] sm:$0xff]
        %v3517 = vsel %vm2812, %v3512, 0
        %3519 = vmatprep.subr.mxu0 0.0
        %3520 = vmatpush1.msra.mxu0 %v3514
        %3521 = vmatprep.subr.mxu0 0.0
        %3522 = vmatpush1.msra.mxu0 %v3515
        %3523 = vmatprep.subr.mxu0 0.0
        %3524 = vmatpush1.msra.mxu0 0.0
        %3525 = vmatprep.subr.mxu0 0.0
        %3526 = vmatpush1.msra.mxu0 0.0
        %3527 = vmatprep.subr.mxu0 0.0
        %3528 = vmatpush1.msra.mxu0 0.0
        %3529 = vmatprep.subr.mxu0 0.0
        %3530 = vmatpush1.msra.mxu0 0.0
        %3531 = vmatprep.subr.mxu0 0.0
        %3532 = vmatpush1.msra.mxu0 0.0
        %3533 = vmatprep.subr.mxu0 0.0
        %3534 = vmatpush1.msra.mxu0 0.0
        %3535 = vmatprep.subr.mxu0 0.0
        %3536 = vmatpush1.msra.mxu0 0.0
        %3537 = vmatprep.subr.mxu0 0.0
        %3538 = vmatpush1.msra.mxu0 0.0
        %3539 = vmatprep.subr.mxu0 0.0
        %3540 = vmatpush1.msra.mxu0 0.0
        %3541 = vmatprep.subr.mxu0 0.0
        %3542 = vmatpush1.msra.mxu0 0.0
        %3543 = vmatprep.subr.mxu0 0.0
        %3544 = vmatpush1.msra.mxu0 0.0
        %3545 = vmatprep.subr.mxu0 0.0
        %3546 = vmatpush1.msra.mxu0 0.0
        %3547 = vmatprep.subr.mxu0 0.0
        %3548 = vmatpush1.msra.mxu0 0.0
        %3549 = vmatprep.subr.mxu0 0.0
        %3550 = vmatpush1.msra.mxu0 0.0
        %3551 = vmatprep.subr.mxu0 0.0
        %3552 = vmatpush1.msra.mxu0 0.0
        %3553 = vmatprep.subr.mxu0 0.0
        %3554 = vmatpush1.msra.mxu0 0.0
        %3555 = vmatprep.subr.mxu0 0.0
        %3556 = vmatpush1.msra.mxu0 0.0
        %3557 = vmatprep.subr.mxu0 0.0
        %3558 = vmatpush1.msra.mxu0 0.0
        %3559 = vmatprep.subr.mxu0 0.0
        %3560 = vmatpush1.msra.mxu0 0.0
        %3561 = vmatprep.subr.mxu0 0.0
        %3562 = vmatpush1.msra.mxu0 0.0
        %3563 = vmatprep.subr.mxu0 0.0
        %3564 = vmatpush1.msra.mxu0 0.0
        %3565 = vmatprep.subr.mxu0 0.0
        %3566 = vmatpush1.msra.mxu0 0.0
        %3567 = vmatprep.subr.mxu0 0.0
        %3568 = vmatpush1.msra.mxu0 0.0
        %3569 = vmatprep.subr.mxu0 0.0
        %3570 = vmatpush1.msra.mxu0 0.0
        %3571 = vmatprep.subr.mxu0 0.0
        %3572 = vmatpush1.msra.mxu0 0.0
        %3573 = vmatprep.subr.mxu0 0.0
        %3574 = vmatpush1.msra.mxu0 0.0
        %3575 = vmatprep.subr.mxu0 0.0
        %3576 = vmatpush1.msra.mxu0 0.0
        %3577 = vmatprep.subr.mxu0 0.0
        %3578 = vmatpush1.msra.mxu0 0.0
        %3579 = vmatprep.subr.mxu0 0.0
        %3580 = vmatpush1.msra.mxu0 0.0
        %3581 = vmatprep.subr.mxu0 0.0
        %3582 = vmatpush1.msra.mxu0 0.0
        %3583 = vmatprep.mubr.f32.mxu0 0.0
        %3584 = vmatmul.mubr.f32.gmra.mrb[0].mxu0 %v3517
        %v3585 = vpop.f32.mrb[0].mxu0
        %v3586 = vadd.f32 0.0, %v3585
        %v3587 = vpop.f32.mrb[0].mxu0
        %3588 = vdwg.mxu0
        %v3589 = vadd.f32 %v3511, %v3586
        %s3590 = scalar_lea.vmem [#allocation7], 16
        %v3591 = vld [vmem:[%s3590] sm:$0x1]
        %s3592 = scalar_lea.vmem %s5, 160
        %v3593 = vld [vmem:[%s3592] sm:$0xff]
        %v3594 = vld [vmem:[%s3592 + $0x8] sm:$0xff]
        %v3596 = vsel %vm2812, %v3591, 0
        %3598 = vmatprep.subr.mxu0 0.0
        %3599 = vmatpush1.msra.mxu0 %v3593
        %3600 = vmatprep.subr.mxu0 0.0
        %3601 = vmatpush1.msra.mxu0 %v3594
        %3602 = vmatprep.subr.mxu0 0.0
        %3603 = vmatpush1.msra.mxu0 0.0
        %3604 = vmatprep.subr.mxu0 0.0
        %3605 = vmatpush1.msra.mxu0 0.0
        %3606 = vmatprep.subr.mxu0 0.0
        %3607 = vmatpush1.msra.mxu0 0.0
        %3608 = vmatprep.subr.mxu0 0.0
        %3609 = vmatpush1.msra.mxu0 0.0
        %3610 = vmatprep.subr.mxu0 0.0
        %3611 = vmatpush1.msra.mxu0 0.0
        %3612 = vmatprep.subr.mxu0 0.0
        %3613 = vmatpush1.msra.mxu0 0.0
        %3614 = vmatprep.subr.mxu0 0.0
        %3615 = vmatpush1.msra.mxu0 0.0
        %3616 = vmatprep.subr.mxu0 0.0
        %3617 = vmatpush1.msra.mxu0 0.0
        %3618 = vmatprep.subr.mxu0 0.0
        %3619 = vmatpush1.msra.mxu0 0.0
        %3620 = vmatprep.subr.mxu0 0.0
        %3621 = vmatpush1.msra.mxu0 0.0
        %3622 = vmatprep.subr.mxu0 0.0
        %3623 = vmatpush1.msra.mxu0 0.0
        %3624 = vmatprep.subr.mxu0 0.0
        %3625 = vmatpush1.msra.mxu0 0.0
        %3626 = vmatprep.subr.mxu0 0.0
        %3627 = vmatpush1.msra.mxu0 0.0
        %3628 = vmatprep.subr.mxu0 0.0
        %3629 = vmatpush1.msra.mxu0 0.0
        %3630 = vmatprep.subr.mxu0 0.0
        %3631 = vmatpush1.msra.mxu0 0.0
        %3632 = vmatprep.subr.mxu0 0.0
        %3633 = vmatpush1.msra.mxu0 0.0
        %3634 = vmatprep.subr.mxu0 0.0
        %3635 = vmatpush1.msra.mxu0 0.0
        %3636 = vmatprep.subr.mxu0 0.0
        %3637 = vmatpush1.msra.mxu0 0.0
        %3638 = vmatprep.subr.mxu0 0.0
        %3639 = vmatpush1.msra.mxu0 0.0
        %3640 = vmatprep.subr.mxu0 0.0
        %3641 = vmatpush1.msra.mxu0 0.0
        %3642 = vmatprep.subr.mxu0 0.0
        %3643 = vmatpush1.msra.mxu0 0.0
        %3644 = vmatprep.subr.mxu0 0.0
        %3645 = vmatpush1.msra.mxu0 0.0
        %3646 = vmatprep.subr.mxu0 0.0
        %3647 = vmatpush1.msra.mxu0 0.0
        %3648 = vmatprep.subr.mxu0 0.0
        %3649 = vmatpush1.msra.mxu0 0.0
        %3650 = vmatprep.subr.mxu0 0.0
        %3651 = vmatpush1.msra.mxu0 0.0
        %3652 = vmatprep.subr.mxu0 0.0
        %3653 = vmatpush1.msra.mxu0 0.0
        %3654 = vmatprep.subr.mxu0 0.0
        %3655 = vmatpush1.msra.mxu0 0.0
        %3656 = vmatprep.subr.mxu0 0.0
        %3657 = vmatpush1.msra.mxu0 0.0
        %3658 = vmatprep.subr.mxu0 0.0
        %3659 = vmatpush1.msra.mxu0 0.0
        %3660 = vmatprep.subr.mxu0 0.0
        %3661 = vmatpush1.msra.mxu0 0.0
        %3662 = vmatprep.mubr.f32.mxu0 0.0
        %3663 = vmatmul.mubr.f32.gmra.mrb[0].mxu0 %v3596
        %v3664 = vpop.f32.mrb[0].mxu0
        %v3665 = vadd.f32 0.0, %v3664
        %v3666 = vpop.f32.mrb[0].mxu0
        %3667 = vdwg.mxu0
        %v3668 = vadd.f32 %v3589, %v3665
        %v3669 = vld [vmem:[%s3590 + $0x1] sm:$0x1]
        %s3670 = scalar_lea.vmem %s5, 176
        %v3671 = vld [vmem:[%s3670] sm:$0xff]
        %v3672 = vld [vmem:[%s3670 + $0x8] sm:$0xff]
        %v3674 = vsel %vm2812, %v3669, 0
        %3676 = vmatprep.subr.mxu0 0.0
        %3677 = vmatpush1.msra.mxu0 %v3671
        %3678 = vmatprep.subr.mxu0 0.0
        %3679 = vmatpush1.msra.mxu0 %v3672
        %3680 = vmatprep.subr.mxu0 0.0
        %3681 = vmatpush1.msra.mxu0 0.0
        %3682 = vmatprep.subr.mxu0 0.0
        %3683 = vmatpush1.msra.mxu0 0.0
        %3684 = vmatprep.subr.mxu0 0.0
        %3685 = vmatpush1.msra.mxu0 0.0
        %3686 = vmatprep.subr.mxu0 0.0
        %3687 = vmatpush1.msra.mxu0 0.0
        %3688 = vmatprep.subr.mxu0 0.0
        %3689 = vmatpush1.msra.mxu0 0.0
        %3690 = vmatprep.subr.mxu0 0.0
        %3691 = vmatpush1.msra.mxu0 0.0
        %3692 = vmatprep.subr.mxu0 0.0
        %3693 = vmatpush1.msra.mxu0 0.0
        %3694 = vmatprep.subr.mxu0 0.0
        %3695 = vmatpush1.msra.mxu0 0.0
        %3696 = vmatprep.subr.mxu0 0.0
        %3697 = vmatpush1.msra.mxu0 0.0
        %3698 = vmatprep.subr.mxu0 0.0
        %3699 = vmatpush1.msra.mxu0 0.0
        %3700 = vmatprep.subr.mxu0 0.0
        %3701 = vmatpush1.msra.mxu0 0.0
        %3702 = vmatprep.subr.mxu0 0.0
        %3703 = vmatpush1.msra.mxu0 0.0
        %3704 = vmatprep.subr.mxu0 0.0
        %3705 = vmatpush1.msra.mxu0 0.0
        %3706 = vmatprep.subr.mxu0 0.0
        %3707 = vmatpush1.msra.mxu0 0.0
        %3708 = vmatprep.subr.mxu0 0.0
        %3709 = vmatpush1.msra.mxu0 0.0
        %3710 = vmatprep.subr.mxu0 0.0
        %3711 = vmatpush1.msra.mxu0 0.0
        %3712 = vmatprep.subr.mxu0 0.0
        %3713 = vmatpush1.msra.mxu0 0.0
        %3714 = vmatprep.subr.mxu0 0.0
        %3715 = vmatpush1.msra.mxu0 0.0
        %3716 = vmatprep.subr.mxu0 0.0
        %3717 = vmatpush1.msra.mxu0 0.0
        %3718 = vmatprep.subr.mxu0 0.0
        %3719 = vmatpush1.msra.mxu0 0.0
        %3720 = vmatprep.subr.mxu0 0.0
        %3721 = vmatpush1.msra.mxu0 0.0
        %3722 = vmatprep.subr.mxu0 0.0
        %3723 = vmatpush1.msra.mxu0 0.0
        %3724 = vmatprep.subr.mxu0 0.0
        %3725 = vmatpush1.msra.mxu0 0.0
        %3726 = vmatprep.subr.mxu0 0.0
        %3727 = vmatpush1.msra.mxu0 0.0
        %3728 = vmatprep.subr.mxu0 0.0
        %3729 = vmatpush1.msra.mxu0 0.0
        %3730 = vmatprep.subr.mxu0 0.0
        %3731 = vmatpush1.msra.mxu0 0.0
        %3732 = vmatprep.subr.mxu0 0.0
        %3733 = vmatpush1.msra.mxu0 0.0
        %3734 = vmatprep.subr.mxu0 0.0
        %3735 = vmatpush1.msra.mxu0 0.0
        %3736 = vmatprep.subr.mxu0 0.0
        %3737 = vmatpush1.msra.mxu0 0.0
        %3738 = vmatprep.subr.mxu0 0.0
        %3739 = vmatpush1.msra.mxu0 0.0
        %3740 = vmatprep.mubr.f32.mxu0 0.0
        %3741 = vmatmul.mubr.f32.gmra.mrb[0].mxu0 %v3674
        %v3742 = vpop.f32.mrb[0].mxu0
        %v3743 = vadd.f32 0.0, %v3742
        %v3744 = vpop.f32.mrb[0].mxu0
        %3745 = vdwg.mxu0
        %v3746 = vadd.f32 %v3668, %v3743
        %v3747 = vld [vmem:[%s3590 + $0x2] sm:$0x1]
        %s3748 = scalar_lea.vmem %s5, 192
        %v3749 = vld [vmem:[%s3748] sm:$0xff]
        %v3750 = vld [vmem:[%s3748 + $0x8] sm:$0xff]
        %v3752 = vsel %vm2812, %v3747, 0
        %3754 = vmatprep.subr.mxu0 0.0
        %3755 = vmatpush1.msra.mxu0 %v3749
        %3756 = vmatprep.subr.mxu0 0.0
        %3757 = vmatpush1.msra.mxu0 %v3750
        %3758 = vmatprep.subr.mxu0 0.0
        %3759 = vmatpush1.msra.mxu0 0.0
        %3760 = vmatprep.subr.mxu0 0.0
        %3761 = vmatpush1.msra.mxu0 0.0
        %3762 = vmatprep.subr.mxu0 0.0
        %3763 = vmatpush1.msra.mxu0 0.0
        %3764 = vmatprep.subr.mxu0 0.0
        %3765 = vmatpush1.msra.mxu0 0.0
        %3766 = vmatprep.subr.mxu0 0.0
        %3767 = vmatpush1.msra.mxu0 0.0
        %3768 = vmatprep.subr.mxu0 0.0
        %3769 = vmatpush1.msra.mxu0 0.0
        %3770 = vmatprep.subr.mxu0 0.0
        %3771 = vmatpush1.msra.mxu0 0.0
        %3772 = vmatprep.subr.mxu0 0.0
        %3773 = vmatpush1.msra.mxu0 0.0
        %3774 = vmatprep.subr.mxu0 0.0
        %3775 = vmatpush1.msra.mxu0 0.0
        %3776 = vmatprep.subr.mxu0 0.0
        %3777 = vmatpush1.msra.mxu0 0.0
        %3778 = vmatprep.subr.mxu0 0.0
        %3779 = vmatpush1.msra.mxu0 0.0
        %3780 = vmatprep.subr.mxu0 0.0
        %3781 = vmatpush1.msra.mxu0 0.0
        %3782 = vmatprep.subr.mxu0 0.0
        %3783 = vmatpush1.msra.mxu0 0.0
        %3784 = vmatprep.subr.mxu0 0.0
        %3785 = vmatpush1.msra.mxu0 0.0
        %3786 = vmatprep.subr.mxu0 0.0
        %3787 = vmatpush1.msra.mxu0 0.0
        %3788 = vmatprep.subr.mxu0 0.0
        %3789 = vmatpush1.msra.mxu0 0.0
        %3790 = vmatprep.subr.mxu0 0.0
        %3791 = vmatpush1.msra.mxu0 0.0
        %3792 = vmatprep.subr.mxu0 0.0
        %3793 = vmatpush1.msra.mxu0 0.0
        %3794 = vmatprep.subr.mxu0 0.0
        %3795 = vmatpush1.msra.mxu0 0.0
        %3796 = vmatprep.subr.mxu0 0.0
        %3797 = vmatpush1.msra.mxu0 0.0
        %3798 = vmatprep.subr.mxu0 0.0
        %3799 = vmatpush1.msra.mxu0 0.0
        %3800 = vmatprep.subr.mxu0 0.0
        %3801 = vmatpush1.msra.mxu0 0.0
        %3802 = vmatprep.subr.mxu0 0.0
        %3803 = vmatpush1.msra.mxu0 0.0
        %3804 = vmatprep.subr.mxu0 0.0
        %3805 = vmatpush1.msra.mxu0 0.0
        %3806 = vmatprep.subr.mxu0 0.0
        %3807 = vmatpush1.msra.mxu0 0.0
        %3808 = vmatprep.subr.mxu0 0.0
        %3809 = vmatpush1.msra.mxu0 0.0
        %3810 = vmatprep.subr.mxu0 0.0
        %3811 = vmatpush1.msra.mxu0 0.0
        %3812 = vmatprep.subr.mxu0 0.0
        %3813 = vmatpush1.msra.mxu0 0.0
        %3814 = vmatprep.subr.mxu0 0.0
        %3815 = vmatpush1.msra.mxu0 0.0
        %3816 = vmatprep.subr.mxu0 0.0
        %3817 = vmatpush1.msra.mxu0 0.0
        %3818 = vmatprep.mubr.f32.mxu0 0.0
        %3819 = vmatmul.mubr.f32.gmra.mrb[0].mxu0 %v3752
        %v3820 = vpop.f32.mrb[0].mxu0
        %v3821 = vadd.f32 0.0, %v3820
        %v3822 = vpop.f32.mrb[0].mxu0
        %3823 = vdwg.mxu0
        %v3824 = vadd.f32 %v3746, %v3821
        %v3825 = vld [vmem:[%s3590 + $0x3] sm:$0x1]
        %s3826 = scalar_lea.vmem %s5, 208
        %v3827 = vld [vmem:[%s3826] sm:$0xff]
        %v3828 = vld [vmem:[%s3826 + $0x8] sm:$0xff]
        %v3830 = vsel %vm2812, %v3825, 0
        %3832 = vmatprep.subr.mxu0 0.0
        %3833 = vmatpush1.msra.mxu0 %v3827
        %3834 = vmatprep.subr.mxu0 0.0
        %3835 = vmatpush1.msra.mxu0 %v3828
        %3836 = vmatprep.subr.mxu0 0.0
        %3837 = vmatpush1.msra.mxu0 0.0
        %3838 = vmatprep.subr.mxu0 0.0
        %3839 = vmatpush1.msra.mxu0 0.0
        %3840 = vmatprep.subr.mxu0 0.0
        %3841 = vmatpush1.msra.mxu0 0.0
        %3842 = vmatprep.subr.mxu0 0.0
        %3843 = vmatpush1.msra.mxu0 0.0
        %3844 = vmatprep.subr.mxu0 0.0
        %3845 = vmatpush1.msra.mxu0 0.0
        %3846 = vmatprep.subr.mxu0 0.0
        %3847 = vmatpush1.msra.mxu0 0.0
        %3848 = vmatprep.subr.mxu0 0.0
        %3849 = vmatpush1.msra.mxu0 0.0
        %3850 = vmatprep.subr.mxu0 0.0
        %3851 = vmatpush1.msra.mxu0 0.0
        %3852 = vmatprep.subr.mxu0 0.0
        %3853 = vmatpush1.msra.mxu0 0.0
        %3854 = vmatprep.subr.mxu0 0.0
        %3855 = vmatpush1.msra.mxu0 0.0
        %3856 = vmatprep.subr.mxu0 0.0
        %3857 = vmatpush1.msra.mxu0 0.0
        %3858 = vmatprep.subr.mxu0 0.0
        %3859 = vmatpush1.msra.mxu0 0.0
        %3860 = vmatprep.subr.mxu0 0.0
        %3861 = vmatpush1.msra.mxu0 0.0
        %3862 = vmatprep.subr.mxu0 0.0
        %3863 = vmatpush1.msra.mxu0 0.0
        %3864 = vmatprep.subr.mxu0 0.0
        %3865 = vmatpush1.msra.mxu0 0.0
        %3866 = vmatprep.subr.mxu0 0.0
        %3867 = vmatpush1.msra.mxu0 0.0
        %3868 = vmatprep.subr.mxu0 0.0
        %3869 = vmatpush1.msra.mxu0 0.0
        %3870 = vmatprep.subr.mxu0 0.0
        %3871 = vmatpush1.msra.mxu0 0.0
        %3872 = vmatprep.subr.mxu0 0.0
        %3873 = vmatpush1.msra.mxu0 0.0
        %3874 = vmatprep.subr.mxu0 0.0
        %3875 = vmatpush1.msra.mxu0 0.0
        %3876 = vmatprep.subr.mxu0 0.0
        %3877 = vmatpush1.msra.mxu0 0.0
        %3878 = vmatprep.subr.mxu0 0.0
        %3879 = vmatpush1.msra.mxu0 0.0
        %3880 = vmatprep.subr.mxu0 0.0
        %3881 = vmatpush1.msra.mxu0 0.0
        %3882 = vmatprep.subr.mxu0 0.0
        %3883 = vmatpush1.msra.mxu0 0.0
        %3884 = vmatprep.subr.mxu0 0.0
        %3885 = vmatpush1.msra.mxu0 0.0
        %3886 = vmatprep.subr.mxu0 0.0
        %3887 = vmatpush1.msra.mxu0 0.0
        %3888 = vmatprep.subr.mxu0 0.0
        %3889 = vmatpush1.msra.mxu0 0.0
        %3890 = vmatprep.subr.mxu0 0.0
        %3891 = vmatpush1.msra.mxu0 0.0
        %3892 = vmatprep.subr.mxu0 0.0
        %3893 = vmatpush1.msra.mxu0 0.0
        %3894 = vmatprep.subr.mxu0 0.0
        %3895 = vmatpush1.msra.mxu0 0.0
        %3896 = vmatprep.mubr.f32.mxu0 0.0
        %3897 = vmatmul.mubr.f32.gmra.mrb[0].mxu0 %v3830
        %v3898 = vpop.f32.mrb[0].mxu0
        %v3899 = vadd.f32 0.0, %v3898
        %v3900 = vpop.f32.mrb[0].mxu0
        %3901 = vdwg.mxu0
        %v3902 = vadd.f32 %v3824, %v3899
        %v3903 = vld [vmem:[%s3590 + $0x4] sm:$0x1]
        %s3904 = scalar_lea.vmem %s5, 224
        %v3905 = vld [vmem:[%s3904] sm:$0xff]
        %v3906 = vld [vmem:[%s3904 + $0x8] sm:$0xff]
        %v3908 = vsel %vm2812, %v3903, 0
        %3910 = vmatprep.subr.mxu0 0.0
        %3911 = vmatpush1.msra.mxu0 %v3905
        %3912 = vmatprep.subr.mxu0 0.0
        %3913 = vmatpush1.msra.mxu0 %v3906
        %3914 = vmatprep.subr.mxu0 0.0
        %3915 = vmatpush1.msra.mxu0 0.0
        %3916 = vmatprep.subr.mxu0 0.0
        %3917 = vmatpush1.msra.mxu0 0.0
        %3918 = vmatprep.subr.mxu0 0.0
        %3919 = vmatpush1.msra.mxu0 0.0
        %3920 = vmatprep.subr.mxu0 0.0
        %3921 = vmatpush1.msra.mxu0 0.0
        %3922 = vmatprep.subr.mxu0 0.0
        %3923 = vmatpush1.msra.mxu0 0.0
        %3924 = vmatprep.subr.mxu0 0.0
        %3925 = vmatpush1.msra.mxu0 0.0
        %3926 = vmatprep.subr.mxu0 0.0
        %3927 = vmatpush1.msra.mxu0 0.0
        %3928 = vmatprep.subr.mxu0 0.0
        %3929 = vmatpush1.msra.mxu0 0.0
        %3930 = vmatprep.subr.mxu0 0.0
        %3931 = vmatpush1.msra.mxu0 0.0
        %3932 = vmatprep.subr.mxu0 0.0
        %3933 = vmatpush1.msra.mxu0 0.0
        %3934 = vmatprep.subr.mxu0 0.0
        %3935 = vmatpush1.msra.mxu0 0.0
        %3936 = vmatprep.subr.mxu0 0.0
        %3937 = vmatpush1.msra.mxu0 0.0
        %3938 = vmatprep.subr.mxu0 0.0
        %3939 = vmatpush1.msra.mxu0 0.0
        %3940 = vmatprep.subr.mxu0 0.0
        %3941 = vmatpush1.msra.mxu0 0.0
        %3942 = vmatprep.subr.mxu0 0.0
        %3943 = vmatpush1.msra.mxu0 0.0
        %3944 = vmatprep.subr.mxu0 0.0
        %3945 = vmatpush1.msra.mxu0 0.0
        %3946 = vmatprep.subr.mxu0 0.0
        %3947 = vmatpush1.msra.mxu0 0.0
        %3948 = vmatprep.subr.mxu0 0.0
        %3949 = vmatpush1.msra.mxu0 0.0
        %3950 = vmatprep.subr.mxu0 0.0
        %3951 = vmatpush1.msra.mxu0 0.0
        %3952 = vmatprep.subr.mxu0 0.0
        %3953 = vmatpush1.msra.mxu0 0.0
        %3954 = vmatprep.subr.mxu0 0.0
        %3955 = vmatpush1.msra.mxu0 0.0
        %3956 = vmatprep.subr.mxu0 0.0
        %3957 = vmatpush1.msra.mxu0 0.0
        %3958 = vmatprep.subr.mxu0 0.0
        %3959 = vmatpush1.msra.mxu0 0.0
        %3960 = vmatprep.subr.mxu0 0.0
        %3961 = vmatpush1.msra.mxu0 0.0
        %3962 = vmatprep.subr.mxu0 0.0
        %3963 = vmatpush1.msra.mxu0 0.0
        %3964 = vmatprep.subr.mxu0 0.0
        %3965 = vmatpush1.msra.mxu0 0.0
        %3966 = vmatprep.subr.mxu0 0.0
        %3967 = vmatpush1.msra.mxu0 0.0
        %3968 = vmatprep.subr.mxu0 0.0
        %3969 = vmatpush1.msra.mxu0 0.0
        %3970 = vmatprep.subr.mxu0 0.0
        %3971 = vmatpush1.msra.mxu0 0.0
        %3972 = vmatprep.subr.mxu0 0.0
        %3973 = vmatpush1.msra.mxu0 0.0
        %3974 = vmatprep.mubr.f32.mxu0 0.0
        %3975 = vmatmul.mubr.f32.gmra.mrb[0].mxu0 %v3908
        %v3976 = vpop.f32.mrb[0].mxu0
        %v3977 = vadd.f32 0.0, %v3976
        %v3978 = vpop.f32.mrb[0].mxu0
        %3979 = vdwg.mxu0
        %v3980 = vadd.f32 %v3902, %v3977
        %s3981 = scalar_lea.vmem [#allocation7], 24
        %v3982 = vld [vmem:[%s3981] sm:$0x1]
        %s3983 = scalar_lea.vmem %s5, 240
        %v3984 = vld [vmem:[%s3983] sm:$0xff]
        %v3985 = vld [vmem:[%s3983 + $0x8] sm:$0xff]
        %v3987 = vsel %vm2812, %v3982, 0
        %3989 = vmatprep.subr.mxu0 0.0
        %3990 = vmatpush1.msra.mxu0 %v3984
        %3991 = vmatprep.subr.mxu0 0.0
        %3992 = vmatpush1.msra.mxu0 %v3985
        %3993 = vmatprep.subr.mxu0 0.0
        %3994 = vmatpush1.msra.mxu0 0.0
        %3995 = vmatprep.subr.mxu0 0.0
        %3996 = vmatpush1.msra.mxu0 0.0
        %3997 = vmatprep.subr.mxu0 0.0
        %3998 = vmatpush1.msra.mxu0 0.0
        %3999 = vmatprep.subr.mxu0 0.0
        %4000 = vmatpush1.msra.mxu0 0.0
        %4001 = vmatprep.subr.mxu0 0.0
        %4002 = vmatpush1.msra.mxu0 0.0
        %4003 = vmatprep.subr.mxu0 0.0
        %4004 = vmatpush1.msra.mxu0 0.0
        %4005 = vmatprep.subr.mxu0 0.0
        %4006 = vmatpush1.msra.mxu0 0.0
        %4007 = vmatprep.subr.mxu0 0.0
        %4008 = vmatpush1.msra.mxu0 0.0
        %4009 = vmatprep.subr.mxu0 0.0
        %4010 = vmatpush1.msra.mxu0 0.0
        %4011 = vmatprep.subr.mxu0 0.0
        %4012 = vmatpush1.msra.mxu0 0.0
        %4013 = vmatprep.subr.mxu0 0.0
        %4014 = vmatpush1.msra.mxu0 0.0
        %4015 = vmatprep.subr.mxu0 0.0
        %4016 = vmatpush1.msra.mxu0 0.0
        %4017 = vmatprep.subr.mxu0 0.0
        %4018 = vmatpush1.msra.mxu0 0.0
        %4019 = vmatprep.subr.mxu0 0.0
        %4020 = vmatpush1.msra.mxu0 0.0
        %4021 = vmatprep.subr.mxu0 0.0
        %4022 = vmatpush1.msra.mxu0 0.0
        %4023 = vmatprep.subr.mxu0 0.0
        %4024 = vmatpush1.msra.mxu0 0.0
        %4025 = vmatprep.subr.mxu0 0.0
        %4026 = vmatpush1.msra.mxu0 0.0
        %4027 = vmatprep.subr.mxu0 0.0
        %4028 = vmatpush1.msra.mxu0 0.0
        %4029 = vmatprep.subr.mxu0 0.0
        %4030 = vmatpush1.msra.mxu0 0.0
        %4031 = vmatprep.subr.mxu0 0.0
        %4032 = vmatpush1.msra.mxu0 0.0
        %4033 = vmatprep.subr.mxu0 0.0
        %4034 = vmatpush1.msra.mxu0 0.0
        %4035 = vmatprep.subr.mxu0 0.0
        %4036 = vmatpush1.msra.mxu0 0.0
        %4037 = vmatprep.subr.mxu0 0.0
        %4038 = vmatpush1.msra.mxu0 0.0
        %4039 = vmatprep.subr.mxu0 0.0
        %4040 = vmatpush1.msra.mxu0 0.0
        %4041 = vmatprep.subr.mxu0 0.0
        %4042 = vmatpush1.msra.mxu0 0.0
        %4043 = vmatprep.subr.mxu0 0.0
        %4044 = vmatpush1.msra.mxu0 0.0
        %4045 = vmatprep.subr.mxu0 0.0
        %4046 = vmatpush1.msra.mxu0 0.0
        %4047 = vmatprep.subr.mxu0 0.0
        %4048 = vmatpush1.msra.mxu0 0.0
        %4049 = vmatprep.subr.mxu0 0.0
        %4050 = vmatpush1.msra.mxu0 0.0
        %4051 = vmatprep.subr.mxu0 0.0
        %4052 = vmatpush1.msra.mxu0 0.0
        %4053 = vmatprep.mubr.f32.mxu0 0.0
        %4054 = vmatmul.mubr.f32.gmra.mrb[0].mxu0 %v3987
        %v4055 = vpop.f32.mrb[0].mxu0
        %v4056 = vadd.f32 0.0, %v4055
        %v4057 = vpop.f32.mrb[0].mxu0
        %4058 = vdwg.mxu0
        %v4059 = vadd.f32 %v3980, %v4056
        %v4060 = vld [vmem:[%s3981 + $0x1] sm:$0x1]
        %s4061 = scalar_lea.vmem %s5, 256
        %v4062 = vld [vmem:[%s4061] sm:$0xff]
        %v4063 = vld [vmem:[%s4061 + $0x8] sm:$0xff]
        %v4065 = vsel %vm2812, %v4060, 0
        %4067 = vmatprep.subr.mxu0 0.0
        %4068 = vmatpush1.msra.mxu0 %v4062
        %4069 = vmatprep.subr.mxu0 0.0
        %4070 = vmatpush1.msra.mxu0 %v4063
        %4071 = vmatprep.subr.mxu0 0.0
        %4072 = vmatpush1.msra.mxu0 0.0
        %4073 = vmatprep.subr.mxu0 0.0
        %4074 = vmatpush1.msra.mxu0 0.0
        %4075 = vmatprep.subr.mxu0 0.0
        %4076 = vmatpush1.msra.mxu0 0.0
        %4077 = vmatprep.subr.mxu0 0.0
        %4078 = vmatpush1.msra.mxu0 0.0
        %4079 = vmatprep.subr.mxu0 0.0
        %4080 = vmatpush1.msra.mxu0 0.0
        %4081 = vmatprep.subr.mxu0 0.0
        %4082 = vmatpush1.msra.mxu0 0.0
        %4083 = vmatprep.subr.mxu0 0.0
        %4084 = vmatpush1.msra.mxu0 0.0
        %4085 = vmatprep.subr.mxu0 0.0
        %4086 = vmatpush1.msra.mxu0 0.0
        %4087 = vmatprep.subr.mxu0 0.0
        %4088 = vmatpush1.msra.mxu0 0.0
        %4089 = vmatprep.subr.mxu0 0.0
        %4090 = vmatpush1.msra.mxu0 0.0
        %4091 = vmatprep.subr.mxu0 0.0
        %4092 = vmatpush1.msra.mxu0 0.0
        %4093 = vmatprep.subr.mxu0 0.0
        %4094 = vmatpush1.msra.mxu0 0.0
        %4095 = vmatprep.subr.mxu0 0.0
        %4096 = vmatpush1.msra.mxu0 0.0
        %4097 = vmatprep.subr.mxu0 0.0
        %4098 = vmatpush1.msra.mxu0 0.0
        %4099 = vmatprep.subr.mxu0 0.0
        %4100 = vmatpush1.msra.mxu0 0.0
        %4101 = vmatprep.subr.mxu0 0.0
        %4102 = vmatpush1.msra.mxu0 0.0
        %4103 = vmatprep.subr.mxu0 0.0
        %4104 = vmatpush1.msra.mxu0 0.0
        %4105 = vmatprep.subr.mxu0 0.0
        %4106 = vmatpush1.msra.mxu0 0.0
        %4107 = vmatprep.subr.mxu0 0.0
        %4108 = vmatpush1.msra.mxu0 0.0
        %4109 = vmatprep.subr.mxu0 0.0
        %4110 = vmatpush1.msra.mxu0 0.0
        %4111 = vmatprep.subr.mxu0 0.0
        %4112 = vmatpush1.msra.mxu0 0.0
        %4113 = vmatprep.subr.mxu0 0.0
        %4114 = vmatpush1.msra.mxu0 0.0
        %4115 = vmatprep.subr.mxu0 0.0
        %4116 = vmatpush1.msra.mxu0 0.0
        %4117 = vmatprep.subr.mxu0 0.0
        %4118 = vmatpush1.msra.mxu0 0.0
        %4119 = vmatprep.subr.mxu0 0.0
        %4120 = vmatpush1.msra.mxu0 0.0
        %4121 = vmatprep.subr.mxu0 0.0
        %4122 = vmatpush1.msra.mxu0 0.0
        %4123 = vmatprep.subr.mxu0 0.0
        %4124 = vmatpush1.msra.mxu0 0.0
        %4125 = vmatprep.subr.mxu0 0.0
        %4126 = vmatpush1.msra.mxu0 0.0
        %4127 = vmatprep.subr.mxu0 0.0
        %4128 = vmatpush1.msra.mxu0 0.0
        %4129 = vmatprep.subr.mxu0 0.0
        %4130 = vmatpush1.msra.mxu0 0.0
        %4131 = vmatprep.mubr.f32.mxu0 0.0
        %4132 = vmatmul.mubr.f32.gmra.mrb[0].mxu0 %v4065
        %v4133 = vpop.f32.mrb[0].mxu0
        %v4134 = vadd.f32 0.0, %v4133
        %v4135 = vpop.f32.mrb[0].mxu0
        %4136 = vdwg.mxu0
        %v4137 = vadd.f32 %v4059, %v4134
        %v4138 = vld [vmem:[%s3981 + $0x2] sm:$0x1]
        %s4139 = scalar_lea.vmem %s5, 272
        %v4140 = vld [vmem:[%s4139] sm:$0xff]
        %v4141 = vld [vmem:[%s4139 + $0x8] sm:$0xff]
        %v4143 = vsel %vm2812, %v4138, 0
        %4145 = vmatprep.subr.mxu0 0.0
        %4146 = vmatpush1.msra.mxu0 %v4140
        %4147 = vmatprep.subr.mxu0 0.0
        %4148 = vmatpush1.msra.mxu0 %v4141
        %4149 = vmatprep.subr.mxu0 0.0
        %4150 = vmatpush1.msra.mxu0 0.0
        %4151 = vmatprep.subr.mxu0 0.0
        %4152 = vmatpush1.msra.mxu0 0.0
        %4153 = vmatprep.subr.mxu0 0.0
        %4154 = vmatpush1.msra.mxu0 0.0
        %4155 = vmatprep.subr.mxu0 0.0
        %4156 = vmatpush1.msra.mxu0 0.0
        %4157 = vmatprep.subr.mxu0 0.0
        %4158 = vmatpush1.msra.mxu0 0.0
        %4159 = vmatprep.subr.mxu0 0.0
        %4160 = vmatpush1.msra.mxu0 0.0
        %4161 = vmatprep.subr.mxu0 0.0
        %4162 = vmatpush1.msra.mxu0 0.0
        %4163 = vmatprep.subr.mxu0 0.0
        %4164 = vmatpush1.msra.mxu0 0.0
        %4165 = vmatprep.subr.mxu0 0.0
        %4166 = vmatpush1.msra.mxu0 0.0
        %4167 = vmatprep.subr.mxu0 0.0
        %4168 = vmatpush1.msra.mxu0 0.0
        %4169 = vmatprep.subr.mxu0 0.0
        %4170 = vmatpush1.msra.mxu0 0.0
        %4171 = vmatprep.subr.mxu0 0.0
        %4172 = vmatpush1.msra.mxu0 0.0
        %4173 = vmatprep.subr.mxu0 0.0
        %4174 = vmatpush1.msra.mxu0 0.0
        %4175 = vmatprep.subr.mxu0 0.0
        %4176 = vmatpush1.msra.mxu0 0.0
        %4177 = vmatprep.subr.mxu0 0.0
        %4178 = vmatpush1.msra.mxu0 0.0
        %4179 = vmatprep.subr.mxu0 0.0
        %4180 = vmatpush1.msra.mxu0 0.0
        %4181 = vmatprep.subr.mxu0 0.0
        %4182 = vmatpush1.msra.mxu0 0.0
        %4183 = vmatprep.subr.mxu0 0.0
        %4184 = vmatpush1.msra.mxu0 0.0
        %4185 = vmatprep.subr.mxu0 0.0
        %4186 = vmatpush1.msra.mxu0 0.0
        %4187 = vmatprep.subr.mxu0 0.0
        %4188 = vmatpush1.msra.mxu0 0.0
        %4189 = vmatprep.subr.mxu0 0.0
        %4190 = vmatpush1.msra.mxu0 0.0
        %4191 = vmatprep.subr.mxu0 0.0
        %4192 = vmatpush1.msra.mxu0 0.0
        %4193 = vmatprep.subr.mxu0 0.0
        %4194 = vmatpush1.msra.mxu0 0.0
        %4195 = vmatprep.subr.mxu0 0.0
        %4196 = vmatpush1.msra.mxu0 0.0
        %4197 = vmatprep.subr.mxu0 0.0
        %4198 = vmatpush1.msra.mxu0 0.0
        %4199 = vmatprep.subr.mxu0 0.0
        %4200 = vmatpush1.msra.mxu0 0.0
        %4201 = vmatprep.subr.mxu0 0.0
        %4202 = vmatpush1.msra.mxu0 0.0
        %4203 = vmatprep.subr.mxu0 0.0
        %4204 = vmatpush1.msra.mxu0 0.0
        %4205 = vmatprep.subr.mxu0 0.0
        %4206 = vmatpush1.msra.mxu0 0.0
        %4207 = vmatprep.subr.mxu0 0.0
        %4208 = vmatpush1.msra.mxu0 0.0
        %4209 = vmatprep.mubr.f32.mxu0 0.0
        %4210 = vmatmul.mubr.f32.gmra.mrb[0].mxu0 %v4143
        %v4211 = vpop.f32.mrb[0].mxu0
        %v4212 = vadd.f32 0.0, %v4211
        %v4213 = vpop.f32.mrb[0].mxu0
        %4214 = vdwg.mxu0
        %v4215 = vadd.f32 %v4137, %v4212
        %v4216 = vld [vmem:[%s3981 + $0x3] sm:$0x1]
        %s4217 = scalar_lea.vmem %s5, 288
        %v4218 = vld [vmem:[%s4217] sm:$0xff]
        %v4219 = vld [vmem:[%s4217 + $0x8] sm:$0xff]
        %v4221 = vsel %vm2812, %v4216, 0
        %4223 = vmatprep.subr.mxu0 0.0
        %4224 = vmatpush1.msra.mxu0 %v4218
        %4225 = vmatprep.subr.mxu0 0.0
        %4226 = vmatpush1.msra.mxu0 %v4219
        %4227 = vmatprep.subr.mxu0 0.0
        %4228 = vmatpush1.msra.mxu0 0.0
        %4229 = vmatprep.subr.mxu0 0.0
        %4230 = vmatpush1.msra.mxu0 0.0
        %4231 = vmatprep.subr.mxu0 0.0
        %4232 = vmatpush1.msra.mxu0 0.0
        %4233 = vmatprep.subr.mxu0 0.0
        %4234 = vmatpush1.msra.mxu0 0.0
        %4235 = vmatprep.subr.mxu0 0.0
        %4236 = vmatpush1.msra.mxu0 0.0
        %4237 = vmatprep.subr.mxu0 0.0
        %4238 = vmatpush1.msra.mxu0 0.0
        %4239 = vmatprep.subr.mxu0 0.0
        %4240 = vmatpush1.msra.mxu0 0.0
        %4241 = vmatprep.subr.mxu0 0.0
        %4242 = vmatpush1.msra.mxu0 0.0
        %4243 = vmatprep.subr.mxu0 0.0
        %4244 = vmatpush1.msra.mxu0 0.0
        %4245 = vmatprep.subr.mxu0 0.0
        %4246 = vmatpush1.msra.mxu0 0.0
        %4247 = vmatprep.subr.mxu0 0.0
        %4248 = vmatpush1.msra.mxu0 0.0
        %4249 = vmatprep.subr.mxu0 0.0
        %4250 = vmatpush1.msra.mxu0 0.0
        %4251 = vmatprep.subr.mxu0 0.0
        %4252 = vmatpush1.msra.mxu0 0.0
        %4253 = vmatprep.subr.mxu0 0.0
        %4254 = vmatpush1.msra.mxu0 0.0
        %4255 = vmatprep.subr.mxu0 0.0
        %4256 = vmatpush1.msra.mxu0 0.0
        %4257 = vmatprep.subr.mxu0 0.0
        %4258 = vmatpush1.msra.mxu0 0.0
        %4259 = vmatprep.subr.mxu0 0.0
        %4260 = vmatpush1.msra.mxu0 0.0
        %4261 = vmatprep.subr.mxu0 0.0
        %4262 = vmatpush1.msra.mxu0 0.0
        %4263 = vmatprep.subr.mxu0 0.0
        %4264 = vmatpush1.msra.mxu0 0.0
        %4265 = vmatprep.subr.mxu0 0.0
        %4266 = vmatpush1.msra.mxu0 0.0
        %4267 = vmatprep.subr.mxu0 0.0
        %4268 = vmatpush1.msra.mxu0 0.0
        %4269 = vmatprep.subr.mxu0 0.0
        %4270 = vmatpush1.msra.mxu0 0.0
        %4271 = vmatprep.subr.mxu0 0.0
        %4272 = vmatpush1.msra.mxu0 0.0
        %4273 = vmatprep.subr.mxu0 0.0
        %4274 = vmatpush1.msra.mxu0 0.0
        %4275 = vmatprep.subr.mxu0 0.0
        %4276 = vmatpush1.msra.mxu0 0.0
        %4277 = vmatprep.subr.mxu0 0.0
        %4278 = vmatpush1.msra.mxu0 0.0
        %4279 = vmatprep.subr.mxu0 0.0
        %4280 = vmatpush1.msra.mxu0 0.0
        %4281 = vmatprep.subr.mxu0 0.0
        %4282 = vmatpush1.msra.mxu0 0.0
        %4283 = vmatprep.subr.mxu0 0.0
        %4284 = vmatpush1.msra.mxu0 0.0
        %4285 = vmatprep.subr.mxu0 0.0
        %4286 = vmatpush1.msra.mxu0 0.0
        %4287 = vmatprep.mubr.f32.mxu0 0.0
        %4288 = vmatmul.mubr.f32.gmra.mrb[0].mxu0 %v4221
        %v4289 = vpop.f32.mrb[0].mxu0
        %v4290 = vadd.f32 0.0, %v4289
        %v4291 = vpop.f32.mrb[0].mxu0
        %4292 = vdwg.mxu0
        %v4293 = vadd.f32 %v4215, %v4290
        %v4294 = vld [vmem:[%s3981 + $0x4] sm:$0x1]
        %s4295 = scalar_lea.vmem %s5, 304
        %v4296 = vld [vmem:[%s4295] sm:$0xff]
        %v4297 = vld [vmem:[%s4295 + $0x8] sm:$0xff]
        %v4299 = vsel %vm2812, %v4294, 0
        %4301 = vmatprep.subr.mxu0 0.0
        %4302 = vmatpush1.msra.mxu0 %v4296
        %4303 = vmatprep.subr.mxu0 0.0
        %4304 = vmatpush1.msra.mxu0 %v4297
        %4305 = vmatprep.subr.mxu0 0.0
        %4306 = vmatpush1.msra.mxu0 0.0
        %4307 = vmatprep.subr.mxu0 0.0
        %4308 = vmatpush1.msra.mxu0 0.0
        %4309 = vmatprep.subr.mxu0 0.0
        %4310 = vmatpush1.msra.mxu0 0.0
        %4311 = vmatprep.subr.mxu0 0.0
        %4312 = vmatpush1.msra.mxu0 0.0
        %4313 = vmatprep.subr.mxu0 0.0
        %4314 = vmatpush1.msra.mxu0 0.0
        %4315 = vmatprep.subr.mxu0 0.0
        %4316 = vmatpush1.msra.mxu0 0.0
        %4317 = vmatprep.subr.mxu0 0.0
        %4318 = vmatpush1.msra.mxu0 0.0
        %4319 = vmatprep.subr.mxu0 0.0
        %4320 = vmatpush1.msra.mxu0 0.0
        %4321 = vmatprep.subr.mxu0 0.0
        %4322 = vmatpush1.msra.mxu0 0.0
        %4323 = vmatprep.subr.mxu0 0.0
        %4324 = vmatpush1.msra.mxu0 0.0
        %4325 = vmatprep.subr.mxu0 0.0
        %4326 = vmatpush1.msra.mxu0 0.0
        %4327 = vmatprep.subr.mxu0 0.0
        %4328 = vmatpush1.msra.mxu0 0.0
        %4329 = vmatprep.subr.mxu0 0.0
        %4330 = vmatpush1.msra.mxu0 0.0
        %4331 = vmatprep.subr.mxu0 0.0
        %4332 = vmatpush1.msra.mxu0 0.0
        %4333 = vmatprep.subr.mxu0 0.0
        %4334 = vmatpush1.msra.mxu0 0.0
        %4335 = vmatprep.subr.mxu0 0.0
        %4336 = vmatpush1.msra.mxu0 0.0
        %4337 = vmatprep.subr.mxu0 0.0
        %4338 = vmatpush1.msra.mxu0 0.0
        %4339 = vmatprep.subr.mxu0 0.0
        %4340 = vmatpush1.msra.mxu0 0.0
        %4341 = vmatprep.subr.mxu0 0.0
        %4342 = vmatpush1.msra.mxu0 0.0
        %4343 = vmatprep.subr.mxu0 0.0
        %4344 = vmatpush1.msra.mxu0 0.0
        %4345 = vmatprep.subr.mxu0 0.0
        %4346 = vmatpush1.msra.mxu0 0.0
        %4347 = vmatprep.subr.mxu0 0.0
        %4348 = vmatpush1.msra.mxu0 0.0
        %4349 = vmatprep.subr.mxu0 0.0
        %4350 = vmatpush1.msra.mxu0 0.0
        %4351 = vmatprep.subr.mxu0 0.0
        %4352 = vmatpush1.msra.mxu0 0.0
        %4353 = vmatprep.subr.mxu0 0.0
        %4354 = vmatpush1.msra.mxu0 0.0
        %4355 = vmatprep.subr.mxu0 0.0
        %4356 = vmatpush1.msra.mxu0 0.0
        %4357 = vmatprep.subr.mxu0 0.0
        %4358 = vmatpush1.msra.mxu0 0.0
        %4359 = vmatprep.subr.mxu0 0.0
        %4360 = vmatpush1.msra.mxu0 0.0
        %4361 = vmatprep.subr.mxu0 0.0
        %4362 = vmatpush1.msra.mxu0 0.0
        %4363 = vmatprep.subr.mxu0 0.0
        %4364 = vmatpush1.msra.mxu0 0.0
        %4365 = vmatprep.mubr.f32.mxu0 0.0
        %4366 = vmatmul.mubr.f32.gmra.mrb[0].mxu0 %v4299
        %v4367 = vpop.f32.mrb[0].mxu0
        %v4368 = vadd.f32 0.0, %v4367
        %v4369 = vpop.f32.mrb[0].mxu0
        %4370 = vdwg.mxu0
        %v4371 = vadd.f32 %v4293, %v4368
        %s4372 = scalar_lea.vmem [#allocation7], 32
        %v4373 = vld [vmem:[%s4372] sm:$0x1]
        %s4374 = scalar_lea.vmem %s5, 320
        %v4375 = vld [vmem:[%s4374] sm:$0xff]
        %v4376 = vld [vmem:[%s4374 + $0x8] sm:$0xff]
        %v4378 = vsel %vm2812, %v4373, 0
        %4380 = vmatprep.subr.mxu0 0.0
        %4381 = vmatpush1.msra.mxu0 %v4375
        %4382 = vmatprep.subr.mxu0 0.0
        %4383 = vmatpush1.msra.mxu0 %v4376
        %4384 = vmatprep.subr.mxu0 0.0
        %4385 = vmatpush1.msra.mxu0 0.0
        %4386 = vmatprep.subr.mxu0 0.0
        %4387 = vmatpush1.msra.mxu0 0.0
        %4388 = vmatprep.subr.mxu0 0.0
        %4389 = vmatpush1.msra.mxu0 0.0
        %4390 = vmatprep.subr.mxu0 0.0
        %4391 = vmatpush1.msra.mxu0 0.0
        %4392 = vmatprep.subr.mxu0 0.0
        %4393 = vmatpush1.msra.mxu0 0.0
        %4394 = vmatprep.subr.mxu0 0.0
        %4395 = vmatpush1.msra.mxu0 0.0
        %4396 = vmatprep.subr.mxu0 0.0
        %4397 = vmatpush1.msra.mxu0 0.0
        %4398 = vmatprep.subr.mxu0 0.0
        %4399 = vmatpush1.msra.mxu0 0.0
        %4400 = vmatprep.subr.mxu0 0.0
        %4401 = vmatpush1.msra.mxu0 0.0
        %4402 = vmatprep.subr.mxu0 0.0
        %4403 = vmatpush1.msra.mxu0 0.0
        %4404 = vmatprep.subr.mxu0 0.0
        %4405 = vmatpush1.msra.mxu0 0.0
        %4406 = vmatprep.subr.mxu0 0.0
        %4407 = vmatpush1.msra.mxu0 0.0
        %4408 = vmatprep.subr.mxu0 0.0
        %4409 = vmatpush1.msra.mxu0 0.0
        %4410 = vmatprep.subr.mxu0 0.0
        %4411 = vmatpush1.msra.mxu0 0.0
        %4412 = vmatprep.subr.mxu0 0.0
        %4413 = vmatpush1.msra.mxu0 0.0
        %4414 = vmatprep.subr.mxu0 0.0
        %4415 = vmatpush1.msra.mxu0 0.0
        %4416 = vmatprep.subr.mxu0 0.0
        %4417 = vmatpush1.msra.mxu0 0.0
        %4418 = vmatprep.subr.mxu0 0.0
        %4419 = vmatpush1.msra.mxu0 0.0
        %4420 = vmatprep.subr.mxu0 0.0
        %4421 = vmatpush1.msra.mxu0 0.0
        %4422 = vmatprep.subr.mxu0 0.0
        %4423 = vmatpush1.msra.mxu0 0.0
        %4424 = vmatprep.subr.mxu0 0.0
        %4425 = vmatpush1.msra.mxu0 0.0
        %4426 = vmatprep.subr.mxu0 0.0
        %4427 = vmatpush1.msra.mxu0 0.0
        %4428 = vmatprep.subr.mxu0 0.0
        %4429 = vmatpush1.msra.mxu0 0.0
        %4430 = vmatprep.subr.mxu0 0.0
        %4431 = vmatpush1.msra.mxu0 0.0
        %4432 = vmatprep.subr.mxu0 0.0
        %4433 = vmatpush1.msra.mxu0 0.0
        %4434 = vmatprep.subr.mxu0 0.0
        %4435 = vmatpush1.msra.mxu0 0.0
        %4436 = vmatprep.subr.mxu0 0.0
        %4437 = vmatpush1.msra.mxu0 0.0
        %4438 = vmatprep.subr.mxu0 0.0
        %4439 = vmatpush1.msra.mxu0 0.0
        %4440 = vmatprep.subr.mxu0 0.0
        %4441 = vmatpush1.msra.mxu0 0.0
        %4442 = vmatprep.subr.mxu0 0.0
        %4443 = vmatpush1.msra.mxu0 0.0
        %4444 = vmatprep.mubr.f32.mxu0 0.0
        %4445 = vmatmul.mubr.f32.gmra.mrb[0].mxu0 %v4378
        %v4446 = vpop.f32.mrb[0].mxu0
        %v4447 = vadd.f32 0.0, %v4446
        %v4448 = vpop.f32.mrb[0].mxu0
        %4449 = vdwg.mxu0
        %v4450 = vadd.f32 %v4371, %v4447
        %v4451 = vld [vmem:[%s4372 + $0x1] sm:$0x1]
        %s4452 = scalar_lea.vmem %s5, 336
        %v4453 = vld [vmem:[%s4452] sm:$0xff]
        %v4454 = vld [vmem:[%s4452 + $0x8] sm:$0xff]
        %v4456 = vsel %vm2812, %v4451, 0
        %4458 = vmatprep.subr.mxu0 0.0
        %4459 = vmatpush1.msra.mxu0 %v4453
        %4460 = vmatprep.subr.mxu0 0.0
        %4461 = vmatpush1.msra.mxu0 %v4454
        %4462 = vmatprep.subr.mxu0 0.0
        %4463 = vmatpush1.msra.mxu0 0.0
        %4464 = vmatprep.subr.mxu0 0.0
        %4465 = vmatpush1.msra.mxu0 0.0
        %4466 = vmatprep.subr.mxu0 0.0
        %4467 = vmatpush1.msra.mxu0 0.0
        %4468 = vmatprep.subr.mxu0 0.0
        %4469 = vmatpush1.msra.mxu0 0.0
        %4470 = vmatprep.subr.mxu0 0.0
        %4471 = vmatpush1.msra.mxu0 0.0
        %4472 = vmatprep.subr.mxu0 0.0
        %4473 = vmatpush1.msra.mxu0 0.0
        %4474 = vmatprep.subr.mxu0 0.0
        %4475 = vmatpush1.msra.mxu0 0.0
        %4476 = vmatprep.subr.mxu0 0.0
        %4477 = vmatpush1.msra.mxu0 0.0
        %4478 = vmatprep.subr.mxu0 0.0
        %4479 = vmatpush1.msra.mxu0 0.0
        %4480 = vmatprep.subr.mxu0 0.0
        %4481 = vmatpush1.msra.mxu0 0.0
        %4482 = vmatprep.subr.mxu0 0.0
        %4483 = vmatpush1.msra.mxu0 0.0
        %4484 = vmatprep.subr.mxu0 0.0
        %4485 = vmatpush1.msra.mxu0 0.0
        %4486 = vmatprep.subr.mxu0 0.0
        %4487 = vmatpush1.msra.mxu0 0.0
        %4488 = vmatprep.subr.mxu0 0.0
        %4489 = vmatpush1.msra.mxu0 0.0
        %4490 = vmatprep.subr.mxu0 0.0
        %4491 = vmatpush1.msra.mxu0 0.0
        %4492 = vmatprep.subr.mxu0 0.0
        %4493 = vmatpush1.msra.mxu0 0.0
        %4494 = vmatprep.subr.mxu0 0.0
        %4495 = vmatpush1.msra.mxu0 0.0
        %4496 = vmatprep.subr.mxu0 0.0
        %4497 = vmatpush1.msra.mxu0 0.0
        %4498 = vmatprep.subr.mxu0 0.0
        %4499 = vmatpush1.msra.mxu0 0.0
        %4500 = vmatprep.subr.mxu0 0.0
        %4501 = vmatpush1.msra.mxu0 0.0
        %4502 = vmatprep.subr.mxu0 0.0
        %4503 = vmatpush1.msra.mxu0 0.0
        %4504 = vmatprep.subr.mxu0 0.0
        %4505 = vmatpush1.msra.mxu0 0.0
        %4506 = vmatprep.subr.mxu0 0.0
        %4507 = vmatpush1.msra.mxu0 0.0
        %4508 = vmatprep.subr.mxu0 0.0
        %4509 = vmatpush1.msra.mxu0 0.0
        %4510 = vmatprep.subr.mxu0 0.0
        %4511 = vmatpush1.msra.mxu0 0.0
        %4512 = vmatprep.subr.mxu0 0.0
        %4513 = vmatpush1.msra.mxu0 0.0
        %4514 = vmatprep.subr.mxu0 0.0
        %4515 = vmatpush1.msra.mxu0 0.0
        %4516 = vmatprep.subr.mxu0 0.0
        %4517 = vmatpush1.msra.mxu0 0.0
        %4518 = vmatprep.subr.mxu0 0.0
        %4519 = vmatpush1.msra.mxu0 0.0
        %4520 = vmatprep.subr.mxu0 0.0
        %4521 = vmatpush1.msra.mxu0 0.0
        %4522 = vmatprep.mubr.f32.mxu0 0.0
        %4523 = vmatmul.mubr.f32.gmra.mrb[0].mxu0 %v4456
        %v4524 = vpop.f32.mrb[0].mxu0
        %v4525 = vadd.f32 0.0, %v4524
        %v4526 = vpop.f32.mrb[0].mxu0
        %4527 = vdwg.mxu0
        %v4528 = vadd.f32 %v4450, %v4525
        %v4529 = vld [vmem:[%s4372 + $0x2] sm:$0x1]
        %s4530 = scalar_lea.vmem %s5, 352
        %v4531 = vld [vmem:[%s4530] sm:$0xff]
        %v4532 = vld [vmem:[%s4530 + $0x8] sm:$0xff]
        %v4534 = vsel %vm2812, %v4529, 0
        %4536 = vmatprep.subr.mxu0 0.0
        %4537 = vmatpush1.msra.mxu0 %v4531
        %4538 = vmatprep.subr.mxu0 0.0
        %4539 = vmatpush1.msra.mxu0 %v4532
        %4540 = vmatprep.subr.mxu0 0.0
        %4541 = vmatpush1.msra.mxu0 0.0
        %4542 = vmatprep.subr.mxu0 0.0
        %4543 = vmatpush1.msra.mxu0 0.0
        %4544 = vmatprep.subr.mxu0 0.0
        %4545 = vmatpush1.msra.mxu0 0.0
        %4546 = vmatprep.subr.mxu0 0.0
        %4547 = vmatpush1.msra.mxu0 0.0
        %4548 = vmatprep.subr.mxu0 0.0
        %4549 = vmatpush1.msra.mxu0 0.0
        %4550 = vmatprep.subr.mxu0 0.0
        %4551 = vmatpush1.msra.mxu0 0.0
        %4552 = vmatprep.subr.mxu0 0.0
        %4553 = vmatpush1.msra.mxu0 0.0
        %4554 = vmatprep.subr.mxu0 0.0
        %4555 = vmatpush1.msra.mxu0 0.0
        %4556 = vmatprep.subr.mxu0 0.0
        %4557 = vmatpush1.msra.mxu0 0.0
        %4558 = vmatprep.subr.mxu0 0.0
        %4559 = vmatpush1.msra.mxu0 0.0
        %4560 = vmatprep.subr.mxu0 0.0
        %4561 = vmatpush1.msra.mxu0 0.0
        %4562 = vmatprep.subr.mxu0 0.0
        %4563 = vmatpush1.msra.mxu0 0.0
        %4564 = vmatprep.subr.mxu0 0.0
        %4565 = vmatpush1.msra.mxu0 0.0
        %4566 = vmatprep.subr.mxu0 0.0
        %4567 = vmatpush1.msra.mxu0 0.0
        %4568 = vmatprep.subr.mxu0 0.0
        %4569 = vmatpush1.msra.mxu0 0.0
        %4570 = vmatprep.subr.mxu0 0.0
        %4571 = vmatpush1.msra.mxu0 0.0
        %4572 = vmatprep.subr.mxu0 0.0
        %4573 = vmatpush1.msra.mxu0 0.0
        %4574 = vmatprep.subr.mxu0 0.0
        %4575 = vmatpush1.msra.mxu0 0.0
        %4576 = vmatprep.subr.mxu0 0.0
        %4577 = vmatpush1.msra.mxu0 0.0
        %4578 = vmatprep.subr.mxu0 0.0
        %4579 = vmatpush1.msra.mxu0 0.0
        %4580 = vmatprep.subr.mxu0 0.0
        %4581 = vmatpush1.msra.mxu0 0.0
        %4582 = vmatprep.subr.mxu0 0.0
        %4583 = vmatpush1.msra.mxu0 0.0
        %4584 = vmatprep.subr.mxu0 0.0
        %4585 = vmatpush1.msra.mxu0 0.0
        %4586 = vmatprep.subr.mxu0 0.0
        %4587 = vmatpush1.msra.mxu0 0.0
        %4588 = vmatprep.subr.mxu0 0.0
        %4589 = vmatpush1.msra.mxu0 0.0
        %4590 = vmatprep.subr.mxu0 0.0
        %4591 = vmatpush1.msra.mxu0 0.0
        %4592 = vmatprep.subr.mxu0 0.0
        %4593 = vmatpush1.msra.mxu0 0.0
        %4594 = vmatprep.subr.mxu0 0.0
        %4595 = vmatpush1.msra.mxu0 0.0
        %4596 = vmatprep.subr.mxu0 0.0
        %4597 = vmatpush1.msra.mxu0 0.0
        %4598 = vmatprep.subr.mxu0 0.0
        %4599 = vmatpush1.msra.mxu0 0.0
        %4600 = vmatprep.mubr.f32.mxu0 0.0
        %4601 = vmatmul.mubr.f32.gmra.mrb[0].mxu0 %v4534
        %v4602 = vpop.f32.mrb[0].mxu0
        %v4603 = vadd.f32 0.0, %v4602
        %v4604 = vpop.f32.mrb[0].mxu0
        %4605 = vdwg.mxu0
        %v4606 = vadd.f32 %v4528, %v4603
        %v4607 = vld [vmem:[%s4372 + $0x3] sm:$0x1]
        %s4608 = scalar_lea.vmem %s5, 368
        %v4609 = vld [vmem:[%s4608] sm:$0xff]
        %v4610 = vld [vmem:[%s4608 + $0x8] sm:$0xff]
        %v4612 = vsel %vm2812, %v4607, 0
        %4614 = vmatprep.subr.mxu0 0.0
        %4615 = vmatpush1.msra.mxu0 %v4609
        %4616 = vmatprep.subr.mxu0 0.0
        %4617 = vmatpush1.msra.mxu0 %v4610
        %4618 = vmatprep.subr.mxu0 0.0
        %4619 = vmatpush1.msra.mxu0 0.0
        %4620 = vmatprep.subr.mxu0 0.0
        %4621 = vmatpush1.msra.mxu0 0.0
        %4622 = vmatprep.subr.mxu0 0.0
        %4623 = vmatpush1.msra.mxu0 0.0
        %4624 = vmatprep.subr.mxu0 0.0
        %4625 = vmatpush1.msra.mxu0 0.0
        %4626 = vmatprep.subr.mxu0 0.0
        %4627 = vmatpush1.msra.mxu0 0.0
        %4628 = vmatprep.subr.mxu0 0.0
        %4629 = vmatpush1.msra.mxu0 0.0
        %4630 = vmatprep.subr.mxu0 0.0
        %4631 = vmatpush1.msra.mxu0 0.0
        %4632 = vmatprep.subr.mxu0 0.0
        %4633 = vmatpush1.msra.mxu0 0.0
        %4634 = vmatprep.subr.mxu0 0.0
        %4635 = vmatpush1.msra.mxu0 0.0
        %4636 = vmatprep.subr.mxu0 0.0
        %4637 = vmatpush1.msra.mxu0 0.0
        %4638 = vmatprep.subr.mxu0 0.0
        %4639 = vmatpush1.msra.mxu0 0.0
        %4640 = vmatprep.subr.mxu0 0.0
        %4641 = vmatpush1.msra.mxu0 0.0
        %4642 = vmatprep.subr.mxu0 0.0
        %4643 = vmatpush1.msra.mxu0 0.0
        %4644 = vmatprep.subr.mxu0 0.0
        %4645 = vmatpush1.msra.mxu0 0.0
        %4646 = vmatprep.subr.mxu0 0.0
        %4647 = vmatpush1.msra.mxu0 0.0
        %4648 = vmatprep.subr.mxu0 0.0
        %4649 = vmatpush1.msra.mxu0 0.0
        %4650 = vmatprep.subr.mxu0 0.0
        %4651 = vmatpush1.msra.mxu0 0.0
        %4652 = vmatprep.subr.mxu0 0.0
        %4653 = vmatpush1.msra.mxu0 0.0
        %4654 = vmatprep.subr.mxu0 0.0
        %4655 = vmatpush1.msra.mxu0 0.0
        %4656 = vmatprep.subr.mxu0 0.0
        %4657 = vmatpush1.msra.mxu0 0.0
        %4658 = vmatprep.subr.mxu0 0.0
        %4659 = vmatpush1.msra.mxu0 0.0
        %4660 = vmatprep.subr.mxu0 0.0
        %4661 = vmatpush1.msra.mxu0 0.0
        %4662 = vmatprep.subr.mxu0 0.0
        %4663 = vmatpush1.msra.mxu0 0.0
        %4664 = vmatprep.subr.mxu0 0.0
        %4665 = vmatpush1.msra.mxu0 0.0
        %4666 = vmatprep.subr.mxu0 0.0
        %4667 = vmatpush1.msra.mxu0 0.0
        %4668 = vmatprep.subr.mxu0 0.0
        %4669 = vmatpush1.msra.mxu0 0.0
        %4670 = vmatprep.subr.mxu0 0.0
        %4671 = vmatpush1.msra.mxu0 0.0
        %4672 = vmatprep.subr.mxu0 0.0
        %4673 = vmatpush1.msra.mxu0 0.0
        %4674 = vmatprep.subr.mxu0 0.0
        %4675 = vmatpush1.msra.mxu0 0.0
        %4676 = vmatprep.subr.mxu0 0.0
        %4677 = vmatpush1.msra.mxu0 0.0
        %4678 = vmatprep.mubr.f32.mxu0 0.0
        %4679 = vmatmul.mubr.f32.gmra.mrb[0].mxu0 %v4612
        %v4680 = vpop.f32.mrb[0].mxu0
        %v4681 = vadd.f32 0.0, %v4680
        %v4682 = vpop.f32.mrb[0].mxu0
        %4683 = vdwg.mxu0
        %v4684 = vadd.f32 %v4606, %v4681
        %v4685 = vld [vmem:[%s4372 + $0x4] sm:$0x1]
        %s4686 = scalar_lea.vmem %s5, 384
        %v4687 = vld [vmem:[%s4686] sm:$0xff]
        %v4688 = vld [vmem:[%s4686 + $0x8] sm:$0xff]
        %v4690 = vsel %vm2812, %v4685, 0
        %4692 = vmatprep.subr.mxu0 0.0
        %4693 = vmatpush1.msra.mxu0 %v4687
        %4694 = vmatprep.subr.mxu0 0.0
        %4695 = vmatpush1.msra.mxu0 %v4688
        %4696 = vmatprep.subr.mxu0 0.0
        %4697 = vmatpush1.msra.mxu0 0.0
        %4698 = vmatprep.subr.mxu0 0.0
        %4699 = vmatpush1.msra.mxu0 0.0
        %4700 = vmatprep.subr.mxu0 0.0
        %4701 = vmatpush1.msra.mxu0 0.0
        %4702 = vmatprep.subr.mxu0 0.0
        %4703 = vmatpush1.msra.mxu0 0.0
        %4704 = vmatprep.subr.mxu0 0.0
        %4705 = vmatpush1.msra.mxu0 0.0
        %4706 = vmatprep.subr.mxu0 0.0
        %4707 = vmatpush1.msra.mxu0 0.0
        %4708 = vmatprep.subr.mxu0 0.0
        %4709 = vmatpush1.msra.mxu0 0.0
        %4710 = vmatprep.subr.mxu0 0.0
        %4711 = vmatpush1.msra.mxu0 0.0
        %4712 = vmatprep.subr.mxu0 0.0
        %4713 = vmatpush1.msra.mxu0 0.0
        %4714 = vmatprep.subr.mxu0 0.0
        %4715 = vmatpush1.msra.mxu0 0.0
        %4716 = vmatprep.subr.mxu0 0.0
        %4717 = vmatpush1.msra.mxu0 0.0
        %4718 = vmatprep.subr.mxu0 0.0
        %4719 = vmatpush1.msra.mxu0 0.0
        %4720 = vmatprep.subr.mxu0 0.0
        %4721 = vmatpush1.msra.mxu0 0.0
        %4722 = vmatprep.subr.mxu0 0.0
        %4723 = vmatpush1.msra.mxu0 0.0
        %4724 = vmatprep.subr.mxu0 0.0
        %4725 = vmatpush1.msra.mxu0 0.0
        %4726 = vmatprep.subr.mxu0 0.0
        %4727 = vmatpush1.msra.mxu0 0.0
        %4728 = vmatprep.subr.mxu0 0.0
        %4729 = vmatpush1.msra.mxu0 0.0
        %4730 = vmatprep.subr.mxu0 0.0
        %4731 = vmatpush1.msra.mxu0 0.0
        %4732 = vmatprep.subr.mxu0 0.0
        %4733 = vmatpush1.msra.mxu0 0.0
        %4734 = vmatprep.subr.mxu0 0.0
        %4735 = vmatpush1.msra.mxu0 0.0
        %4736 = vmatprep.subr.mxu0 0.0
        %4737 = vmatpush1.msra.mxu0 0.0
        %4738 = vmatprep.subr.mxu0 0.0
        %4739 = vmatpush1.msra.mxu0 0.0
        %4740 = vmatprep.subr.mxu0 0.0
        %4741 = vmatpush1.msra.mxu0 0.0
        %4742 = vmatprep.subr.mxu0 0.0
        %4743 = vmatpush1.msra.mxu0 0.0
        %4744 = vmatprep.subr.mxu0 0.0
        %4745 = vmatpush1.msra.mxu0 0.0
        %4746 = vmatprep.subr.mxu0 0.0
        %4747 = vmatpush1.msra.mxu0 0.0
        %4748 = vmatprep.subr.mxu0 0.0
        %4749 = vmatpush1.msra.mxu0 0.0
        %4750 = vmatprep.subr.mxu0 0.0
        %4751 = vmatpush1.msra.mxu0 0.0
        %4752 = vmatprep.subr.mxu0 0.0
        %4753 = vmatpush1.msra.mxu0 0.0
        %4754 = vmatprep.subr.mxu0 0.0
        %4755 = vmatpush1.msra.mxu0 0.0
        %4756 = vmatprep.mubr.f32.mxu0 0.0
        %4757 = vmatmul.mubr.f32.gmra.mrb[0].mxu0 %v4690
        %v4758 = vpop.f32.mrb[0].mxu0
        %v4759 = vadd.f32 0.0, %v4758
        %v4760 = vpop.f32.mrb[0].mxu0
        %4761 = vdwg.mxu0
        %v4762 = vadd.f32 %v4684, %v4759
        %v4763 = vmax.f32 %v4762, 0.0
        %v4764 = vld [vmem:[%s7] sm:$0xff]
        %v4765 = vld [vmem:[%s7 + $0x8] sm:$0xff]
        %v4766 = vld [vmem:[%s7 + $0x10] sm:$0xff]
        %v4767 = vld [vmem:[%s7 + $0x18] sm:$0xff]
        %v4768 = vld [vmem:[%s7 + $0x20] sm:$0xff]
        %v4769 = vld [vmem:[%s7 + $0x28] sm:$0xff]
        %v4770 = vld [vmem:[%s7 + $0x30] sm:$0xff]
        %v4771 = vld [vmem:[%s7 + $0x38] sm:$0xff]
        %v4772 = vld [vmem:[%s7 + $0x40] sm:$0xff]
        %v4773 = vld [vmem:[%s7 + $0x48] sm:$0xff]
        %v4774 = vld [vmem:[%s7 + $0x50] sm:$0xff]
        %v4775 = vld [vmem:[%s7 + $0x58] sm:$0xff]
        %v4776 = vld [vmem:[%s7 + $0x60] sm:$0xff]
        %v4777 = vld [vmem:[%s7 + $0x68] sm:$0xff]
        %v4778 = vld [vmem:[%s7 + $0x70] sm:$0xff]
        %v4779 = vld [vmem:[%s7 + $0x78] sm:$0xff]
        %v4780 = vld [vmem:[%s8] sm:$0x1]
        %4781 = vmatprep.subr.mxu0 0.0
        %4782 = vmatpush1.msra.mxu0 %v4764
        %4783 = vmatprep.subr.mxu0 0.0
        %4784 = vmatpush1.msra.mxu0 %v4765
        %4785 = vmatprep.subr.mxu0 0.0
        %4786 = vmatpush1.msra.mxu0 %v4766
        %4787 = vmatprep.subr.mxu0 0.0
        %4788 = vmatpush1.msra.mxu0 %v4767
        %4789 = vmatprep.subr.mxu0 0.0
        %4790 = vmatpush1.msra.mxu0 %v4768
        %4791 = vmatprep.subr.mxu0 0.0
        %4792 = vmatpush1.msra.mxu0 %v4769
        %4793 = vmatprep.subr.mxu0 0.0
        %4794 = vmatpush1.msra.mxu0 %v4770
        %4795 = vmatprep.subr.mxu0 0.0
        %4796 = vmatpush1.msra.mxu0 %v4771
        %4797 = vmatprep.subr.mxu0 0.0
        %4798 = vmatpush1.msra.mxu0 %v4772
        %4799 = vmatprep.subr.mxu0 0.0
        %4800 = vmatpush1.msra.mxu0 %v4773
        %4801 = vmatprep.subr.mxu0 0.0
        %4802 = vmatpush1.msra.mxu0 %v4774
        %4803 = vmatprep.subr.mxu0 0.0
        %4804 = vmatpush1.msra.mxu0 %v4775
        %4805 = vmatprep.subr.mxu0 0.0
        %4806 = vmatpush1.msra.mxu0 %v4776
        %4807 = vmatprep.subr.mxu0 0.0
        %4808 = vmatpush1.msra.mxu0 %v4777
        %4809 = vmatprep.subr.mxu0 0.0
        %4810 = vmatpush1.msra.mxu0 %v4778
        %4811 = vmatprep.subr.mxu0 0.0
        %4812 = vmatpush1.msra.mxu0 %v4779
        %4813 = vmatprep.subr.mxu0 0.0
        %4814 = vmatpush1.msra.mxu0 0.0
        %4815 = vmatprep.subr.mxu0 0.0
        %4816 = vmatpush1.msra.mxu0 0.0
        %4817 = vmatprep.subr.mxu0 0.0
        %4818 = vmatpush1.msra.mxu0 0.0
        %4819 = vmatprep.subr.mxu0 0.0
        %4820 = vmatpush1.msra.mxu0 0.0
        %4821 = vmatprep.subr.mxu0 0.0
        %4822 = vmatpush1.msra.mxu0 0.0
        %4823 = vmatprep.subr.mxu0 0.0
        %4824 = vmatpush1.msra.mxu0 0.0
        %4825 = vmatprep.subr.mxu0 0.0
        %4826 = vmatpush1.msra.mxu0 0.0
        %4827 = vmatprep.subr.mxu0 0.0
        %4828 = vmatpush1.msra.mxu0 0.0
        %4829 = vmatprep.subr.mxu0 0.0
        %4830 = vmatpush1.msra.mxu0 0.0
        %4831 = vmatprep.subr.mxu0 0.0
        %4832 = vmatpush1.msra.mxu0 0.0
        %4833 = vmatprep.subr.mxu0 0.0
        %4834 = vmatpush1.msra.mxu0 0.0
        %4835 = vmatprep.subr.mxu0 0.0
        %4836 = vmatpush1.msra.mxu0 0.0
        %4837 = vmatprep.subr.mxu0 0.0
        %4838 = vmatpush1.msra.mxu0 0.0
        %4839 = vmatprep.subr.mxu0 0.0
        %4840 = vmatpush1.msra.mxu0 0.0
        %4841 = vmatprep.subr.mxu0 0.0
        %4842 = vmatpush1.msra.mxu0 0.0
        %4843 = vmatprep.subr.mxu0 0.0
        %4844 = vmatpush1.msra.mxu0 0.0
        %4845 = vmatprep.mubr.f32.mxu0 0.0
        %4846 = vmatmul.mubr.f32.gmra.mrb[0].mxu0 %v4763
        %v4847 = vpop.f32.mrb[0].mxu0
        %v4848 = vadd.f32 %v4780, %v4847
        %v4849 = vpop.f32.mrb[0].mxu0
        %4850 = vdwg.mxu0
        %v4851 = vmax.f32 %v4848, 0.0
        %v4852 = vld [vmem:[%s9] sm:$0xff]
        %v4853 = vld [vmem:[%s9 + $0x8] sm:$0xff]
        %v4854 = vld [vmem:[%s9 + $0x10] sm:$0xff]
        %v4855 = vld [vmem:[%s9 + $0x18] sm:$0xff]
        %v4856 = vld [vmem:[%s9 + $0x20] sm:$0xff]
        %v4857 = vld [vmem:[%s9 + $0x28] sm:$0xff]
        %v4858 = vld [vmem:[%s9 + $0x30] sm:$0xff]
        %v4859 = vld [vmem:[%s9 + $0x38] sm:$0xff]
        %v4860 = vld [vmem:[%s9 + $0x40] sm:$0xff]
        %v4861 = vld [vmem:[%s9 + $0x48] sm:$0xff]
        %v4862 = vld [vmem:[%s9 + $0x50] sm:$0xff]
        %v4863 = vld [vmem:[%s9 + $0x58] sm:$0xff]
        %v4864 = vld [vmem:[%s9 + $0x60] sm:$0xff]
        %v4865 = vld [vmem:[%s9 + $0x68] sm:$0xff]
        %v4866 = vld [vmem:[%s9 + $0x70] sm:$0xff]
        %v4867 = vld [vmem:[%s9 + $0x78] sm:$0xff]
        %v4868 = vld [vmem:[%s10] sm:$0x1]
        %4869 = vmatprep.subr.mxu0 0.0
        %4870 = vmatpush1.msra.mxu0 %v4852
        %4871 = vmatprep.subr.mxu0 0.0
        %4872 = vmatpush1.msra.mxu0 %v4853
        %4873 = vmatprep.subr.mxu0 0.0
        %4874 = vmatpush1.msra.mxu0 %v4854
        %4875 = vmatprep.subr.mxu0 0.0
        %4876 = vmatpush1.msra.mxu0 %v4855
        %4877 = vmatprep.subr.mxu0 0.0
        %4878 = vmatpush1.msra.mxu0 %v4856
        %4879 = vmatprep.subr.mxu0 0.0
        %4880 = vmatpush1.msra.mxu0 %v4857
        %4881 = vmatprep.subr.mxu0 0.0
        %4882 = vmatpush1.msra.mxu0 %v4858
        %4883 = vmatprep.subr.mxu0 0.0
        %4884 = vmatpush1.msra.mxu0 %v4859
        %4885 = vmatprep.subr.mxu0 0.0
        %4886 = vmatpush1.msra.mxu0 %v4860
        %4887 = vmatprep.subr.mxu0 0.0
        %4888 = vmatpush1.msra.mxu0 %v4861
        %4889 = vmatprep.subr.mxu0 0.0
        %4890 = vmatpush1.msra.mxu0 %v4862
        %4891 = vmatprep.subr.mxu0 0.0
        %4892 = vmatpush1.msra.mxu0 %v4863
        %4893 = vmatprep.subr.mxu0 0.0
        %4894 = vmatpush1.msra.mxu0 %v4864
        %4895 = vmatprep.subr.mxu0 0.0
        %4896 = vmatpush1.msra.mxu0 %v4865
        %4897 = vmatprep.subr.mxu0 0.0
        %4898 = vmatpush1.msra.mxu0 %v4866
        %4899 = vmatprep.subr.mxu0 0.0
        %4900 = vmatpush1.msra.mxu0 %v4867
        %4901 = vmatprep.subr.mxu0 0.0
        %4902 = vmatpush1.msra.mxu0 0.0
        %4903 = vmatprep.subr.mxu0 0.0
        %4904 = vmatpush1.msra.mxu0 0.0
        %4905 = vmatprep.subr.mxu0 0.0
        %4906 = vmatpush1.msra.mxu0 0.0
        %4907 = vmatprep.subr.mxu0 0.0
        %4908 = vmatpush1.msra.mxu0 0.0
        %4909 = vmatprep.subr.mxu0 0.0
        %4910 = vmatpush1.msra.mxu0 0.0
        %4911 = vmatprep.subr.mxu0 0.0
        %4912 = vmatpush1.msra.mxu0 0.0
        %4913 = vmatprep.subr.mxu0 0.0
        %4914 = vmatpush1.msra.mxu0 0.0
        %4915 = vmatprep.subr.mxu0 0.0
        %4916 = vmatpush1.msra.mxu0 0.0
        %4917 = vmatprep.subr.mxu0 0.0
        %4918 = vmatpush1.msra.mxu0 0.0
        %4919 = vmatprep.subr.mxu0 0.0
        %4920 = vmatpush1.msra.mxu0 0.0
        %4921 = vmatprep.subr.mxu0 0.0
        %4922 = vmatpush1.msra.mxu0 0.0
        %4923 = vmatprep.subr.mxu0 0.0
        %4924 = vmatpush1.msra.mxu0 0.0
        %4925 = vmatprep.subr.mxu0 0.0
        %4926 = vmatpush1.msra.mxu0 0.0
        %4927 = vmatprep.subr.mxu0 0.0
        %4928 = vmatpush1.msra.mxu0 0.0
        %4929 = vmatprep.subr.mxu0 0.0
        %4930 = vmatpush1.msra.mxu0 0.0
        %4931 = vmatprep.subr.mxu0 0.0
        %4932 = vmatpush1.msra.mxu0 0.0
        %4933 = vmatprep.mubr.f32.mxu0 0.0
        %4934 = vmatmul.mubr.f32.gmra.mrb[0].mxu0 %v4851
        %v4935 = vpop.f32.mrb[0].mxu0
        %v4936 = vadd.f32 %v4868, %v4935
        %v4937 = vpop.f32.mrb[0].mxu0
        %4938 = vdwg.mxu0
        %4939 = vst [vmem:[%s378] sm:$0x1] %v4936
        %s4940 = sand.u32 %s269, 1
        %s4941 = scalar_lea.sflag [#allocation9], %s4940
        %s4942 = sand.u32 %s269, 1
        %s4943 = scalar_lea.vmem [#allocation8], %s4942
        // Predicated region
        $region79: #{lenet_cifar100_forward.1} parent=63 // pred_check
          %p4944 = pneg %p279
        $region80: #{lenet_cifar100_forward.1} parent=63 // pred_check_branch
          %4946 = sbr.rel (%p4944) target = $region82
        $region81: #{lenet_cifar100_forward.1} parent=63 // pred_region
          %s4948 = ssub.s32 16, 16
          %4949 = vsyncadd %s4941, %s4948
          %s4950 = smul.addr %s25, 16
          %s4951 = scalar_lea.hbm %s11, %s4950
          %s4953 = sshll.u32 %s4943, 4
          %s4954 = int_to_ptr.vmem [resolvable:$true] %s4953
          %4956 = dma.vmem_to_hbm [thread:$0]  %s4954, 16, %s4951, %s4941
        $region82: #{lenet_cifar100_forward.1} parent=63 // pred_fallthru
          _
      $region64: #{lenet_cifar100_forward.1} parent=5 // pred_fallthru
        _
      %p4957 = scmp.le.s32.totalorder 2, %s20
      // Predicated region
      $region83: #{lenet_cifar100_forward.1} parent=5 // pred_check
        %p4958 = pneg %p4957
      $region84: #{lenet_cifar100_forward.1} parent=5 // pred_check_branch
        %4960 = sbr.rel (%p4958) target = $region86
      $region85: #{lenet_cifar100_forward.1} parent=5 // pred_region
        %s4961 = ssub.s32 %s20, 2
        // Predicated region
        $region87: #{lenet_cifar100_forward.1} parent=85 // pred_check
          %p4962 = pneg %p285
        $region88: #{lenet_cifar100_forward.1} parent=85 // pred_check_branch
          %4964 = sbr.rel (%p4962) target = $region90
        $region89: #{lenet_cifar100_forward.1} parent=85 // pred_region
          %s4965 = sand.u32 %s270, 1
          %s4966 = scalar_lea.sflag [#allocation9], %s4965
          %s4967 = sand.u32 %s270, 1
          %s4968 = scalar_lea.vmem [#allocation8], %s4967
          %4969 = dma.done %s4966, 16
        $region90: #{lenet_cifar100_forward.1} parent=85 // pred_fallthru
          _
      $region86: #{lenet_cifar100_forward.1} parent=5 // pred_fallthru
        _
    $region6: #{lenet_cifar100_forward.1} parent=1 // loop_footer
      %s24 = sadd.s32 1, %s20
    $region7: #{lenet_cifar100_forward.1} parent=1 // loop_footer_branch
      %19 = sbr.rel target = $region3
    $region8: #{lenet_cifar100_forward.1} parent=1 // loop_exit
      _
    %4970 = vsyncpa [#allocation9], 1
    %s4971 = scalar_lea.sflag [#allocation9], 1
    %4972 = vsyncpa %s4971, 1

</llo_original>
